<compile_context>
chip_gen: v7x
topology: tpu7x:2x2x1
jax: 0.10.0
libtpu: 0.0.40
codegen_flags: <defaults>
</compile_context>

<pallas_src>
import functools

import jax
import jax.numpy as jnp
from jax.experimental import pallas as pl
from jax.experimental.pallas import tpu as pltpu

# ---- small, self-consistent hyperparameters ----
# NOTE: dim_embed must equal dim_model because the embedding weight is tied to
# the classifier weight in the PyTorch module.
VOCAB = 64
DIM_EMBED = 32
DIM_MODEL = 32
DIM_FF = 64
NUM_LAYERS = 2
PAD_ID = 0

VMEM = pltpu.MemorySpace.VMEM
BF16 = jnp.bfloat16
F32 = jnp.float32


# --------------------------- in-kernel helpers ---------------------------
def _bdot(a, b):
    """bf16 MXU matmul with f32 accumulation (elementwise math stays f32)."""
    return jnp.dot(a.astype(BF16), b.astype(BF16), preferred_element_type=F32)


def _gru_update(gi, gh, h, hdim):
    """PyTorch GRU cell update from fused [r|z|n] gate pre-activations.

    gi, gh: (B, 3H) f32; h: (B, H) f32.
    """
    r = jax.nn.sigmoid(gi[:, :hdim] + gh[:, :hdim])
    z = jax.nn.sigmoid(gi[:, hdim:2 * hdim] + gh[:, hdim:2 * hdim])
    n = jnp.tanh(gi[:, 2 * hdim:] + r * gh[:, 2 * hdim:])
    return (1.0 - z) * n + z * h


# --------------------------- Pallas kernels ---------------------------
def _enc_gru_layer_kernel(xs_ref, wih_ref, whh_ref, bih_ref, bhh_ref,
                          out_ref, hfin_ref, *, hdim, seq_len):
    # One grid step per direction (0 = forward order, 1 = pre-reversed input).
    # Weights are loaded/cast once and stay resident in VMEM; the time loop runs
    # inside the kernel with the hidden state as a fori_loop carry.
    wih = wih_ref[...].astype(BF16)        # (Din, 3H)
    whh = whh_ref[...].astype(BF16)        # (H, 3H)
    bih = bih_ref[...]                     # (1, 3H)
    bhh = bhh_ref[...]
    bsz = xs_ref.shape[1]
    h0 = jnp.zeros((bsz, hdim), F32)

    def step(t, h):
        x_t = xs_ref[t]                    # (B, Din)
        gi = _bdot(x_t, wih) + bih         # fused 3-gate matmul
        gh = _bdot(h, whh) + bhh
        h_new = _gru_update(gi, gh, h, hdim)
        out_ref[t] = h_new
        return h_new

    h_last = jax.lax.fori_loop(0, seq_len, step, h0, unroll=True)
    hfin_ref[...] = h_last


def _mlp_kernel(x_ref, w1_ref, b1_ref, w2_ref, b2_ref, o_ref):
    # Linear -> ReLU -> Linear (hidden_map).  Dropout is identity (eval).
    h = _bdot(x_ref[...], w1_ref[...]) + b1_ref[...]
    h = jnp.maximum(h, 0.0)
    o_ref[...] = _bdot(h, w2_ref[...]) + b2_ref[...]


def _mlp_energy_kernel(x_ref, w1_ref, b1_ref, w2_ref, b2_ref, we_ref,
                       o_ref, e_ref):
    # output_map (Linear -> ReLU -> Linear) fused with the attention
    # encoder-side energy projection (context @ W2), which does not depend on
    # the decode step, so it is hoisted out of the decoder time loop.
    h = _bdot(x_ref[...], w1_ref[...]) + b1_ref[...]
    h = jnp.maximum(h, 0.0)
    ctx = _bdot(h, w2_ref[...]) + b2_ref[...]
    o_ref[...] = ctx
    e_ref[...] = _bdot(ctx, we_ref[...])


def _decoder_kernel(emb_ref, ctx_ref, ec_ref, hinit_ref,
                    wih0e_ref, wih0a_ref, whh0_ref, bih0_ref, bhh0_ref,
                    wih1_ref, whh1_ref, bih1_ref, bhh1_ref,
                    aw1_ref, abe_ref, awa_ref,
                    out_ref, *, hdim, n_steps):
    # Entire T-step decode (attention + 2-layer GRU) in one resident kernel.
    ctx = ctx_ref[...]                     # (S, B, H) encoder output (time-major)
    ec = ec_ref[...]                       # (S, B, H) precomputed ctx @ att_W2
    wih0e = wih0e_ref[...].astype(BF16)    # (E, 3H)  acts on the token embedding
    wih0a = wih0a_ref[...].astype(BF16)    # (H, 3H)  acts on the attention vector
    whh0 = whh0_ref[...].astype(BF16)
    wih1 = wih1_ref[...].astype(BF16)
    whh1 = whh1_ref[...].astype(BF16)
    bih0 = bih0_ref[...]
    bhh0 = bhh0_ref[...]
    bih1 = bih1_ref[...]
    bhh1 = bhh1_ref[...]
    aw1 = aw1_ref[...].astype(BF16)        # (H, H)
    abe = abe_ref[...]                     # (1, H)
    awa = awa_ref[...]                     # (1, 1, H) alpha row, stays on VPU
    h_init = hinit_ref[...]                # (B, H)

    def step(t, carry):
        h_l0, h_l1 = carry
        # ---- attention: softmax_s(alpha(fc_energy([h; ctx_s]))) ----
        e_h = _bdot(h_l1, aw1) + abe                        # (B, H)
        energy = ec + e_h[None]                             # (S, B, H)
        scores = jnp.sum(energy * awa, axis=-1, keepdims=True)   # (S, B, 1)
        m = jnp.max(scores, axis=0, keepdims=True)
        w = jnp.exp(scores - m)
        alphas = w / jnp.sum(w, axis=0, keepdims=True)      # softmax over S
        attn = jnp.sum(alphas * ctx, axis=0)                # (B, H)
        # ---- 2-layer GRU (layer-0 weight split avoids an in-kernel concat) ----
        emb_t = emb_ref[t]                                  # (B, E)
        gi0 = _bdot(emb_t, wih0e) + _bdot(attn, wih0a) + bih0
        gh0 = _bdot(h_l0, whh0) + bhh0
        h_l0n = _gru_update(gi0, gh0, h_l0, hdim)
        # TODO(synk): inter-layer GRU dropout is identity (eval mode).
        gi1 = _bdot(h_l0n, wih1) + bih1
        gh1 = _bdot(h_l1, whh1) + bhh1
        h_l1n = _gru_update(gi1, gh1, h_l1, hdim)
        out_ref[t] = h_l1n
        return (h_l0n, h_l1n)

    jax.lax.fori_loop(0, n_steps, step, (h_init, h_init), unroll=True)


def _linear_kernel(x_ref, wt_ref, b_ref, o_ref):
    o_ref[...] = _bdot(x_ref[...], wt_ref[...]) + b_ref[...]


def _ce_kernel(logits_ref, tgt_ref, o_ref, *, pad_id):
    logits = logits_ref[...]                              # (N, V)
    tgt = tgt_ref[...]                                    # (N, 1) int32
    m = jnp.max(logits, axis=-1, keepdims=True)
    lse = jnp.log(jnp.sum(jnp.exp(logits - m), axis=-1, keepdims=True)) + m
    cols = jax.lax.broadcasted_iota(jnp.int32, logits.shape, 1)
    tgt_logit = jnp.sum(jnp.where(cols == tgt, logits, 0.0), axis=-1, keepdims=True)
    valid = (tgt != pad_id).astype(F32)
    loss_sum = jnp.sum(valid * (lse - tgt_logit))
    count = jnp.sum(valid)
    # Guard the all-padding slice (avoid 0/0 NaN); scalar -> (1,1) masked store
    # is negligible at this size.
    loss = jnp.where(count > 0.0, loss_sum / jnp.maximum(count, 1.0), 0.0)
    o_ref[...] = jnp.reshape(loss, (1, 1))


# --------------------------- pallas_call wrappers ---------------------------
def encoder_gru_layer(x_tm, p):
    # x_tm: (S, B, Din) time-major.  fwd / rev directions run as grid=(2,)
    # ("parallel" -> megacore-shardable on v7x); the reverse direction consumes
    # a pre-reversed copy so the in-kernel loop is identical for both.
    s, b, din = x_tm.shape
    h = DIM_MODEL
    xs_both = jnp.stack([x_tm, x_tm[::-1]], axis=0)        # (2, S, B, Din)
    out, hfin = pl.pallas_call(
        functools.partial(_enc_gru_layer_kernel, hdim=h, seq_len=s),
        grid=(2,),
        out_shape=(jax.ShapeDtypeStruct((2, s, b, h), F32),
                   jax.ShapeDtypeStruct((2, b, h), F32)),
        in_specs=[
            pl.BlockSpec((None, s, b, din), lambda d: (d, 0, 0, 0)),
            pl.BlockSpec((None, din, 3 * h), lambda d: (d, 0, 0)),
            pl.BlockSpec((None, h, 3 * h), lambda d: (d, 0, 0)),
            pl.BlockSpec((None, 1, 3 * h), lambda d: (d, 0, 0)),
            pl.BlockSpec((None, 1, 3 * h), lambda d: (d, 0, 0)),
        ],
        out_specs=(
            pl.BlockSpec((None, s, b, h), lambda d: (d, 0, 0, 0)),
            pl.BlockSpec((None, b, h), lambda d: (d, 0, 0)),
        ),
        compiler_params=pltpu.CompilerParams(
            dimension_semantics=("parallel",)),
    )(xs_both, p["wih"], p["whh"], p["bih"], p["bhh"])
    out_f = out[0]                       # (S, B, H)
    out_r = out[1][::-1]                 # realign reverse outputs to time order
    return jnp.concatenate([out_f, out_r], axis=-1), hfin


def mlp(x, w1, b1, w2, b2):
    m = x.shape[0]
    n = w2.shape[1]
    return pl.pallas_call(
        _mlp_kernel,
        out_shape=jax.ShapeDtypeStruct((m, n), F32),
        in_specs=[pl.BlockSpec(memory_space=VMEM)] * 5,
        out_specs=pl.BlockSpec(memory_space=VMEM),
    )(x, w1, b1, w2, b2)


def output_map_with_energy(x, params):
    m = x.shape[0]
    h = DIM_MODEL
    return pl.pallas_call(
        _mlp_energy_kernel,
        out_shape=(jax.ShapeDtypeStruct((m, h), F32),
                   jax.ShapeDtypeStruct((m, h), F32)),
        in_specs=[pl.BlockSpec(memory_space=VMEM)] * 6,
        out_specs=(pl.BlockSpec(memory_space=VMEM),
                   pl.BlockSpec(memory_space=VMEM)),
    )(x, params["om_w1t"], params["om_b1"], params["om_w2t"], params["om_b2"],
      params["att_w2t"])


def linear(x, wt, b):
    m = x.shape[0]
    n = wt.shape[1]
    return pl.pallas_call(
        _linear_kernel,
        out_shape=jax.ShapeDtypeStruct((m, n), F32),
        in_specs=[pl.BlockSpec(memory_space=VMEM)] * 3,
        out_specs=pl.BlockSpec(memory_space=VMEM),
    )(x, wt, b)


def cross_entropy(flat_logits, flat_targets, pad_id):
    return pl.pallas_call(
        functools.partial(_ce_kernel, pad_id=pad_id),
        out_shape=jax.ShapeDtypeStruct((1, 1), F32),
        in_specs=[pl.BlockSpec(memory_space=VMEM)] * 2,
        out_specs=pl.BlockSpec(memory_space=VMEM),
    )(flat_logits, flat_targets)[0, 0]


# --------------------------- model glue (plain JAX) ---------------------------
def encoder_forward(src_tokens, params):
    emb = params["cls_w"][src_tokens]                 # tied embedding (B, S, E)
    # TODO(synk): encoder embedding dropout treated as identity (eval mode).
    x = jnp.transpose(emb, (1, 0, 2))                 # time-major (S, B, E)
    hfin = None
    for l in range(NUM_LAYERS):
        x, hfin = encoder_gru_layer(x, params["enc_gru"][l])
    context_tm = x                                    # (S, B, 2H)
    last_hidden = jnp.concatenate([hfin[0], hfin[1]], axis=-1)   # (B, 2H)
    to_dec_hidden = mlp(last_hidden, params["hm_w1t"], params["hm_b1"],
                        params["hm_w2t"], params["hm_b2"])       # (B, H)
    s, b, _ = context_tm.shape
    ctx_flat, ec_flat = output_map_with_energy(
        context_tm.reshape(s * b, 2 * DIM_MODEL), params)
    ctx = ctx_flat.reshape(s, b, DIM_MODEL)           # (S, B, H)
    ec = ec_flat.reshape(s, b, DIM_MODEL)             # (S, B, H)
    return ctx, ec, to_dec_hidden


def decoder_forward(target, ctx, ec, dec_h0, params):
    b, t_len = target.shape
    emb = params["cls_w"][target]                     # (B, T, E)
    emb_tm = jnp.transpose(emb, (1, 0, 2))            # (T, B, E)
    return pl.pallas_call(
        functools.partial(_decoder_kernel, hdim=DIM_MODEL, n_steps=t_len),
        out_shape=jax.ShapeDtypeStruct((t_len, b, DIM_MODEL), F32),
        in_specs=[pl.BlockSpec(memory_space=VMEM)] * 16,
        out_specs=pl.BlockSpec(memory_space=VMEM),
    )(emb_tm, ctx, ec, dec_h0,
      params["dec_wih0e"], params["dec_wih0a"], params["dec_whh0"],
      params["dec_bih0"], params["dec_bhh0"],
      params["dec_wih1"], params["dec_whh1"],
      params["dec_bih1"], params["dec_bhh1"],
      params["att_w1t"], params["att_be"], params["att_wa"])


def seq2seq_forward(source, target, pad_id, params):
    ctx, ec, dec_h0 = encoder_forward(source, params)
    dec_out = decoder_forward(target, ctx, ec, dec_h0, params)   # (T, B, H)
    t_len, b, _ = dec_out.shape
    flat_logits = linear(dec_out.reshape(t_len * b, DIM_MODEL),
                         params["cls_wt"], params["cls_b"])      # (T*B, V)
    logits_tbv = flat_logits.reshape(t_len, b, VOCAB)
    total_logits = jnp.transpose(logits_tbv, (1, 0, 2))          # (B, T, V)
    loss = None
    if t_len > 1:
        loss_logits = logits_tbv[:-1].reshape((t_len - 1) * b, VOCAB)
        loss_tgt = jnp.transpose(target[:, 1:], (1, 0)).reshape(
            (t_len - 1) * b, 1).astype(jnp.int32)
        loss = cross_entropy(loss_logits, loss_tgt, pad_id)
    return total_logits, loss


# --------------------------- deterministic parameter init ---------------------------
def init_params(key):
    keys = [key]

    def nxt():
        keys[0], sub = jax.random.split(keys[0])
        return sub

    def u(shape, scale=0.1):
        return jax.random.uniform(nxt(), shape, F32, -scale, scale)

    H, E, F, V, L = DIM_MODEL, DIM_EMBED, DIM_FF, VOCAB, NUM_LAYERS
    p = {}
    # classifier weight (V, H); tied to encoder/decoder embedding tables.
    p["cls_w"] = u((V, H))
    p["cls_wt"] = jnp.transpose(p["cls_w"])     # (H, V) for x @ W^T
    p["cls_b"] = u((1, V))

    # encoder bidirectional GRU: fwd/rev weights stacked along dim 0, gates
    # fused along the output axis in [r|z|n] order.
    p["enc_gru"] = []
    for l in range(L):
        din = E if l == 0 else 2 * H
        p["enc_gru"].append({
            "wih": u((2, din, 3 * H)),
            "whh": u((2, H, 3 * H)),
            "bih": u((2, 1, 3 * H)),
            "bhh": u((2, 1, 3 * H)),
        })

    # decoder GRU: layer-0 input is cat(embedding, attention); the input weight
    # is stored split so the kernel does two dots instead of an in-kernel concat.
    p["dec_wih0e"] = u((E, 3 * H))
    p["dec_wih0a"] = u((H, 3 * H))
    p["dec_whh0"] = u((H, 3 * H))
    p["dec_bih0"] = u((1, 3 * H))
    p["dec_bhh0"] = u((1, 3 * H))
    p["dec_wih1"] = u((H, 3 * H))
    p["dec_whh1"] = u((H, 3 * H))
    p["dec_bih1"] = u((1, 3 * H))
    p["dec_bhh1"] = u((1, 3 * H))

    # encoder hidden_map / output_map: Linear(2H, F) -> ReLU -> Linear(F, H)
    p["hm_w1t"] = u((2 * H, F)); p["hm_b1"] = u((1, F))
    p["hm_w2t"] = u((F, H));     p["hm_b2"] = u((1, H))
    p["om_w1t"] = u((2 * H, F)); p["om_b1"] = u((1, F))
    p["om_w2t"] = u((F, H));     p["om_b2"] = u((1, H))

    # attention: fc_energy Linear(2H, H) split into the decoder-hidden part
    # (w1t) and the encoder-output part (w2t); alpha Linear(H, 1, bias=False)
    # stored as a (1,1,H) row for a VPU multiply + lane reduce.
    p["att_w1t"] = u((H, H))
    p["att_w2t"] = u((H, H))
    p["att_be"] = u((1, H))
    p["att_wa"] = u((1, 1, H))
    return p


if __name__ == "__main__":
    key = jax.random.PRNGKey(0)
    pkey, skey, tkey = jax.random.split(key, 3)
    params = init_params(pkey)

    B, S, T = 2, 8, 6
    source = jax.random.randint(skey, (B, S), 0, VOCAB, dtype=jnp.int32)
    target = jax.random.randint(tkey, (B, T), 0, VOCAB, dtype=jnp.int32)

    fwd = jax.jit(functools.partial(seq2seq_forward, pad_id=PAD_ID, params=params))
    total_logits, loss = fwd(source, target)
    jax.block_until_ready((total_logits, loss))

    assert total_logits.shape == (B, T, VOCAB)
    assert total_logits.dtype == jnp.float32
    assert loss.shape == ()
    print("KERNEL_OK")
</pallas_src>

<mosaic_0001>
module attributes {stable_mosaic.version = 11 : i64} {
  func.func @_enc_gru_layer_kernel(%arg0: i32, %arg1: memref<1x8x2x32xf32, #tpu.memory_space<vmem>>, %arg2: memref<1x32x96xf32, #tpu.memory_space<vmem>>, %arg3: memref<1x32x96xf32, #tpu.memory_space<vmem>>, %arg4: memref<1x1x96xf32, #tpu.memory_space<vmem>>, %arg5: memref<1x1x96xf32, #tpu.memory_space<vmem>>, %arg6: memref<1x8x2x32xf32, #tpu.memory_space<vmem>>, %arg7: memref<1x2x32xf32, #tpu.memory_space<vmem>>) attributes {dimension_semantics = [#tpu.dimension_semantics<parallel>], iteration_bounds = array<i64: 2>, scalar_prefetch = 0 : i64, scratch_operands = 0 : i64, tpu.core_type = #tpu.core_type<tc>, window_params = [{transform_indices = @transform_0, window_bounds = array<i64: 1, 8, 2, 32>}, {transform_indices = @transform_1, window_bounds = array<i64: 1, 32, 96>}, {transform_indices = @transform_2, window_bounds = array<i64: 1, 32, 96>}, {transform_indices = @transform_3, window_bounds = array<i64: 1, 1, 96>}, {transform_indices = @transform_4, window_bounds = array<i64: 1, 1, 96>}, {transform_indices = @transform_5, window_bounds = array<i64: 1, 8, 2, 32>}, {transform_indices = @transform_6, window_bounds = array<i64: 1, 2, 32>}]} {
    %c0 = arith.constant 0 : index
    %c0_0 = arith.constant 0 : index
    %c0_1 = arith.constant 0 : index
    %0 = vector.load %arg2[%c0, %c0_0, %c0_1] : memref<1x32x96xf32, #tpu.memory_space<vmem>>, vector<1x32x96xf32>
    %1 = vector.shape_cast %0 : vector<1x32x96xf32> to vector<32x96xf32>
    %2 = arith.truncf %1 : vector<32x96xf32> to vector<32x96xbf16>
    %c0_2 = arith.constant 0 : index
    %c0_3 = arith.constant 0 : index
    %c0_4 = arith.constant 0 : index
    %3 = vector.load %arg3[%c0_2, %c0_3, %c0_4] : memref<1x32x96xf32, #tpu.memory_space<vmem>>, vector<1x32x96xf32>
    %4 = vector.shape_cast %3 : vector<1x32x96xf32> to vector<32x96xf32>
    %5 = arith.truncf %4 : vector<32x96xf32> to vector<32x96xbf16>
    %c0_5 = arith.constant 0 : index
    %c0_6 = arith.constant 0 : index
    %c0_7 = arith.constant 0 : index
    %6 = vector.load %arg4[%c0_5, %c0_6, %c0_7] : memref<1x1x96xf32, #tpu.memory_space<vmem>>, vector<1x1x96xf32>
    %7 = vector.shape_cast %6 : vector<1x1x96xf32> to vector<1x96xf32>
    %c0_8 = arith.constant 0 : index
    %c0_9 = arith.constant 0 : index
    %c0_10 = arith.constant 0 : index
    %8 = vector.load %arg5[%c0_8, %c0_9, %c0_10] : memref<1x1x96xf32, #tpu.memory_space<vmem>>, vector<1x1x96xf32>
    %9 = vector.shape_cast %8 : vector<1x1x96xf32> to vector<1x96xf32>
    %cst = arith.constant 0.000000e+00 : f32
    %10 = vector.broadcast %cst : f32 to vector<2x32xf32>
    %c0_i32 = arith.constant 0 : i32
    %c0_11 = arith.constant 0 : index
    %11 = arith.index_cast %c0_i32 : i32 to index
    %c0_12 = arith.constant 0 : index
    %c0_13 = arith.constant 0 : index
    %12 = vector.load %arg1[%c0_11, %11, %c0_12, %c0_13] : memref<1x8x2x32xf32, #tpu.memory_space<vmem>>, vector<1x1x2x32xf32>
    %13 = vector.shape_cast %12 : vector<1x1x2x32xf32> to vector<2x32xf32>
    %14 = arith.truncf %13 : vector<2x32xf32> to vector<2x32xbf16>
    %cst_14 = arith.constant dense<0.000000e+00> : vector<2x96xf32>
    %15 = tpu.matmul %14, %2, %cst_14 {dimension_numbers = #tpu.dot_dimension_numbers<[1], [0], [0], [1], [0, 0, 1, 1], [], []>} : vector<2x32xbf16>, vector<32x96xbf16>, vector<2x96xf32> -> vector<2x96xf32>
    %16 = vector.broadcast %7 : vector<1x96xf32> to vector<2x96xf32>
    %17 = arith.addf %15, %16 : vector<2x96xf32>
    %18 = arith.truncf %10 : vector<2x32xf32> to vector<2x32xbf16>
    %cst_15 = arith.constant dense<0.000000e+00> : vector<2x96xf32>
    %19 = tpu.matmul %18, %5, %cst_15 {dimension_numbers = #tpu.dot_dimension_numbers<[1], [0], [0], [1], [0, 0, 1, 1], [], []>} : vector<2x32xbf16>, vector<32x96xbf16>, vector<2x96xf32> -> vector<2x96xf32>
    %20 = vector.broadcast %9 : vector<1x96xf32> to vector<2x96xf32>
    %21 = arith.addf %19, %20 : vector<2x96xf32>
    %22 = vector.extract_strided_slice %17 {offsets = [0, 0], sizes = [2, 32], strides = [1, 1]} : vector<2x96xf32> to vector<2x32xf32>
    %23 = vector.extract_strided_slice %21 {offsets = [0, 0], sizes = [2, 32], strides = [1, 1]} : vector<2x96xf32> to vector<2x32xf32>
    %24 = arith.addf %22, %23 : vector<2x32xf32>
    %25 = arith.negf %24 : vector<2x32xf32>
    %26 = math.exp %25 : vector<2x32xf32>
    %cst_16 = arith.constant 1.000000e+00 : f32
    %27 = vector.broadcast %cst_16 : f32 to vector<2x32xf32>
    %28 = arith.addf %27, %26 : vector<2x32xf32>
    %29 = arith.divf %27, %28 : vector<2x32xf32>
    %30 = vector.extract_strided_slice %17 {offsets = [0, 32], sizes = [2, 32], strides = [1, 1]} : vector<2x96xf32> to vector<2x32xf32>
    %31 = vector.extract_strided_slice %21 {offsets = [0, 32], sizes = [2, 32], strides = [1, 1]} : vector<2x96xf32> to vector<2x32xf32>
    %32 = arith.addf %30, %31 : vector<2x32xf32>
    %33 = arith.negf %32 : vector<2x32xf32>
    %34 = math.exp %33 : vector<2x32xf32>
    %cst_17 = arith.constant 1.000000e+00 : f32
    %35 = vector.broadcast %cst_17 : f32 to vector<2x32xf32>
    %36 = arith.addf %35, %34 : vector<2x32xf32>
    %37 = arith.divf %35, %36 : vector<2x32xf32>
    %38 = vector.extract_strided_slice %17 {offsets = [0, 64], sizes = [2, 32], strides = [1, 1]} : vector<2x96xf32> to vector<2x32xf32>
    %39 = vector.extract_strided_slice %21 {offsets = [0, 64], sizes = [2, 32], strides = [1, 1]} : vector<2x96xf32> to vector<2x32xf32>
    %40 = arith.mulf %29, %39 : vector<2x32xf32>
    %41 = arith.addf %38, %40 : vector<2x32xf32>
    %42 = math.tanh %41 : vector<2x32xf32>
    %cst_18 = arith.constant 1.000000e+00 : f32
    %43 = vector.broadcast %cst_18 : f32 to vector<2x32xf32>
    %44 = arith.subf %43, %37 : vector<2x32xf32>
    %45 = arith.mulf %44, %42 : vector<2x32xf32>
    %46 = arith.mulf %37, %10 : vector<2x32xf32>
    %47 = arith.addf %45, %46 : vector<2x32xf32>
    %c0_19 = arith.constant 0 : index
    %48 = arith.index_cast %c0_i32 : i32 to index
    %c0_20 = arith.constant 0 : index
    %c0_21 = arith.constant 0 : index
    %49 = vector.load %arg6[%c0_19, %48, %c0_20, %c0_21] : memref<1x8x2x32xf32, #tpu.memory_space<vmem>>, vector<1x1x2x32xf32>
    %50 = vector.shape_cast %49 : vector<1x1x2x32xf32> to vector<2x32xf32>
    %51 = vector.shape_cast %47 : vector<2x32xf32> to vector<1x1x2x32xf32>
    tpu.vector_store %arg6[%c0_19, %48, %c0_20, %c0_21], %51 {strides = array<i32>} : memref<1x8x2x32xf32, #tpu.memory_space<vmem>>, vector<1x1x2x32xf32>,
    %c1_i32 = arith.constant 1 : i32
    %c0_22 = arith.constant 0 : index
    %52 = arith.index_cast %c1_i32 : i32 to index
    %c0_23 = arith.constant 0 : index
    %c0_24 = arith.constant 0 : index
    %53 = vector.load %arg1[%c0_22, %52, %c0_23, %c0_24] : memref<1x8x2x32xf32, #tpu.memory_space<vmem>>, vector<1x1x2x32xf32>
    %54 = vector.shape_cast %53 : vector<1x1x2x32xf32> to vector<2x32xf32>
    %55 = arith.truncf %54 : vector<2x32xf32> to vector<2x32xbf16>
    %cst_25 = arith.constant dense<0.000000e+00> : vector<2x96xf32>
    %56 = tpu.matmul %55, %2, %cst_25 {dimension_numbers = #tpu.dot_dimension_numbers<[1], [0], [0], [1], [0, 0, 1, 1], [], []>} : vector<2x32xbf16>, vector<32x96xbf16>, vector<2x96xf32> -> vector<2x96xf32>
    %57 = vector.broadcast %7 : vector<1x96xf32> to vector<2x96xf32>
    %58 = arith.addf %56, %57 : vector<2x96xf32>
    %59 = arith.truncf %47 : vector<2x32xf32> to vector<2x32xbf16>
    %cst_26 = arith.constant dense<0.000000e+00> : vector<2x96xf32>
    %60 = tpu.matmul %59, %5, %cst_26 {dimension_numbers = #tpu.dot_dimension_numbers<[1], [0], [0], [1], [0, 0, 1, 1], [], []>} : vector<2x32xbf16>, vector<32x96xbf16>, vector<2x96xf32> -> vector<2x96xf32>
    %61 = vector.broadcast %9 : vector<1x96xf32> to vector<2x96xf32>
    %62 = arith.addf %60, %61 : vector<2x96xf32>
    %63 = vector.extract_strided_slice %58 {offsets = [0, 0], sizes = [2, 32], strides = [1, 1]} : vector<2x96xf32> to vector<2x32xf32>
    %64 = vector.extract_strided_slice %62 {offsets = [0, 0], sizes = [2, 32], strides = [1, 1]} : vector<2x96xf32> to vector<2x32xf32>
    %65 = arith.addf %63, %64 : vector<2x32xf32>
    %66 = arith.negf %65 : vector<2x32xf32>
    %67 = math.exp %66 : vector<2x32xf32>
    %cst_27 = arith.constant 1.000000e+00 : f32
    %68 = vector.broadcast %cst_27 : f32 to vector<2x32xf32>
    %69 = arith.addf %68, %67 : vector<2x32xf32>
    %70 = arith.divf %68, %69 : vector<2x32xf32>
    %71 = vector.extract_strided_slice %58 {offsets = [0, 32], sizes = [2, 32], strides = [1, 1]} : vector<2x96xf32> to vector<2x32xf32>
    %72 = vector.extract_strided_slice %62 {offsets = [0, 32], sizes = [2, 32], strides = [1, 1]} : vector<2x96xf32> to vector<2x32xf32>
    %73 = arith.addf %71, %72 : vector<2x32xf32>
    %74 = arith.negf %73 : vector<2x32xf32>
    %75 = math.exp %74 : vector<2x32xf32>
    %cst_28 = arith.constant 1.000000e+00 : f32
    %76 = vector.broadcast %cst_28 : f32 to vector<2x32xf32>
    %77 = arith.addf %76, %75 : vector<2x32xf32>
    %78 = arith.divf %76, %77 : vector<2x32xf32>
    %79 = vector.extract_strided_slice %58 {offsets = [0, 64], sizes = [2, 32], strides = [1, 1]} : vector<2x96xf32> to vector<2x32xf32>
    %80 = vector.extract_strided_slice %62 {offsets = [0, 64], sizes = [2, 32], strides = [1, 1]} : vector<2x96xf32> to vector<2x32xf32>
    %81 = arith.mulf %70, %80 : vector<2x32xf32>
    %82 = arith.addf %79, %81 : vector<2x32xf32>
    %83 = math.tanh %82 : vector<2x32xf32>
    %cst_29 = arith.constant 1.000000e+00 : f32
    %84 = vector.broadcast %cst_29 : f32 to vector<2x32xf32>
    %85 = arith.subf %84, %78 : vector<2x32xf32>
    %86 = arith.mulf %85, %83 : vector<2x32xf32>
    %87 = arith.mulf %78, %47 : vector<2x32xf32>
    %88 = arith.addf %86, %87 : vector<2x32xf32>
    %c0_30 = arith.constant 0 : index
    %89 = arith.index_cast %c1_i32 : i32 to index
    %c0_31 = arith.constant 0 : index
    %c0_32 = arith.constant 0 : index
    %90 = vector.load %arg6[%c0_30, %89, %c0_31, %c0_32] : memref<1x8x2x32xf32, #tpu.memory_space<vmem>>, vector<1x1x2x32xf32>
    %91 = vector.shape_cast %90 : vector<1x1x2x32xf32> to vector<2x32xf32>
    %92 = vector.shape_cast %88 : vector<2x32xf32> to vector<1x1x2x32xf32>
    tpu.vector_store %arg6[%c0_30, %89, %c0_31, %c0_32], %92 {strides = array<i32>} : memref<1x8x2x32xf32, #tpu.memory_space<vmem>>, vector<1x1x2x32xf32>,
    %c2_i32 = arith.constant 2 : i32
    %c0_33 = arith.constant 0 : index
    %93 = arith.index_cast %c2_i32 : i32 to index
    %c0_34 = arith.constant 0 : index
    %c0_35 = arith.constant 0 : index
    %94 = vector.load %arg1[%c0_33, %93, %c0_34, %c0_35] : memref<1x8x2x32xf32, #tpu.memory_space<vmem>>, vector<1x1x2x32xf32>
    %95 = vector.shape_cast %94 : vector<1x1x2x32xf32> to vector<2x32xf32>
    %96 = arith.truncf %95 : vector<2x32xf32> to vector<2x32xbf16>
    %cst_36 = arith.constant dense<0.000000e+00> : vector<2x96xf32>
    %97 = tpu.matmul %96, %2, %cst_36 {dimension_numbers = #tpu.dot_dimension_numbers<[1], [0], [0], [1], [0, 0, 1, 1], [], []>} : vector<2x32xbf16>, vector<32x96xbf16>, vector<2x96xf32> -> vector<2x96xf32>
    %98 = vector.broadcast %7 : vector<1x96xf32> to vector<2x96xf32>
    %99 = arith.addf %97, %98 : vector<2x96xf32>
    %100 = arith.truncf %88 : vector<2x32xf32> to vector<2x32xbf16>
    %cst_37 = arith.constant dense<0.000000e+00> : vector<2x96xf32>
    %101 = tpu.matmul %100, %5, %cst_37 {dimension_numbers = #tpu.dot_dimension_numbers<[1], [0], [0], [1], [0, 0, 1, 1], [], []>} : vector<2x32xbf16>, vector<32x96xbf16>, vector<2x96xf32> -> vector<2x96xf32>
    %102 = vector.broadcast %9 : vector<1x96xf32> to vector<2x96xf32>
    %103 = arith.addf %101, %102 : vector<2x96xf32>
    %104 = vector.extract_strided_slice %99 {offsets = [0, 0], sizes = [2, 32], strides = [1, 1]} : vector<2x96xf32> to vector<2x32xf32>
    %105 = vector.extract_strided_slice %103 {offsets = [0, 0], sizes = [2, 32], strides = [1, 1]} : vector<2x96xf32> to vector<2x32xf32>
    %106 = arith.addf %104, %105 : vector<2x32xf32>
    %107 = arith.negf %106 : vector<2x32xf32>
    %108 = math.exp %107 : vector<2x32xf32>
    %cst_38 = arith.constant 1.000000e+00 : f32
    %109 = vector.broadcast %cst_38 : f32 to vector<2x32xf32>
    %110 = arith.addf %109, %108 : vector<2x32xf32>
    %111 = arith.divf %109, %110 : vector<2x32xf32>
    %112 = vector.extract_strided_slice %99 {offsets = [0, 32], sizes = [2, 32], strides = [1, 1]} : vector<2x96xf32> to vector<2x32xf32>
    %113 = vector.extract_strided_slice %103 {offsets = [0, 32], sizes = [2, 32], strides = [1, 1]} : vector<2x96xf32> to vector<2x32xf32>
    %114 = arith.addf %112, %113 : vector<2x32xf32>
    %115 = arith.negf %114 : vector<2x32xf32>
    %116 = math.exp %115 : vector<2x32xf32>
    %cst_39 = arith.constant 1.000000e+00 : f32
    %117 = vector.broadcast %cst_39 : f32 to vector<2x32xf32>
    %118 = arith.addf %117, %116 : vector<2x32xf32>
    %119 = arith.divf %117, %118 : vector<2x32xf32>
    %120 = vector.extract_strided_slice %99 {offsets = [0, 64], sizes = [2, 32], strides = [1, 1]} : vector<2x96xf32> to vector<2x32xf32>
    %121 = vector.extract_strided_slice %103 {offsets = [0, 64], sizes = [2, 32], strides = [1, 1]} : vector<2x96xf32> to vector<2x32xf32>
    %122 = arith.mulf %111, %121 : vector<2x32xf32>
    %123 = arith.addf %120, %122 : vector<2x32xf32>
    %124 = math.tanh %123 : vector<2x32xf32>
    %cst_40 = arith.constant 1.000000e+00 : f32
    %125 = vector.broadcast %cst_40 : f32 to vector<2x32xf32>
    %126 = arith.subf %125, %119 : vector<2x32xf32>
    %127 = arith.mulf %126, %124 : vector<2x32xf32>
    %128 = arith.mulf %119, %88 : vector<2x32xf32>
    %129 = arith.addf %127, %128 : vector<2x32xf32>
    %c0_41 = arith.constant 0 : index
    %130 = arith.index_cast %c2_i32 : i32 to index
    %c0_42 = arith.constant 0 : index
    %c0_43 = arith.constant 0 : index
    %131 = vector.load %arg6[%c0_41, %130, %c0_42, %c0_43] : memref<1x8x2x32xf32, #tpu.memory_space<vmem>>, vector<1x1x2x32xf32>
    %132 = vector.shape_cast %131 : vector<1x1x2x32xf32> to vector<2x32xf32>
    %133 = vector.shape_cast %129 : vector<2x32xf32> to vector<1x1x2x32xf32>
    tpu.vector_store %arg6[%c0_41, %130, %c0_42, %c0_43], %133 {strides = array<i32>} : memref<1x8x2x32xf32, #tpu.memory_space<vmem>>, vector<1x1x2x32xf32>,
    %c3_i32 = arith.constant 3 : i32
    %c0_44 = arith.constant 0 : index
    %134 = arith.index_cast %c3_i32 : i32 to index
    %c0_45 = arith.constant 0 : index
    %c0_46 = arith.constant 0 : index
    %135 = vector.load %arg1[%c0_44, %134, %c0_45, %c0_46] : memref<1x8x2x32xf32, #tpu.memory_space<vmem>>, vector<1x1x2x32xf32>
    %136 = vector.shape_cast %135 : vector<1x1x2x32xf32> to vector<2x32xf32>
    %137 = arith.truncf %136 : vector<2x32xf32> to vector<2x32xbf16>
    %cst_47 = arith.constant dense<0.000000e+00> : vector<2x96xf32>
    %138 = tpu.matmul %137, %2, %cst_47 {dimension_numbers = #tpu.dot_dimension_numbers<[1], [0], [0], [1], [0, 0, 1, 1], [], []>} : vector<2x32xbf16>, vector<32x96xbf16>, vector<2x96xf32> -> vector<2x96xf32>
    %139 = vector.broadcast %7 : vector<1x96xf32> to vector<2x96xf32>
    %140 = arith.addf %138, %139 : vector<2x96xf32>
    %141 = arith.truncf %129 : vector<2x32xf32> to vector<2x32xbf16>
    %cst_48 = arith.constant dense<0.000000e+00> : vector<2x96xf32>
    %142 = tpu.matmul %141, %5, %cst_48 {dimension_numbers = #tpu.dot_dimension_numbers<[1], [0], [0], [1], [0, 0, 1, 1], [], []>} : vector<2x32xbf16>, vector<32x96xbf16>, vector<2x96xf32> -> vector<2x96xf32>
    %143 = vector.broadcast %9 : vector<1x96xf32> to vector<2x96xf32>
    %144 = arith.addf %142, %143 : vector<2x96xf32>
    %145 = vector.extract_strided_slice %140 {offsets = [0, 0], sizes = [2, 32], strides = [1, 1]} : vector<2x96xf32> to vector<2x32xf32>
    %146 = vector.extract_strided_slice %144 {offsets = [0, 0], sizes = [2, 32], strides = [1, 1]} : vector<2x96xf32> to vector<2x32xf32>
    %147 = arith.addf %145, %146 : vector<2x32xf32>
    %148 = arith.negf %147 : vector<2x32xf32>
    %149 = math.exp %148 : vector<2x32xf32>
    %cst_49 = arith.constant 1.000000e+00 : f32
    %150 = vector.broadcast %cst_49 : f32 to vector<2x32xf32>
    %151 = arith.addf %150, %149 : vector<2x32xf32>
    %152 = arith.divf %150, %151 : vector<2x32xf32>
    %153 = vector.extract_strided_slice %140 {offsets = [0, 32], sizes = [2, 32], strides = [1, 1]} : vector<2x96xf32> to vector<2x32xf32>
    %154 = vector.extract_strided_slice %144 {offsets = [0, 32], sizes = [2, 32], strides = [1, 1]} : vector<2x96xf32> to vector<2x32xf32>
    %155 = arith.addf %153, %154 : vector<2x32xf32>
    %156 = arith.negf %155 : vector<2x32xf32>
    %157 = math.exp %156 : vector<2x32xf32>
    %cst_50 = arith.constant 1.000000e+00 : f32
    %158 = vector.broadcast %cst_50 : f32 to vector<2x32xf32>
    %159 = arith.addf %158, %157 : vector<2x32xf32>
    %160 = arith.divf %158, %159 : vector<2x32xf32>
    %161 = vector.extract_strided_slice %140 {offsets = [0, 64], sizes = [2, 32], strides = [1, 1]} : vector<2x96xf32> to vector<2x32xf32>
    %162 = vector.extract_strided_slice %144 {offsets = [0, 64], sizes = [2, 32], strides = [1, 1]} : vector<2x96xf32> to vector<2x32xf32>
    %163 = arith.mulf %152, %162 : vector<2x32xf32>
    %164 = arith.addf %161, %163 : vector<2x32xf32>
    %165 = math.tanh %164 : vector<2x32xf32>
    %cst_51 = arith.constant 1.000000e+00 : f32
    %166 = vector.broadcast %cst_51 : f32 to vector<2x32xf32>
    %167 = arith.subf %166, %160 : vector<2x32xf32>
    %168 = arith.mulf %167, %165 : vector<2x32xf32>
    %169 = arith.mulf %160, %129 : vector<2x32xf32>
    %170 = arith.addf %168, %169 : vector<2x32xf32>
    %c0_52 = arith.constant 0 : index
    %171 = arith.index_cast %c3_i32 : i32 to index
    %c0_53 = arith.constant 0 : index
    %c0_54 = arith.constant 0 : index
    %172 = vector.load %arg6[%c0_52, %171, %c0_53, %c0_54] : memref<1x8x2x32xf32, #tpu.memory_space<vmem>>, vector<1x1x2x32xf32>
    %173 = vector.shape_cast %172 : vector<1x1x2x32xf32> to vector<2x32xf32>
    %174 = vector.shape_cast %170 : vector<2x32xf32> to vector<1x1x2x32xf32>
    tpu.vector_store %arg6[%c0_52, %171, %c0_53, %c0_54], %174 {strides = array<i32>} : memref<1x8x2x32xf32, #tpu.memory_space<vmem>>, vector<1x1x2x32xf32>,
    %c4_i32 = arith.constant 4 : i32
    %c0_55 = arith.constant 0 : index
    %175 = arith.index_cast %c4_i32 : i32 to index
    %c0_56 = arith.constant 0 : index
    %c0_57 = arith.constant 0 : index
    %176 = vector.load %arg1[%c0_55, %175, %c0_56, %c0_57] : memref<1x8x2x32xf32, #tpu.memory_space<vmem>>, vector<1x1x2x32xf32>
    %177 = vector.shape_cast %176 : vector<1x1x2x32xf32> to vector<2x32xf32>
    %178 = arith.truncf %177 : vector<2x32xf32> to vector<2x32xbf16>
    %cst_58 = arith.constant dense<0.000000e+00> : vector<2x96xf32>
    %179 = tpu.matmul %178, %2, %cst_58 {dimension_numbers = #tpu.dot_dimension_numbers<[1], [0], [0], [1], [0, 0, 1, 1], [], []>} : vector<2x32xbf16>, vector<32x96xbf16>, vector<2x96xf32> -> vector<2x96xf32>
    %180 = vector.broadcast %7 : vector<1x96xf32> to vector<2x96xf32>
    %181 = arith.addf %179, %180 : vector<2x96xf32>
    %182 = arith.truncf %170 : vector<2x32xf32> to vector<2x32xbf16>
    %cst_59 = arith.constant dense<0.000000e+00> : vector<2x96xf32>
    %183 = tpu.matmul %182, %5, %cst_59 {dimension_numbers = #tpu.dot_dimension_numbers<[1], [0], [0], [1], [0, 0, 1, 1], [], []>} : vector<2x32xbf16>, vector<32x96xbf16>, vector<2x96xf32> -> vector<2x96xf32>
    %184 = vector.broadcast %9 : vector<1x96xf32> to vector<2x96xf32>
    %185 = arith.addf %183, %184 : vector<2x96xf32>
    %186 = vector.extract_strided_slice %181 {offsets = [0, 0], sizes = [2, 32], strides = [1, 1]} : vector<2x96xf32> to vector<2x32xf32>
    %187 = vector.extract_strided_slice %185 {offsets = [0, 0], sizes = [2, 32], strides = [1, 1]} : vector<2x96xf32> to vector<2x32xf32>
    %188 = arith.addf %186, %187 : vector<2x32xf32>
    %189 = arith.negf %188 : vector<2x32xf32>
    %190 = math.exp %189 : vector<2x32xf32>
    %cst_60 = arith.constant 1.000000e+00 : f32
    %191 = vector.broadcast %cst_60 : f32 to vector<2x32xf32>
    %192 = arith.addf %191, %190 : vector<2x32xf32>
    %193 = arith.divf %191, %192 : vector<2x32xf32>
    %194 = vector.extract_strided_slice %181 {offsets = [0, 32], sizes = [2, 32], strides = [1, 1]} : vector<2x96xf32> to vector<2x32xf32>
    %195 = vector.extract_strided_slice %185 {offsets = [0, 32], sizes = [2, 32], strides = [1, 1]} : vector<2x96xf32> to vector<2x32xf32>
    %196 = arith.addf %194, %195 : vector<2x32xf32>
    %197 = arith.negf %196 : vector<2x32xf32>
    %198 = math.exp %197 : vector<2x32xf32>
    %cst_61 = arith.constant 1.000000e+00 : f32
    %199 = vector.broadcast %cst_61 : f32 to vector<2x32xf32>
    %200 = arith.addf %199, %198 : vector<2x32xf32>
    %201 = arith.divf %199, %200 : vector<2x32xf32>
    %202 = vector.extract_strided_slice %181 {offsets = [0, 64], sizes = [2, 32], strides = [1, 1]} : vector<2x96xf32> to vector<2x32xf32>
    %203 = vector.extract_strided_slice %185 {offsets = [0, 64], sizes = [2, 32], strides = [1, 1]} : vector<2x96xf32> to vector<2x32xf32>
    %204 = arith.mulf %193, %203 : vector<2x32xf32>
    %205 = arith.addf %202, %204 : vector<2x32xf32>
    %206 = math.tanh %205 : vector<2x32xf32>
    %cst_62 = arith.constant 1.000000e+00 : f32
    %207 = vector.broadcast %cst_62 : f32 to vector<2x32xf32>
    %208 = arith.subf %207, %201 : vector<2x32xf32>
    %209 = arith.mulf %208, %206 : vector<2x32xf32>
    %210 = arith.mulf %201, %170 : vector<2x32xf32>
    %211 = arith.addf %209, %210 : vector<2x32xf32>
    %c0_63 = arith.constant 0 : index
    %212 = arith.index_cast %c4_i32 : i32 to index
    %c0_64 = arith.constant 0 : index
    %c0_65 = arith.constant 0 : index
    %213 = vector.load %arg6[%c0_63, %212, %c0_64, %c0_65] : memref<1x8x2x32xf32, #tpu.memory_space<vmem>>, vector<1x1x2x32xf32>
    %214 = vector.shape_cast %213 : vector<1x1x2x32xf32> to vector<2x32xf32>
    %215 = vector.shape_cast %211 : vector<2x32xf32> to vector<1x1x2x32xf32>
    tpu.vector_store %arg6[%c0_63, %212, %c0_64, %c0_65], %215 {strides = array<i32>} : memref<1x8x2x32xf32, #tpu.memory_space<vmem>>, vector<1x1x2x32xf32>,
    %c5_i32 = arith.constant 5 : i32
    %c0_66 = arith.constant 0 : index
    %216 = arith.index_cast %c5_i32 : i32 to index
    %c0_67 = arith.constant 0 : index
    %c0_68 = arith.constant 0 : index
    %217 = vector.load %arg1[%c0_66, %216, %c0_67, %c0_68] : memref<1x8x2x32xf32, #tpu.memory_space<vmem>>, vector<1x1x2x32xf32>
    %218 = vector.shape_cast %217 : vector<1x1x2x32xf32> to vector<2x32xf32>
    %219 = arith.truncf %218 : vector<2x32xf32> to vector<2x32xbf16>
    %cst_69 = arith.constant dense<0.000000e+00> : vector<2x96xf32>
    %220 = tpu.matmul %219, %2, %cst_69 {dimension_numbers = #tpu.dot_dimension_numbers<[1], [0], [0], [1], [0, 0, 1, 1], [], []>} : vector<2x32xbf16>, vector<32x96xbf16>, vector<2x96xf32> -> vector<2x96xf32>
    %221 = vector.broadcast %7 : vector<1x96xf32> to vector<2x96xf32>
    %222 = arith.addf %220, %221 : vector<2x96xf32>
    %223 = arith.truncf %211 : vector<2x32xf32> to vector<2x32xbf16>
    %cst_70 = arith.constant dense<0.000000e+00> : vector<2x96xf32>
    %224 = tpu.matmul %223, %5, %cst_70 {dimension_numbers = #tpu.dot_dimension_numbers<[1], [0], [0], [1], [0, 0, 1, 1], [], []>} : vector<2x32xbf16>, vector<32x96xbf16>, vector<2x96xf32> -> vector<2x96xf32>
    %225 = vector.broadcast %9 : vector<1x96xf32> to vector<2x96xf32>
    %226 = arith.addf %224, %225 : vector<2x96xf32>
    %227 = vector.extract_strided_slice %222 {offsets = [0, 0], sizes = [2, 32], strides = [1, 1]} : vector<2x96xf32> to vector<2x32xf32>
    %228 = vector.extract_strided_slice %226 {offsets = [0, 0], sizes = [2, 32], strides = [1, 1]} : vector<2x96xf32> to vector<2x32xf32>
    %229 = arith.addf %227, %228 : vector<2x32xf32>
    %230 = arith.negf %229 : vector<2x32xf32>
    %231 = math.exp %230 : vector<2x32xf32>
    %cst_71 = arith.constant 1.000000e+00 : f32
    %232 = vector.broadcast %cst_71 : f32 to vector<2x32xf32>
    %233 = arith.addf %232, %231 : vector<2x32xf32>
    %234 = arith.divf %232, %233 : vector<2x32xf32>
    %235 = vector.extract_strided_slice %222 {offsets = [0, 32], sizes = [2, 32], strides = [1, 1]} : vector<2x96xf32> to vector<2x32xf32>
    %236 = vector.extract_strided_slice %226 {offsets = [0, 32], sizes = [2, 32], strides = [1, 1]} : vector<2x96xf32> to vector<2x32xf32>
    %237 = arith.addf %235, %236 : vector<2x32xf32>
    %238 = arith.negf %237 : vector<2x32xf32>
    %239 = math.exp %238 : vector<2x32xf32>
    %cst_72 = arith.constant 1.000000e+00 : f32
    %240 = vector.broadcast %cst_72 : f32 to vector<2x32xf32>
    %241 = arith.addf %240, %239 : vector<2x32xf32>
    %242 = arith.divf %240, %241 : vector<2x32xf32>
    %243 = vector.extract_strided_slice %222 {offsets = [0, 64], sizes = [2, 32], strides = [1, 1]} : vector<2x96xf32> to vector<2x32xf32>
    %244 = vector.extract_strided_slice %226 {offsets = [0, 64], sizes = [2, 32], strides = [1, 1]} : vector<2x96xf32> to vector<2x32xf32>
    %245 = arith.mulf %234, %244 : vector<2x32xf32>
    %246 = arith.addf %243, %245 : vector<2x32xf32>
    %247 = math.tanh %246 : vector<2x32xf32>
    %cst_73 = arith.constant 1.000000e+00 : f32
    %248 = vector.broadcast %cst_73 : f32 to vector<2x32xf32>
    %249 = arith.subf %248, %242 : vector<2x32xf32>
    %250 = arith.mulf %249, %247 : vector<2x32xf32>
    %251 = arith.mulf %242, %211 : vector<2x32xf32>
    %252 = arith.addf %250, %251 : vector<2x32xf32>
    %c0_74 = arith.constant 0 : index
    %253 = arith.index_cast %c5_i32 : i32 to index
    %c0_75 = arith.constant 0 : index
    %c0_76 = arith.constant 0 : index
    %254 = vector.load %arg6[%c0_74, %253, %c0_75, %c0_76] : memref<1x8x2x32xf32, #tpu.memory_space<vmem>>, vector<1x1x2x32xf32>
    %255 = vector.shape_cast %254 : vector<1x1x2x32xf32> to vector<2x32xf32>
    %256 = vector.shape_cast %252 : vector<2x32xf32> to vector<1x1x2x32xf32>
    tpu.vector_store %arg6[%c0_74, %253, %c0_75, %c0_76], %256 {strides = array<i32>} : memref<1x8x2x32xf32, #tpu.memory_space<vmem>>, vector<1x1x2x32xf32>,
    %c6_i32 = arith.constant 6 : i32
    %c0_77 = arith.constant 0 : index
    %257 = arith.index_cast %c6_i32 : i32 to index
    %c0_78 = arith.constant 0 : index
    %c0_79 = arith.constant 0 : index
    %258 = vector.load %arg1[%c0_77, %257, %c0_78, %c0_79] : memref<1x8x2x32xf32, #tpu.memory_space<vmem>>, vector<1x1x2x32xf32>
    %259 = vector.shape_cast %258 : vector<1x1x2x32xf32> to vector<2x32xf32>
    %260 = arith.truncf %259 : vector<2x32xf32> to vector<2x32xbf16>
    %cst_80 = arith.constant dense<0.000000e+00> : vector<2x96xf32>
    %261 = tpu.matmul %260, %2, %cst_80 {dimension_numbers = #tpu.dot_dimension_numbers<[1], [0], [0], [1], [0, 0, 1, 1], [], []>} : vector<2x32xbf16>, vector<32x96xbf16>, vector<2x96xf32> -> vector<2x96xf32>
    %262 = vector.broadcast %7 : vector<1x96xf32> to vector<2x96xf32>
    %263 = arith.addf %261, %262 : vector<2x96xf32>
    %264 = arith.truncf %252 : vector<2x32xf32> to vector<2x32xbf16>
    %cst_81 = arith.constant dense<0.000000e+00> : vector<2x96xf32>
    %265 = tpu.matmul %264, %5, %cst_81 {dimension_numbers = #tpu.dot_dimension_numbers<[1], [0], [0], [1], [0, 0, 1, 1], [], []>} : vector<2x32xbf16>, vector<32x96xbf16>, vector<2x96xf32> -> vector<2x96xf32>
    %266 = vector.broadcast %9 : vector<1x96xf32> to vector<2x96xf32>
    %267 = arith.addf %265, %266 : vector<2x96xf32>
    %268 = vector.extract_strided_slice %263 {offsets = [0, 0], sizes = [2, 32], strides = [1, 1]} : vector<2x96xf32> to vector<2x32xf32>
    %269 = vector.extract_strided_slice %267 {offsets = [0, 0], sizes = [2, 32], strides = [1, 1]} : vector<2x96xf32> to vector<2x32xf32>
    %270 = arith.addf %268, %269 : vector<2x32xf32>
    %271 = arith.negf %270 : vector<2x32xf32>
    %272 = math.exp %271 : vector<2x32xf32>
    %cst_82 = arith.constant 1.000000e+00 : f32
    %273 = vector.broadcast %cst_82 : f32 to vector<2x32xf32>
    %274 = arith.addf %273, %272 : vector<2x32xf32>
    %275 = arith.divf %273, %274 : vector<2x32xf32>
    %276 = vector.extract_strided_slice %263 {offsets = [0, 32], sizes = [2, 32], strides = [1, 1]} : vector<2x96xf32> to vector<2x32xf32>
    %277 = vector.extract_strided_slice %267 {offsets = [0, 32], sizes = [2, 32], strides = [1, 1]} : vector<2x96xf32> to vector<2x32xf32>
    %278 = arith.addf %276, %277 : vector<2x32xf32>
    %279 = arith.negf %278 : vector<2x32xf32>
    %280 = math.exp %279 : vector<2x32xf32>
    %cst_83 = arith.constant 1.000000e+00 : f32
    %281 = vector.broadcast %cst_83 : f32 to vector<2x32xf32>
    %282 = arith.addf %281, %280 : vector<2x32xf32>
    %283 = arith.divf %281, %282 : vector<2x32xf32>
    %284 = vector.extract_strided_slice %263 {offsets = [0, 64], sizes = [2, 32], strides = [1, 1]} : vector<2x96xf32> to vector<2x32xf32>
    %285 = vector.extract_strided_slice %267 {offsets = [0, 64], sizes = [2, 32], strides = [1, 1]} : vector<2x96xf32> to vector<2x32xf32>
    %286 = arith.mulf %275, %285 : vector<2x32xf32>
    %287 = arith.addf %284, %286 : vector<2x32xf32>
    %288 = math.tanh %287 : vector<2x32xf32>
    %cst_84 = arith.constant 1.000000e+00 : f32
    %289 = vector.broadcast %cst_84 : f32 to vector<2x32xf32>
    %290 = arith.subf %289, %283 : vector<2x32xf32>
    %291 = arith.mulf %290, %288 : vector<2x32xf32>
    %292 = arith.mulf %283, %252 : vector<2x32xf32>
    %293 = arith.addf %291, %292 : vector<2x32xf32>
    %c0_85 = arith.constant 0 : index
    %294 = arith.index_cast %c6_i32 : i32 to index
    %c0_86 = arith.constant 0 : index
    %c0_87 = arith.constant 0 : index
    %295 = vector.load %arg6[%c0_85, %294, %c0_86, %c0_87] : memref<1x8x2x32xf32, #tpu.memory_space<vmem>>, vector<1x1x2x32xf32>
    %296 = vector.shape_cast %295 : vector<1x1x2x32xf32> to vector<2x32xf32>
    %297 = vector.shape_cast %293 : vector<2x32xf32> to vector<1x1x2x32xf32>
    tpu.vector_store %arg6[%c0_85, %294, %c0_86, %c0_87], %297 {strides = array<i32>} : memref<1x8x2x32xf32, #tpu.memory_space<vmem>>, vector<1x1x2x32xf32>,
    %c7_i32 = arith.constant 7 : i32
    %c0_88 = arith.constant 0 : index
    %298 = arith.index_cast %c7_i32 : i32 to index
    %c0_89 = arith.constant 0 : index
    %c0_90 = arith.constant 0 : index
    %299 = vector.load %arg1[%c0_88, %298, %c0_89, %c0_90] : memref<1x8x2x32xf32, #tpu.memory_space<vmem>>, vector<1x1x2x32xf32>
    %300 = vector.shape_cast %299 : vector<1x1x2x32xf32> to vector<2x32xf32>
    %301 = arith.truncf %300 : vector<2x32xf32> to vector<2x32xbf16>
    %cst_91 = arith.constant dense<0.000000e+00> : vector<2x96xf32>
    %302 = tpu.matmul %301, %2, %cst_91 {dimension_numbers = #tpu.dot_dimension_numbers<[1], [0], [0], [1], [0, 0, 1, 1], [], []>} : vector<2x32xbf16>, vector<32x96xbf16>, vector<2x96xf32> -> vector<2x96xf32>
    %303 = vector.broadcast %7 : vector<1x96xf32> to vector<2x96xf32>
    %304 = arith.addf %302, %303 : vector<2x96xf32>
    %305 = arith.truncf %293 : vector<2x32xf32> to vector<2x32xbf16>
    %cst_92 = arith.constant dense<0.000000e+00> : vector<2x96xf32>
    %306 = tpu.matmul %305, %5, %cst_92 {dimension_numbers = #tpu.dot_dimension_numbers<[1], [0], [0], [1], [0, 0, 1, 1], [], []>} : vector<2x32xbf16>, vector<32x96xbf16>, vector<2x96xf32> -> vector<2x96xf32>
    %307 = vector.broadcast %9 : vector<1x96xf32> to vector<2x96xf32>
    %308 = arith.addf %306, %307 : vector<2x96xf32>
    %309 = vector.extract_strided_slice %304 {offsets = [0, 0], sizes = [2, 32], strides = [1, 1]} : vector<2x96xf32> to vector<2x32xf32>
    %310 = vector.extract_strided_slice %308 {offsets = [0, 0], sizes = [2, 32], strides = [1, 1]} : vector<2x96xf32> to vector<2x32xf32>
    %311 = arith.addf %309, %310 : vector<2x32xf32>
    %312 = arith.negf %311 : vector<2x32xf32>
    %313 = math.exp %312 : vector<2x32xf32>
    %cst_93 = arith.constant 1.000000e+00 : f32
    %314 = vector.broadcast %cst_93 : f32 to vector<2x32xf32>
    %315 = arith.addf %314, %313 : vector<2x32xf32>
    %316 = arith.divf %314, %315 : vector<2x32xf32>
    %317 = vector.extract_strided_slice %304 {offsets = [0, 32], sizes = [2, 32], strides = [1, 1]} : vector<2x96xf32> to vector<2x32xf32>
    %318 = vector.extract_strided_slice %308 {offsets = [0, 32], sizes = [2, 32], strides = [1, 1]} : vector<2x96xf32> to vector<2x32xf32>
    %319 = arith.addf %317, %318 : vector<2x32xf32>
    %320 = arith.negf %319 : vector<2x32xf32>
    %321 = math.exp %320 : vector<2x32xf32>
    %cst_94 = arith.constant 1.000000e+00 : f32
    %322 = vector.broadcast %cst_94 : f32 to vector<2x32xf32>
    %323 = arith.addf %322, %321 : vector<2x32xf32>
    %324 = arith.divf %322, %323 : vector<2x32xf32>
    %325 = vector.extract_strided_slice %304 {offsets = [0, 64], sizes = [2, 32], strides = [1, 1]} : vector<2x96xf32> to vector<2x32xf32>
    %326 = vector.extract_strided_slice %308 {offsets = [0, 64], sizes = [2, 32], strides = [1, 1]} : vector<2x96xf32> to vector<2x32xf32>
    %327 = arith.mulf %316, %326 : vector<2x32xf32>
    %328 = arith.addf %325, %327 : vector<2x32xf32>
    %329 = math.tanh %328 : vector<2x32xf32>
    %cst_95 = arith.constant 1.000000e+00 : f32
    %330 = vector.broadcast %cst_95 : f32 to vector<2x32xf32>
    %331 = arith.subf %330, %324 : vector<2x32xf32>
    %332 = arith.mulf %331, %329 : vector<2x32xf32>
    %333 = arith.mulf %324, %293 : vector<2x32xf32>
    %334 = arith.addf %332, %333 : vector<2x32xf32>
    %c0_96 = arith.constant 0 : index
    %335 = arith.index_cast %c7_i32 : i32 to index
    %c0_97 = arith.constant 0 : index
    %c0_98 = arith.constant 0 : index
    %336 = vector.load %arg6[%c0_96, %335, %c0_97, %c0_98] : memref<1x8x2x32xf32, #tpu.memory_space<vmem>>, vector<1x1x2x32xf32>
    %337 = vector.shape_cast %336 : vector<1x1x2x32xf32> to vector<2x32xf32>
    %338 = vector.shape_cast %334 : vector<2x32xf32> to vector<1x1x2x32xf32>
    tpu.vector_store %arg6[%c0_96, %335, %c0_97, %c0_98], %338 {strides = array<i32>} : memref<1x8x2x32xf32, #tpu.memory_space<vmem>>, vector<1x1x2x32xf32>,
    %c8_i32 = arith.constant 8 : i32
    %c0_99 = arith.constant 0 : index
    %c0_100 = arith.constant 0 : index
    %c0_101 = arith.constant 0 : index
    %339 = vector.load %arg7[%c0_99, %c0_100, %c0_101] : memref<1x2x32xf32, #tpu.memory_space<vmem>>, vector<1x2x32xf32>
    %340 = vector.shape_cast %339 : vector<1x2x32xf32> to vector<2x32xf32>
    %341 = vector.shape_cast %334 : vector<2x32xf32> to vector<1x2x32xf32>
    tpu.vector_store %arg7[%c0_99, %c0_100, %c0_101], %341 {strides = array<i32>} : memref<1x2x32xf32, #tpu.memory_space<vmem>>, vector<1x2x32xf32>,
    return
  }
  func.func @transform_0(%arg0: i32) -> (i32, i32, i32, i32) {
    %c0_i32 = arith.constant 0 : i32
    %c0_i32_0 = arith.constant 0 : i32
    %c0_i32_1 = arith.constant 0 : i32
    %c0_i32_2 = arith.constant 0 : i32
    return %arg0, %c0_i32, %c0_i32_0, %c0_i32_1 : i32, i32, i32, i32
  }
  func.func @transform_1(%arg0: i32) -> (i32, i32, i32) {
    %c0_i32 = arith.constant 0 : i32
    %c0_i32_0 = arith.constant 0 : i32
    %c0_i32_1 = arith.constant 0 : i32
    return %arg0, %c0_i32, %c0_i32_0 : i32, i32, i32
  }
  func.func @transform_2(%arg0: i32) -> (i32, i32, i32) {
    %c0_i32 = arith.constant 0 : i32
    %c0_i32_0 = arith.constant 0 : i32
    %c0_i32_1 = arith.constant 0 : i32
    return %arg0, %c0_i32, %c0_i32_0 : i32, i32, i32
  }
  func.func @transform_3(%arg0: i32) -> (i32, i32, i32) {
    %c0_i32 = arith.constant 0 : i32
    %c0_i32_0 = arith.constant 0 : i32
    %c0_i32_1 = arith.constant 0 : i32
    return %arg0, %c0_i32, %c0_i32_0 : i32, i32, i32
  }
  func.func @transform_4(%arg0: i32) -> (i32, i32, i32) {
    %c0_i32 = arith.constant 0 : i32
    %c0_i32_0 = arith.constant 0 : i32
    %c0_i32_1 = arith.constant 0 : i32
    return %arg0, %c0_i32, %c0_i32_0 : i32, i32, i32
  }
  func.func @transform_5(%arg0: i32) -> (i32, i32, i32, i32) {
    %c0_i32 = arith.constant 0 : i32
    %c0_i32_0 = arith.constant 0 : i32
    %c0_i32_1 = arith.constant 0 : i32
    %c0_i32_2 = arith.constant 0 : i32
    return %arg0, %c0_i32, %c0_i32_0, %c0_i32_1 : i32, i32, i32, i32
  }
  func.func @transform_6(%arg0: i32) -> (i32, i32, i32) {
    %c0_i32 = arith.constant 0 : i32
    %c0_i32_0 = arith.constant 0 : i32
    %c0_i32_1 = arith.constant 0 : i32
    return %arg0, %c0_i32, %c0_i32_0 : i32, i32, i32
  }
}

module attributes {stable_mosaic.version = 11 : i64} {
  func.func @_mlp_energy_kernel(%arg0: memref<16x64xf32, #tpu.memory_space<vmem>>, %arg1: memref<64x64xf32, #tpu.memory_space<vmem>>, %arg2: memref<1x64xf32, #tpu.memory_space<vmem>>, %arg3: memref<64x32xf32, #tpu.memory_space<vmem>>, %arg4: memref<1x32xf32, #tpu.memory_space<vmem>>, %arg5: memref<32x32xf32, #tpu.memory_space<vmem>>, %arg6: memref<16x32xf32, #tpu.memory_space<vmem>>, %arg7: memref<16x32xf32, #tpu.memory_space<vmem>>) attributes {dimension_semantics = [], scalar_prefetch = 0 : i64, scratch_operands = 0 : i64, tpu.core_type = #tpu.core_type<tc>} {
    %c0 = arith.constant 0 : index
    %c0_0 = arith.constant 0 : index
    %0 = vector.load %arg0[%c0, %c0_0] : memref<16x64xf32, #tpu.memory_space<vmem>>, vector<16x64xf32>
    %c0_1 = arith.constant 0 : index
    %c0_2 = arith.constant 0 : index
    %1 = vector.load %arg1[%c0_1, %c0_2] : memref<64x64xf32, #tpu.memory_space<vmem>>, vector<64x64xf32>
    %2 = arith.truncf %0 : vector<16x64xf32> to vector<16x64xbf16>
    %3 = arith.truncf %1 : vector<64x64xf32> to vector<64x64xbf16>
    %cst = arith.constant dense<0.000000e+00> : vector<16x64xf32>
    %4 = tpu.matmul %2, %3, %cst {dimension_numbers = #tpu.dot_dimension_numbers<[1], [0], [0], [1], [0, 0, 1, 1], [], []>} : vector<16x64xbf16>, vector<64x64xbf16>, vector<16x64xf32> -> vector<16x64xf32>
    %c0_3 = arith.constant 0 : index
    %c0_4 = arith.constant 0 : index
    %5 = vector.load %arg2[%c0_3, %c0_4] : memref<1x64xf32, #tpu.memory_space<vmem>>, vector<1x64xf32>
    %6 = vector.broadcast %5 : vector<1x64xf32> to vector<16x64xf32>
    %7 = arith.addf %4, %6 : vector<16x64xf32>
    %cst_5 = arith.constant 0.000000e+00 : f32
    %8 = vector.broadcast %cst_5 : f32 to vector<16x64xf32>
    %9 = arith.maximumf %7, %8 : vector<16x64xf32>
    %c0_6 = arith.constant 0 : index
    %c0_7 = arith.constant 0 : index
    %10 = vector.load %arg3[%c0_6, %c0_7] : memref<64x32xf32, #tpu.memory_space<vmem>>, vector<64x32xf32>
    %11 = arith.truncf %9 : vector<16x64xf32> to vector<16x64xbf16>
    %12 = arith.truncf %10 : vector<64x32xf32> to vector<64x32xbf16>
    %cst_8 = arith.constant dense<0.000000e+00> : vector<16x32xf32>
    %13 = tpu.matmul %11, %12, %cst_8 {dimension_numbers = #tpu.dot_dimension_numbers<[1], [0], [0], [1], [0, 0, 1, 1], [], []>} : vector<16x64xbf16>, vector<64x32xbf16>, vector<16x32xf32> -> vector<16x32xf32>
    %c0_9 = arith.constant 0 : index
    %c0_10 = arith.constant 0 : index
    %14 = vector.load %arg4[%c0_9, %c0_10] : memref<1x32xf32, #tpu.memory_space<vmem>>, vector<1x32xf32>
    %15 = vector.broadcast %14 : vector<1x32xf32> to vector<16x32xf32>
    %16 = arith.addf %13, %15 : vector<16x32xf32>
    %c0_11 = arith.constant 0 : index
    %c0_12 = arith.constant 0 : index
    %17 = vector.load %arg6[%c0_11, %c0_12] : memref<16x32xf32, #tpu.memory_space<vmem>>, vector<16x32xf32>
    tpu.vector_store %arg6[%c0_11, %c0_12], %16 {strides = array<i32>} : memref<16x32xf32, #tpu.memory_space<vmem>>, vector<16x32xf32>,
    %c0_13 = arith.constant 0 : index
    %c0_14 = arith.constant 0 : index
    %18 = vector.load %arg5[%c0_13, %c0_14] : memref<32x32xf32, #tpu.memory_space<vmem>>, vector<32x32xf32>
    %19 = arith.truncf %16 : vector<16x32xf32> to vector<16x32xbf16>
    %20 = arith.truncf %18 : vector<32x32xf32> to vector<32x32xbf16>
    %cst_15 = arith.constant dense<0.000000e+00> : vector<16x32xf32>
    %21 = tpu.matmul %19, %20, %cst_15 {dimension_numbers = #tpu.dot_dimension_numbers<[1], [0], [0], [1], [0, 0, 1, 1], [], []>} : vector<16x32xbf16>, vector<32x32xbf16>, vector<16x32xf32> -> vector<16x32xf32>
    %c0_16 = arith.constant 0 : index
    %c0_17 = arith.constant 0 : index
    %22 = vector.load %arg7[%c0_16, %c0_17] : memref<16x32xf32, #tpu.memory_space<vmem>>, vector<16x32xf32>
    tpu.vector_store %arg7[%c0_16, %c0_17], %21 {strides = array<i32>} : memref<16x32xf32, #tpu.memory_space<vmem>>, vector<16x32xf32>,
    return
  }
}

module attributes {stable_mosaic.version = 11 : i64} {
  func.func @_enc_gru_layer_kernel(%arg0: i32, %arg1: memref<1x8x2x64xf32, #tpu.memory_space<vmem>>, %arg2: memref<1x64x96xf32, #tpu.memory_space<vmem>>, %arg3: memref<1x32x96xf32, #tpu.memory_space<vmem>>, %arg4: memref<1x1x96xf32, #tpu.memory_space<vmem>>, %arg5: memref<1x1x96xf32, #tpu.memory_space<vmem>>, %arg6: memref<1x8x2x32xf32, #tpu.memory_space<vmem>>, %arg7: memref<1x2x32xf32, #tpu.memory_space<vmem>>) attributes {dimension_semantics = [#tpu.dimension_semantics<parallel>], iteration_bounds = array<i64: 2>, scalar_prefetch = 0 : i64, scratch_operands = 0 : i64, tpu.core_type = #tpu.core_type<tc>, window_params = [{transform_indices = @transform_0, window_bounds = array<i64: 1, 8, 2, 64>}, {transform_indices = @transform_1, window_bounds = array<i64: 1, 64, 96>}, {transform_indices = @transform_2, window_bounds = array<i64: 1, 32, 96>}, {transform_indices = @transform_3, window_bounds = array<i64: 1, 1, 96>}, {transform_indices = @transform_4, window_bounds = array<i64: 1, 1, 96>}, {transform_indices = @transform_5, window_bounds = array<i64: 1, 8, 2, 32>}, {transform_indices = @transform_6, window_bounds = array<i64: 1, 2, 32>}]} {
    %c0 = arith.constant 0 : index
    %c0_0 = arith.constant 0 : index
    %c0_1 = arith.constant 0 : index
    %0 = vector.load %arg2[%c0, %c0_0, %c0_1] : memref<1x64x96xf32, #tpu.memory_space<vmem>>, vector<1x64x96xf32>
    %1 = vector.shape_cast %0 : vector<1x64x96xf32> to vector<64x96xf32>
    %2 = arith.truncf %1 : vector<64x96xf32> to vector<64x96xbf16>
    %c0_2 = arith.constant 0 : index
    %c0_3 = arith.constant 0 : index
    %c0_4 = arith.constant 0 : index
    %3 = vector.load %arg3[%c0_2, %c0_3, %c0_4] : memref<1x32x96xf32, #tpu.memory_space<vmem>>, vector<1x32x96xf32>
    %4 = vector.shape_cast %3 : vector<1x32x96xf32> to vector<32x96xf32>
    %5 = arith.truncf %4 : vector<32x96xf32> to vector<32x96xbf16>
    %c0_5 = arith.constant 0 : index
    %c0_6 = arith.constant 0 : index
    %c0_7 = arith.constant 0 : index
    %6 = vector.load %arg4[%c0_5, %c0_6, %c0_7] : memref<1x1x96xf32, #tpu.memory_space<vmem>>, vector<1x1x96xf32>
    %7 = vector.shape_cast %6 : vector<1x1x96xf32> to vector<1x96xf32>
    %c0_8 = arith.constant 0 : index
    %c0_9 = arith.constant 0 : index
    %c0_10 = arith.constant 0 : index
    %8 = vector.load %arg5[%c0_8, %c0_9, %c0_10] : memref<1x1x96xf32, #tpu.memory_space<vmem>>, vector<1x1x96xf32>
    %9 = vector.shape_cast %8 : vector<1x1x96xf32> to vector<1x96xf32>
    %cst = arith.constant 0.000000e+00 : f32
    %10 = vector.broadcast %cst : f32 to vector<2x32xf32>
    %c0_i32 = arith.constant 0 : i32
    %c0_11 = arith.constant 0 : index
    %11 = arith.index_cast %c0_i32 : i32 to index
    %c0_12 = arith.constant 0 : index
    %c0_13 = arith.constant 0 : index
    %12 = vector.load %arg1[%c0_11, %11, %c0_12, %c0_13] : memref<1x8x2x64xf32, #tpu.memory_space<vmem>>, vector<1x1x2x64xf32>
    %13 = vector.shape_cast %12 : vector<1x1x2x64xf32> to vector<2x64xf32>
    %14 = arith.truncf %13 : vector<2x64xf32> to vector<2x64xbf16>
    %cst_14 = arith.constant dense<0.000000e+00> : vector<2x96xf32>
    %15 = tpu.matmul %14, %2, %cst_14 {dimension_numbers = #tpu.dot_dimension_numbers<[1], [0], [0], [1], [0, 0, 1, 1], [], []>} : vector<2x64xbf16>, vector<64x96xbf16>, vector<2x96xf32> -> vector<2x96xf32>
    %16 = vector.broadcast %7 : vector<1x96xf32> to vector<2x96xf32>
    %17 = arith.addf %15, %16 : vector<2x96xf32>
    %18 = arith.truncf %10 : vector<2x32xf32> to vector<2x32xbf16>
    %cst_15 = arith.constant dense<0.000000e+00> : vector<2x96xf32>
    %19 = tpu.matmul %18, %5, %cst_15 {dimension_numbers = #tpu.dot_dimension_numbers<[1], [0], [0], [1], [0, 0, 1, 1], [], []>} : vector<2x32xbf16>, vector<32x96xbf16>, vector<2x96xf32> -> vector<2x96xf32>
    %20 = vector.broadcast %9 : vector<1x96xf32> to vector<2x96xf32>
    %21 = arith.addf %19, %20 : vector<2x96xf32>
    %22 = vector.extract_strided_slice %17 {offsets = [0, 0], sizes = [2, 32], strides = [1, 1]} : vector<2x96xf32> to vector<2x32xf32>
    %23 = vector.extract_strided_slice %21 {offsets = [0, 0], sizes = [2, 32], strides = [1, 1]} : vector<2x96xf32> to vector<2x32xf32>
    %24 = arith.addf %22, %23 : vector<2x32xf32>
    %25 = arith.negf %24 : vector<2x32xf32>
    %26 = math.exp %25 : vector<2x32xf32>
    %cst_16 = arith.constant 1.000000e+00 : f32
    %27 = vector.broadcast %cst_16 : f32 to vector<2x32xf32>
    %28 = arith.addf %27, %26 : vector<2x32xf32>
    %29 = arith.divf %27, %28 : vector<2x32xf32>
    %30 = vector.extract_strided_slice %17 {offsets = [0, 32], sizes = [2, 32], strides = [1, 1]} : vector<2x96xf32> to vector<2x32xf32>
    %31 = vector.extract_strided_slice %21 {offsets = [0, 32], sizes = [2, 32], strides = [1, 1]} : vector<2x96xf32> to vector<2x32xf32>
    %32 = arith.addf %30, %31 : vector<2x32xf32>
    %33 = arith.negf %32 : vector<2x32xf32>
    %34 = math.exp %33 : vector<2x32xf32>
    %cst_17 = arith.constant 1.000000e+00 : f32
    %35 = vector.broadcast %cst_17 : f32 to vector<2x32xf32>
    %36 = arith.addf %35, %34 : vector<2x32xf32>
    %37 = arith.divf %35, %36 : vector<2x32xf32>
    %38 = vector.extract_strided_slice %17 {offsets = [0, 64], sizes = [2, 32], strides = [1, 1]} : vector<2x96xf32> to vector<2x32xf32>
    %39 = vector.extract_strided_slice %21 {offsets = [0, 64], sizes = [2, 32], strides = [1, 1]} : vector<2x96xf32> to vector<2x32xf32>
    %40 = arith.mulf %29, %39 : vector<2x32xf32>
    %41 = arith.addf %38, %40 : vector<2x32xf32>
    %42 = math.tanh %41 : vector<2x32xf32>
    %cst_18 = arith.constant 1.000000e+00 : f32
    %43 = vector.broadcast %cst_18 : f32 to vector<2x32xf32>
    %44 = arith.subf %43, %37 : vector<2x32xf32>
    %45 = arith.mulf %44, %42 : vector<2x32xf32>
    %46 = arith.mulf %37, %10 : vector<2x32xf32>
    %47 = arith.addf %45, %46 : vector<2x32xf32>
    %c0_19 = arith.constant 0 : index
    %48 = arith.index_cast %c0_i32 : i32 to index
    %c0_20 = arith.constant 0 : index
    %c0_21 = arith.constant 0 : index
    %49 = vector.load %arg6[%c0_19, %48, %c0_20, %c0_21] : memref<1x8x2x32xf32, #tpu.memory_space<vmem>>, vector<1x1x2x32xf32>
    %50 = vector.shape_cast %49 : vector<1x1x2x32xf32> to vector<2x32xf32>
    %51 = vector.shape_cast %47 : vector<2x32xf32> to vector<1x1x2x32xf32>
    tpu.vector_store %arg6[%c0_19, %48, %c0_20, %c0_21], %51 {strides = array<i32>} : memref<1x8x2x32xf32, #tpu.memory_space<vmem>>, vector<1x1x2x32xf32>,
    %c1_i32 = arith.constant 1 : i32
    %c0_22 = arith.constant 0 : index
    %52 = arith.index_cast %c1_i32 : i32 to index
    %c0_23 = arith.constant 0 : index
    %c0_24 = arith.constant 0 : index
    %53 = vector.load %arg1[%c0_22, %52, %c0_23, %c0_24] : memref<1x8x2x64xf32, #tpu.memory_space<vmem>>, vector<1x1x2x64xf32>
    %54 = vector.shape_cast %53 : vector<1x1x2x64xf32> to vector<2x64xf32>
    %55 = arith.truncf %54 : vector<2x64xf32> to vector<2x64xbf16>
    %cst_25 = arith.constant dense<0.000000e+00> : vector<2x96xf32>
    %56 = tpu.matmul %55, %2, %cst_25 {dimension_numbers = #tpu.dot_dimension_numbers<[1], [0], [0], [1], [0, 0, 1, 1], [], []>} : vector<2x64xbf16>, vector<64x96xbf16>, vector<2x96xf32> -> vector<2x96xf32>
    %57 = vector.broadcast %7 : vector<1x96xf32> to vector<2x96xf32>
    %58 = arith.addf %56, %57 : vector<2x96xf32>
    %59 = arith.truncf %47 : vector<2x32xf32> to vector<2x32xbf16>
    %cst_26 = arith.constant dense<0.000000e+00> : vector<2x96xf32>
    %60 = tpu.matmul %59, %5, %cst_26 {dimension_numbers = #tpu.dot_dimension_numbers<[1], [0], [0], [1], [0, 0, 1, 1], [], []>} : vector<2x32xbf16>, vector<32x96xbf16>, vector<2x96xf32> -> vector<2x96xf32>
    %61 = vector.broadcast %9 : vector<1x96xf32> to vector<2x96xf32>
    %62 = arith.addf %60, %61 : vector<2x96xf32>
    %63 = vector.extract_strided_slice %58 {offsets = [0, 0], sizes = [2, 32], strides = [1, 1]} : vector<2x96xf32> to vector<2x32xf32>
    %64 = vector.extract_strided_slice %62 {offsets = [0, 0], sizes = [2, 32], strides = [1, 1]} : vector<2x96xf32> to vector<2x32xf32>
    %65 = arith.addf %63, %64 : vector<2x32xf32>
    %66 = arith.negf %65 : vector<2x32xf32>
    %67 = math.exp %66 : vector<2x32xf32>
    %cst_27 = arith.constant 1.000000e+00 : f32
    %68 = vector.broadcast %cst_27 : f32 to vector<2x32xf32>
    %69 = arith.addf %68, %67 : vector<2x32xf32>
    %70 = arith.divf %68, %69 : vector<2x32xf32>
    %71 = vector.extract_strided_slice %58 {offsets = [0, 32], sizes = [2, 32], strides = [1, 1]} : vector<2x96xf32> to vector<2x32xf32>
    %72 = vector.extract_strided_slice %62 {offsets = [0, 32], sizes = [2, 32], strides = [1, 1]} : vector<2x96xf32> to vector<2x32xf32>
    %73 = arith.addf %71, %72 : vector<2x32xf32>
    %74 = arith.negf %73 : vector<2x32xf32>
    %75 = math.exp %74 : vector<2x32xf32>
    %cst_28 = arith.constant 1.000000e+00 : f32
    %76 = vector.broadcast %cst_28 : f32 to vector<2x32xf32>
    %77 = arith.addf %76, %75 : vector<2x32xf32>
    %78 = arith.divf %76, %77 : vector<2x32xf32>
    %79 = vector.extract_strided_slice %58 {offsets = [0, 64], sizes = [2, 32], strides = [1, 1]} : vector<2x96xf32> to vector<2x32xf32>
    %80 = vector.extract_strided_slice %62 {offsets = [0, 64], sizes = [2, 32], strides = [1, 1]} : vector<2x96xf32> to vector<2x32xf32>
    %81 = arith.mulf %70, %80 : vector<2x32xf32>
    %82 = arith.addf %79, %81 : vector<2x32xf32>
    %83 = math.tanh %82 : vector<2x32xf32>
    %cst_29 = arith.constant 1.000000e+00 : f32
    %84 = vector.broadcast %cst_29 : f32 to vector<2x32xf32>
    %85 = arith.subf %84, %78 : vector<2x32xf32>
    %86 = arith.mulf %85, %83 : vector<2x32xf32>
    %87 = arith.mulf %78, %47 : vector<2x32xf32>
    %88 = arith.addf %86, %87 : vector<2x32xf32>
    %c0_30 = arith.constant 0 : index
    %89 = arith.index_cast %c1_i32 : i32 to index
    %c0_31 = arith.constant 0 : index
    %c0_32 = arith.constant 0 : index
    %90 = vector.load %arg6[%c0_30, %89, %c0_31, %c0_32] : memref<1x8x2x32xf32, #tpu.memory_space<vmem>>, vector<1x1x2x32xf32>
    %91 = vector.shape_cast %90 : vector<1x1x2x32xf32> to vector<2x32xf32>
    %92 = vector.shape_cast %88 : vector<2x32xf32> to vector<1x1x2x32xf32>
    tpu.vector_store %arg6[%c0_30, %89, %c0_31, %c0_32], %92 {strides = array<i32>} : memref<1x8x2x32xf32, #tpu.memory_space<vmem>>, vector<1x1x2x32xf32>,
    %c2_i32 = arith.constant 2 : i32
    %c0_33 = arith.constant 0 : index
    %93 = arith.index_cast %c2_i32 : i32 to index
    %c0_34 = arith.constant 0 : index
    %c0_35 = arith.constant 0 : index
    %94 = vector.load %arg1[%c0_33, %93, %c0_34, %c0_35] : memref<1x8x2x64xf32, #tpu.memory_space<vmem>>, vector<1x1x2x64xf32>
    %95 = vector.shape_cast %94 : vector<1x1x2x64xf32> to vector<2x64xf32>
    %96 = arith.truncf %95 : vector<2x64xf32> to vector<2x64xbf16>
    %cst_36 = arith.constant dense<0.000000e+00> : vector<2x96xf32>
    %97 = tpu.matmul %96, %2, %cst_36 {dimension_numbers = #tpu.dot_dimension_numbers<[1], [0], [0], [1], [0, 0, 1, 1], [], []>} : vector<2x64xbf16>, vector<64x96xbf16>, vector<2x96xf32> -> vector<2x96xf32>
    %98 = vector.broadcast %7 : vector<1x96xf32> to vector<2x96xf32>
    %99 = arith.addf %97, %98 : vector<2x96xf32>
    %100 = arith.truncf %88 : vector<2x32xf32> to vector<2x32xbf16>
    %cst_37 = arith.constant dense<0.000000e+00> : vector<2x96xf32>
    %101 = tpu.matmul %100, %5, %cst_37 {dimension_numbers = #tpu.dot_dimension_numbers<[1], [0], [0], [1], [0, 0, 1, 1], [], []>} : vector<2x32xbf16>, vector<32x96xbf16>, vector<2x96xf32> -> vector<2x96xf32>
    %102 = vector.broadcast %9 : vector<1x96xf32> to vector<2x96xf32>
    %103 = arith.addf %101, %102 : vector<2x96xf32>
    %104 = vector.extract_strided_slice %99 {offsets = [0, 0], sizes = [2, 32], strides = [1, 1]} : vector<2x96xf32> to vector<2x32xf32>
    %105 = vector.extract_strided_slice %103 {offsets = [0, 0], sizes = [2, 32], strides = [1, 1]} : vector<2x96xf32> to vector<2x32xf32>
    %106 = arith.addf %104, %105 : vector<2x32xf32>
    %107 = arith.negf %106 : vector<2x32xf32>
    %108 = math.exp %107 : vector<2x32xf32>
    %cst_38 = arith.constant 1.000000e+00 : f32
    %109 = vector.broadcast %cst_38 : f32 to vector<2x32xf32>
    %110 = arith.addf %109, %108 : vector<2x32xf32>
    %111 = arith.divf %109, %110 : vector<2x32xf32>
    %112 = vector.extract_strided_slice %99 {offsets = [0, 32], sizes = [2, 32], strides = [1, 1]} : vector<2x96xf32> to vector<2x32xf32>
    %113 = vector.extract_strided_slice %103 {offsets = [0, 32], sizes = [2, 32], strides = [1, 1]} : vector<2x96xf32> to vector<2x32xf32>
    %114 = arith.addf %112, %113 : vector<2x32xf32>
    %115 = arith.negf %114 : vector<2x32xf32>
    %116 = math.exp %115 : vector<2x32xf32>
    %cst_39 = arith.constant 1.000000e+00 : f32
    %117 = vector.broadcast %cst_39 : f32 to vector<2x32xf32>
    %118 = arith.addf %117, %116 : vector<2x32xf32>
    %119 = arith.divf %117, %118 : vector<2x32xf32>
    %120 = vector.extract_strided_slice %99 {offsets = [0, 64], sizes = [2, 32], strides = [1, 1]} : vector<2x96xf32> to vector<2x32xf32>
    %121 = vector.extract_strided_slice %103 {offsets = [0, 64], sizes = [2, 32], strides = [1, 1]} : vector<2x96xf32> to vector<2x32xf32>
    %122 = arith.mulf %111, %121 : vector<2x32xf32>
    %123 = arith.addf %120, %122 : vector<2x32xf32>
    %124 = math.tanh %123 : vector<2x32xf32>
    %cst_40 = arith.constant 1.000000e+00 : f32
    %125 = vector.broadcast %cst_40 : f32 to vector<2x32xf32>
    %126 = arith.subf %125, %119 : vector<2x32xf32>
    %127 = arith.mulf %126, %124 : vector<2x32xf32>
    %128 = arith.mulf %119, %88 : vector<2x32xf32>
    %129 = arith.addf %127, %128 : vector<2x32xf32>
    %c0_41 = arith.constant 0 : index
    %130 = arith.index_cast %c2_i32 : i32 to index
    %c0_42 = arith.constant 0 : index
    %c0_43 = arith.constant 0 : index
    %131 = vector.load %arg6[%c0_41, %130, %c0_42, %c0_43] : memref<1x8x2x32xf32, #tpu.memory_space<vmem>>, vector<1x1x2x32xf32>
    %132 = vector.shape_cast %131 : vector<1x1x2x32xf32> to vector<2x32xf32>
    %133 = vector.shape_cast %129 : vector<2x32xf32> to vector<1x1x2x32xf32>
    tpu.vector_store %arg6[%c0_41, %130, %c0_42, %c0_43], %133 {strides = array<i32>} : memref<1x8x2x32xf32, #tpu.memory_space<vmem>>, vector<1x1x2x32xf32>,
    %c3_i32 = arith.constant 3 : i32
    %c0_44 = arith.constant 0 : index
    %134 = arith.index_cast %c3_i32 : i32 to index
    %c0_45 = arith.constant 0 : index
    %c0_46 = arith.constant 0 : index
    %135 = vector.load %arg1[%c0_44, %134, %c0_45, %c0_46] : memref<1x8x2x64xf32, #tpu.memory_space<vmem>>, vector<1x1x2x64xf32>
    %136 = vector.shape_cast %135 : vector<1x1x2x64xf32> to vector<2x64xf32>
    %137 = arith.truncf %136 : vector<2x64xf32> to vector<2x64xbf16>
    %cst_47 = arith.constant dense<0.000000e+00> : vector<2x96xf32>
    %138 = tpu.matmul %137, %2, %cst_47 {dimension_numbers = #tpu.dot_dimension_numbers<[1], [0], [0], [1], [0, 0, 1, 1], [], []>} : vector<2x64xbf16>, vector<64x96xbf16>, vector<2x96xf32> -> vector<2x96xf32>
    %139 = vector.broadcast %7 : vector<1x96xf32> to vector<2x96xf32>
    %140 = arith.addf %138, %139 : vector<2x96xf32>
    %141 = arith.truncf %129 : vector<2x32xf32> to vector<2x32xbf16>
    %cst_48 = arith.constant dense<0.000000e+00> : vector<2x96xf32>
    %142 = tpu.matmul %141, %5, %cst_48 {dimension_numbers = #tpu.dot_dimension_numbers<[1], [0], [0], [1], [0, 0, 1, 1], [], []>} : vector<2x32xbf16>, vector<32x96xbf16>, vector<2x96xf32> -> vector<2x96xf32>
    %143 = vector.broadcast %9 : vector<1x96xf32> to vector<2x96xf32>
    %144 = arith.addf %142, %143 : vector<2x96xf32>
    %145 = vector.extract_strided_slice %140 {offsets = [0, 0], sizes = [2, 32], strides = [1, 1]} : vector<2x96xf32> to vector<2x32xf32>
    %146 = vector.extract_strided_slice %144 {offsets = [0, 0], sizes = [2, 32], strides = [1, 1]} : vector<2x96xf32> to vector<2x32xf32>
    %147 = arith.addf %145, %146 : vector<2x32xf32>
    %148 = arith.negf %147 : vector<2x32xf32>
    %149 = math.exp %148 : vector<2x32xf32>
    %cst_49 = arith.constant 1.000000e+00 : f32
    %150 = vector.broadcast %cst_49 : f32 to vector<2x32xf32>
    %151 = arith.addf %150, %149 : vector<2x32xf32>
    %152 = arith.divf %150, %151 : vector<2x32xf32>
    %153 = vector.extract_strided_slice %140 {offsets = [0, 32], sizes = [2, 32], strides = [1, 1]} : vector<2x96xf32> to vector<2x32xf32>
    %154 = vector.extract_strided_slice %144 {offsets = [0, 32], sizes = [2, 32], strides = [1, 1]} : vector<2x96xf32> to vector<2x32xf32>
    %155 = arith.addf %153, %154 : vector<2x32xf32>
    %156 = arith.negf %155 : vector<2x32xf32>
    %157 = math.exp %156 : vector<2x32xf32>
    %cst_50 = arith.constant 1.000000e+00 : f32
    %158 = vector.broadcast %cst_50 : f32 to vector<2x32xf32>
    %159 = arith.addf %158, %157 : vector<2x32xf32>
    %160 = arith.divf %158, %159 : vector<2x32xf32>
    %161 = vector.extract_strided_slice %140 {offsets = [0, 64], sizes = [2, 32], strides = [1, 1]} : vector<2x96xf32> to vector<2x32xf32>
    %162 = vector.extract_strided_slice %144 {offsets = [0, 64], sizes = [2, 32], strides = [1, 1]} : vector<2x96xf32> to vector<2x32xf32>
    %163 = arith.mulf %152, %162 : vector<2x32xf32>
    %164 = arith.addf %161, %163 : vector<2x32xf32>
    %165 = math.tanh %164 : vector<2x32xf32>
    %cst_51 = arith.constant 1.000000e+00 : f32
    %166 = vector.broadcast %cst_51 : f32 to vector<2x32xf32>
    %167 = arith.subf %166, %160 : vector<2x32xf32>
    %168 = arith.mulf %167, %165 : vector<2x32xf32>
    %169 = arith.mulf %160, %129 : vector<2x32xf32>
    %170 = arith.addf %168, %169 : vector<2x32xf32>
    %c0_52 = arith.constant 0 : index
    %171 = arith.index_cast %c3_i32 : i32 to index
    %c0_53 = arith.constant 0 : index
    %c0_54 = arith.constant 0 : index
    %172 = vector.load %arg6[%c0_52, %171, %c0_53, %c0_54] : memref<1x8x2x32xf32, #tpu.memory_space<vmem>>, vector<1x1x2x32xf32>
    %173 = vector.shape_cast %172 : vector<1x1x2x32xf32> to vector<2x32xf32>
    %174 = vector.shape_cast %170 : vector<2x32xf32> to vector<1x1x2x32xf32>
    tpu.vector_store %arg6[%c0_52, %171, %c0_53, %c0_54], %174 {strides = array<i32>} : memref<1x8x2x32xf32, #tpu.memory_space<vmem>>, vector<1x1x2x32xf32>,
    %c4_i32 = arith.constant 4 : i32
    %c0_55 = arith.constant 0 : index
    %175 = arith.index_cast %c4_i32 : i32 to index
    %c0_56 = arith.constant 0 : index
    %c0_57 = arith.constant 0 : index
    %176 = vector.load %arg1[%c0_55, %175, %c0_56, %c0_57] : memref<1x8x2x64xf32, #tpu.memory_space<vmem>>, vector<1x1x2x64xf32>
    %177 = vector.shape_cast %176 : vector<1x1x2x64xf32> to vector<2x64xf32>
    %178 = arith.truncf %177 : vector<2x64xf32> to vector<2x64xbf16>
    %cst_58 = arith.constant dense<0.000000e+00> : vector<2x96xf32>
    %179 = tpu.matmul %178, %2, %cst_58 {dimension_numbers = #tpu.dot_dimension_numbers<[1], [0], [0], [1], [0, 0, 1, 1], [], []>} : vector<2x64xbf16>, vector<64x96xbf16>, vector<2x96xf32> -> vector<2x96xf32>
    %180 = vector.broadcast %7 : vector<1x96xf32> to vector<2x96xf32>
    %181 = arith.addf %179, %180 : vector<2x96xf32>
    %182 = arith.truncf %170 : vector<2x32xf32> to vector<2x32xbf16>
    %cst_59 = arith.constant dense<0.000000e+00> : vector<2x96xf32>
    %183 = tpu.matmul %182, %5, %cst_59 {dimension_numbers = #tpu.dot_dimension_numbers<[1], [0], [0], [1], [0, 0, 1, 1], [], []>} : vector<2x32xbf16>, vector<32x96xbf16>, vector<2x96xf32> -> vector<2x96xf32>
    %184 = vector.broadcast %9 : vector<1x96xf32> to vector<2x96xf32>
    %185 = arith.addf %183, %184 : vector<2x96xf32>
    %186 = vector.extract_strided_slice %181 {offsets = [0, 0], sizes = [2, 32], strides = [1, 1]} : vector<2x96xf32> to vector<2x32xf32>
    %187 = vector.extract_strided_slice %185 {offsets = [0, 0], sizes = [2, 32], strides = [1, 1]} : vector<2x96xf32> to vector<2x32xf32>
    %188 = arith.addf %186, %187 : vector<2x32xf32>
    %189 = arith.negf %188 : vector<2x32xf32>
    %190 = math.exp %189 : vector<2x32xf32>
    %cst_60 = arith.constant 1.000000e+00 : f32
    %191 = vector.broadcast %cst_60 : f32 to vector<2x32xf32>
    %192 = arith.addf %191, %190 : vector<2x32xf32>
    %193 = arith.divf %191, %192 : vector<2x32xf32>
    %194 = vector.extract_strided_slice %181 {offsets = [0, 32], sizes = [2, 32], strides = [1, 1]} : vector<2x96xf32> to vector<2x32xf32>
    %195 = vector.extract_strided_slice %185 {offsets = [0, 32], sizes = [2, 32], strides = [1, 1]} : vector<2x96xf32> to vector<2x32xf32>
    %196 = arith.addf %194, %195 : vector<2x32xf32>
    %197 = arith.negf %196 : vector<2x32xf32>
    %198 = math.exp %197 : vector<2x32xf32>
    %cst_61 = arith.constant 1.000000e+00 : f32
    %199 = vector.broadcast %cst_61 : f32 to vector<2x32xf32>
    %200 = arith.addf %199, %198 : vector<2x32xf32>
    %201 = arith.divf %199, %200 : vector<2x32xf32>
    %202 = vector.extract_strided_slice %181 {offsets = [0, 64], sizes = [2, 32], strides = [1, 1]} : vector<2x96xf32> to vector<2x32xf32>
    %203 = vector.extract_strided_slice %185 {offsets = [0, 64], sizes = [2, 32], strides = [1, 1]} : vector<2x96xf32> to vector<2x32xf32>
    %204 = arith.mulf %193, %203 : vector<2x32xf32>
    %205 = arith.addf %202, %204 : vector<2x32xf32>
    %206 = math.tanh %205 : vector<2x32xf32>
    %cst_62 = arith.constant 1.000000e+00 : f32
    %207 = vector.broadcast %cst_62 : f32 to vector<2x32xf32>
    %208 = arith.subf %207, %201 : vector<2x32xf32>
    %209 = arith.mulf %208, %206 : vector<2x32xf32>
    %210 = arith.mulf %201, %170 : vector<2x32xf32>
    %211 = arith.addf %209, %210 : vector<2x32xf32>
    %c0_63 = arith.constant 0 : index
    %212 = arith.index_cast %c4_i32 : i32 to index
    %c0_64 = arith.constant 0 : index
    %c0_65 = arith.constant 0 : index
    %213 = vector.load %arg6[%c0_63, %212, %c0_64, %c0_65] : memref<1x8x2x32xf32, #tpu.memory_space<vmem>>, vector<1x1x2x32xf32>
    %214 = vector.shape_cast %213 : vector<1x1x2x32xf32> to vector<2x32xf32>
    %215 = vector.shape_cast %211 : vector<2x32xf32> to vector<1x1x2x32xf32>
    tpu.vector_store %arg6[%c0_63, %212, %c0_64, %c0_65], %215 {strides = array<i32>} : memref<1x8x2x32xf32, #tpu.memory_space<vmem>>, vector<1x1x2x32xf32>,
    %c5_i32 = arith.constant 5 : i32
    %c0_66 = arith.constant 0 : index
    %216 = arith.index_cast %c5_i32 : i32 to index
    %c0_67 = arith.constant 0 : index
    %c0_68 = arith.constant 0 : index
    %217 = vector.load %arg1[%c0_66, %216, %c0_67, %c0_68] : memref<1x8x2x64xf32, #tpu.memory_space<vmem>>, vector<1x1x2x64xf32>
    %218 = vector.shape_cast %217 : vector<1x1x2x64xf32> to vector<2x64xf32>
    %219 = arith.truncf %218 : vector<2x64xf32> to vector<2x64xbf16>
    %cst_69 = arith.constant dense<0.000000e+00> : vector<2x96xf32>
    %220 = tpu.matmul %219, %2, %cst_69 {dimension_numbers = #tpu.dot_dimension_numbers<[1], [0], [0], [1], [0, 0, 1, 1], [], []>} : vector<2x64xbf16>, vector<64x96xbf16>, vector<2x96xf32> -> vector<2x96xf32>
    %221 = vector.broadcast %7 : vector<1x96xf32> to vector<2x96xf32>
    %222 = arith.addf %220, %221 : vector<2x96xf32>
    %223 = arith.truncf %211 : vector<2x32xf32> to vector<2x32xbf16>
    %cst_70 = arith.constant dense<0.000000e+00> : vector<2x96xf32>
    %224 = tpu.matmul %223, %5, %cst_70 {dimension_numbers = #tpu.dot_dimension_numbers<[1], [0], [0], [1], [0, 0, 1, 1], [], []>} : vector<2x32xbf16>, vector<32x96xbf16>, vector<2x96xf32> -> vector<2x96xf32>
    %225 = vector.broadcast %9 : vector<1x96xf32> to vector<2x96xf32>
    %226 = arith.addf %224, %225 : vector<2x96xf32>
    %227 = vector.extract_strided_slice %222 {offsets = [0, 0], sizes = [2, 32], strides = [1, 1]} : vector<2x96xf32> to vector<2x32xf32>
    %228 = vector.extract_strided_slice %226 {offsets = [0, 0], sizes = [2, 32], strides = [1, 1]} : vector<2x96xf32> to vector<2x32xf32>
    %229 = arith.addf %227, %228 : vector<2x32xf32>
    %230 = arith.negf %229 : vector<2x32xf32>
    %231 = math.exp %230 : vector<2x32xf32>
    %cst_71 = arith.constant 1.000000e+00 : f32
    %232 = vector.broadcast %cst_71 : f32 to vector<2x32xf32>
    %233 = arith.addf %232, %231 : vector<2x32xf32>
    %234 = arith.divf %232, %233 : vector<2x32xf32>
    %235 = vector.extract_strided_slice %222 {offsets = [0, 32], sizes = [2, 32], strides = [1, 1]} : vector<2x96xf32> to vector<2x32xf32>
    %236 = vector.extract_strided_slice %226 {offsets = [0, 32], sizes = [2, 32], strides = [1, 1]} : vector<2x96xf32> to vector<2x32xf32>
    %237 = arith.addf %235, %236 : vector<2x32xf32>
    %238 = arith.negf %237 : vector<2x32xf32>
    %239 = math.exp %238 : vector<2x32xf32>
    %cst_72 = arith.constant 1.000000e+00 : f32
    %240 = vector.broadcast %cst_72 : f32 to vector<2x32xf32>
    %241 = arith.addf %240, %239 : vector<2x32xf32>
    %242 = arith.divf %240, %241 : vector<2x32xf32>
    %243 = vector.extract_strided_slice %222 {offsets = [0, 64], sizes = [2, 32], strides = [1, 1]} : vector<2x96xf32> to vector<2x32xf32>
    %244 = vector.extract_strided_slice %226 {offsets = [0, 64], sizes = [2, 32], strides = [1, 1]} : vector<2x96xf32> to vector<2x32xf32>
    %245 = arith.mulf %234, %244 : vector<2x32xf32>
    %246 = arith.addf %243, %245 : vector<2x32xf32>
    %247 = math.tanh %246 : vector<2x32xf32>
    %cst_73 = arith.constant 1.000000e+00 : f32
    %248 = vector.broadcast %cst_73 : f32 to vector<2x32xf32>
    %249 = arith.subf %248, %242 : vector<2x32xf32>
    %250 = arith.mulf %249, %247 : vector<2x32xf32>
    %251 = arith.mulf %242, %211 : vector<2x32xf32>
    %252 = arith.addf %250, %251 : vector<2x32xf32>
    %c0_74 = arith.constant 0 : index
    %253 = arith.index_cast %c5_i32 : i32 to index
    %c0_75 = arith.constant 0 : index
    %c0_76 = arith.constant 0 : index
    %254 = vector.load %arg6[%c0_74, %253, %c0_75, %c0_76] : memref<1x8x2x32xf32, #tpu.memory_space<vmem>>, vector<1x1x2x32xf32>
    %255 = vector.shape_cast %254 : vector<1x1x2x32xf32> to vector<2x32xf32>
    %256 = vector.shape_cast %252 : vector<2x32xf32> to vector<1x1x2x32xf32>
    tpu.vector_store %arg6[%c0_74, %253, %c0_75, %c0_76], %256 {strides = array<i32>} : memref<1x8x2x32xf32, #tpu.memory_space<vmem>>, vector<1x1x2x32xf32>,
    %c6_i32 = arith.constant 6 : i32
    %c0_77 = arith.constant 0 : index
    %257 = arith.index_cast %c6_i32 : i32 to index
    %c0_78 = arith.constant 0 : index
    %c0_79 = arith.constant 0 : index
    %258 = vector.load %arg1[%c0_77, %257, %c0_78, %c0_79] : memref<1x8x2x64xf32, #tpu.memory_space<vmem>>, vector<1x1x2x64xf32>
    %259 = vector.shape_cast %258 : vector<1x1x2x64xf32> to vector<2x64xf32>
    %260 = arith.truncf %259 : vector<2x64xf32> to vector<2x64xbf16>
    %cst_80 = arith.constant dense<0.000000e+00> : vector<2x96xf32>
    %261 = tpu.matmul %260, %2, %cst_80 {dimension_numbers = #tpu.dot_dimension_numbers<[1], [0], [0], [1], [0, 0, 1, 1], [], []>} : vector<2x64xbf16>, vector<64x96xbf16>, vector<2x96xf32> -> vector<2x96xf32>
    %262 = vector.broadcast %7 : vector<1x96xf32> to vector<2x96xf32>
    %263 = arith.addf %261, %262 : vector<2x96xf32>
    %264 = arith.truncf %252 : vector<2x32xf32> to vector<2x32xbf16>
    %cst_81 = arith.constant dense<0.000000e+00> : vector<2x96xf32>
    %265 = tpu.matmul %264, %5, %cst_81 {dimension_numbers = #tpu.dot_dimension_numbers<[1], [0], [0], [1], [0, 0, 1, 1], [], []>} : vector<2x32xbf16>, vector<32x96xbf16>, vector<2x96xf32> -> vector<2x96xf32>
    %266 = vector.broadcast %9 : vector<1x96xf32> to vector<2x96xf32>
    %267 = arith.addf %265, %266 : vector<2x96xf32>
    %268 = vector.extract_strided_slice %263 {offsets = [0, 0], sizes = [2, 32], strides = [1, 1]} : vector<2x96xf32> to vector<2x32xf32>
    %269 = vector.extract_strided_slice %267 {offsets = [0, 0], sizes = [2, 32], strides = [1, 1]} : vector<2x96xf32> to vector<2x32xf32>
    %270 = arith.addf %268, %269 : vector<2x32xf32>
    %271 = arith.negf %270 : vector<2x32xf32>
    %272 = math.exp %271 : vector<2x32xf32>
    %cst_82 = arith.constant 1.000000e+00 : f32
    %273 = vector.broadcast %cst_82 : f32 to vector<2x32xf32>
    %274 = arith.addf %273, %272 : vector<2x32xf32>
    %275 = arith.divf %273, %274 : vector<2x32xf32>
    %276 = vector.extract_strided_slice %263 {offsets = [0, 32], sizes = [2, 32], strides = [1, 1]} : vector<2x96xf32> to vector<2x32xf32>
    %277 = vector.extract_strided_slice %267 {offsets = [0, 32], sizes = [2, 32], strides = [1, 1]} : vector<2x96xf32> to vector<2x32xf32>
    %278 = arith.addf %276, %277 : vector<2x32xf32>
    %279 = arith.negf %278 : vector<2x32xf32>
    %280 = math.exp %279 : vector<2x32xf32>
    %cst_83 = arith.constant 1.000000e+00 : f32
    %281 = vector.broadcast %cst_83 : f32 to vector<2x32xf32>
    %282 = arith.addf %281, %280 : vector<2x32xf32>
    %283 = arith.divf %281, %282 : vector<2x32xf32>
    %284 = vector.extract_strided_slice %263 {offsets = [0, 64], sizes = [2, 32], strides = [1, 1]} : vector<2x96xf32> to vector<2x32xf32>
    %285 = vector.extract_strided_slice %267 {offsets = [0, 64], sizes = [2, 32], strides = [1, 1]} : vector<2x96xf32> to vector<2x32xf32>
    %286 = arith.mulf %275, %285 : vector<2x32xf32>
    %287 = arith.addf %284, %286 : vector<2x32xf32>
    %288 = math.tanh %287 : vector<2x32xf32>
    %cst_84 = arith.constant 1.000000e+00 : f32
    %289 = vector.broadcast %cst_84 : f32 to vector<2x32xf32>
    %290 = arith.subf %289, %283 : vector<2x32xf32>
    %291 = arith.mulf %290, %288 : vector<2x32xf32>
    %292 = arith.mulf %283, %252 : vector<2x32xf32>
    %293 = arith.addf %291, %292 : vector<2x32xf32>
    %c0_85 = arith.constant 0 : index
    %294 = arith.index_cast %c6_i32 : i32 to index
    %c0_86 = arith.constant 0 : index
    %c0_87 = arith.constant 0 : index
    %295 = vector.load %arg6[%c0_85, %294, %c0_86, %c0_87] : memref<1x8x2x32xf32, #tpu.memory_space<vmem>>, vector<1x1x2x32xf32>
    %296 = vector.shape_cast %295 : vector<1x1x2x32xf32> to vector<2x32xf32>
    %297 = vector.shape_cast %293 : vector<2x32xf32> to vector<1x1x2x32xf32>
    tpu.vector_store %arg6[%c0_85, %294, %c0_86, %c0_87], %297 {strides = array<i32>} : memref<1x8x2x32xf32, #tpu.memory_space<vmem>>, vector<1x1x2x32xf32>,
    %c7_i32 = arith.constant 7 : i32
    %c0_88 = arith.constant 0 : index
    %298 = arith.index_cast %c7_i32 : i32 to index
    %c0_89 = arith.constant 0 : index
    %c0_90 = arith.constant 0 : index
    %299 = vector.load %arg1[%c0_88, %298, %c0_89, %c0_90] : memref<1x8x2x64xf32, #tpu.memory_space<vmem>>, vector<1x1x2x64xf32>
    %300 = vector.shape_cast %299 : vector<1x1x2x64xf32> to vector<2x64xf32>
    %301 = arith.truncf %300 : vector<2x64xf32> to vector<2x64xbf16>
    %cst_91 = arith.constant dense<0.000000e+00> : vector<2x96xf32>
    %302 = tpu.matmul %301, %2, %cst_91 {dimension_numbers = #tpu.dot_dimension_numbers<[1], [0], [0], [1], [0, 0, 1, 1], [], []>} : vector<2x64xbf16>, vector<64x96xbf16>, vector<2x96xf32> -> vector<2x96xf32>
    %303 = vector.broadcast %7 : vector<1x96xf32> to vector<2x96xf32>
    %304 = arith.addf %302, %303 : vector<2x96xf32>
    %305 = arith.truncf %293 : vector<2x32xf32> to vector<2x32xbf16>
    %cst_92 = arith.constant dense<0.000000e+00> : vector<2x96xf32>
    %306 = tpu.matmul %305, %5, %cst_92 {dimension_numbers = #tpu.dot_dimension_numbers<[1], [0], [0], [1], [0, 0, 1, 1], [], []>} : vector<2x32xbf16>, vector<32x96xbf16>, vector<2x96xf32> -> vector<2x96xf32>
    %307 = vector.broadcast %9 : vector<1x96xf32> to vector<2x96xf32>
    %308 = arith.addf %306, %307 : vector<2x96xf32>
    %309 = vector.extract_strided_slice %304 {offsets = [0, 0], sizes = [2, 32], strides = [1, 1]} : vector<2x96xf32> to vector<2x32xf32>
    %310 = vector.extract_strided_slice %308 {offsets = [0, 0], sizes = [2, 32], strides = [1, 1]} : vector<2x96xf32> to vector<2x32xf32>
    %311 = arith.addf %309, %310 : vector<2x32xf32>
    %312 = arith.negf %311 : vector<2x32xf32>
    %313 = math.exp %312 : vector<2x32xf32>
    %cst_93 = arith.constant 1.000000e+00 : f32
    %314 = vector.broadcast %cst_93 : f32 to vector<2x32xf32>
    %315 = arith.addf %314, %313 : vector<2x32xf32>
    %316 = arith.divf %314, %315 : vector<2x32xf32>
    %317 = vector.extract_strided_slice %304 {offsets = [0, 32], sizes = [2, 32], strides = [1, 1]} : vector<2x96xf32> to vector<2x32xf32>
    %318 = vector.extract_strided_slice %308 {offsets = [0, 32], sizes = [2, 32], strides = [1, 1]} : vector<2x96xf32> to vector<2x32xf32>
    %319 = arith.addf %317, %318 : vector<2x32xf32>
    %320 = arith.negf %319 : vector<2x32xf32>
    %321 = math.exp %320 : vector<2x32xf32>
    %cst_94 = arith.constant 1.000000e+00 : f32
    %322 = vector.broadcast %cst_94 : f32 to vector<2x32xf32>
    %323 = arith.addf %322, %321 : vector<2x32xf32>
    %324 = arith.divf %322, %323 : vector<2x32xf32>
    %325 = vector.extract_strided_slice %304 {offsets = [0, 64], sizes = [2, 32], strides = [1, 1]} : vector<2x96xf32> to vector<2x32xf32>
    %326 = vector.extract_strided_slice %308 {offsets = [0, 64], sizes = [2, 32], strides = [1, 1]} : vector<2x96xf32> to vector<2x32xf32>
    %327 = arith.mulf %316, %326 : vector<2x32xf32>
    %328 = arith.addf %325, %327 : vector<2x32xf32>
    %329 = math.tanh %328 : vector<2x32xf32>
    %cst_95 = arith.constant 1.000000e+00 : f32
    %330 = vector.broadcast %cst_95 : f32 to vector<2x32xf32>
    %331 = arith.subf %330, %324 : vector<2x32xf32>
    %332 = arith.mulf %331, %329 : vector<2x32xf32>
    %333 = arith.mulf %324, %293 : vector<2x32xf32>
    %334 = arith.addf %332, %333 : vector<2x32xf32>
    %c0_96 = arith.constant 0 : index
    %335 = arith.index_cast %c7_i32 : i32 to index
    %c0_97 = arith.constant 0 : index
    %c0_98 = arith.constant 0 : index
    %336 = vector.load %arg6[%c0_96, %335, %c0_97, %c0_98] : memref<1x8x2x32xf32, #tpu.memory_space<vmem>>, vector<1x1x2x32xf32>
    %337 = vector.shape_cast %336 : vector<1x1x2x32xf32> to vector<2x32xf32>
    %338 = vector.shape_cast %334 : vector<2x32xf32> to vector<1x1x2x32xf32>
    tpu.vector_store %arg6[%c0_96, %335, %c0_97, %c0_98], %338 {strides = array<i32>} : memref<1x8x2x32xf32, #tpu.memory_space<vmem>>, vector<1x1x2x32xf32>,
    %c8_i32 = arith.constant 8 : i32
    %c0_99 = arith.constant 0 : index
    %c0_100 = arith.constant 0 : index
    %c0_101 = arith.constant 0 : index
    %339 = vector.load %arg7[%c0_99, %c0_100, %c0_101] : memref<1x2x32xf32, #tpu.memory_space<vmem>>, vector<1x2x32xf32>
    %340 = vector.shape_cast %339 : vector<1x2x32xf32> to vector<2x32xf32>
    %341 = vector.shape_cast %334 : vector<2x32xf32> to vector<1x2x32xf32>
    tpu.vector_store %arg7[%c0_99, %c0_100, %c0_101], %341 {strides = array<i32>} : memref<1x2x32xf32, #tpu.memory_space<vmem>>, vector<1x2x32xf32>,
    return
  }
  func.func @transform_0(%arg0: i32) -> (i32, i32, i32, i32) {
    %c0_i32 = arith.constant 0 : i32
    %c0_i32_0 = arith.constant 0 : i32
    %c0_i32_1 = arith.constant 0 : i32
    %c0_i32_2 = arith.constant 0 : i32
    return %arg0, %c0_i32, %c0_i32_0, %c0_i32_1 : i32, i32, i32, i32
  }
  func.func @transform_1(%arg0: i32) -> (i32, i32, i32) {
    %c0_i32 = arith.constant 0 : i32
    %c0_i32_0 = arith.constant 0 : i32
    %c0_i32_1 = arith.constant 0 : i32
    return %arg0, %c0_i32, %c0_i32_0 : i32, i32, i32
  }
  func.func @transform_2(%arg0: i32) -> (i32, i32, i32) {
    %c0_i32 = arith.constant 0 : i32
    %c0_i32_0 = arith.constant 0 : i32
    %c0_i32_1 = arith.constant 0 : i32
    return %arg0, %c0_i32, %c0_i32_0 : i32, i32, i32
  }
  func.func @transform_3(%arg0: i32) -> (i32, i32, i32) {
    %c0_i32 = arith.constant 0 : i32
    %c0_i32_0 = arith.constant 0 : i32
    %c0_i32_1 = arith.constant 0 : i32
    return %arg0, %c0_i32, %c0_i32_0 : i32, i32, i32
  }
  func.func @transform_4(%arg0: i32) -> (i32, i32, i32) {
    %c0_i32 = arith.constant 0 : i32
    %c0_i32_0 = arith.constant 0 : i32
    %c0_i32_1 = arith.constant 0 : i32
    return %arg0, %c0_i32, %c0_i32_0 : i32, i32, i32
  }
  func.func @transform_5(%arg0: i32) -> (i32, i32, i32, i32) {
    %c0_i32 = arith.constant 0 : i32
    %c0_i32_0 = arith.constant 0 : i32
    %c0_i32_1 = arith.constant 0 : i32
    %c0_i32_2 = arith.constant 0 : i32
    return %arg0, %c0_i32, %c0_i32_0, %c0_i32_1 : i32, i32, i32, i32
  }
  func.func @transform_6(%arg0: i32) -> (i32, i32, i32) {
    %c0_i32 = arith.constant 0 : i32
    %c0_i32_0 = arith.constant 0 : i32
    %c0_i32_1 = arith.constant 0 : i32
    return %arg0, %c0_i32, %c0_i32_0 : i32, i32, i32
  }
}

module attributes {stable_mosaic.version = 11 : i64} {
  func.func @_mlp_kernel(%arg0: memref<2x64xf32, #tpu.memory_space<vmem>>, %arg1: memref<64x64xf32, #tpu.memory_space<vmem>>, %arg2: memref<1x64xf32, #tpu.memory_space<vmem>>, %arg3: memref<64x32xf32, #tpu.memory_space<vmem>>, %arg4: memref<1x32xf32, #tpu.memory_space<vmem>>, %arg5: memref<2x32xf32, #tpu.memory_space<vmem>>) attributes {dimension_semantics = [], scalar_prefetch = 0 : i64, scratch_operands = 0 : i64, tpu.core_type = #tpu.core_type<tc>} {
    %c0 = arith.constant 0 : index
    %c0_0 = arith.constant 0 : index
    %0 = vector.load %arg0[%c0, %c0_0] : memref<2x64xf32, #tpu.memory_space<vmem>>, vector<2x64xf32>
    %c0_1 = arith.constant 0 : index
    %c0_2 = arith.constant 0 : index
    %1 = vector.load %arg1[%c0_1, %c0_2] : memref<64x64xf32, #tpu.memory_space<vmem>>, vector<64x64xf32>
    %2 = arith.truncf %0 : vector<2x64xf32> to vector<2x64xbf16>
    %3 = arith.truncf %1 : vector<64x64xf32> to vector<64x64xbf16>
    %cst = arith.constant dense<0.000000e+00> : vector<2x64xf32>
    %4 = tpu.matmul %2, %3, %cst {dimension_numbers = #tpu.dot_dimension_numbers<[1], [0], [0], [1], [0, 0, 1, 1], [], []>} : vector<2x64xbf16>, vector<64x64xbf16>, vector<2x64xf32> -> vector<2x64xf32>
    %c0_3 = arith.constant 0 : index
    %c0_4 = arith.constant 0 : index
    %5 = vector.load %arg2[%c0_3, %c0_4] : memref<1x64xf32, #tpu.memory_space<vmem>>, vector<1x64xf32>
    %6 = vector.broadcast %5 : vector<1x64xf32> to vector<2x64xf32>
    %7 = arith.addf %4, %6 : vector<2x64xf32>
    %cst_5 = arith.constant 0.000000e+00 : f32
    %8 = vector.broadcast %cst_5 : f32 to vector<2x64xf32>
    %9 = arith.maximumf %7, %8 : vector<2x64xf32>
    %c0_6 = arith.constant 0 : index
    %c0_7 = arith.constant 0 : index
    %10 = vector.load %arg3[%c0_6, %c0_7] : memref<64x32xf32, #tpu.memory_space<vmem>>, vector<64x32xf32>
    %11 = arith.truncf %9 : vector<2x64xf32> to vector<2x64xbf16>
    %12 = arith.truncf %10 : vector<64x32xf32> to vector<64x32xbf16>
    %cst_8 = arith.constant dense<0.000000e+00> : vector<2x32xf32>
    %13 = tpu.matmul %11, %12, %cst_8 {dimension_numbers = #tpu.dot_dimension_numbers<[1], [0], [0], [1], [0, 0, 1, 1], [], []>} : vector<2x64xbf16>, vector<64x32xbf16>, vector<2x32xf32> -> vector<2x32xf32>
    %c0_9 = arith.constant 0 : index
    %c0_10 = arith.constant 0 : index
    %14 = vector.load %arg4[%c0_9, %c0_10] : memref<1x32xf32, #tpu.memory_space<vmem>>, vector<1x32xf32>
    %15 = vector.broadcast %14 : vector<1x32xf32> to vector<2x32xf32>
    %16 = arith.addf %13, %15 : vector<2x32xf32>
    %c0_11 = arith.constant 0 : index
    %c0_12 = arith.constant 0 : index
    %17 = vector.load %arg5[%c0_11, %c0_12] : memref<2x32xf32, #tpu.memory_space<vmem>>, vector<2x32xf32>
    tpu.vector_store %arg5[%c0_11, %c0_12], %16 {strides = array<i32>} : memref<2x32xf32, #tpu.memory_space<vmem>>, vector<2x32xf32>,
    return
  }
}

module attributes {stable_mosaic.version = 11 : i64} {
  func.func @_decoder_kernel(%arg0: memref<6x2x32xf32, #tpu.memory_space<vmem>>, %arg1: memref<8x2x32xf32, #tpu.memory_space<vmem>>, %arg2: memref<8x2x32xf32, #tpu.memory_space<vmem>>, %arg3: memref<2x32xf32, #tpu.memory_space<vmem>>, %arg4: memref<32x96xf32, #tpu.memory_space<vmem>>, %arg5: memref<32x96xf32, #tpu.memory_space<vmem>>, %arg6: memref<32x96xf32, #tpu.memory_space<vmem>>, %arg7: memref<1x96xf32, #tpu.memory_space<vmem>>, %arg8: memref<1x96xf32, #tpu.memory_space<vmem>>, %arg9: memref<32x96xf32, #tpu.memory_space<vmem>>, %arg10: memref<32x96xf32, #tpu.memory_space<vmem>>, %arg11: memref<1x96xf32, #tpu.memory_space<vmem>>, %arg12: memref<1x96xf32, #tpu.memory_space<vmem>>, %arg13: memref<32x32xf32, #tpu.memory_space<vmem>>, %arg14: memref<1x32xf32, #tpu.memory_space<vmem>>, %arg15: memref<1x1x32xf32, #tpu.memory_space<vmem>>, %arg16: memref<6x2x32xf32, #tpu.memory_space<vmem>>) attributes {dimension_semantics = [], scalar_prefetch = 0 : i64, scratch_operands = 0 : i64, tpu.core_type = #tpu.core_type<tc>} {
    %c0 = arith.constant 0 : index
    %c0_0 = arith.constant 0 : index
    %c0_1 = arith.constant 0 : index
    %0 = vector.load %arg1[%c0, %c0_0, %c0_1] : memref<8x2x32xf32, #tpu.memory_space<vmem>>, vector<8x2x32xf32>
    %c0_2 = arith.constant 0 : index
    %c0_3 = arith.constant 0 : index
    %c0_4 = arith.constant 0 : index
    %1 = vector.load %arg2[%c0_2, %c0_3, %c0_4] : memref<8x2x32xf32, #tpu.memory_space<vmem>>, vector<8x2x32xf32>
    %c0_5 = arith.constant 0 : index
    %c0_6 = arith.constant 0 : index
    %2 = vector.load %arg4[%c0_5, %c0_6] : memref<32x96xf32, #tpu.memory_space<vmem>>, vector<32x96xf32>
    %3 = arith.truncf %2 : vector<32x96xf32> to vector<32x96xbf16>
    %c0_7 = arith.constant 0 : index
    %c0_8 = arith.constant 0 : index
    %4 = vector.load %arg5[%c0_7, %c0_8] : memref<32x96xf32, #tpu.memory_space<vmem>>, vector<32x96xf32>
    %5 = arith.truncf %4 : vector<32x96xf32> to vector<32x96xbf16>
    %c0_9 = arith.constant 0 : index
    %c0_10 = arith.constant 0 : index
    %6 = vector.load %arg6[%c0_9, %c0_10] : memref<32x96xf32, #tpu.memory_space<vmem>>, vector<32x96xf32>
    %7 = arith.truncf %6 : vector<32x96xf32> to vector<32x96xbf16>
    %c0_11 = arith.constant 0 : index
    %c0_12 = arith.constant 0 : index
    %8 = vector.load %arg9[%c0_11, %c0_12] : memref<32x96xf32, #tpu.memory_space<vmem>>, vector<32x96xf32>
    %9 = arith.truncf %8 : vector<32x96xf32> to vector<32x96xbf16>
    %c0_13 = arith.constant 0 : index
    %c0_14 = arith.constant 0 : index
    %10 = vector.load %arg10[%c0_13, %c0_14] : memref<32x96xf32, #tpu.memory_space<vmem>>, vector<32x96xf32>
    %11 = arith.truncf %10 : vector<32x96xf32> to vector<32x96xbf16>
    %c0_15 = arith.constant 0 : index
    %c0_16 = arith.constant 0 : index
    %12 = vector.load %arg7[%c0_15, %c0_16] : memref<1x96xf32, #tpu.memory_space<vmem>>, vector<1x96xf32>
    %c0_17 = arith.constant 0 : index
    %c0_18 = arith.constant 0 : index
    %13 = vector.load %arg8[%c0_17, %c0_18] : memref<1x96xf32, #tpu.memory_space<vmem>>, vector<1x96xf32>
    %c0_19 = arith.constant 0 : index
    %c0_20 = arith.constant 0 : index
    %14 = vector.load %arg11[%c0_19, %c0_20] : memref<1x96xf32, #tpu.memory_space<vmem>>, vector<1x96xf32>
    %c0_21 = arith.constant 0 : index
    %c0_22 = arith.constant 0 : index
    %15 = vector.load %arg12[%c0_21, %c0_22] : memref<1x96xf32, #tpu.memory_space<vmem>>, vector<1x96xf32>
    %c0_23 = arith.constant 0 : index
    %c0_24 = arith.constant 0 : index
    %16 = vector.load %arg13[%c0_23, %c0_24] : memref<32x32xf32, #tpu.memory_space<vmem>>, vector<32x32xf32>
    %17 = arith.truncf %16 : vector<32x32xf32> to vector<32x32xbf16>
    %c0_25 = arith.constant 0 : index
    %c0_26 = arith.constant 0 : index
    %18 = vector.load %arg14[%c0_25, %c0_26] : memref<1x32xf32, #tpu.memory_space<vmem>>, vector<1x32xf32>
    %c0_27 = arith.constant 0 : index
    %c0_28 = arith.constant 0 : index
    %c0_29 = arith.constant 0 : index
    %19 = vector.load %arg15[%c0_27, %c0_28, %c0_29] : memref<1x1x32xf32, #tpu.memory_space<vmem>>, vector<1x1x32xf32>
    %c0_30 = arith.constant 0 : index
    %c0_31 = arith.constant 0 : index
    %20 = vector.load %arg3[%c0_30, %c0_31] : memref<2x32xf32, #tpu.memory_space<vmem>>, vector<2x32xf32>
    %c0_i32 = arith.constant 0 : i32
    %21 = arith.truncf %20 : vector<2x32xf32> to vector<2x32xbf16>
    %cst = arith.constant dense<0.000000e+00> : vector<2x32xf32>
    %22 = tpu.matmul %21, %17, %cst {dimension_numbers = #tpu.dot_dimension_numbers<[1], [0], [0], [1], [0, 0, 1, 1], [], []>} : vector<2x32xbf16>, vector<32x32xbf16>, vector<2x32xf32> -> vector<2x32xf32>
    %23 = vector.broadcast %18 : vector<1x32xf32> to vector<2x32xf32>
    %24 = arith.addf %22, %23 : vector<2x32xf32>
    %25 = vector.shape_cast %24 : vector<2x32xf32> to vector<1x2x32xf32>
    %26 = vector.broadcast %25 : vector<1x2x32xf32> to vector<8x2x32xf32>
    %27 = arith.addf %1, %26 : vector<8x2x32xf32>
    %28 = vector.broadcast %19 : vector<1x1x32xf32> to vector<8x2x32xf32>
    %29 = arith.mulf %27, %28 : vector<8x2x32xf32>
    %cst_32 = arith.constant dense<0.000000e+00> : vector<8x2xf32>
    %30 = vector.multi_reduction <add>, %29, %cst_32 [2] : vector<8x2x32xf32> to vector<8x2xf32>
    %31 = vector.shape_cast %30 : vector<8x2xf32> to vector<8x2x1xf32>
    %cst_33 = arith.constant dense<0xFF800000> : vector<2x1xf32>
    %32 = vector.multi_reduction <maximumf>, %31, %cst_33 [0] : vector<8x2x1xf32> to vector<2x1xf32>
    %33 = vector.shape_cast %32 : vector<2x1xf32> to vector<1x2x1xf32>
    %34 = vector.broadcast %33 : vector<1x2x1xf32> to vector<8x2x1xf32>
    %35 = arith.subf %31, %34 : vector<8x2x1xf32>
    %36 = math.exp %35 : vector<8x2x1xf32>
    %cst_34 = arith.constant dense<0.000000e+00> : vector<2x1xf32>
    %37 = vector.multi_reduction <add>, %36, %cst_34 [0] : vector<8x2x1xf32> to vector<2x1xf32>
    %38 = vector.shape_cast %37 : vector<2x1xf32> to vector<1x2x1xf32>
    %39 = vector.broadcast %38 : vector<1x2x1xf32> to vector<8x2x1xf32>
    %40 = arith.divf %36, %39 : vector<8x2x1xf32>
    %41 = vector.broadcast %40 : vector<8x2x1xf32> to vector<8x2x32xf32>
    %42 = arith.mulf %41, %0 : vector<8x2x32xf32>
    %cst_35 = arith.constant dense<0.000000e+00> : vector<2x32xf32>
    %43 = vector.multi_reduction <add>, %42, %cst_35 [0] : vector<8x2x32xf32> to vector<2x32xf32>
    %44 = arith.index_cast %c0_i32 : i32 to index
    %c0_36 = arith.constant 0 : index
    %c0_37 = arith.constant 0 : index
    %45 = vector.load %arg0[%44, %c0_36, %c0_37] : memref<6x2x32xf32, #tpu.memory_space<vmem>>, vector<1x2x32xf32>
    %46 = vector.shape_cast %45 : vector<1x2x32xf32> to vector<2x32xf32>
    %47 = arith.truncf %46 : vector<2x32xf32> to vector<2x32xbf16>
    %cst_38 = arith.constant dense<0.000000e+00> : vector<2x96xf32>
    %48 = tpu.matmul %47, %3, %cst_38 {dimension_numbers = #tpu.dot_dimension_numbers<[1], [0], [0], [1], [0, 0, 1, 1], [], []>} : vector<2x32xbf16>, vector<32x96xbf16>, vector<2x96xf32> -> vector<2x96xf32>
    %49 = arith.truncf %43 : vector<2x32xf32> to vector<2x32xbf16>
    %cst_39 = arith.constant dense<0.000000e+00> : vector<2x96xf32>
    %50 = tpu.matmul %49, %5, %cst_39 {dimension_numbers = #tpu.dot_dimension_numbers<[1], [0], [0], [1], [0, 0, 1, 1], [], []>} : vector<2x32xbf16>, vector<32x96xbf16>, vector<2x96xf32> -> vector<2x96xf32>
    %51 = arith.addf %48, %50 : vector<2x96xf32>
    %52 = vector.broadcast %12 : vector<1x96xf32> to vector<2x96xf32>
    %53 = arith.addf %51, %52 : vector<2x96xf32>
    %54 = arith.truncf %20 : vector<2x32xf32> to vector<2x32xbf16>
    %cst_40 = arith.constant dense<0.000000e+00> : vector<2x96xf32>
    %55 = tpu.matmul %54, %7, %cst_40 {dimension_numbers = #tpu.dot_dimension_numbers<[1], [0], [0], [1], [0, 0, 1, 1], [], []>} : vector<2x32xbf16>, vector<32x96xbf16>, vector<2x96xf32> -> vector<2x96xf32>
    %56 = vector.broadcast %13 : vector<1x96xf32> to vector<2x96xf32>
    %57 = arith.addf %55, %56 : vector<2x96xf32>
    %58 = vector.extract_strided_slice %53 {offsets = [0, 0], sizes = [2, 32], strides = [1, 1]} : vector<2x96xf32> to vector<2x32xf32>
    %59 = vector.extract_strided_slice %57 {offsets = [0, 0], sizes = [2, 32], strides = [1, 1]} : vector<2x96xf32> to vector<2x32xf32>
    %60 = arith.addf %58, %59 : vector<2x32xf32>
    %61 = arith.negf %60 : vector<2x32xf32>
    %62 = math.exp %61 : vector<2x32xf32>
    %cst_41 = arith.constant 1.000000e+00 : f32
    %63 = vector.broadcast %cst_41 : f32 to vector<2x32xf32>
    %64 = arith.addf %63, %62 : vector<2x32xf32>
    %65 = arith.divf %63, %64 : vector<2x32xf32>
    %66 = vector.extract_strided_slice %53 {offsets = [0, 32], sizes = [2, 32], strides = [1, 1]} : vector<2x96xf32> to vector<2x32xf32>
    %67 = vector.extract_strided_slice %57 {offsets = [0, 32], sizes = [2, 32], strides = [1, 1]} : vector<2x96xf32> to vector<2x32xf32>
    %68 = arith.addf %66, %67 : vector<2x32xf32>
    %69 = arith.negf %68 : vector<2x32xf32>
    %70 = math.exp %69 : vector<2x32xf32>
    %cst_42 = arith.constant 1.000000e+00 : f32
    %71 = vector.broadcast %cst_42 : f32 to vector<2x32xf32>
    %72 = arith.addf %71, %70 : vector<2x32xf32>
    %73 = arith.divf %71, %72 : vector<2x32xf32>
    %74 = vector.extract_strided_slice %53 {offsets = [0, 64], sizes = [2, 32], strides = [1, 1]} : vector<2x96xf32> to vector<2x32xf32>
    %75 = vector.extract_strided_slice %57 {offsets = [0, 64], sizes = [2, 32], strides = [1, 1]} : vector<2x96xf32> to vector<2x32xf32>
    %76 = arith.mulf %65, %75 : vector<2x32xf32>
    %77 = arith.addf %74, %76 : vector<2x32xf32>
    %78 = math.tanh %77 : vector<2x32xf32>
    %cst_43 = arith.constant 1.000000e+00 : f32
    %79 = vector.broadcast %cst_43 : f32 to vector<2x32xf32>
    %80 = arith.subf %79, %73 : vector<2x32xf32>
    %81 = arith.mulf %80, %78 : vector<2x32xf32>
    %82 = arith.mulf %73, %20 : vector<2x32xf32>
    %83 = arith.addf %81, %82 : vector<2x32xf32>
    %84 = arith.truncf %83 : vector<2x32xf32> to vector<2x32xbf16>
    %cst_44 = arith.constant dense<0.000000e+00> : vector<2x96xf32>
    %85 = tpu.matmul %84, %9, %cst_44 {dimension_numbers = #tpu.dot_dimension_numbers<[1], [0], [0], [1], [0, 0, 1, 1], [], []>} : vector<2x32xbf16>, vector<32x96xbf16>, vector<2x96xf32> -> vector<2x96xf32>
    %86 = vector.broadcast %14 : vector<1x96xf32> to vector<2x96xf32>
    %87 = arith.addf %85, %86 : vector<2x96xf32>
    %88 = arith.truncf %20 : vector<2x32xf32> to vector<2x32xbf16>
    %cst_45 = arith.constant dense<0.000000e+00> : vector<2x96xf32>
    %89 = tpu.matmul %88, %11, %cst_45 {dimension_numbers = #tpu.dot_dimension_numbers<[1], [0], [0], [1], [0, 0, 1, 1], [], []>} : vector<2x32xbf16>, vector<32x96xbf16>, vector<2x96xf32> -> vector<2x96xf32>
    %90 = vector.broadcast %15 : vector<1x96xf32> to vector<2x96xf32>
    %91 = arith.addf %89, %90 : vector<2x96xf32>
    %92 = vector.extract_strided_slice %87 {offsets = [0, 0], sizes = [2, 32], strides = [1, 1]} : vector<2x96xf32> to vector<2x32xf32>
    %93 = vector.extract_strided_slice %91 {offsets = [0, 0], sizes = [2, 32], strides = [1, 1]} : vector<2x96xf32> to vector<2x32xf32>
    %94 = arith.addf %92, %93 : vector<2x32xf32>
    %95 = arith.negf %94 : vector<2x32xf32>
    %96 = math.exp %95 : vector<2x32xf32>
    %cst_46 = arith.constant 1.000000e+00 : f32
    %97 = vector.broadcast %cst_46 : f32 to vector<2x32xf32>
    %98 = arith.addf %97, %96 : vector<2x32xf32>
    %99 = arith.divf %97, %98 : vector<2x32xf32>
    %100 = vector.extract_strided_slice %87 {offsets = [0, 32], sizes = [2, 32], strides = [1, 1]} : vector<2x96xf32> to vector<2x32xf32>
    %101 = vector.extract_strided_slice %91 {offsets = [0, 32], sizes = [2, 32], strides = [1, 1]} : vector<2x96xf32> to vector<2x32xf32>
    %102 = arith.addf %100, %101 : vector<2x32xf32>
    %103 = arith.negf %102 : vector<2x32xf32>
    %104 = math.exp %103 : vector<2x32xf32>
    %cst_47 = arith.constant 1.000000e+00 : f32
    %105 = vector.broadcast %cst_47 : f32 to vector<2x32xf32>
    %106 = arith.addf %105, %104 : vector<2x32xf32>
    %107 = arith.divf %105, %106 : vector<2x32xf32>
    %108 = vector.extract_strided_slice %87 {offsets = [0, 64], sizes = [2, 32], strides = [1, 1]} : vector<2x96xf32> to vector<2x32xf32>
    %109 = vector.extract_strided_slice %91 {offsets = [0, 64], sizes = [2, 32], strides = [1, 1]} : vector<2x96xf32> to vector<2x32xf32>
    %110 = arith.mulf %99, %109 : vector<2x32xf32>
    %111 = arith.addf %108, %110 : vector<2x32xf32>
    %112 = math.tanh %111 : vector<2x32xf32>
    %cst_48 = arith.constant 1.000000e+00 : f32
    %113 = vector.broadcast %cst_48 : f32 to vector<2x32xf32>
    %114 = arith.subf %113, %107 : vector<2x32xf32>
    %115 = arith.mulf %114, %112 : vector<2x32xf32>
    %116 = arith.mulf %107, %20 : vector<2x32xf32>
    %117 = arith.addf %115, %116 : vector<2x32xf32>
    %118 = arith.index_cast %c0_i32 : i32 to index
    %c0_49 = arith.constant 0 : index
    %c0_50 = arith.constant 0 : index
    %119 = vector.load %arg16[%118, %c0_49, %c0_50] : memref<6x2x32xf32, #tpu.memory_space<vmem>>, vector<1x2x32xf32>
    %120 = vector.shape_cast %119 : vector<1x2x32xf32> to vector<2x32xf32>
    %121 = vector.shape_cast %117 : vector<2x32xf32> to vector<1x2x32xf32>
    tpu.vector_store %arg16[%118, %c0_49, %c0_50], %121 {strides = array<i32>} : memref<6x2x32xf32, #tpu.memory_space<vmem>>, vector<1x2x32xf32>,
    %c1_i32 = arith.constant 1 : i32
    %122 = arith.truncf %117 : vector<2x32xf32> to vector<2x32xbf16>
    %cst_51 = arith.constant dense<0.000000e+00> : vector<2x32xf32>
    %123 = tpu.matmul %122, %17, %cst_51 {dimension_numbers = #tpu.dot_dimension_numbers<[1], [0], [0], [1], [0, 0, 1, 1], [], []>} : vector<2x32xbf16>, vector<32x32xbf16>, vector<2x32xf32> -> vector<2x32xf32>
    %124 = vector.broadcast %18 : vector<1x32xf32> to vector<2x32xf32>
    %125 = arith.addf %123, %124 : vector<2x32xf32>
    %126 = vector.shape_cast %125 : vector<2x32xf32> to vector<1x2x32xf32>
    %127 = vector.broadcast %126 : vector<1x2x32xf32> to vector<8x2x32xf32>
    %128 = arith.addf %1, %127 : vector<8x2x32xf32>
    %129 = vector.broadcast %19 : vector<1x1x32xf32> to vector<8x2x32xf32>
    %130 = arith.mulf %128, %129 : vector<8x2x32xf32>
    %cst_52 = arith.constant dense<0.000000e+00> : vector<8x2xf32>
    %131 = vector.multi_reduction <add>, %130, %cst_52 [2] : vector<8x2x32xf32> to vector<8x2xf32>
    %132 = vector.shape_cast %131 : vector<8x2xf32> to vector<8x2x1xf32>
    %cst_53 = arith.constant dense<0xFF800000> : vector<2x1xf32>
    %133 = vector.multi_reduction <maximumf>, %132, %cst_53 [0] : vector<8x2x1xf32> to vector<2x1xf32>
    %134 = vector.shape_cast %133 : vector<2x1xf32> to vector<1x2x1xf32>
    %135 = vector.broadcast %134 : vector<1x2x1xf32> to vector<8x2x1xf32>
    %136 = arith.subf %132, %135 : vector<8x2x1xf32>
    %137 = math.exp %136 : vector<8x2x1xf32>
    %cst_54 = arith.constant dense<0.000000e+00> : vector<2x1xf32>
    %138 = vector.multi_reduction <add>, %137, %cst_54 [0] : vector<8x2x1xf32> to vector<2x1xf32>
    %139 = vector.shape_cast %138 : vector<2x1xf32> to vector<1x2x1xf32>
    %140 = vector.broadcast %139 : vector<1x2x1xf32> to vector<8x2x1xf32>
    %141 = arith.divf %137, %140 : vector<8x2x1xf32>
    %142 = vector.broadcast %141 : vector<8x2x1xf32> to vector<8x2x32xf32>
    %143 = arith.mulf %142, %0 : vector<8x2x32xf32>
    %cst_55 = arith.constant dense<0.000000e+00> : vector<2x32xf32>
    %144 = vector.multi_reduction <add>, %143, %cst_55 [0] : vector<8x2x32xf32> to vector<2x32xf32>
    %145 = arith.index_cast %c1_i32 : i32 to index
    %c0_56 = arith.constant 0 : index
    %c0_57 = arith.constant 0 : index
    %146 = vector.load %arg0[%145, %c0_56, %c0_57] : memref<6x2x32xf32, #tpu.memory_space<vmem>>, vector<1x2x32xf32>
    %147 = vector.shape_cast %146 : vector<1x2x32xf32> to vector<2x32xf32>
    %148 = arith.truncf %147 : vector<2x32xf32> to vector<2x32xbf16>
    %cst_58 = arith.constant dense<0.000000e+00> : vector<2x96xf32>
    %149 = tpu.matmul %148, %3, %cst_58 {dimension_numbers = #tpu.dot_dimension_numbers<[1], [0], [0], [1], [0, 0, 1, 1], [], []>} : vector<2x32xbf16>, vector<32x96xbf16>, vector<2x96xf32> -> vector<2x96xf32>
    %150 = arith.truncf %144 : vector<2x32xf32> to vector<2x32xbf16>
    %cst_59 = arith.constant dense<0.000000e+00> : vector<2x96xf32>
    %151 = tpu.matmul %150, %5, %cst_59 {dimension_numbers = #tpu.dot_dimension_numbers<[1], [0], [0], [1], [0, 0, 1, 1], [], []>} : vector<2x32xbf16>, vector<32x96xbf16>, vector<2x96xf32> -> vector<2x96xf32>
    %152 = arith.addf %149, %151 : vector<2x96xf32>
    %153 = vector.broadcast %12 : vector<1x96xf32> to vector<2x96xf32>
    %154 = arith.addf %152, %153 : vector<2x96xf32>
    %155 = arith.truncf %83 : vector<2x32xf32> to vector<2x32xbf16>
    %cst_60 = arith.constant dense<0.000000e+00> : vector<2x96xf32>
    %156 = tpu.matmul %155, %7, %cst_60 {dimension_numbers = #tpu.dot_dimension_numbers<[1], [0], [0], [1], [0, 0, 1, 1], [], []>} : vector<2x32xbf16>, vector<32x96xbf16>, vector<2x96xf32> -> vector<2x96xf32>
    %157 = vector.broadcast %13 : vector<1x96xf32> to vector<2x96xf32>
    %158 = arith.addf %156, %157 : vector<2x96xf32>
    %159 = vector.extract_strided_slice %154 {offsets = [0, 0], sizes = [2, 32], strides = [1, 1]} : vector<2x96xf32> to vector<2x32xf32>
    %160 = vector.extract_strided_slice %158 {offsets = [0, 0], sizes = [2, 32], strides = [1, 1]} : vector<2x96xf32> to vector<2x32xf32>
    %161 = arith.addf %159, %160 : vector<2x32xf32>
    %162 = arith.negf %161 : vector<2x32xf32>
    %163 = math.exp %162 : vector<2x32xf32>
    %cst_61 = arith.constant 1.000000e+00 : f32
    %164 = vector.broadcast %cst_61 : f32 to vector<2x32xf32>
    %165 = arith.addf %164, %163 : vector<2x32xf32>
    %166 = arith.divf %164, %165 : vector<2x32xf32>
    %167 = vector.extract_strided_slice %154 {offsets = [0, 32], sizes = [2, 32], strides = [1, 1]} : vector<2x96xf32> to vector<2x32xf32>
    %168 = vector.extract_strided_slice %158 {offsets = [0, 32], sizes = [2, 32], strides = [1, 1]} : vector<2x96xf32> to vector<2x32xf32>
    %169 = arith.addf %167, %168 : vector<2x32xf32>
    %170 = arith.negf %169 : vector<2x32xf32>
    %171 = math.exp %170 : vector<2x32xf32>
    %cst_62 = arith.constant 1.000000e+00 : f32
    %172 = vector.broadcast %cst_62 : f32 to vector<2x32xf32>
    %173 = arith.addf %172, %171 : vector<2x32xf32>
    %174 = arith.divf %172, %173 : vector<2x32xf32>
    %175 = vector.extract_strided_slice %154 {offsets = [0, 64], sizes = [2, 32], strides = [1, 1]} : vector<2x96xf32> to vector<2x32xf32>
    %176 = vector.extract_strided_slice %158 {offsets = [0, 64], sizes = [2, 32], strides = [1, 1]} : vector<2x96xf32> to vector<2x32xf32>
    %177 = arith.mulf %166, %176 : vector<2x32xf32>
    %178 = arith.addf %175, %177 : vector<2x32xf32>
    %179 = math.tanh %178 : vector<2x32xf32>
    %cst_63 = arith.constant 1.000000e+00 : f32
    %180 = vector.broadcast %cst_63 : f32 to vector<2x32xf32>
    %181 = arith.subf %180, %174 : vector<2x32xf32>
    %182 = arith.mulf %181, %179 : vector<2x32xf32>
    %183 = arith.mulf %174, %83 : vector<2x32xf32>
    %184 = arith.addf %182, %183 : vector<2x32xf32>
    %185 = arith.truncf %184 : vector<2x32xf32> to vector<2x32xbf16>
    %cst_64 = arith.constant dense<0.000000e+00> : vector<2x96xf32>
    %186 = tpu.matmul %185, %9, %cst_64 {dimension_numbers = #tpu.dot_dimension_numbers<[1], [0], [0], [1], [0, 0, 1, 1], [], []>} : vector<2x32xbf16>, vector<32x96xbf16>, vector<2x96xf32> -> vector<2x96xf32>
    %187 = vector.broadcast %14 : vector<1x96xf32> to vector<2x96xf32>
    %188 = arith.addf %186, %187 : vector<2x96xf32>
    %189 = arith.truncf %117 : vector<2x32xf32> to vector<2x32xbf16>
    %cst_65 = arith.constant dense<0.000000e+00> : vector<2x96xf32>
    %190 = tpu.matmul %189, %11, %cst_65 {dimension_numbers = #tpu.dot_dimension_numbers<[1], [0], [0], [1], [0, 0, 1, 1], [], []>} : vector<2x32xbf16>, vector<32x96xbf16>, vector<2x96xf32> -> vector<2x96xf32>
    %191 = vector.broadcast %15 : vector<1x96xf32> to vector<2x96xf32>
    %192 = arith.addf %190, %191 : vector<2x96xf32>
    %193 = vector.extract_strided_slice %188 {offsets = [0, 0], sizes = [2, 32], strides = [1, 1]} : vector<2x96xf32> to vector<2x32xf32>
    %194 = vector.extract_strided_slice %192 {offsets = [0, 0], sizes = [2, 32], strides = [1, 1]} : vector<2x96xf32> to vector<2x32xf32>
    %195 = arith.addf %193, %194 : vector<2x32xf32>
    %196 = arith.negf %195 : vector<2x32xf32>
    %197 = math.exp %196 : vector<2x32xf32>
    %cst_66 = arith.constant 1.000000e+00 : f32
    %198 = vector.broadcast %cst_66 : f32 to vector<2x32xf32>
    %199 = arith.addf %198, %197 : vector<2x32xf32>
    %200 = arith.divf %198, %199 : vector<2x32xf32>
    %201 = vector.extract_strided_slice %188 {offsets = [0, 32], sizes = [2, 32], strides = [1, 1]} : vector<2x96xf32> to vector<2x32xf32>
    %202 = vector.extract_strided_slice %192 {offsets = [0, 32], sizes = [2, 32], strides = [1, 1]} : vector<2x96xf32> to vector<2x32xf32>
    %203 = arith.addf %201, %202 : vector<2x32xf32>
    %204 = arith.negf %203 : vector<2x32xf32>
    %205 = math.exp %204 : vector<2x32xf32>
    %cst_67 = arith.constant 1.000000e+00 : f32
    %206 = vector.broadcast %cst_67 : f32 to vector<2x32xf32>
    %207 = arith.addf %206, %205 : vector<2x32xf32>
    %208 = arith.divf %206, %207 : vector<2x32xf32>
    %209 = vector.extract_strided_slice %188 {offsets = [0, 64], sizes = [2, 32], strides = [1, 1]} : vector<2x96xf32> to vector<2x32xf32>
    %210 = vector.extract_strided_slice %192 {offsets = [0, 64], sizes = [2, 32], strides = [1, 1]} : vector<2x96xf32> to vector<2x32xf32>
    %211 = arith.mulf %200, %210 : vector<2x32xf32>
    %212 = arith.addf %209, %211 : vector<2x32xf32>
    %213 = math.tanh %212 : vector<2x32xf32>
    %cst_68 = arith.constant 1.000000e+00 : f32
    %214 = vector.broadcast %cst_68 : f32 to vector<2x32xf32>
    %215 = arith.subf %214, %208 : vector<2x32xf32>
    %216 = arith.mulf %215, %213 : vector<2x32xf32>
    %217 = arith.mulf %208, %117 : vector<2x32xf32>
    %218 = arith.addf %216, %217 : vector<2x32xf32>
    %219 = arith.index_cast %c1_i32 : i32 to index
    %c0_69 = arith.constant 0 : index
    %c0_70 = arith.constant 0 : index
    %220 = vector.load %arg16[%219, %c0_69, %c0_70] : memref<6x2x32xf32, #tpu.memory_space<vmem>>, vector<1x2x32xf32>
    %221 = vector.shape_cast %220 : vector<1x2x32xf32> to vector<2x32xf32>
    %222 = vector.shape_cast %218 : vector<2x32xf32> to vector<1x2x32xf32>
    tpu.vector_store %arg16[%219, %c0_69, %c0_70], %222 {strides = array<i32>} : memref<6x2x32xf32, #tpu.memory_space<vmem>>, vector<1x2x32xf32>,
    %c2_i32 = arith.constant 2 : i32
    %223 = arith.truncf %218 : vector<2x32xf32> to vector<2x32xbf16>
    %cst_71 = arith.constant dense<0.000000e+00> : vector<2x32xf32>
    %224 = tpu.matmul %223, %17, %cst_71 {dimension_numbers = #tpu.dot_dimension_numbers<[1], [0], [0], [1], [0, 0, 1, 1], [], []>} : vector<2x32xbf16>, vector<32x32xbf16>, vector<2x32xf32> -> vector<2x32xf32>
    %225 = vector.broadcast %18 : vector<1x32xf32> to vector<2x32xf32>
    %226 = arith.addf %224, %225 : vector<2x32xf32>
    %227 = vector.shape_cast %226 : vector<2x32xf32> to vector<1x2x32xf32>
    %228 = vector.broadcast %227 : vector<1x2x32xf32> to vector<8x2x32xf32>
    %229 = arith.addf %1, %228 : vector<8x2x32xf32>
    %230 = vector.broadcast %19 : vector<1x1x32xf32> to vector<8x2x32xf32>
    %231 = arith.mulf %229, %230 : vector<8x2x32xf32>
    %cst_72 = arith.constant dense<0.000000e+00> : vector<8x2xf32>
    %232 = vector.multi_reduction <add>, %231, %cst_72 [2] : vector<8x2x32xf32> to vector<8x2xf32>
    %233 = vector.shape_cast %232 : vector<8x2xf32> to vector<8x2x1xf32>
    %cst_73 = arith.constant dense<0xFF800000> : vector<2x1xf32>
    %234 = vector.multi_reduction <maximumf>, %233, %cst_73 [0] : vector<8x2x1xf32> to vector<2x1xf32>
    %235 = vector.shape_cast %234 : vector<2x1xf32> to vector<1x2x1xf32>
    %236 = vector.broadcast %235 : vector<1x2x1xf32> to vector<8x2x1xf32>
    %237 = arith.subf %233, %236 : vector<8x2x1xf32>
    %238 = math.exp %237 : vector<8x2x1xf32>
    %cst_74 = arith.constant dense<0.000000e+00> : vector<2x1xf32>
    %239 = vector.multi_reduction <add>, %238, %cst_74 [0] : vector<8x2x1xf32> to vector<2x1xf32>
    %240 = vector.shape_cast %239 : vector<2x1xf32> to vector<1x2x1xf32>
    %241 = vector.broadcast %240 : vector<1x2x1xf32> to vector<8x2x1xf32>
    %242 = arith.divf %238, %241 : vector<8x2x1xf32>
    %243 = vector.broadcast %242 : vector<8x2x1xf32> to vector<8x2x32xf32>
    %244 = arith.mulf %243, %0 : vector<8x2x32xf32>
    %cst_75 = arith.constant dense<0.000000e+00> : vector<2x32xf32>
    %245 = vector.multi_reduction <add>, %244, %cst_75 [0] : vector<8x2x32xf32> to vector<2x32xf32>
    %246 = arith.index_cast %c2_i32 : i32 to index
    %c0_76 = arith.constant 0 : index
    %c0_77 = arith.constant 0 : index
    %247 = vector.load %arg0[%246, %c0_76, %c0_77] : memref<6x2x32xf32, #tpu.memory_space<vmem>>, vector<1x2x32xf32>
    %248 = vector.shape_cast %247 : vector<1x2x32xf32> to vector<2x32xf32>
    %249 = arith.truncf %248 : vector<2x32xf32> to vector<2x32xbf16>
    %cst_78 = arith.constant dense<0.000000e+00> : vector<2x96xf32>
    %250 = tpu.matmul %249, %3, %cst_78 {dimension_numbers = #tpu.dot_dimension_numbers<[1], [0], [0], [1], [0, 0, 1, 1], [], []>} : vector<2x32xbf16>, vector<32x96xbf16>, vector<2x96xf32> -> vector<2x96xf32>
    %251 = arith.truncf %245 : vector<2x32xf32> to vector<2x32xbf16>
    %cst_79 = arith.constant dense<0.000000e+00> : vector<2x96xf32>
    %252 = tpu.matmul %251, %5, %cst_79 {dimension_numbers = #tpu.dot_dimension_numbers<[1], [0], [0], [1], [0, 0, 1, 1], [], []>} : vector<2x32xbf16>, vector<32x96xbf16>, vector<2x96xf32> -> vector<2x96xf32>
    %253 = arith.addf %250, %252 : vector<2x96xf32>
    %254 = vector.broadcast %12 : vector<1x96xf32> to vector<2x96xf32>
    %255 = arith.addf %253, %254 : vector<2x96xf32>
    %256 = arith.truncf %184 : vector<2x32xf32> to vector<2x32xbf16>
    %cst_80 = arith.constant dense<0.000000e+00> : vector<2x96xf32>
    %257 = tpu.matmul %256, %7, %cst_80 {dimension_numbers = #tpu.dot_dimension_numbers<[1], [0], [0], [1], [0, 0, 1, 1], [], []>} : vector<2x32xbf16>, vector<32x96xbf16>, vector<2x96xf32> -> vector<2x96xf32>
    %258 = vector.broadcast %13 : vector<1x96xf32> to vector<2x96xf32>
    %259 = arith.addf %257, %258 : vector<2x96xf32>
    %260 = vector.extract_strided_slice %255 {offsets = [0, 0], sizes = [2, 32], strides = [1, 1]} : vector<2x96xf32> to vector<2x32xf32>
    %261 = vector.extract_strided_slice %259 {offsets = [0, 0], sizes = [2, 32], strides = [1, 1]} : vector<2x96xf32> to vector<2x32xf32>
    %262 = arith.addf %260, %261 : vector<2x32xf32>
    %263 = arith.negf %262 : vector<2x32xf32>
    %264 = math.exp %263 : vector<2x32xf32>
    %cst_81 = arith.constant 1.000000e+00 : f32
    %265 = vector.broadcast %cst_81 : f32 to vector<2x32xf32>
    %266 = arith.addf %265, %264 : vector<2x32xf32>
    %267 = arith.divf %265, %266 : vector<2x32xf32>
    %268 = vector.extract_strided_slice %255 {offsets = [0, 32], sizes = [2, 32], strides = [1, 1]} : vector<2x96xf32> to vector<2x32xf32>
    %269 = vector.extract_strided_slice %259 {offsets = [0, 32], sizes = [2, 32], strides = [1, 1]} : vector<2x96xf32> to vector<2x32xf32>
    %270 = arith.addf %268, %269 : vector<2x32xf32>
    %271 = arith.negf %270 : vector<2x32xf32>
    %272 = math.exp %271 : vector<2x32xf32>
    %cst_82 = arith.constant 1.000000e+00 : f32
    %273 = vector.broadcast %cst_82 : f32 to vector<2x32xf32>
    %274 = arith.addf %273, %272 : vector<2x32xf32>
    %275 = arith.divf %273, %274 : vector<2x32xf32>
    %276 = vector.extract_strided_slice %255 {offsets = [0, 64], sizes = [2, 32], strides = [1, 1]} : vector<2x96xf32> to vector<2x32xf32>
    %277 = vector.extract_strided_slice %259 {offsets = [0, 64], sizes = [2, 32], strides = [1, 1]} : vector<2x96xf32> to vector<2x32xf32>
    %278 = arith.mulf %267, %277 : vector<2x32xf32>
    %279 = arith.addf %276, %278 : vector<2x32xf32>
    %280 = math.tanh %279 : vector<2x32xf32>
    %cst_83 = arith.constant 1.000000e+00 : f32
    %281 = vector.broadcast %cst_83 : f32 to vector<2x32xf32>
    %282 = arith.subf %281, %275 : vector<2x32xf32>
    %283 = arith.mulf %282, %280 : vector<2x32xf32>
    %284 = arith.mulf %275, %184 : vector<2x32xf32>
    %285 = arith.addf %283, %284 : vector<2x32xf32>
    %286 = arith.truncf %285 : vector<2x32xf32> to vector<2x32xbf16>
    %cst_84 = arith.constant dense<0.000000e+00> : vector<2x96xf32>
    %287 = tpu.matmul %286, %9, %cst_84 {dimension_numbers = #tpu.dot_dimension_numbers<[1], [0], [0], [1], [0, 0, 1, 1], [], []>} : vector<2x32xbf16>, vector<32x96xbf16>, vector<2x96xf32> -> vector<2x96xf32>
    %288 = vector.broadcast %14 : vector<1x96xf32> to vector<2x96xf32>
    %289 = arith.addf %287, %288 : vector<2x96xf32>
    %290 = arith.truncf %218 : vector<2x32xf32> to vector<2x32xbf16>
    %cst_85 = arith.constant dense<0.000000e+00> : vector<2x96xf32>
    %291 = tpu.matmul %290, %11, %cst_85 {dimension_numbers = #tpu.dot_dimension_numbers<[1], [0], [0], [1], [0, 0, 1, 1], [], []>} : vector<2x32xbf16>, vector<32x96xbf16>, vector<2x96xf32> -> vector<2x96xf32>
    %292 = vector.broadcast %15 : vector<1x96xf32> to vector<2x96xf32>
    %293 = arith.addf %291, %292 : vector<2x96xf32>
    %294 = vector.extract_strided_slice %289 {offsets = [0, 0], sizes = [2, 32], strides = [1, 1]} : vector<2x96xf32> to vector<2x32xf32>
    %295 = vector.extract_strided_slice %293 {offsets = [0, 0], sizes = [2, 32], strides = [1, 1]} : vector<2x96xf32> to vector<2x32xf32>
    %296 = arith.addf %294, %295 : vector<2x32xf32>
    %297 = arith.negf %296 : vector<2x32xf32>
    %298 = math.exp %297 : vector<2x32xf32>
    %cst_86 = arith.constant 1.000000e+00 : f32
    %299 = vector.broadcast %cst_86 : f32 to vector<2x32xf32>
    %300 = arith.addf %299, %298 : vector<2x32xf32>
    %301 = arith.divf %299, %300 : vector<2x32xf32>
    %302 = vector.extract_strided_slice %289 {offsets = [0, 32], sizes = [2, 32], strides = [1, 1]} : vector<2x96xf32> to vector<2x32xf32>
    %303 = vector.extract_strided_slice %293 {offsets = [0, 32], sizes = [2, 32], strides = [1, 1]} : vector<2x96xf32> to vector<2x32xf32>
    %304 = arith.addf %302, %303 : vector<2x32xf32>
    %305 = arith.negf %304 : vector<2x32xf32>
    %306 = math.exp %305 : vector<2x32xf32>
    %cst_87 = arith.constant 1.000000e+00 : f32
    %307 = vector.broadcast %cst_87 : f32 to vector<2x32xf32>
    %308 = arith.addf %307, %306 : vector<2x32xf32>
    %309 = arith.divf %307, %308 : vector<2x32xf32>
    %310 = vector.extract_strided_slice %289 {offsets = [0, 64], sizes = [2, 32], strides = [1, 1]} : vector<2x96xf32> to vector<2x32xf32>
    %311 = vector.extract_strided_slice %293 {offsets = [0, 64], sizes = [2, 32], strides = [1, 1]} : vector<2x96xf32> to vector<2x32xf32>
    %312 = arith.mulf %301, %311 : vector<2x32xf32>
    %313 = arith.addf %310, %312 : vector<2x32xf32>
    %314 = math.tanh %313 : vector<2x32xf32>
    %cst_88 = arith.constant 1.000000e+00 : f32
    %315 = vector.broadcast %cst_88 : f32 to vector<2x32xf32>
    %316 = arith.subf %315, %309 : vector<2x32xf32>
    %317 = arith.mulf %316, %314 : vector<2x32xf32>
    %318 = arith.mulf %309, %218 : vector<2x32xf32>
    %319 = arith.addf %317, %318 : vector<2x32xf32>
    %320 = arith.index_cast %c2_i32 : i32 to index
    %c0_89 = arith.constant 0 : index
    %c0_90 = arith.constant 0 : index
    %321 = vector.load %arg16[%320, %c0_89, %c0_90] : memref<6x2x32xf32, #tpu.memory_space<vmem>>, vector<1x2x32xf32>
    %322 = vector.shape_cast %321 : vector<1x2x32xf32> to vector<2x32xf32>
    %323 = vector.shape_cast %319 : vector<2x32xf32> to vector<1x2x32xf32>
    tpu.vector_store %arg16[%320, %c0_89, %c0_90], %323 {strides = array<i32>} : memref<6x2x32xf32, #tpu.memory_space<vmem>>, vector<1x2x32xf32>,
    %c3_i32 = arith.constant 3 : i32
    %324 = arith.truncf %319 : vector<2x32xf32> to vector<2x32xbf16>
    %cst_91 = arith.constant dense<0.000000e+00> : vector<2x32xf32>
    %325 = tpu.matmul %324, %17, %cst_91 {dimension_numbers = #tpu.dot_dimension_numbers<[1], [0], [0], [1], [0, 0, 1, 1], [], []>} : vector<2x32xbf16>, vector<32x32xbf16>, vector<2x32xf32> -> vector<2x32xf32>
    %326 = vector.broadcast %18 : vector<1x32xf32> to vector<2x32xf32>
    %327 = arith.addf %325, %326 : vector<2x32xf32>
    %328 = vector.shape_cast %327 : vector<2x32xf32> to vector<1x2x32xf32>
    %329 = vector.broadcast %328 : vector<1x2x32xf32> to vector<8x2x32xf32>
    %330 = arith.addf %1, %329 : vector<8x2x32xf32>
    %331 = vector.broadcast %19 : vector<1x1x32xf32> to vector<8x2x32xf32>
    %332 = arith.mulf %330, %331 : vector<8x2x32xf32>
    %cst_92 = arith.constant dense<0.000000e+00> : vector<8x2xf32>
    %333 = vector.multi_reduction <add>, %332, %cst_92 [2] : vector<8x2x32xf32> to vector<8x2xf32>
    %334 = vector.shape_cast %333 : vector<8x2xf32> to vector<8x2x1xf32>
    %cst_93 = arith.constant dense<0xFF800000> : vector<2x1xf32>
    %335 = vector.multi_reduction <maximumf>, %334, %cst_93 [0] : vector<8x2x1xf32> to vector<2x1xf32>
    %336 = vector.shape_cast %335 : vector<2x1xf32> to vector<1x2x1xf32>
    %337 = vector.broadcast %336 : vector<1x2x1xf32> to vector<8x2x1xf32>
    %338 = arith.subf %334, %337 : vector<8x2x1xf32>
    %339 = math.exp %338 : vector<8x2x1xf32>
    %cst_94 = arith.constant dense<0.000000e+00> : vector<2x1xf32>
    %340 = vector.multi_reduction <add>, %339, %cst_94 [0] : vector<8x2x1xf32> to vector<2x1xf32>
    %341 = vector.shape_cast %340 : vector<2x1xf32> to vector<1x2x1xf32>
    %342 = vector.broadcast %341 : vector<1x2x1xf32> to vector<8x2x1xf32>
    %343 = arith.divf %339, %342 : vector<8x2x1xf32>
    %344 = vector.broadcast %343 : vector<8x2x1xf32> to vector<8x2x32xf32>
    %345 = arith.mulf %344, %0 : vector<8x2x32xf32>
    %cst_95 = arith.constant dense<0.000000e+00> : vector<2x32xf32>
    %346 = vector.multi_reduction <add>, %345, %cst_95 [0] : vector<8x2x32xf32> to vector<2x32xf32>
    %347 = arith.index_cast %c3_i32 : i32 to index
    %c0_96 = arith.constant 0 : index
    %c0_97 = arith.constant 0 : index
    %348 = vector.load %arg0[%347, %c0_96, %c0_97] : memref<6x2x32xf32, #tpu.memory_space<vmem>>, vector<1x2x32xf32>
    %349 = vector.shape_cast %348 : vector<1x2x32xf32> to vector<2x32xf32>
    %350 = arith.truncf %349 : vector<2x32xf32> to vector<2x32xbf16>
    %cst_98 = arith.constant dense<0.000000e+00> : vector<2x96xf32>
    %351 = tpu.matmul %350, %3, %cst_98 {dimension_numbers = #tpu.dot_dimension_numbers<[1], [0], [0], [1], [0, 0, 1, 1], [], []>} : vector<2x32xbf16>, vector<32x96xbf16>, vector<2x96xf32> -> vector<2x96xf32>
    %352 = arith.truncf %346 : vector<2x32xf32> to vector<2x32xbf16>
    %cst_99 = arith.constant dense<0.000000e+00> : vector<2x96xf32>
    %353 = tpu.matmul %352, %5, %cst_99 {dimension_numbers = #tpu.dot_dimension_numbers<[1], [0], [0], [1], [0, 0, 1, 1], [], []>} : vector<2x32xbf16>, vector<32x96xbf16>, vector<2x96xf32> -> vector<2x96xf32>
    %354 = arith.addf %351, %353 : vector<2x96xf32>
    %355 = vector.broadcast %12 : vector<1x96xf32> to vector<2x96xf32>
    %356 = arith.addf %354, %355 : vector<2x96xf32>
    %357 = arith.truncf %285 : vector<2x32xf32> to vector<2x32xbf16>
    %cst_100 = arith.constant dense<0.000000e+00> : vector<2x96xf32>
    %358 = tpu.matmul %357, %7, %cst_100 {dimension_numbers = #tpu.dot_dimension_numbers<[1], [0], [0], [1], [0, 0, 1, 1], [], []>} : vector<2x32xbf16>, vector<32x96xbf16>, vector<2x96xf32> -> vector<2x96xf32>
    %359 = vector.broadcast %13 : vector<1x96xf32> to vector<2x96xf32>
    %360 = arith.addf %358, %359 : vector<2x96xf32>
    %361 = vector.extract_strided_slice %356 {offsets = [0, 0], sizes = [2, 32], strides = [1, 1]} : vector<2x96xf32> to vector<2x32xf32>
    %362 = vector.extract_strided_slice %360 {offsets = [0, 0], sizes = [2, 32], strides = [1, 1]} : vector<2x96xf32> to vector<2x32xf32>
    %363 = arith.addf %361, %362 : vector<2x32xf32>
    %364 = arith.negf %363 : vector<2x32xf32>
    %365 = math.exp %364 : vector<2x32xf32>
    %cst_101 = arith.constant 1.000000e+00 : f32
    %366 = vector.broadcast %cst_101 : f32 to vector<2x32xf32>
    %367 = arith.addf %366, %365 : vector<2x32xf32>
    %368 = arith.divf %366, %367 : vector<2x32xf32>
    %369 = vector.extract_strided_slice %356 {offsets = [0, 32], sizes = [2, 32], strides = [1, 1]} : vector<2x96xf32> to vector<2x32xf32>
    %370 = vector.extract_strided_slice %360 {offsets = [0, 32], sizes = [2, 32], strides = [1, 1]} : vector<2x96xf32> to vector<2x32xf32>
    %371 = arith.addf %369, %370 : vector<2x32xf32>
    %372 = arith.negf %371 : vector<2x32xf32>
    %373 = math.exp %372 : vector<2x32xf32>
    %cst_102 = arith.constant 1.000000e+00 : f32
    %374 = vector.broadcast %cst_102 : f32 to vector<2x32xf32>
    %375 = arith.addf %374, %373 : vector<2x32xf32>
    %376 = arith.divf %374, %375 : vector<2x32xf32>
    %377 = vector.extract_strided_slice %356 {offsets = [0, 64], sizes = [2, 32], strides = [1, 1]} : vector<2x96xf32> to vector<2x32xf32>
    %378 = vector.extract_strided_slice %360 {offsets = [0, 64], sizes = [2, 32], strides = [1, 1]} : vector<2x96xf32> to vector<2x32xf32>
    %379 = arith.mulf %368, %378 : vector<2x32xf32>
    %380 = arith.addf %377, %379 : vector<2x32xf32>
    %381 = math.tanh %380 : vector<2x32xf32>
    %cst_103 = arith.constant 1.000000e+00 : f32
    %382 = vector.broadcast %cst_103 : f32 to vector<2x32xf32>
    %383 = arith.subf %382, %376 : vector<2x32xf32>
    %384 = arith.mulf %383, %381 : vector<2x32xf32>
    %385 = arith.mulf %376, %285 : vector<2x32xf32>
    %386 = arith.addf %384, %385 : vector<2x32xf32>
    %387 = arith.truncf %386 : vector<2x32xf32> to vector<2x32xbf16>
    %cst_104 = arith.constant dense<0.000000e+00> : vector<2x96xf32>
    %388 = tpu.matmul %387, %9, %cst_104 {dimension_numbers = #tpu.dot_dimension_numbers<[1], [0], [0], [1], [0, 0, 1, 1], [], []>} : vector<2x32xbf16>, vector<32x96xbf16>, vector<2x96xf32> -> vector<2x96xf32>
    %389 = vector.broadcast %14 : vector<1x96xf32> to vector<2x96xf32>
    %390 = arith.addf %388, %389 : vector<2x96xf32>
    %391 = arith.truncf %319 : vector<2x32xf32> to vector<2x32xbf16>
    %cst_105 = arith.constant dense<0.000000e+00> : vector<2x96xf32>
    %392 = tpu.matmul %391, %11, %cst_105 {dimension_numbers = #tpu.dot_dimension_numbers<[1], [0], [0], [1], [0, 0, 1, 1], [], []>} : vector<2x32xbf16>, vector<32x96xbf16>, vector<2x96xf32> -> vector<2x96xf32>
    %393 = vector.broadcast %15 : vector<1x96xf32> to vector<2x96xf32>
    %394 = arith.addf %392, %393 : vector<2x96xf32>
    %395 = vector.extract_strided_slice %390 {offsets = [0, 0], sizes = [2, 32], strides = [1, 1]} : vector<2x96xf32> to vector<2x32xf32>
    %396 = vector.extract_strided_slice %394 {offsets = [0, 0], sizes = [2, 32], strides = [1, 1]} : vector<2x96xf32> to vector<2x32xf32>
    %397 = arith.addf %395, %396 : vector<2x32xf32>
    %398 = arith.negf %397 : vector<2x32xf32>
    %399 = math.exp %398 : vector<2x32xf32>
    %cst_106 = arith.constant 1.000000e+00 : f32
    %400 = vector.broadcast %cst_106 : f32 to vector<2x32xf32>
    %401 = arith.addf %400, %399 : vector<2x32xf32>
    %402 = arith.divf %400, %401 : vector<2x32xf32>
    %403 = vector.extract_strided_slice %390 {offsets = [0, 32], sizes = [2, 32], strides = [1, 1]} : vector<2x96xf32> to vector<2x32xf32>
    %404 = vector.extract_strided_slice %394 {offsets = [0, 32], sizes = [2, 32], strides = [1, 1]} : vector<2x96xf32> to vector<2x32xf32>
    %405 = arith.addf %403, %404 : vector<2x32xf32>
    %406 = arith.negf %405 : vector<2x32xf32>
    %407 = math.exp %406 : vector<2x32xf32>
    %cst_107 = arith.constant 1.000000e+00 : f32
    %408 = vector.broadcast %cst_107 : f32 to vector<2x32xf32>
    %409 = arith.addf %408, %407 : vector<2x32xf32>
    %410 = arith.divf %408, %409 : vector<2x32xf32>
    %411 = vector.extract_strided_slice %390 {offsets = [0, 64], sizes = [2, 32], strides = [1, 1]} : vector<2x96xf32> to vector<2x32xf32>
    %412 = vector.extract_strided_slice %394 {offsets = [0, 64], sizes = [2, 32], strides = [1, 1]} : vector<2x96xf32> to vector<2x32xf32>
    %413 = arith.mulf %402, %412 : vector<2x32xf32>
    %414 = arith.addf %411, %413 : vector<2x32xf32>
    %415 = math.tanh %414 : vector<2x32xf32>
    %cst_108 = arith.constant 1.000000e+00 : f32
    %416 = vector.broadcast %cst_108 : f32 to vector<2x32xf32>
    %417 = arith.subf %416, %410 : vector<2x32xf32>
    %418 = arith.mulf %417, %415 : vector<2x32xf32>
    %419 = arith.mulf %410, %319 : vector<2x32xf32>
    %420 = arith.addf %418, %419 : vector<2x32xf32>
    %421 = arith.index_cast %c3_i32 : i32 to index
    %c0_109 = arith.constant 0 : index
    %c0_110 = arith.constant 0 : index
    %422 = vector.load %arg16[%421, %c0_109, %c0_110] : memref<6x2x32xf32, #tpu.memory_space<vmem>>, vector<1x2x32xf32>
    %423 = vector.shape_cast %422 : vector<1x2x32xf32> to vector<2x32xf32>
    %424 = vector.shape_cast %420 : vector<2x32xf32> to vector<1x2x32xf32>
    tpu.vector_store %arg16[%421, %c0_109, %c0_110], %424 {strides = array<i32>} : memref<6x2x32xf32, #tpu.memory_space<vmem>>, vector<1x2x32xf32>,
    %c4_i32 = arith.constant 4 : i32
    %425 = arith.truncf %420 : vector<2x32xf32> to vector<2x32xbf16>
    %cst_111 = arith.constant dense<0.000000e+00> : vector<2x32xf32>
    %426 = tpu.matmul %425, %17, %cst_111 {dimension_numbers = #tpu.dot_dimension_numbers<[1], [0], [0], [1], [0, 0, 1, 1], [], []>} : vector<2x32xbf16>, vector<32x32xbf16>, vector<2x32xf32> -> vector<2x32xf32>
    %427 = vector.broadcast %18 : vector<1x32xf32> to vector<2x32xf32>
    %428 = arith.addf %426, %427 : vector<2x32xf32>
    %429 = vector.shape_cast %428 : vector<2x32xf32> to vector<1x2x32xf32>
    %430 = vector.broadcast %429 : vector<1x2x32xf32> to vector<8x2x32xf32>
    %431 = arith.addf %1, %430 : vector<8x2x32xf32>
    %432 = vector.broadcast %19 : vector<1x1x32xf32> to vector<8x2x32xf32>
    %433 = arith.mulf %431, %432 : vector<8x2x32xf32>
    %cst_112 = arith.constant dense<0.000000e+00> : vector<8x2xf32>
    %434 = vector.multi_reduction <add>, %433, %cst_112 [2] : vector<8x2x32xf32> to vector<8x2xf32>
    %435 = vector.shape_cast %434 : vector<8x2xf32> to vector<8x2x1xf32>
    %cst_113 = arith.constant dense<0xFF800000> : vector<2x1xf32>
    %436 = vector.multi_reduction <maximumf>, %435, %cst_113 [0] : vector<8x2x1xf32> to vector<2x1xf32>
    %437 = vector.shape_cast %436 : vector<2x1xf32> to vector<1x2x1xf32>
    %438 = vector.broadcast %437 : vector<1x2x1xf32> to vector<8x2x1xf32>
    %439 = arith.subf %435, %438 : vector<8x2x1xf32>
    %440 = math.exp %439 : vector<8x2x1xf32>
    %cst_114 = arith.constant dense<0.000000e+00> : vector<2x1xf32>
    %441 = vector.multi_reduction <add>, %440, %cst_114 [0] : vector<8x2x1xf32> to vector<2x1xf32>
    %442 = vector.shape_cast %441 : vector<2x1xf32> to vector<1x2x1xf32>
    %443 = vector.broadcast %442 : vector<1x2x1xf32> to vector<8x2x1xf32>
    %444 = arith.divf %440, %443 : vector<8x2x1xf32>
    %445 = vector.broadcast %444 : vector<8x2x1xf32> to vector<8x2x32xf32>
    %446 = arith.mulf %445, %0 : vector<8x2x32xf32>
    %cst_115 = arith.constant dense<0.000000e+00> : vector<2x32xf32>
    %447 = vector.multi_reduction <add>, %446, %cst_115 [0] : vector<8x2x32xf32> to vector<2x32xf32>
    %448 = arith.index_cast %c4_i32 : i32 to index
    %c0_116 = arith.constant 0 : index
    %c0_117 = arith.constant 0 : index
    %449 = vector.load %arg0[%448, %c0_116, %c0_117] : memref<6x2x32xf32, #tpu.memory_space<vmem>>, vector<1x2x32xf32>
    %450 = vector.shape_cast %449 : vector<1x2x32xf32> to vector<2x32xf32>
    %451 = arith.truncf %450 : vector<2x32xf32> to vector<2x32xbf16>
    %cst_118 = arith.constant dense<0.000000e+00> : vector<2x96xf32>
    %452 = tpu.matmul %451, %3, %cst_118 {dimension_numbers = #tpu.dot_dimension_numbers<[1], [0], [0], [1], [0, 0, 1, 1], [], []>} : vector<2x32xbf16>, vector<32x96xbf16>, vector<2x96xf32> -> vector<2x96xf32>
    %453 = arith.truncf %447 : vector<2x32xf32> to vector<2x32xbf16>
    %cst_119 = arith.constant dense<0.000000e+00> : vector<2x96xf32>
    %454 = tpu.matmul %453, %5, %cst_119 {dimension_numbers = #tpu.dot_dimension_numbers<[1], [0], [0], [1], [0, 0, 1, 1], [], []>} : vector<2x32xbf16>, vector<32x96xbf16>, vector<2x96xf32> -> vector<2x96xf32>
    %455 = arith.addf %452, %454 : vector<2x96xf32>
    %456 = vector.broadcast %12 : vector<1x96xf32> to vector<2x96xf32>
    %457 = arith.addf %455, %456 : vector<2x96xf32>
    %458 = arith.truncf %386 : vector<2x32xf32> to vector<2x32xbf16>
    %cst_120 = arith.constant dense<0.000000e+00> : vector<2x96xf32>
    %459 = tpu.matmul %458, %7, %cst_120 {dimension_numbers = #tpu.dot_dimension_numbers<[1], [0], [0], [1], [0, 0, 1, 1], [], []>} : vector<2x32xbf16>, vector<32x96xbf16>, vector<2x96xf32> -> vector<2x96xf32>
    %460 = vector.broadcast %13 : vector<1x96xf32> to vector<2x96xf32>
    %461 = arith.addf %459, %460 : vector<2x96xf32>
    %462 = vector.extract_strided_slice %457 {offsets = [0, 0], sizes = [2, 32], strides = [1, 1]} : vector<2x96xf32> to vector<2x32xf32>
    %463 = vector.extract_strided_slice %461 {offsets = [0, 0], sizes = [2, 32], strides = [1, 1]} : vector<2x96xf32> to vector<2x32xf32>
    %464 = arith.addf %462, %463 : vector<2x32xf32>
    %465 = arith.negf %464 : vector<2x32xf32>
    %466 = math.exp %465 : vector<2x32xf32>
    %cst_121 = arith.constant 1.000000e+00 : f32
    %467 = vector.broadcast %cst_121 : f32 to vector<2x32xf32>
    %468 = arith.addf %467, %466 : vector<2x32xf32>
    %469 = arith.divf %467, %468 : vector<2x32xf32>
    %470 = vector.extract_strided_slice %457 {offsets = [0, 32], sizes = [2, 32], strides = [1, 1]} : vector<2x96xf32> to vector<2x32xf32>
    %471 = vector.extract_strided_slice %461 {offsets = [0, 32], sizes = [2, 32], strides = [1, 1]} : vector<2x96xf32> to vector<2x32xf32>
    %472 = arith.addf %470, %471 : vector<2x32xf32>
    %473 = arith.negf %472 : vector<2x32xf32>
    %474 = math.exp %473 : vector<2x32xf32>
    %cst_122 = arith.constant 1.000000e+00 : f32
    %475 = vector.broadcast %cst_122 : f32 to vector<2x32xf32>
    %476 = arith.addf %475, %474 : vector<2x32xf32>
    %477 = arith.divf %475, %476 : vector<2x32xf32>
    %478 = vector.extract_strided_slice %457 {offsets = [0, 64], sizes = [2, 32], strides = [1, 1]} : vector<2x96xf32> to vector<2x32xf32>
    %479 = vector.extract_strided_slice %461 {offsets = [0, 64], sizes = [2, 32], strides = [1, 1]} : vector<2x96xf32> to vector<2x32xf32>
    %480 = arith.mulf %469, %479 : vector<2x32xf32>
    %481 = arith.addf %478, %480 : vector<2x32xf32>
    %482 = math.tanh %481 : vector<2x32xf32>
    %cst_123 = arith.constant 1.000000e+00 : f32
    %483 = vector.broadcast %cst_123 : f32 to vector<2x32xf32>
    %484 = arith.subf %483, %477 : vector<2x32xf32>
    %485 = arith.mulf %484, %482 : vector<2x32xf32>
    %486 = arith.mulf %477, %386 : vector<2x32xf32>
    %487 = arith.addf %485, %486 : vector<2x32xf32>
    %488 = arith.truncf %487 : vector<2x32xf32> to vector<2x32xbf16>
    %cst_124 = arith.constant dense<0.000000e+00> : vector<2x96xf32>
    %489 = tpu.matmul %488, %9, %cst_124 {dimension_numbers = #tpu.dot_dimension_numbers<[1], [0], [0], [1], [0, 0, 1, 1], [], []>} : vector<2x32xbf16>, vector<32x96xbf16>, vector<2x96xf32> -> vector<2x96xf32>
    %490 = vector.broadcast %14 : vector<1x96xf32> to vector<2x96xf32>
    %491 = arith.addf %489, %490 : vector<2x96xf32>
    %492 = arith.truncf %420 : vector<2x32xf32> to vector<2x32xbf16>
    %cst_125 = arith.constant dense<0.000000e+00> : vector<2x96xf32>
    %493 = tpu.matmul %492, %11, %cst_125 {dimension_numbers = #tpu.dot_dimension_numbers<[1], [0], [0], [1], [0, 0, 1, 1], [], []>} : vector<2x32xbf16>, vector<32x96xbf16>, vector<2x96xf32> -> vector<2x96xf32>
    %494 = vector.broadcast %15 : vector<1x96xf32> to vector<2x96xf32>
    %495 = arith.addf %493, %494 : vector<2x96xf32>
    %496 = vector.extract_strided_slice %491 {offsets = [0, 0], sizes = [2, 32], strides = [1, 1]} : vector<2x96xf32> to vector<2x32xf32>
    %497 = vector.extract_strided_slice %495 {offsets = [0, 0], sizes = [2, 32], strides = [1, 1]} : vector<2x96xf32> to vector<2x32xf32>
    %498 = arith.addf %496, %497 : vector<2x32xf32>
    %499 = arith.negf %498 : vector<2x32xf32>
    %500 = math.exp %499 : vector<2x32xf32>
    %cst_126 = arith.constant 1.000000e+00 : f32
    %501 = vector.broadcast %cst_126 : f32 to vector<2x32xf32>
    %502 = arith.addf %501, %500 : vector<2x32xf32>
    %503 = arith.divf %501, %502 : vector<2x32xf32>
    %504 = vector.extract_strided_slice %491 {offsets = [0, 32], sizes = [2, 32], strides = [1, 1]} : vector<2x96xf32> to vector<2x32xf32>
    %505 = vector.extract_strided_slice %495 {offsets = [0, 32], sizes = [2, 32], strides = [1, 1]} : vector<2x96xf32> to vector<2x32xf32>
    %506 = arith.addf %504, %505 : vector<2x32xf32>
    %507 = arith.negf %506 : vector<2x32xf32>
    %508 = math.exp %507 : vector<2x32xf32>
    %cst_127 = arith.constant 1.000000e+00 : f32
    %509 = vector.broadcast %cst_127 : f32 to vector<2x32xf32>
    %510 = arith.addf %509, %508 : vector<2x32xf32>
    %511 = arith.divf %509, %510 : vector<2x32xf32>
    %512 = vector.extract_strided_slice %491 {offsets = [0, 64], sizes = [2, 32], strides = [1, 1]} : vector<2x96xf32> to vector<2x32xf32>
    %513 = vector.extract_strided_slice %495 {offsets = [0, 64], sizes = [2, 32], strides = [1, 1]} : vector<2x96xf32> to vector<2x32xf32>
    %514 = arith.mulf %503, %513 : vector<2x32xf32>
    %515 = arith.addf %512, %514 : vector<2x32xf32>
    %516 = math.tanh %515 : vector<2x32xf32>
    %cst_128 = arith.constant 1.000000e+00 : f32
    %517 = vector.broadcast %cst_128 : f32 to vector<2x32xf32>
    %518 = arith.subf %517, %511 : vector<2x32xf32>
    %519 = arith.mulf %518, %516 : vector<2x32xf32>
    %520 = arith.mulf %511, %420 : vector<2x32xf32>
    %521 = arith.addf %519, %520 : vector<2x32xf32>
    %522 = arith.index_cast %c4_i32 : i32 to index
    %c0_129 = arith.constant 0 : index
    %c0_130 = arith.constant 0 : index
    %523 = vector.load %arg16[%522, %c0_129, %c0_130] : memref<6x2x32xf32, #tpu.memory_space<vmem>>, vector<1x2x32xf32>
    %524 = vector.shape_cast %523 : vector<1x2x32xf32> to vector<2x32xf32>
    %525 = vector.shape_cast %521 : vector<2x32xf32> to vector<1x2x32xf32>
    tpu.vector_store %arg16[%522, %c0_129, %c0_130], %525 {strides = array<i32>} : memref<6x2x32xf32, #tpu.memory_space<vmem>>, vector<1x2x32xf32>,
    %c5_i32 = arith.constant 5 : i32
    %526 = arith.truncf %521 : vector<2x32xf32> to vector<2x32xbf16>
    %cst_131 = arith.constant dense<0.000000e+00> : vector<2x32xf32>
    %527 = tpu.matmul %526, %17, %cst_131 {dimension_numbers = #tpu.dot_dimension_numbers<[1], [0], [0], [1], [0, 0, 1, 1], [], []>} : vector<2x32xbf16>, vector<32x32xbf16>, vector<2x32xf32> -> vector<2x32xf32>
    %528 = vector.broadcast %18 : vector<1x32xf32> to vector<2x32xf32>
    %529 = arith.addf %527, %528 : vector<2x32xf32>
    %530 = vector.shape_cast %529 : vector<2x32xf32> to vector<1x2x32xf32>
    %531 = vector.broadcast %530 : vector<1x2x32xf32> to vector<8x2x32xf32>
    %532 = arith.addf %1, %531 : vector<8x2x32xf32>
    %533 = vector.broadcast %19 : vector<1x1x32xf32> to vector<8x2x32xf32>
    %534 = arith.mulf %532, %533 : vector<8x2x32xf32>
    %cst_132 = arith.constant dense<0.000000e+00> : vector<8x2xf32>
    %535 = vector.multi_reduction <add>, %534, %cst_132 [2] : vector<8x2x32xf32> to vector<8x2xf32>
    %536 = vector.shape_cast %535 : vector<8x2xf32> to vector<8x2x1xf32>
    %cst_133 = arith.constant dense<0xFF800000> : vector<2x1xf32>
    %537 = vector.multi_reduction <maximumf>, %536, %cst_133 [0] : vector<8x2x1xf32> to vector<2x1xf32>
    %538 = vector.shape_cast %537 : vector<2x1xf32> to vector<1x2x1xf32>
    %539 = vector.broadcast %538 : vector<1x2x1xf32> to vector<8x2x1xf32>
    %540 = arith.subf %536, %539 : vector<8x2x1xf32>
    %541 = math.exp %540 : vector<8x2x1xf32>
    %cst_134 = arith.constant dense<0.000000e+00> : vector<2x1xf32>
    %542 = vector.multi_reduction <add>, %541, %cst_134 [0] : vector<8x2x1xf32> to vector<2x1xf32>
    %543 = vector.shape_cast %542 : vector<2x1xf32> to vector<1x2x1xf32>
    %544 = vector.broadcast %543 : vector<1x2x1xf32> to vector<8x2x1xf32>
    %545 = arith.divf %541, %544 : vector<8x2x1xf32>
    %546 = vector.broadcast %545 : vector<8x2x1xf32> to vector<8x2x32xf32>
    %547 = arith.mulf %546, %0 : vector<8x2x32xf32>
    %cst_135 = arith.constant dense<0.000000e+00> : vector<2x32xf32>
    %548 = vector.multi_reduction <add>, %547, %cst_135 [0] : vector<8x2x32xf32> to vector<2x32xf32>
    %549 = arith.index_cast %c5_i32 : i32 to index
    %c0_136 = arith.constant 0 : index
    %c0_137 = arith.constant 0 : index
    %550 = vector.load %arg0[%549, %c0_136, %c0_137] : memref<6x2x32xf32, #tpu.memory_space<vmem>>, vector<1x2x32xf32>
    %551 = vector.shape_cast %550 : vector<1x2x32xf32> to vector<2x32xf32>
    %552 = arith.truncf %551 : vector<2x32xf32> to vector<2x32xbf16>
    %cst_138 = arith.constant dense<0.000000e+00> : vector<2x96xf32>
    %553 = tpu.matmul %552, %3, %cst_138 {dimension_numbers = #tpu.dot_dimension_numbers<[1], [0], [0], [1], [0, 0, 1, 1], [], []>} : vector<2x32xbf16>, vector<32x96xbf16>, vector<2x96xf32> -> vector<2x96xf32>
    %554 = arith.truncf %548 : vector<2x32xf32> to vector<2x32xbf16>
    %cst_139 = arith.constant dense<0.000000e+00> : vector<2x96xf32>
    %555 = tpu.matmul %554, %5, %cst_139 {dimension_numbers = #tpu.dot_dimension_numbers<[1], [0], [0], [1], [0, 0, 1, 1], [], []>} : vector<2x32xbf16>, vector<32x96xbf16>, vector<2x96xf32> -> vector<2x96xf32>
    %556 = arith.addf %553, %555 : vector<2x96xf32>
    %557 = vector.broadcast %12 : vector<1x96xf32> to vector<2x96xf32>
    %558 = arith.addf %556, %557 : vector<2x96xf32>
    %559 = arith.truncf %487 : vector<2x32xf32> to vector<2x32xbf16>
    %cst_140 = arith.constant dense<0.000000e+00> : vector<2x96xf32>
    %560 = tpu.matmul %559, %7, %cst_140 {dimension_numbers = #tpu.dot_dimension_numbers<[1], [0], [0], [1], [0, 0, 1, 1], [], []>} : vector<2x32xbf16>, vector<32x96xbf16>, vector<2x96xf32> -> vector<2x96xf32>
    %561 = vector.broadcast %13 : vector<1x96xf32> to vector<2x96xf32>
    %562 = arith.addf %560, %561 : vector<2x96xf32>
    %563 = vector.extract_strided_slice %558 {offsets = [0, 0], sizes = [2, 32], strides = [1, 1]} : vector<2x96xf32> to vector<2x32xf32>
    %564 = vector.extract_strided_slice %562 {offsets = [0, 0], sizes = [2, 32], strides = [1, 1]} : vector<2x96xf32> to vector<2x32xf32>
    %565 = arith.addf %563, %564 : vector<2x32xf32>
    %566 = arith.negf %565 : vector<2x32xf32>
    %567 = math.exp %566 : vector<2x32xf32>
    %cst_141 = arith.constant 1.000000e+00 : f32
    %568 = vector.broadcast %cst_141 : f32 to vector<2x32xf32>
    %569 = arith.addf %568, %567 : vector<2x32xf32>
    %570 = arith.divf %568, %569 : vector<2x32xf32>
    %571 = vector.extract_strided_slice %558 {offsets = [0, 32], sizes = [2, 32], strides = [1, 1]} : vector<2x96xf32> to vector<2x32xf32>
    %572 = vector.extract_strided_slice %562 {offsets = [0, 32], sizes = [2, 32], strides = [1, 1]} : vector<2x96xf32> to vector<2x32xf32>
    %573 = arith.addf %571, %572 : vector<2x32xf32>
    %574 = arith.negf %573 : vector<2x32xf32>
    %575 = math.exp %574 : vector<2x32xf32>
    %cst_142 = arith.constant 1.000000e+00 : f32
    %576 = vector.broadcast %cst_142 : f32 to vector<2x32xf32>
    %577 = arith.addf %576, %575 : vector<2x32xf32>
    %578 = arith.divf %576, %577 : vector<2x32xf32>
    %579 = vector.extract_strided_slice %558 {offsets = [0, 64], sizes = [2, 32], strides = [1, 1]} : vector<2x96xf32> to vector<2x32xf32>
    %580 = vector.extract_strided_slice %562 {offsets = [0, 64], sizes = [2, 32], strides = [1, 1]} : vector<2x96xf32> to vector<2x32xf32>
    %581 = arith.mulf %570, %580 : vector<2x32xf32>
    %582 = arith.addf %579, %581 : vector<2x32xf32>
    %583 = math.tanh %582 : vector<2x32xf32>
    %cst_143 = arith.constant 1.000000e+00 : f32
    %584 = vector.broadcast %cst_143 : f32 to vector<2x32xf32>
    %585 = arith.subf %584, %578 : vector<2x32xf32>
    %586 = arith.mulf %585, %583 : vector<2x32xf32>
    %587 = arith.mulf %578, %487 : vector<2x32xf32>
    %588 = arith.addf %586, %587 : vector<2x32xf32>
    %589 = arith.truncf %588 : vector<2x32xf32> to vector<2x32xbf16>
    %cst_144 = arith.constant dense<0.000000e+00> : vector<2x96xf32>
    %590 = tpu.matmul %589, %9, %cst_144 {dimension_numbers = #tpu.dot_dimension_numbers<[1], [0], [0], [1], [0, 0, 1, 1], [], []>} : vector<2x32xbf16>, vector<32x96xbf16>, vector<2x96xf32> -> vector<2x96xf32>
    %591 = vector.broadcast %14 : vector<1x96xf32> to vector<2x96xf32>
    %592 = arith.addf %590, %591 : vector<2x96xf32>
    %593 = arith.truncf %521 : vector<2x32xf32> to vector<2x32xbf16>
    %cst_145 = arith.constant dense<0.000000e+00> : vector<2x96xf32>
    %594 = tpu.matmul %593, %11, %cst_145 {dimension_numbers = #tpu.dot_dimension_numbers<[1], [0], [0], [1], [0, 0, 1, 1], [], []>} : vector<2x32xbf16>, vector<32x96xbf16>, vector<2x96xf32> -> vector<2x96xf32>
    %595 = vector.broadcast %15 : vector<1x96xf32> to vector<2x96xf32>
    %596 = arith.addf %594, %595 : vector<2x96xf32>
    %597 = vector.extract_strided_slice %592 {offsets = [0, 0], sizes = [2, 32], strides = [1, 1]} : vector<2x96xf32> to vector<2x32xf32>
    %598 = vector.extract_strided_slice %596 {offsets = [0, 0], sizes = [2, 32], strides = [1, 1]} : vector<2x96xf32> to vector<2x32xf32>
    %599 = arith.addf %597, %598 : vector<2x32xf32>
    %600 = arith.negf %599 : vector<2x32xf32>
    %601 = math.exp %600 : vector<2x32xf32>
    %cst_146 = arith.constant 1.000000e+00 : f32
    %602 = vector.broadcast %cst_146 : f32 to vector<2x32xf32>
    %603 = arith.addf %602, %601 : vector<2x32xf32>
    %604 = arith.divf %602, %603 : vector<2x32xf32>
    %605 = vector.extract_strided_slice %592 {offsets = [0, 32], sizes = [2, 32], strides = [1, 1]} : vector<2x96xf32> to vector<2x32xf32>
    %606 = vector.extract_strided_slice %596 {offsets = [0, 32], sizes = [2, 32], strides = [1, 1]} : vector<2x96xf32> to vector<2x32xf32>
    %607 = arith.addf %605, %606 : vector<2x32xf32>
    %608 = arith.negf %607 : vector<2x32xf32>
    %609 = math.exp %608 : vector<2x32xf32>
    %cst_147 = arith.constant 1.000000e+00 : f32
    %610 = vector.broadcast %cst_147 : f32 to vector<2x32xf32>
    %611 = arith.addf %610, %609 : vector<2x32xf32>
    %612 = arith.divf %610, %611 : vector<2x32xf32>
    %613 = vector.extract_strided_slice %592 {offsets = [0, 64], sizes = [2, 32], strides = [1, 1]} : vector<2x96xf32> to vector<2x32xf32>
    %614 = vector.extract_strided_slice %596 {offsets = [0, 64], sizes = [2, 32], strides = [1, 1]} : vector<2x96xf32> to vector<2x32xf32>
    %615 = arith.mulf %604, %614 : vector<2x32xf32>
    %616 = arith.addf %613, %615 : vector<2x32xf32>
    %617 = math.tanh %616 : vector<2x32xf32>
    %cst_148 = arith.constant 1.000000e+00 : f32
    %618 = vector.broadcast %cst_148 : f32 to vector<2x32xf32>
    %619 = arith.subf %618, %612 : vector<2x32xf32>
    %620 = arith.mulf %619, %617 : vector<2x32xf32>
    %621 = arith.mulf %612, %521 : vector<2x32xf32>
    %622 = arith.addf %620, %621 : vector<2x32xf32>
    %623 = arith.index_cast %c5_i32 : i32 to index
    %c0_149 = arith.constant 0 : index
    %c0_150 = arith.constant 0 : index
    %624 = vector.load %arg16[%623, %c0_149, %c0_150] : memref<6x2x32xf32, #tpu.memory_space<vmem>>, vector<1x2x32xf32>
    %625 = vector.shape_cast %624 : vector<1x2x32xf32> to vector<2x32xf32>
    %626 = vector.shape_cast %622 : vector<2x32xf32> to vector<1x2x32xf32>
    tpu.vector_store %arg16[%623, %c0_149, %c0_150], %626 {strides = array<i32>} : memref<6x2x32xf32, #tpu.memory_space<vmem>>, vector<1x2x32xf32>,
    %c6_i32 = arith.constant 6 : i32
    return
  }
}

module attributes {stable_mosaic.version = 11 : i64} {
  func.func @_linear_kernel(%arg0: memref<12x32xf32, #tpu.memory_space<vmem>>, %arg1: memref<32x64xf32, #tpu.memory_space<vmem>>, %arg2: memref<1x64xf32, #tpu.memory_space<vmem>>, %arg3: memref<12x64xf32, #tpu.memory_space<vmem>>) attributes {dimension_semantics = [], scalar_prefetch = 0 : i64, scratch_operands = 0 : i64, tpu.core_type = #tpu.core_type<tc>} {
    %c0 = arith.constant 0 : index
    %c0_0 = arith.constant 0 : index
    %0 = vector.load %arg0[%c0, %c0_0] : memref<12x32xf32, #tpu.memory_space<vmem>>, vector<12x32xf32>
    %c0_1 = arith.constant 0 : index
    %c0_2 = arith.constant 0 : index
    %1 = vector.load %arg1[%c0_1, %c0_2] : memref<32x64xf32, #tpu.memory_space<vmem>>, vector<32x64xf32>
    %2 = arith.truncf %0 : vector<12x32xf32> to vector<12x32xbf16>
    %3 = arith.truncf %1 : vector<32x64xf32> to vector<32x64xbf16>
    %cst = arith.constant dense<0.000000e+00> : vector<12x64xf32>
    %4 = tpu.matmul %2, %3, %cst {dimension_numbers = #tpu.dot_dimension_numbers<[1], [0], [0], [1], [0, 0, 1, 1], [], []>} : vector<12x32xbf16>, vector<32x64xbf16>, vector<12x64xf32> -> vector<12x64xf32>
    %c0_3 = arith.constant 0 : index
    %c0_4 = arith.constant 0 : index
    %5 = vector.load %arg2[%c0_3, %c0_4] : memref<1x64xf32, #tpu.memory_space<vmem>>, vector<1x64xf32>
    %6 = vector.broadcast %5 : vector<1x64xf32> to vector<12x64xf32>
    %7 = arith.addf %4, %6 : vector<12x64xf32>
    %c0_5 = arith.constant 0 : index
    %c0_6 = arith.constant 0 : index
    %8 = vector.load %arg3[%c0_5, %c0_6] : memref<12x64xf32, #tpu.memory_space<vmem>>, vector<12x64xf32>
    tpu.vector_store %arg3[%c0_5, %c0_6], %7 {strides = array<i32>} : memref<12x64xf32, #tpu.memory_space<vmem>>, vector<12x64xf32>,
    return
  }
}

module attributes {stable_mosaic.version = 11 : i64} {
  func.func @_ce_kernel(%arg0: memref<10x64xf32, #tpu.memory_space<vmem>>, %arg1: memref<10x1xi32, #tpu.memory_space<vmem>>, %arg2: memref<1x1xf32, #tpu.memory_space<vmem>>) attributes {dimension_semantics = [], scalar_prefetch = 0 : i64, scratch_operands = 0 : i64, tpu.core_type = #tpu.core_type<tc>} {
    %c0 = arith.constant 0 : index
    %c0_0 = arith.constant 0 : index
    %0 = vector.load %arg0[%c0, %c0_0] : memref<10x64xf32, #tpu.memory_space<vmem>>, vector<10x64xf32>
    %c0_1 = arith.constant 0 : index
    %c0_2 = arith.constant 0 : index
    %1 = vector.load %arg1[%c0_1, %c0_2] : memref<10x1xi32, #tpu.memory_space<vmem>>, vector<10x1xi32>
    %cst = arith.constant dense<0xFF800000> : vector<10xf32>
    %2 = vector.multi_reduction <maximumf>, %0, %cst [1] : vector<10x64xf32> to vector<10xf32>
    %3 = vector.shape_cast %2 : vector<10xf32> to vector<10x1xf32>
    %4 = vector.broadcast %3 : vector<10x1xf32> to vector<10x64xf32>
    %5 = arith.subf %0, %4 : vector<10x64xf32>
    %6 = math.exp %5 : vector<10x64xf32>
    %cst_3 = arith.constant dense<0.000000e+00> : vector<10xf32>
    %7 = vector.multi_reduction <add>, %6, %cst_3 [1] : vector<10x64xf32> to vector<10xf32>
    %8 = vector.shape_cast %7 : vector<10xf32> to vector<10x1xf32>
    %9 = math.log %8 : vector<10x1xf32>
    %10 = arith.addf %9, %3 : vector<10x1xf32>
    %11 = tpu.iota {dimensions = array<i32: 1>} : vector<10x64xi32>
    %12 = vector.broadcast %1 : vector<10x1xi32> to vector<10x64xi32>
    %13 = arith.cmpi eq, %11, %12 : vector<10x64xi32>
    %cst_4 = arith.constant 0.000000e+00 : f32
    %14 = vector.broadcast %cst_4 : f32 to vector<10x64xf32>
    %15 = arith.select %13, %0, %14 : vector<10x64xi1>, vector<10x64xf32>
    %cst_5 = arith.constant dense<0.000000e+00> : vector<10xf32>
    %16 = vector.multi_reduction <add>, %15, %cst_5 [1] : vector<10x64xf32> to vector<10xf32>
    %17 = vector.shape_cast %16 : vector<10xf32> to vector<10x1xf32>
    %c0_i32 = arith.constant 0 : i32
    %18 = vector.broadcast %c0_i32 : i32 to vector<10x1xi32>
    %19 = arith.cmpi ne, %1, %18 : vector<10x1xi32>
    %20 = arith.extui %19 : vector<10x1xi1> to vector<10x1xi32>
    %21 = arith.sitofp %20 : vector<10x1xi32> to vector<10x1xf32>
    %22 = arith.subf %10, %17 : vector<10x1xf32>
    %23 = arith.mulf %21, %22 : vector<10x1xf32>
    %24 = vector.shape_cast %23 : vector<10x1xf32> to vector<1x10x1xf32>
    %cst_6 = arith.constant dense<0.000000e+00> : vector<1xf32>
    %25 = vector.multi_reduction <add>, %24, %cst_6 [1, 2] : vector<1x10x1xf32> to vector<1xf32>
    %26 = vector.shape_cast %25 : vector<1xf32> to vector<1x1x1xf32>
    %27 = vector.extract %26[0, 0, 0] : f32 from vector<1x1x1xf32>
    %28 = vector.shape_cast %21 : vector<10x1xf32> to vector<1x10x1xf32>
    %cst_7 = arith.constant dense<0.000000e+00> : vector<1xf32>
    %29 = vector.multi_reduction <add>, %28, %cst_7 [1, 2] : vector<1x10x1xf32> to vector<1xf32>
    %30 = vector.shape_cast %29 : vector<1xf32> to vector<1x1x1xf32>
    %31 = vector.extract %30[0, 0, 0] : f32 from vector<1x1x1xf32>
    %cst_8 = arith.constant 0.000000e+00 : f32
    %32 = arith.cmpf ogt, %31, %cst_8 : f32
    %cst_9 = arith.constant 1.000000e+00 : f32
    %33 = arith.maximumf %31, %cst_9 : f32
    %34 = arith.divf %27, %33 : f32
    %cst_10 = arith.constant 0.000000e+00 : f32
    %35 = arith.select %32, %34, %cst_10 : f32
    %36 = vector.broadcast %35 : f32 to vector<1x1xf32>
    %c0_11 = arith.constant 0 : index
    %c0_12 = arith.constant 0 : index
    %37 = vector.load %arg2[%c0_11, %c0_12] : memref<1x1xf32, #tpu.memory_space<vmem>>, vector<1x1xf32>
    tpu.vector_store %arg2[%c0_11, %c0_12], %36 {strides = array<i32>} : memref<1x1xf32, #tpu.memory_space<vmem>>, vector<1x1xf32>,
    return
  }
}

</mosaic_0001>

<llo_original>
// kernel: seq2seq_forward.9
$region0: #{seq2seq_forward.9}
  #allocation0 [shape = 'u32[]', space=smem, size = 0x4, offset = 0x4, fixed_abs, tag = 'smem constant byte address 0x4 - core index']
  #allocation1 [shape = 'u32[144,128]{1,0:T(1,128)}', space=vmem, size = 0x12000, scoped, tag = 'internal scratch']
  %s0 = inlined_call_operand.vmem [shape: f32[2,64], index: 0, kind: input, shape index: {}]
  %s1 = inlined_call_operand.vmem [shape: f32[64,64], index: 1, kind: input, shape index: {}]
  %s2 = inlined_call_operand.vmem [shape: f32[1,64], index: 2, kind: input, shape index: {}]
  %s3 = inlined_call_operand.vmem [shape: f32[64,32], index: 3, kind: input, shape index: {}]
  %s4 = inlined_call_operand.vmem [shape: f32[1,32], index: 4, kind: input, shape index: {}]
  %s5 = inlined_call_operand.vmem [shape: f32[2,32], index: 5, kind: output, shape index: {}]
  %s6 = sld [smem:[#allocation0]]
  $region30: #{seq2seq_forward.9} parent=0
    _
  %s8 = ssub.s32 1, %s6
  %s9 = scalar_select 0, %s8, %s6
  // Predicated region
  $region2: #{seq2seq_forward.9} parent=0 // pred_check
    _
  $region3: #{seq2seq_forward.9} parent=0 // pred_check_branch
    %11 = sbr.rel (0) target = $region5
  $region4: #{seq2seq_forward.9} parent=0 // pred_region
    _
  $region5: #{seq2seq_forward.9} parent=0 // pred_fallthru
    _
  // Predicated region
  $region6: #{seq2seq_forward.9} parent=0 // pred_check
    _
  $region7: #{seq2seq_forward.9} parent=0 // pred_check_branch
    %13 = sbr.rel (0) target = $region9
  $region8: #{seq2seq_forward.9} parent=0 // pred_region
    _
  $region9: #{seq2seq_forward.9} parent=0 // pred_fallthru
    _
  // Predicated region
  $region10: #{seq2seq_forward.9} parent=0 // pred_check
    _
  $region11: #{seq2seq_forward.9} parent=0 // pred_check_branch
    %15 = sbr.rel (0) target = $region13
  $region12: #{seq2seq_forward.9} parent=0 // pred_region
    _
  $region13: #{seq2seq_forward.9} parent=0 // pred_fallthru
    _
  // Predicated region
  $region14: #{seq2seq_forward.9} parent=0 // pred_check
    _
  $region15: #{seq2seq_forward.9} parent=0 // pred_check_branch
    %17 = sbr.rel (0) target = $region17
  $region16: #{seq2seq_forward.9} parent=0 // pred_region
    _
  $region17: #{seq2seq_forward.9} parent=0 // pred_fallthru
    _
  // Predicated region
  $region18: #{seq2seq_forward.9} parent=0 // pred_check
    _
  $region19: #{seq2seq_forward.9} parent=0 // pred_check_branch
    %19 = sbr.rel (0) target = $region21
  $region20: #{seq2seq_forward.9} parent=0 // pred_region
    _
  $region21: #{seq2seq_forward.9} parent=0 // pred_fallthru
    _
  %v21 = vld [vmem:[%s0] sm:$0x3]
  %v22 = vld [vmem:[%s1] sm:$0xff]
  %v23 = vld [vmem:[%s1 + $0x8] sm:$0xff]
  %v24 = vld [vmem:[%s1 + $0x10] sm:$0xff]
  %v25 = vld [vmem:[%s1 + $0x18] sm:$0xff]
  %v26 = vld [vmem:[%s1 + $0x20] sm:$0xff]
  %v27 = vld [vmem:[%s1 + $0x28] sm:$0xff]
  %v28 = vld [vmem:[%s1 + $0x30] sm:$0xff]
  %v29 = vld [vmem:[%s1 + $0x38] sm:$0xff]
  %v30 = vpack.c.bf16 %v21, %v21
  %v31 = vpack.c.bf16 %v23, %v22
  %v32 = vpack.c.bf16 %v25, %v24
  %v33 = vpack.c.bf16 %v27, %v26
  %v34 = vpack.c.bf16 %v29, %v28
  %v35 = vld [vmem:[%s2] sm:$0x1]
  %v37 = vlaneseq
  %v38 = vshrl.u32 %v37, 7
  %v39 = vsub.s32 0, %v38
  %v40 = vrot.slane %v35, %v39
  %vm42 = vcmask 523264
  %v44 = vsel %vm42, %v30, 0
  %46 = vmatprep.subr.bf16.mxu0 0
  %47 = vmatpush1.bf16.msra.mxu0 %v31
  %48 = vmatprep.subr.bf16.mxu0 0
  %49 = vmatpush1.bf16.msra.mxu0 %v32
  %50 = vmatprep.subr.bf16.mxu0 0
  %51 = vmatpush1.bf16.msra.mxu0 %v33
  %52 = vmatprep.subr.bf16.mxu0 0
  %53 = vmatpush1.bf16.msra.mxu0 %v34
  %54 = vmatprep.subr.bf16.mxu0 0
  %55 = vmatpush1.bf16.msra.mxu0 0
  %56 = vmatprep.subr.bf16.mxu0 0
  %57 = vmatpush1.bf16.msra.mxu0 0
  %58 = vmatprep.subr.bf16.mxu0 0
  %59 = vmatpush1.bf16.msra.mxu0 0
  %60 = vmatprep.subr.bf16.mxu0 0
  %61 = vmatpush1.bf16.msra.mxu0 0
  %62 = vmatprep.subr.bf16.mxu0 0
  %63 = vmatpush1.bf16.msra.mxu0 0
  %64 = vmatprep.subr.bf16.mxu0 0
  %65 = vmatpush1.bf16.msra.mxu0 0
  %66 = vmatprep.subr.bf16.mxu0 0
  %67 = vmatpush1.bf16.msra.mxu0 0
  %68 = vmatprep.subr.bf16.mxu0 0
  %69 = vmatpush1.bf16.msra.mxu0 0
  %70 = vmatprep.subr.bf16.mxu0 0
  %71 = vmatpush1.bf16.msra.mxu0 0
  %72 = vmatprep.subr.bf16.mxu0 0
  %73 = vmatpush1.bf16.msra.mxu0 0
  %74 = vmatprep.subr.bf16.mxu0 0
  %75 = vmatpush1.bf16.msra.mxu0 0
  %76 = vmatprep.subr.bf16.mxu0 0
  %77 = vmatpush1.bf16.msra.mxu0 0
  %78 = vmatprep.mubr.bf16.mxu0 0
  %79 = vmatmul.mubr.bf16.gmra.mrb[0].mxu0 %v44
  %v80 = vpop.f32.mrb[0].mxu0
  %v81 = vadd.f32 %v40, %v80
  %v82 = vpop.f32.mrb[0].mxu0
  %v83 = vpop.f32.mrb[0].mxu0
  %v84 = vpop.f32.mrb[0].mxu0
  %85 = vdwg.mxu0
  %v86 = vmax.f32 %v81, 0.0
  %v87 = vld [vmem:[%s3] sm:$0xff]
  %v88 = vld [vmem:[%s3 + $0x8] sm:$0xff]
  %v89 = vld [vmem:[%s3 + $0x10] sm:$0xff]
  %v90 = vld [vmem:[%s3 + $0x18] sm:$0xff]
  %v91 = vld [vmem:[%s3 + $0x20] sm:$0xff]
  %v92 = vld [vmem:[%s3 + $0x28] sm:$0xff]
  %v93 = vld [vmem:[%s3 + $0x30] sm:$0xff]
  %v94 = vld [vmem:[%s3 + $0x38] sm:$0xff]
  %v95 = vpack.c.bf16 %v86, %v86
  %v96 = vpack.c.bf16 %v88, %v87
  %v97 = vpack.c.bf16 %v90, %v89
  %v98 = vpack.c.bf16 %v92, %v91
  %v99 = vpack.c.bf16 %v94, %v93
  %v100 = vld [vmem:[%s4] sm:$0x1]
  %v102 = vlaneseq
  %v103 = vshrl.u32 %v102, 7
  %v104 = vsub.s32 0, %v103
  %v105 = vrot.slane %v100, %v104
  %v108 = vsel %vm42, %v95, 0
  %110 = vmatprep.subr.bf16.mxu0 0
  %111 = vmatpush1.bf16.msra.mxu0 %v96
  %112 = vmatprep.subr.bf16.mxu0 0
  %113 = vmatpush1.bf16.msra.mxu0 %v97
  %114 = vmatprep.subr.bf16.mxu0 0
  %115 = vmatpush1.bf16.msra.mxu0 %v98
  %116 = vmatprep.subr.bf16.mxu0 0
  %117 = vmatpush1.bf16.msra.mxu0 %v99
  %118 = vmatprep.subr.bf16.mxu0 0
  %119 = vmatpush1.bf16.msra.mxu0 0
  %120 = vmatprep.subr.bf16.mxu0 0
  %121 = vmatpush1.bf16.msra.mxu0 0
  %122 = vmatprep.subr.bf16.mxu0 0
  %123 = vmatpush1.bf16.msra.mxu0 0
  %124 = vmatprep.subr.bf16.mxu0 0
  %125 = vmatpush1.bf16.msra.mxu0 0
  %126 = vmatprep.subr.bf16.mxu0 0
  %127 = vmatpush1.bf16.msra.mxu0 0
  %128 = vmatprep.subr.bf16.mxu0 0
  %129 = vmatpush1.bf16.msra.mxu0 0
  %130 = vmatprep.subr.bf16.mxu0 0
  %131 = vmatpush1.bf16.msra.mxu0 0
  %132 = vmatprep.subr.bf16.mxu0 0
  %133 = vmatpush1.bf16.msra.mxu0 0
  %134 = vmatprep.subr.bf16.mxu0 0
  %135 = vmatpush1.bf16.msra.mxu0 0
  %136 = vmatprep.subr.bf16.mxu0 0
  %137 = vmatpush1.bf16.msra.mxu0 0
  %138 = vmatprep.subr.bf16.mxu0 0
  %139 = vmatpush1.bf16.msra.mxu0 0
  %140 = vmatprep.subr.bf16.mxu0 0
  %141 = vmatpush1.bf16.msra.mxu0 0
  %142 = vmatprep.mubr.bf16.mxu0 0
  %143 = vmatmul.mubr.bf16.gmra.mrb[0].mxu0 %v108
  %v144 = vpop.f32.mrb[0].mxu0
  %v145 = vadd.f32 %v105, %v144
  %v146 = vpop.f32.mrb[0].mxu0
  %v147 = vpop.f32.mrb[0].mxu0
  %v148 = vpop.f32.mrb[0].mxu0
  %149 = vdwg.mxu0
  %vm150 = vcmask 254976
  %151 = vst.msk [vmem:[%s5] sm:$0x3] %vm150, %v145
  // Predicated region
  $region22: #{seq2seq_forward.9} parent=0 // pred_check
    _
  $region23: #{seq2seq_forward.9} parent=0 // pred_check_branch
    %153 = sbr.rel (0) target = $region25
  $region24: #{seq2seq_forward.9} parent=0 // pred_region
    _
  $region25: #{seq2seq_forward.9} parent=0 // pred_fallthru
    _
  // Predicated region
  $region26: #{seq2seq_forward.9} parent=0 // pred_check
    _
  $region27: #{seq2seq_forward.9} parent=0 // pred_check_branch
    %155 = sbr.rel (0) target = $region29
  $region28: #{seq2seq_forward.9} parent=0 // pred_region
    _
  $region29: #{seq2seq_forward.9} parent=0 // pred_fallthru
    _

// kernel: seq2seq_forward.10
$region0: #{seq2seq_forward.10}
  #allocation0 [shape = 'u32[]', space=smem, size = 0x4, offset = 0x4, fixed_abs, tag = 'smem constant byte address 0x4 - core index']
  #allocation1 [shape = 'u32[144,128]{1,0:T(1,128)}', space=vmem, size = 0x12000, scoped, tag = 'internal scratch']
  %s0 = inlined_call_operand.vmem [shape: f32[16,64], index: 0, kind: input, shape index: {}]
  %s1 = inlined_call_operand.vmem [shape: f32[64,64], index: 1, kind: input, shape index: {}]
  %s2 = inlined_call_operand.vmem [shape: f32[1,64], index: 2, kind: input, shape index: {}]
  %s3 = inlined_call_operand.vmem [shape: f32[64,32], index: 3, kind: input, shape index: {}]
  %s4 = inlined_call_operand.vmem [shape: f32[1,32], index: 4, kind: input, shape index: {}]
  %s5 = inlined_call_operand.vmem [shape: f32[32,32], index: 5, kind: input, shape index: {}]
  %s6 = inlined_call_operand.vmem [shape: f32[16,32], index: 6, kind: output, shape index: {0}]
  %s7 = inlined_call_operand.vmem [shape: f32[16,32], index: 7, kind: output, shape index: {1}]
  %8 = xla_tuple %s6, %s7
  %s9 = sld [smem:[#allocation0]]
  $region42: #{seq2seq_forward.10} parent=0
    _
  %s11 = ssub.s32 1, %s9
  %s12 = scalar_select 0, %s11, %s9
  // Predicated region
  $region2: #{seq2seq_forward.10} parent=0 // pred_check
    _
  $region3: #{seq2seq_forward.10} parent=0 // pred_check_branch
    %14 = sbr.rel (0) target = $region5
  $region4: #{seq2seq_forward.10} parent=0 // pred_region
    _
  $region5: #{seq2seq_forward.10} parent=0 // pred_fallthru
    _
  // Predicated region
  $region6: #{seq2seq_forward.10} parent=0 // pred_check
    _
  $region7: #{seq2seq_forward.10} parent=0 // pred_check_branch
    %16 = sbr.rel (0) target = $region9
  $region8: #{seq2seq_forward.10} parent=0 // pred_region
    _
  $region9: #{seq2seq_forward.10} parent=0 // pred_fallthru
    _
  // Predicated region
  $region10: #{seq2seq_forward.10} parent=0 // pred_check
    _
  $region11: #{seq2seq_forward.10} parent=0 // pred_check_branch
    %18 = sbr.rel (0) target = $region13
  $region12: #{seq2seq_forward.10} parent=0 // pred_region
    _
  $region13: #{seq2seq_forward.10} parent=0 // pred_fallthru
    _
  // Predicated region
  $region14: #{seq2seq_forward.10} parent=0 // pred_check
    _
  $region15: #{seq2seq_forward.10} parent=0 // pred_check_branch
    %20 = sbr.rel (0) target = $region17
  $region16: #{seq2seq_forward.10} parent=0 // pred_region
    _
  $region17: #{seq2seq_forward.10} parent=0 // pred_fallthru
    _
  // Predicated region
  $region18: #{seq2seq_forward.10} parent=0 // pred_check
    _
  $region19: #{seq2seq_forward.10} parent=0 // pred_check_branch
    %22 = sbr.rel (0) target = $region21
  $region20: #{seq2seq_forward.10} parent=0 // pred_region
    _
  $region21: #{seq2seq_forward.10} parent=0 // pred_fallthru
    _
  // Predicated region
  $region22: #{seq2seq_forward.10} parent=0 // pred_check
    _
  $region23: #{seq2seq_forward.10} parent=0 // pred_check_branch
    %24 = sbr.rel (0) target = $region25
  $region24: #{seq2seq_forward.10} parent=0 // pred_region
    _
  $region25: #{seq2seq_forward.10} parent=0 // pred_fallthru
    _
  %v26 = vld [vmem:[%s0] sm:$0xff]
  %v27 = vld [vmem:[%s0 + $0x8] sm:$0xff]
  %v28 = vld [vmem:[%s1] sm:$0xff]
  %v29 = vld [vmem:[%s1 + $0x8] sm:$0xff]
  %v30 = vld [vmem:[%s1 + $0x10] sm:$0xff]
  %v31 = vld [vmem:[%s1 + $0x18] sm:$0xff]
  %v32 = vld [vmem:[%s1 + $0x20] sm:$0xff]
  %v33 = vld [vmem:[%s1 + $0x28] sm:$0xff]
  %v34 = vld [vmem:[%s1 + $0x30] sm:$0xff]
  %v35 = vld [vmem:[%s1 + $0x38] sm:$0xff]
  %v36 = vpack.c.bf16 %v27, %v26
  %v37 = vpack.c.bf16 %v29, %v28
  %v38 = vpack.c.bf16 %v31, %v30
  %v39 = vpack.c.bf16 %v33, %v32
  %v40 = vpack.c.bf16 %v35, %v34
  %v41 = vld [vmem:[%s2] sm:$0x1]
  %v43 = vlaneseq
  %v44 = vshrl.u32 %v43, 7
  %v45 = vsub.s32 0, %v44
  %v46 = vrot.slane %v41, %v45
  %vm48 = vcmask 523264
  %v50 = vsel %vm48, %v36, 0
  %52 = vmatprep.subr.bf16.mxu0 0
  %53 = vmatpush1.bf16.msra.mxu0 %v37
  %54 = vmatprep.subr.bf16.mxu0 0
  %55 = vmatpush1.bf16.msra.mxu0 %v38
  %56 = vmatprep.subr.bf16.mxu0 0
  %57 = vmatpush1.bf16.msra.mxu0 %v39
  %58 = vmatprep.subr.bf16.mxu0 0
  %59 = vmatpush1.bf16.msra.mxu0 %v40
  %60 = vmatprep.subr.bf16.mxu0 0
  %61 = vmatpush1.bf16.msra.mxu0 0
  %62 = vmatprep.subr.bf16.mxu0 0
  %63 = vmatpush1.bf16.msra.mxu0 0
  %64 = vmatprep.subr.bf16.mxu0 0
  %65 = vmatpush1.bf16.msra.mxu0 0
  %66 = vmatprep.subr.bf16.mxu0 0
  %67 = vmatpush1.bf16.msra.mxu0 0
  %68 = vmatprep.subr.bf16.mxu0 0
  %69 = vmatpush1.bf16.msra.mxu0 0
  %70 = vmatprep.subr.bf16.mxu0 0
  %71 = vmatpush1.bf16.msra.mxu0 0
  %72 = vmatprep.subr.bf16.mxu0 0
  %73 = vmatpush1.bf16.msra.mxu0 0
  %74 = vmatprep.subr.bf16.mxu0 0
  %75 = vmatpush1.bf16.msra.mxu0 0
  %76 = vmatprep.subr.bf16.mxu0 0
  %77 = vmatpush1.bf16.msra.mxu0 0
  %78 = vmatprep.subr.bf16.mxu0 0
  %79 = vmatpush1.bf16.msra.mxu0 0
  %80 = vmatprep.subr.bf16.mxu0 0
  %81 = vmatpush1.bf16.msra.mxu0 0
  %82 = vmatprep.subr.bf16.mxu0 0
  %83 = vmatpush1.bf16.msra.mxu0 0
  %84 = vmatprep.mubr.bf16.mxu0 0
  %85 = vmatmul.mubr.bf16.gmra.mrb[0].mxu0 %v50
  %v86 = vpop.f32.mrb[0].mxu0
  %v87 = vadd.f32 %v46, %v86
  %v88 = vpop.f32.mrb[0].mxu0
  %v89 = vpop.f32.mrb[0].mxu0
  %v90 = vadd.f32 %v46, %v89
  %v91 = vpop.f32.mrb[0].mxu0
  %92 = vdwg.mxu0
  %v93 = vmax.f32 %v87, 0.0
  %v94 = vmax.f32 %v90, 0.0
  %v95 = vld [vmem:[%s3] sm:$0xff]
  %v96 = vld [vmem:[%s3 + $0x8] sm:$0xff]
  %v97 = vld [vmem:[%s3 + $0x10] sm:$0xff]
  %v98 = vld [vmem:[%s3 + $0x18] sm:$0xff]
  %v99 = vld [vmem:[%s3 + $0x20] sm:$0xff]
  %v100 = vld [vmem:[%s3 + $0x28] sm:$0xff]
  %v101 = vld [vmem:[%s3 + $0x30] sm:$0xff]
  %v102 = vld [vmem:[%s3 + $0x38] sm:$0xff]
  %v103 = vpack.c.bf16 %v94, %v93
  %v104 = vpack.c.bf16 %v96, %v95
  %v105 = vpack.c.bf16 %v98, %v97
  %v106 = vpack.c.bf16 %v100, %v99
  %v107 = vpack.c.bf16 %v102, %v101
  %v108 = vld [vmem:[%s4] sm:$0x1]
  %v110 = vlaneseq
  %v111 = vshrl.u32 %v110, 7
  %v112 = vsub.s32 0, %v111
  %v113 = vrot.slane %v108, %v112
  %v116 = vsel %vm48, %v103, 0
  %118 = vmatprep.subr.bf16.mxu0 0
  %119 = vmatpush1.bf16.msra.mxu0 %v104
  %120 = vmatprep.subr.bf16.mxu0 0
  %121 = vmatpush1.bf16.msra.mxu0 %v105
  %122 = vmatprep.subr.bf16.mxu0 0
  %123 = vmatpush1.bf16.msra.mxu0 %v106
  %124 = vmatprep.subr.bf16.mxu0 0
  %125 = vmatpush1.bf16.msra.mxu0 %v107
  %126 = vmatprep.subr.bf16.mxu0 0
  %127 = vmatpush1.bf16.msra.mxu0 0
  %128 = vmatprep.subr.bf16.mxu0 0
  %129 = vmatpush1.bf16.msra.mxu0 0
  %130 = vmatprep.subr.bf16.mxu0 0
  %131 = vmatpush1.bf16.msra.mxu0 0
  %132 = vmatprep.subr.bf16.mxu0 0
  %133 = vmatpush1.bf16.msra.mxu0 0
  %134 = vmatprep.subr.bf16.mxu0 0
  %135 = vmatpush1.bf16.msra.mxu0 0
  %136 = vmatprep.subr.bf16.mxu0 0
  %137 = vmatpush1.bf16.msra.mxu0 0
  %138 = vmatprep.subr.bf16.mxu0 0
  %139 = vmatpush1.bf16.msra.mxu0 0
  %140 = vmatprep.subr.bf16.mxu0 0
  %141 = vmatpush1.bf16.msra.mxu0 0
  %142 = vmatprep.subr.bf16.mxu0 0
  %143 = vmatpush1.bf16.msra.mxu0 0
  %144 = vmatprep.subr.bf16.mxu0 0
  %145 = vmatpush1.bf16.msra.mxu0 0
  %146 = vmatprep.subr.bf16.mxu0 0
  %147 = vmatpush1.bf16.msra.mxu0 0
  %148 = vmatprep.subr.bf16.mxu0 0
  %149 = vmatpush1.bf16.msra.mxu0 0
  %150 = vmatprep.mubr.bf16.mxu0 0
  %151 = vmatmul.mubr.bf16.gmra.mrb[0].mxu0 %v116
  %v152 = vpop.f32.mrb[0].mxu0
  %v153 = vadd.f32 %v113, %v152
  %v154 = vpop.f32.mrb[0].mxu0
  %v155 = vpop.f32.mrb[0].mxu0
  %v156 = vadd.f32 %v113, %v155
  %v157 = vpop.f32.mrb[0].mxu0
  %158 = vdwg.mxu0
  %vm159 = vcmask 261120
  %160 = vst.msk [vmem:[%s6] sm:$0xff] %vm159, %v153
  %161 = vst.msk [vmem:[%s6 + $0x8] sm:$0xff] %vm159, %v156
  %v162 = vld [vmem:[%s5] sm:$0xff]
  %v163 = vld [vmem:[%s5 + $0x8] sm:$0xff]
  %v164 = vld [vmem:[%s5 + $0x10] sm:$0xff]
  %v165 = vld [vmem:[%s5 + $0x18] sm:$0xff]
  %v166 = vpack.c.bf16 %v156, %v153
  %v167 = vpack.c.bf16 %v163, %v162
  %v168 = vpack.c.bf16 %v165, %v164
  %v170 = vsel %vm159, %v166, 0
  %172 = vmatprep.subr.bf16.mxu0 0
  %173 = vmatpush1.bf16.msra.mxu0 %v167
  %174 = vmatprep.subr.bf16.mxu0 0
  %175 = vmatpush1.bf16.msra.mxu0 %v168
  %176 = vmatprep.subr.bf16.mxu0 0
  %177 = vmatpush1.bf16.msra.mxu0 0
  %178 = vmatprep.subr.bf16.mxu0 0
  %179 = vmatpush1.bf16.msra.mxu0 0
  %180 = vmatprep.subr.bf16.mxu0 0
  %181 = vmatpush1.bf16.msra.mxu0 0
  %182 = vmatprep.subr.bf16.mxu0 0
  %183 = vmatpush1.bf16.msra.mxu0 0
  %184 = vmatprep.subr.bf16.mxu0 0
  %185 = vmatpush1.bf16.msra.mxu0 0
  %186 = vmatprep.subr.bf16.mxu0 0
  %187 = vmatpush1.bf16.msra.mxu0 0
  %188 = vmatprep.subr.bf16.mxu0 0
  %189 = vmatpush1.bf16.msra.mxu0 0
  %190 = vmatprep.subr.bf16.mxu0 0
  %191 = vmatpush1.bf16.msra.mxu0 0
  %192 = vmatprep.subr.bf16.mxu0 0
  %193 = vmatpush1.bf16.msra.mxu0 0
  %194 = vmatprep.subr.bf16.mxu0 0
  %195 = vmatpush1.bf16.msra.mxu0 0
  %196 = vmatprep.subr.bf16.mxu0 0
  %197 = vmatpush1.bf16.msra.mxu0 0
  %198 = vmatprep.subr.bf16.mxu0 0
  %199 = vmatpush1.bf16.msra.mxu0 0
  %200 = vmatprep.subr.bf16.mxu0 0
  %201 = vmatpush1.bf16.msra.mxu0 0
  %202 = vmatprep.subr.bf16.mxu0 0
  %203 = vmatpush1.bf16.msra.mxu0 0
  %204 = vmatprep.mubr.bf16.mxu0 0
  %205 = vmatmul.mubr.bf16.gmra.mrb[0].mxu0 %v170
  %v206 = vpop.f32.mrb[0].mxu0
  %v207 = vadd.f32 0.0, %v206
  %v208 = vpop.f32.mrb[0].mxu0
  %v209 = vpop.f32.mrb[0].mxu0
  %v210 = vadd.f32 0.0, %v209
  %v211 = vpop.f32.mrb[0].mxu0
  %212 = vdwg.mxu0
  %213 = vst.msk [vmem:[%s7] sm:$0xff] %vm159, %v207
  %214 = vst.msk [vmem:[%s7 + $0x8] sm:$0xff] %vm159, %v210
  // Predicated region
  $region26: #{seq2seq_forward.10} parent=0 // pred_check
    _
  $region27: #{seq2seq_forward.10} parent=0 // pred_check_branch
    %216 = sbr.rel (0) target = $region29
  $region28: #{seq2seq_forward.10} parent=0 // pred_region
    _
  $region29: #{seq2seq_forward.10} parent=0 // pred_fallthru
    _
  // Predicated region
  $region30: #{seq2seq_forward.10} parent=0 // pred_check
    _
  $region31: #{seq2seq_forward.10} parent=0 // pred_check_branch
    %218 = sbr.rel (0) target = $region33
  $region32: #{seq2seq_forward.10} parent=0 // pred_region
    _
  $region33: #{seq2seq_forward.10} parent=0 // pred_fallthru
    _
  // Predicated region
  $region34: #{seq2seq_forward.10} parent=0 // pred_check
    _
  $region35: #{seq2seq_forward.10} parent=0 // pred_check_branch
    %220 = sbr.rel (0) target = $region37
  $region36: #{seq2seq_forward.10} parent=0 // pred_region
    _
  $region37: #{seq2seq_forward.10} parent=0 // pred_fallthru
    _
  // Predicated region
  $region38: #{seq2seq_forward.10} parent=0 // pred_check
    _
  $region39: #{seq2seq_forward.10} parent=0 // pred_check_branch
    %222 = sbr.rel (0) target = $region41
  $region40: #{seq2seq_forward.10} parent=0 // pred_region
    _
  $region41: #{seq2seq_forward.10} parent=0 // pred_fallthru
    _

// kernel: seq2seq_forward.8
$region0: #{seq2seq_forward.8}
  #allocation0 [shape = 'u32[]', space=smem, size = 0x4, offset = 0x4, fixed_abs, tag = 'smem constant byte address 0x4 - core index']
  #allocation1 [shape = 'u32[144,128]{1,0:T(1,128)}', space=vmem, size = 0x12000, scoped, tag = 'internal scratch']
  %s0 = inlined_call_operand.vmem [shape: f32[2,8,2,64], index: 0, kind: input, shape index: {}]
  %s1 = inlined_call_operand.vmem [shape: f32[2,64,96], index: 1, kind: input, shape index: {}]
  %s2 = inlined_call_operand.vmem [shape: f32[2,32,96], index: 2, kind: input, shape index: {}]
  %s3 = inlined_call_operand.vmem [shape: f32[2,1,96], index: 3, kind: input, shape index: {}]
  %s4 = inlined_call_operand.vmem [shape: f32[2,1,96], index: 4, kind: input, shape index: {}]
  %s5 = inlined_call_operand.vmem [shape: f32[2,8,2,32], index: 5, kind: output, shape index: {0}]
  %s6 = inlined_call_operand.vmem [shape: f32[2,2,32], index: 6, kind: output, shape index: {1}]
  %7 = xla_tuple %s5, %s6
  %s8 = sld [smem:[#allocation0]]
  $region61: #{seq2seq_forward.8} parent=0
    _
  %s10 = ssub.s32 1, %s8
  %s11 = scalar_select 0, %s10, %s8
  loop: start=0, step=1, limit=4
  $region2: #{seq2seq_forward.8} parent=0 // loop_pre_header
    _
  $region3: #{seq2seq_forward.8} parent=0 // loop_header
    %s13 = sphi 0, %s17
    %p14 = scmp.ge.s32.totalorder %s13, 4
    %s23 = sphi 0, %s25
    %s26 = sphi 0, %s23
    %s27 = sphi 0, %s26
    %s43 = sphi 0, %s27
    %s49 = sphi 0, %s51
    %s52 = sphi 0, %s49
    %s53 = sphi 0, %s52
    %s69 = sphi 0, %s53
    %s75 = sphi 0, %s77
    %s78 = sphi 0, %s75
    %s79 = sphi 0, %s78
    %s95 = sphi 0, %s79
    %s101 = sphi 0, %s103
    %s104 = sphi 0, %s101
    %s105 = sphi 0, %s104
    %s121 = sphi 0, %s105
    %s127 = sphi 0, %s129
    %s130 = sphi 0, %s127
    %s131 = sphi 0, %s130
    %s147 = sphi 0, %s131
    %s153 = sphi 0, %s155
    %s156 = sphi 0, %s153
    %s157 = sphi 0, %s156
    %s173 = sphi 0, %s157
    %s179 = sphi 0, %s181
    %s182 = sphi 0, %s179
    %s183 = sphi 0, %s182
    %s199 = sphi 0, %s183
  $region4: #{seq2seq_forward.8} parent=0 // loop_header_branch
    %16 = sbr.rel (%p14) target = $region8
  $region5: #{seq2seq_forward.8} parent=0 // loop_body
    %s18 = ssub.s32 %s13, 1
    %s19 = ssub.s32 %s13, 2
    %s20 = sadd.s32 %s13, 1
    %s21 = ssub.s32 %s13, %s20
    %p22 = scmp.eq.s32.totalorder %s21, 0
    %s24 = sadd.s32 %s23, 1
    %s25 = scalar_select %p22, %s23, %s24
    %p28 = pneg %p22
    %p29 = scmp.eq.s32.totalorder %s13, 1
    %p30 = por %p28, %p29
    %p31 = scmp.ne.s32.totalorder %s23, %s26
    %p32 = scmp.eq.s32.totalorder %s13, 0
    %p33 = por %p31, %p32
    %p34 = scmp.ne.s32.totalorder %s23, %s26
    %p35 = scmp.eq.s32.totalorder %s18, 1
    %p36 = por %p34, %p35
    %p37 = scmp.ne.s32.totalorder %s26, %s27
    %p38 = scmp.eq.s32.totalorder %s18, 0
    %p39 = por %p37, %p38
    %p40 = scmp.ne.s32.totalorder %s26, %s27
    %p41 = scmp.eq.s32.totalorder %s19, 1
    %p42 = por %p40, %p41
    %p44 = scmp.ne.s32.totalorder %s27, %s43
    %p45 = scmp.eq.s32.totalorder %s19, 0
    %p46 = por %p44, %p45
    %s47 = ssub.s32 %s13, %s20
    %p48 = scmp.eq.s32.totalorder %s47, 0
    %s50 = sadd.s32 %s49, 1
    %s51 = scalar_select %p48, %s49, %s50
    %p54 = pneg %p48
    %p55 = scmp.eq.s32.totalorder %s13, 1
    %p56 = por %p54, %p55
    %p57 = scmp.ne.s32.totalorder %s49, %s52
    %p58 = scmp.eq.s32.totalorder %s13, 0
    %p59 = por %p57, %p58
    %p60 = scmp.ne.s32.totalorder %s49, %s52
    %p61 = scmp.eq.s32.totalorder %s18, 1
    %p62 = por %p60, %p61
    %p63 = scmp.ne.s32.totalorder %s52, %s53
    %p64 = scmp.eq.s32.totalorder %s18, 0
    %p65 = por %p63, %p64
    %p66 = scmp.ne.s32.totalorder %s52, %s53
    %p67 = scmp.eq.s32.totalorder %s19, 1
    %p68 = por %p66, %p67
    %p70 = scmp.ne.s32.totalorder %s53, %s69
    %p71 = scmp.eq.s32.totalorder %s19, 0
    %p72 = por %p70, %p71
    %s73 = ssub.s32 %s13, %s20
    %p74 = scmp.eq.s32.totalorder %s73, 0
    %s76 = sadd.s32 %s75, 1
    %s77 = scalar_select %p74, %s75, %s76
    %p80 = pneg %p74
    %p81 = scmp.eq.s32.totalorder %s13, 1
    %p82 = por %p80, %p81
    %p83 = scmp.ne.s32.totalorder %s75, %s78
    %p84 = scmp.eq.s32.totalorder %s13, 0
    %p85 = por %p83, %p84
    %p86 = scmp.ne.s32.totalorder %s75, %s78
    %p87 = scmp.eq.s32.totalorder %s18, 1
    %p88 = por %p86, %p87
    %p89 = scmp.ne.s32.totalorder %s78, %s79
    %p90 = scmp.eq.s32.totalorder %s18, 0
    %p91 = por %p89, %p90
    %p92 = scmp.ne.s32.totalorder %s78, %s79
    %p93 = scmp.eq.s32.totalorder %s19, 1
    %p94 = por %p92, %p93
    %p96 = scmp.ne.s32.totalorder %s79, %s95
    %p97 = scmp.eq.s32.totalorder %s19, 0
    %p98 = por %p96, %p97
    %s99 = ssub.s32 %s13, %s20
    %p100 = scmp.eq.s32.totalorder %s99, 0
    %s102 = sadd.s32 %s101, 1
    %s103 = scalar_select %p100, %s101, %s102
    %p106 = pneg %p100
    %p107 = scmp.eq.s32.totalorder %s13, 1
    %p108 = por %p106, %p107
    %p109 = scmp.ne.s32.totalorder %s101, %s104
    %p110 = scmp.eq.s32.totalorder %s13, 0
    %p111 = por %p109, %p110
    %p112 = scmp.ne.s32.totalorder %s101, %s104
    %p113 = scmp.eq.s32.totalorder %s18, 1
    %p114 = por %p112, %p113
    %p115 = scmp.ne.s32.totalorder %s104, %s105
    %p116 = scmp.eq.s32.totalorder %s18, 0
    %p117 = por %p115, %p116
    %p118 = scmp.ne.s32.totalorder %s104, %s105
    %p119 = scmp.eq.s32.totalorder %s19, 1
    %p120 = por %p118, %p119
    %p122 = scmp.ne.s32.totalorder %s105, %s121
    %p123 = scmp.eq.s32.totalorder %s19, 0
    %p124 = por %p122, %p123
    %s125 = ssub.s32 %s13, %s20
    %p126 = scmp.eq.s32.totalorder %s125, 0
    %s128 = sadd.s32 %s127, 1
    %s129 = scalar_select %p126, %s127, %s128
    %p132 = pneg %p126
    %p133 = scmp.eq.s32.totalorder %s13, 1
    %p134 = por %p132, %p133
    %p135 = scmp.ne.s32.totalorder %s127, %s130
    %p136 = scmp.eq.s32.totalorder %s13, 0
    %p137 = por %p135, %p136
    %p138 = scmp.ne.s32.totalorder %s127, %s130
    %p139 = scmp.eq.s32.totalorder %s18, 1
    %p140 = por %p138, %p139
    %p141 = scmp.ne.s32.totalorder %s130, %s131
    %p142 = scmp.eq.s32.totalorder %s18, 0
    %p143 = por %p141, %p142
    %p144 = scmp.ne.s32.totalorder %s130, %s131
    %p145 = scmp.eq.s32.totalorder %s19, 1
    %p146 = por %p144, %p145
    %p148 = scmp.ne.s32.totalorder %s131, %s147
    %p149 = scmp.eq.s32.totalorder %s19, 0
    %p150 = por %p148, %p149
    %s151 = ssub.s32 %s13, %s20
    %p152 = scmp.eq.s32.totalorder %s151, 0
    %s154 = sadd.s32 %s153, 1
    %s155 = scalar_select %p152, %s153, %s154
    %p158 = pneg %p152
    %p159 = scmp.eq.s32.totalorder %s13, 1
    %p160 = por %p158, %p159
    %p161 = scmp.ne.s32.totalorder %s153, %s156
    %p162 = scmp.eq.s32.totalorder %s13, 0
    %p163 = por %p161, %p162
    %p164 = scmp.ne.s32.totalorder %s153, %s156
    %p165 = scmp.eq.s32.totalorder %s18, 1
    %p166 = por %p164, %p165
    %p167 = scmp.ne.s32.totalorder %s156, %s157
    %p168 = scmp.eq.s32.totalorder %s18, 0
    %p169 = por %p167, %p168
    %p170 = scmp.ne.s32.totalorder %s156, %s157
    %p171 = scmp.eq.s32.totalorder %s19, 1
    %p172 = por %p170, %p171
    %p174 = scmp.ne.s32.totalorder %s157, %s173
    %p175 = scmp.eq.s32.totalorder %s19, 0
    %p176 = por %p174, %p175
    %s177 = ssub.s32 %s13, %s20
    %p178 = scmp.eq.s32.totalorder %s177, 0
    %s180 = sadd.s32 %s179, 1
    %s181 = scalar_select %p178, %s179, %s180
    %p184 = pneg %p178
    %p185 = scmp.eq.s32.totalorder %s13, 1
    %p186 = por %p184, %p185
    %p187 = scmp.ne.s32.totalorder %s179, %s182
    %p188 = scmp.eq.s32.totalorder %s13, 0
    %p189 = por %p187, %p188
    %p190 = scmp.ne.s32.totalorder %s179, %s182
    %p191 = scmp.eq.s32.totalorder %s18, 1
    %p192 = por %p190, %p191
    %p193 = scmp.ne.s32.totalorder %s182, %s183
    %p194 = scmp.eq.s32.totalorder %s18, 0
    %p195 = por %p193, %p194
    %p196 = scmp.ne.s32.totalorder %s182, %s183
    %p197 = scmp.eq.s32.totalorder %s19, 1
    %p198 = por %p196, %p197
    %p200 = scmp.ne.s32.totalorder %s183, %s199
    %p201 = scmp.eq.s32.totalorder %s19, 0
    %p202 = por %p200, %p201
    %p203 = scmp.le.s32.totalorder 1, %s13
    %p204 = scmp.lt.s32.totalorder %s13, 3
    %p205 = pnand %p203, %p204
    %p206 = pneg %p205
    // Predicated region
    $region9: #{seq2seq_forward.8} parent=5 // pred_check
      _
    $region10: #{seq2seq_forward.8} parent=5 // pred_check_branch
      %208 = sbr.rel (%p205) target = $region12
    $region11: #{seq2seq_forward.8} parent=5 // pred_region
      %s209 = ssub.s32 %s13, 1
    $region12: #{seq2seq_forward.8} parent=5 // pred_fallthru
      _
    %p210 = scmp.lt.s32.totalorder %s13, 2
    // Predicated region
    $region13: #{seq2seq_forward.8} parent=5 // pred_check
      %p211 = pneg %p210
    $region14: #{seq2seq_forward.8} parent=5 // pred_check_branch
      %213 = sbr.rel (%p211) target = $region16
    $region15: #{seq2seq_forward.8} parent=5 // pred_region
      // Predicated region
      $region17: #{seq2seq_forward.8} parent=15 // pred_check
        %p214 = pneg %p33
      $region18: #{seq2seq_forward.8} parent=15 // pred_check_branch
        %216 = sbr.rel (%p214) target = $region20
      $region19: #{seq2seq_forward.8} parent=15 // pred_region
        %p217 = scmp.lt.s32.totalorder %s13, 1
        %s218 = scalar_select %p217, %s13, 1
        %s219 = smul.addr %s218, 8
        %s220 = smul.addr %s219, 2
        %s221 = scalar_lea.vmem %s0, %s220
      $region20: #{seq2seq_forward.8} parent=15 // pred_fallthru
        _
      // Predicated region
      $region21: #{seq2seq_forward.8} parent=15 // pred_check
        %p222 = pneg %p59
      $region22: #{seq2seq_forward.8} parent=15 // pred_check_branch
        %224 = sbr.rel (%p222) target = $region24
      $region23: #{seq2seq_forward.8} parent=15 // pred_region
        %p225 = scmp.lt.s32.totalorder %s13, 1
        %s226 = scalar_select %p225, %s13, 1
        %s227 = smul.addr %s226, 8
        %s228 = smul.addr %s227, 8
        %s229 = scalar_lea.vmem %s1, %s228
      $region24: #{seq2seq_forward.8} parent=15 // pred_fallthru
        _
      // Predicated region
      $region25: #{seq2seq_forward.8} parent=15 // pred_check
        %p230 = pneg %p85
      $region26: #{seq2seq_forward.8} parent=15 // pred_check_branch
        %232 = sbr.rel (%p230) target = $region28
      $region27: #{seq2seq_forward.8} parent=15 // pred_region
        %p233 = scmp.lt.s32.totalorder %s13, 1
        %s234 = scalar_select %p233, %s13, 1
        %s235 = smul.addr %s234, 4
        %s236 = smul.addr %s235, 8
        %s237 = scalar_lea.vmem %s2, %s236
      $region28: #{seq2seq_forward.8} parent=15 // pred_fallthru
        _
      // Predicated region
      $region29: #{seq2seq_forward.8} parent=15 // pred_check
        %p238 = pneg %p111
      $region30: #{seq2seq_forward.8} parent=15 // pred_check_branch
        %240 = sbr.rel (%p238) target = $region32
      $region31: #{seq2seq_forward.8} parent=15 // pred_region
        %p241 = scmp.lt.s32.totalorder %s13, 1
        %s242 = scalar_select %p241, %s13, 1
        %s243 = scalar_lea.vmem %s3, %s242
      $region32: #{seq2seq_forward.8} parent=15 // pred_fallthru
        _
      // Predicated region
      $region33: #{seq2seq_forward.8} parent=15 // pred_check
        %p244 = pneg %p137
      $region34: #{seq2seq_forward.8} parent=15 // pred_check_branch
        %246 = sbr.rel (%p244) target = $region36
      $region35: #{seq2seq_forward.8} parent=15 // pred_region
        %p247 = scmp.lt.s32.totalorder %s13, 1
        %s248 = scalar_select %p247, %s13, 1
        %s249 = scalar_lea.vmem %s4, %s248
      $region36: #{seq2seq_forward.8} parent=15 // pred_fallthru
        _
    $region16: #{seq2seq_forward.8} parent=5 // pred_fallthru
      _
    %p250 = scmp.le.s32.totalorder 1, %s13
    %p251 = scmp.lt.s32.totalorder %s13, 3
    %p252 = pnand %p250, %p251
    %p253 = pneg %p252
    // Predicated region
    $region37: #{seq2seq_forward.8} parent=5 // pred_check
      _
    $region38: #{seq2seq_forward.8} parent=5 // pred_check_branch
      %255 = sbr.rel (%p252) target = $region40
    $region39: #{seq2seq_forward.8} parent=5 // pred_region
      %s256 = ssub.s32 %s13, 1
      %p257 = scmp.lt.s32.totalorder %s18, 1
      %s258 = scalar_select %p257, %s18, 1
      %s259 = smul.addr %s258, 8
      %s260 = smul.addr %s259, 2
      %s261 = scalar_lea.vmem %s0, %s260
      %p262 = pneg %p39
      %p263 = pneg %p36
      %p264 = scmp.lt.s32.totalorder %s18, 1
      %s265 = scalar_select %p264, %s18, 1
      %s266 = smul.addr %s265, 8
      %s267 = smul.addr %s266, 8
      %s268 = scalar_lea.vmem %s1, %s267
      %p269 = pneg %p65
      %p270 = pneg %p62
      %p271 = scmp.lt.s32.totalorder %s18, 1
      %s272 = scalar_select %p271, %s18, 1
      %s273 = smul.addr %s272, 4
      %s274 = smul.addr %s273, 8
      %s275 = scalar_lea.vmem %s2, %s274
      %p276 = pneg %p91
      %p277 = pneg %p88
      %p278 = scmp.lt.s32.totalorder %s18, 1
      %s279 = scalar_select %p278, %s18, 1
      %s280 = scalar_lea.vmem %s3, %s279
      %p281 = pneg %p117
      %p282 = pneg %p114
      %p283 = scmp.lt.s32.totalorder %s18, 1
      %s284 = scalar_select %p283, %s18, 1
      %s285 = scalar_lea.vmem %s4, %s284
      %p286 = pneg %p143
      %p287 = pneg %p140
      %p288 = pneg %p169
      %p289 = pneg %p166
      %p290 = scmp.lt.s32.totalorder %s18, 1
      %s291 = scalar_select %p290, %s18, 1
      %s292 = smul.addr %s291, 8
      %s293 = smul.addr %s292, 2
      %s294 = scalar_lea.vmem %s5, %s293
      %p295 = pneg %p195
      %p296 = pneg %p192
      %p297 = scmp.lt.s32.totalorder %s18, 1
      %s298 = scalar_select %p297, %s18, 1
      %s299 = smul.addr %s298, 2
      %s300 = scalar_lea.vmem %s6, %s299
      %p301 = scmp.lt.s32.totalorder %s18, 1
      %s302 = scalar_select %p301, %s18, 1
      %s303 = smul.addr %s302, 8
      %s304 = smul.addr %s303, 2
      %s305 = scalar_lea.vmem %s0, %s304
      %p306 = scmp.lt.s32.totalorder %s18, 1
      %s307 = scalar_select %p306, %s18, 1
      %s308 = smul.addr %s307, 8
      %s309 = smul.addr %s308, 8
      %s310 = scalar_lea.vmem %s1, %s309
      %p311 = scmp.lt.s32.totalorder %s18, 1
      %s312 = scalar_select %p311, %s18, 1
      %s313 = smul.addr %s312, 4
      %s314 = smul.addr %s313, 8
      %s315 = scalar_lea.vmem %s2, %s314
      %p316 = scmp.lt.s32.totalorder %s18, 1
      %s317 = scalar_select %p316, %s18, 1
      %s318 = scalar_lea.vmem %s3, %s317
      %p319 = scmp.lt.s32.totalorder %s18, 1
      %s320 = scalar_select %p319, %s18, 1
      %s321 = scalar_lea.vmem %s4, %s320
      %p322 = scmp.lt.s32.totalorder %s18, 1
      %s323 = scalar_select %p322, %s18, 1
      %s324 = smul.addr %s323, 8
      %s325 = smul.addr %s324, 2
      %s326 = scalar_lea.vmem %s5, %s325
      %p327 = scmp.lt.s32.totalorder %s18, 1
      %s328 = scalar_select %p327, %s18, 1
      %s329 = smul.addr %s328, 2
      %s330 = scalar_lea.vmem %s6, %s329
      %v332 = vld [vmem:[%s310] sm:$0xff]
      %v333 = vld [vmem:[%s310 + $0x8] sm:$0xff]
      %v334 = vld [vmem:[%s310 + $0x10] sm:$0xff]
      %v335 = vld [vmem:[%s310 + $0x18] sm:$0xff]
      %v336 = vld [vmem:[%s310 + $0x20] sm:$0xff]
      %v337 = vld [vmem:[%s310 + $0x28] sm:$0xff]
      %v338 = vld [vmem:[%s310 + $0x30] sm:$0xff]
      %v339 = vld [vmem:[%s310 + $0x38] sm:$0xff]
      %v340 = vpack.c.bf16 %v333, %v332
      %v341 = vpack.c.bf16 %v335, %v334
      %v342 = vpack.c.bf16 %v337, %v336
      %v343 = vpack.c.bf16 %v339, %v338
      %v344 = vld [vmem:[%s315] sm:$0xff]
      %v345 = vld [vmem:[%s315 + $0x8] sm:$0xff]
      %v346 = vld [vmem:[%s315 + $0x10] sm:$0xff]
      %v347 = vld [vmem:[%s315 + $0x18] sm:$0xff]
      %v348 = vpack.c.bf16 %v345, %v344
      %v349 = vpack.c.bf16 %v347, %v346
      %v350 = vld [vmem:[%s318] sm:$0x1]
      %v351 = vld [vmem:[%s321] sm:$0x1]
      %v352 = vld [vmem:[%s305] sm:$0x3]
      %v353 = vpack.c.bf16 %v352, %v352
      %v355 = vlaneseq
      %v356 = vshrl.u32 %v355, 7
      %v357 = vsub.s32 0, %v356
      %v358 = vrot.slane %v350, %v357
      %vm360 = vcmask 523264
      %v362 = vsel %vm360, %v353, 0
      %364 = vmatprep.subr.bf16.mxu0 0
      %365 = vmatpush1.bf16.msra.mxu0 %v340
      %366 = vmatprep.subr.bf16.mxu0 0
      %367 = vmatpush1.bf16.msra.mxu0 %v341
      %368 = vmatprep.subr.bf16.mxu0 0
      %369 = vmatpush1.bf16.msra.mxu0 %v342
      %370 = vmatprep.subr.bf16.mxu0 0
      %371 = vmatpush1.bf16.msra.mxu0 %v343
      %372 = vmatprep.subr.bf16.mxu0 0
      %373 = vmatpush1.bf16.msra.mxu0 0
      %374 = vmatprep.subr.bf16.mxu0 0
      %375 = vmatpush1.bf16.msra.mxu0 0
      %376 = vmatprep.subr.bf16.mxu0 0
      %377 = vmatpush1.bf16.msra.mxu0 0
      %378 = vmatprep.subr.bf16.mxu0 0
      %379 = vmatpush1.bf16.msra.mxu0 0
      %380 = vmatprep.subr.bf16.mxu0 0
      %381 = vmatpush1.bf16.msra.mxu0 0
      %382 = vmatprep.subr.bf16.mxu0 0
      %383 = vmatpush1.bf16.msra.mxu0 0
      %384 = vmatprep.subr.bf16.mxu0 0
      %385 = vmatpush1.bf16.msra.mxu0 0
      %386 = vmatprep.subr.bf16.mxu0 0
      %387 = vmatpush1.bf16.msra.mxu0 0
      %388 = vmatprep.subr.bf16.mxu0 0
      %389 = vmatpush1.bf16.msra.mxu0 0
      %390 = vmatprep.subr.bf16.mxu0 0
      %391 = vmatpush1.bf16.msra.mxu0 0
      %392 = vmatprep.subr.bf16.mxu0 0
      %393 = vmatpush1.bf16.msra.mxu0 0
      %394 = vmatprep.subr.bf16.mxu0 0
      %395 = vmatpush1.bf16.msra.mxu0 0
      %396 = vmatprep.mubr.bf16.mxu0 0
      %397 = vmatmul.mubr.bf16.gmra.mrb[0].mxu0 %v362
      %v398 = vpop.f32.mrb[0].mxu0
      %v399 = vadd.f32 %v358, %v398
      %v400 = vpop.f32.mrb[0].mxu0
      %v401 = vpop.f32.mrb[0].mxu0
      %v402 = vpop.f32.mrb[0].mxu0
      %403 = vdwg.mxu0
      %v405 = vlaneseq
      %v406 = vshrl.u32 %v405, 7
      %v407 = vsub.s32 0, %v406
      %v408 = vrot.slane %v351, %v407
      %vm410 = vcmask 261120
      %v412 = vsel %vm410, 0, 0
      %414 = vmatprep.subr.bf16.mxu0 0
      %415 = vmatpush1.bf16.msra.mxu0 %v348
      %416 = vmatprep.subr.bf16.mxu0 0
      %417 = vmatpush1.bf16.msra.mxu0 %v349
      %418 = vmatprep.subr.bf16.mxu0 0
      %419 = vmatpush1.bf16.msra.mxu0 0
      %420 = vmatprep.subr.bf16.mxu0 0
      %421 = vmatpush1.bf16.msra.mxu0 0
      %422 = vmatprep.subr.bf16.mxu0 0
      %423 = vmatpush1.bf16.msra.mxu0 0
      %424 = vmatprep.subr.bf16.mxu0 0
      %425 = vmatpush1.bf16.msra.mxu0 0
      %426 = vmatprep.subr.bf16.mxu0 0
      %427 = vmatpush1.bf16.msra.mxu0 0
      %428 = vmatprep.subr.bf16.mxu0 0
      %429 = vmatpush1.bf16.msra.mxu0 0
      %430 = vmatprep.subr.bf16.mxu0 0
      %431 = vmatpush1.bf16.msra.mxu0 0
      %432 = vmatprep.subr.bf16.mxu0 0
      %433 = vmatpush1.bf16.msra.mxu0 0
      %434 = vmatprep.subr.bf16.mxu0 0
      %435 = vmatpush1.bf16.msra.mxu0 0
      %436 = vmatprep.subr.bf16.mxu0 0
      %437 = vmatpush1.bf16.msra.mxu0 0
      %438 = vmatprep.subr.bf16.mxu0 0
      %439 = vmatpush1.bf16.msra.mxu0 0
      %440 = vmatprep.subr.bf16.mxu0 0
      %441 = vmatpush1.bf16.msra.mxu0 0
      %442 = vmatprep.subr.bf16.mxu0 0
      %443 = vmatpush1.bf16.msra.mxu0 0
      %444 = vmatprep.subr.bf16.mxu0 0
      %445 = vmatpush1.bf16.msra.mxu0 0
      %446 = vmatprep.mubr.bf16.mxu0 0
      %447 = vmatmul.mubr.bf16.gmra.mrb[0].mxu0 %v412
      %v448 = vpop.f32.mrb[0].mxu0
      %v449 = vadd.f32 %v408, %v448
      %v450 = vpop.f32.mrb[0].mxu0
      %v451 = vpop.f32.mrb[0].mxu0
      %v452 = vpop.f32.mrb[0].mxu0
      %453 = vdwg.mxu0
      %v454 = vadd.f32 %v399, %v449
      %v455 = vxor.u32 %v454, 2147483648
      %v456 = vmul.f32 %v455, 1.442695
      %v457 = vpow.pop %v456
      %v458 = vadd.f32 %v457, 1.0
      %v459 = vrcp.pop %v458
      %v460 = vmul.f32 1.0, %v459
      %462 = vrot.lane.b32.xlu0 %v449, 64
      %v463 = vpop.permute.xlu0 %462
      %v465 = vmul.f32 %v460, %v463
      %467 = vrot.lane.b32.xlu0 %v465, 64
      %v468 = vpop.permute.xlu0 %467
      %v470 = vadd.f32 %v399, %v468
      %v471 = vtanh.pop %v470
      %v472 = vsub.f32 1.0, %v460
      %474 = vrot.lane.b32.xlu0 %v471, 96
      %v475 = vpop.permute.xlu0 %474
      %v477 = vmul.f32 %v472, %v475
      %v478 = vmul.f32 %v460, 0.0
      %v479 = vadd.f32 %v477, %v478
      %481 = vrot.lane.b32.xlu0 %v479, 96
      %v482 = vpop.permute.xlu0 %481
      %vm484 = vcmask 254976
      %485 = vst.msk [vmem:[%s326] sm:$0x3] %vm484, %v482
      %s486 = scalar_lea.vmem %s305, 2
      %v487 = vld [vmem:[%s486] sm:$0x3]
      %v488 = vpack.c.bf16 %v487, %v487
      %v490 = vsel %vm360, %v488, 0
      %492 = vmatprep.subr.bf16.mxu0 0
      %493 = vmatpush1.bf16.msra.mxu0 %v340
      %494 = vmatprep.subr.bf16.mxu0 0
      %495 = vmatpush1.bf16.msra.mxu0 %v341
      %496 = vmatprep.subr.bf16.mxu0 0
      %497 = vmatpush1.bf16.msra.mxu0 %v342
      %498 = vmatprep.subr.bf16.mxu0 0
      %499 = vmatpush1.bf16.msra.mxu0 %v343
      %500 = vmatprep.subr.bf16.mxu0 0
      %501 = vmatpush1.bf16.msra.mxu0 0
      %502 = vmatprep.subr.bf16.mxu0 0
      %503 = vmatpush1.bf16.msra.mxu0 0
      %504 = vmatprep.subr.bf16.mxu0 0
      %505 = vmatpush1.bf16.msra.mxu0 0
      %506 = vmatprep.subr.bf16.mxu0 0
      %507 = vmatpush1.bf16.msra.mxu0 0
      %508 = vmatprep.subr.bf16.mxu0 0
      %509 = vmatpush1.bf16.msra.mxu0 0
      %510 = vmatprep.subr.bf16.mxu0 0
      %511 = vmatpush1.bf16.msra.mxu0 0
      %512 = vmatprep.subr.bf16.mxu0 0
      %513 = vmatpush1.bf16.msra.mxu0 0
      %514 = vmatprep.subr.bf16.mxu0 0
      %515 = vmatpush1.bf16.msra.mxu0 0
      %516 = vmatprep.subr.bf16.mxu0 0
      %517 = vmatpush1.bf16.msra.mxu0 0
      %518 = vmatprep.subr.bf16.mxu0 0
      %519 = vmatpush1.bf16.msra.mxu0 0
      %520 = vmatprep.subr.bf16.mxu0 0
      %521 = vmatpush1.bf16.msra.mxu0 0
      %522 = vmatprep.subr.bf16.mxu0 0
      %523 = vmatpush1.bf16.msra.mxu0 0
      %524 = vmatprep.mubr.bf16.mxu0 0
      %525 = vmatmul.mubr.bf16.gmra.mrb[0].mxu0 %v490
      %v526 = vpop.f32.mrb[0].mxu0
      %v527 = vadd.f32 %v358, %v526
      %v528 = vpop.f32.mrb[0].mxu0
      %v529 = vpop.f32.mrb[0].mxu0
      %v530 = vpop.f32.mrb[0].mxu0
      %531 = vdwg.mxu0
      %v532 = vpack.c.bf16 %v479, %v479
      %534 = vrot.lane.b32.xlu0 %v532, 96
      %v535 = vpop.permute.xlu0 %534
      %v537 = vsel %vm410, %v535, 0
      %539 = vmatprep.subr.bf16.mxu0 0
      %540 = vmatpush1.bf16.msra.mxu0 %v348
      %541 = vmatprep.subr.bf16.mxu0 0
      %542 = vmatpush1.bf16.msra.mxu0 %v349
      %543 = vmatprep.subr.bf16.mxu0 0
      %544 = vmatpush1.bf16.msra.mxu0 0
      %545 = vmatprep.subr.bf16.mxu0 0
      %546 = vmatpush1.bf16.msra.mxu0 0
      %547 = vmatprep.subr.bf16.mxu0 0
      %548 = vmatpush1.bf16.msra.mxu0 0
      %549 = vmatprep.subr.bf16.mxu0 0
      %550 = vmatpush1.bf16.msra.mxu0 0
      %551 = vmatprep.subr.bf16.mxu0 0
      %552 = vmatpush1.bf16.msra.mxu0 0
      %553 = vmatprep.subr.bf16.mxu0 0
      %554 = vmatpush1.bf16.msra.mxu0 0
      %555 = vmatprep.subr.bf16.mxu0 0
      %556 = vmatpush1.bf16.msra.mxu0 0
      %557 = vmatprep.subr.bf16.mxu0 0
      %558 = vmatpush1.bf16.msra.mxu0 0
      %559 = vmatprep.subr.bf16.mxu0 0
      %560 = vmatpush1.bf16.msra.mxu0 0
      %561 = vmatprep.subr.bf16.mxu0 0
      %562 = vmatpush1.bf16.msra.mxu0 0
      %563 = vmatprep.subr.bf16.mxu0 0
      %564 = vmatpush1.bf16.msra.mxu0 0
      %565 = vmatprep.subr.bf16.mxu0 0
      %566 = vmatpush1.bf16.msra.mxu0 0
      %567 = vmatprep.subr.bf16.mxu0 0
      %568 = vmatpush1.bf16.msra.mxu0 0
      %569 = vmatprep.subr.bf16.mxu0 0
      %570 = vmatpush1.bf16.msra.mxu0 0
      %571 = vmatprep.mubr.bf16.mxu0 0
      %572 = vmatmul.mubr.bf16.gmra.mrb[0].mxu0 %v537
      %v573 = vpop.f32.mrb[0].mxu0
      %v574 = vadd.f32 %v408, %v573
      %v575 = vpop.f32.mrb[0].mxu0
      %v576 = vpop.f32.mrb[0].mxu0
      %v577 = vpop.f32.mrb[0].mxu0
      %578 = vdwg.mxu0
      %v579 = vadd.f32 %v527, %v574
      %v580 = vxor.u32 %v579, 2147483648
      %v581 = vmul.f32 %v580, 1.442695
      %v582 = vpow.pop %v581
      %v583 = vadd.f32 %v582, 1.0
      %v584 = vrcp.pop %v583
      %v585 = vmul.f32 1.0, %v584
      %587 = vrot.lane.b32.xlu0 %v574, 64
      %v588 = vpop.permute.xlu0 %587
      %v590 = vmul.f32 %v585, %v588
      %592 = vrot.lane.b32.xlu0 %v590, 64
      %v593 = vpop.permute.xlu0 %592
      %v595 = vadd.f32 %v527, %v593
      %v596 = vtanh.pop %v595
      %v597 = vsub.f32 1.0, %v585
      %599 = vrot.lane.b32.xlu0 %v596, 96
      %v600 = vpop.permute.xlu0 %599
      %v602 = vmul.f32 %v597, %v600
      %v603 = vmul.f32 %v585, %v479
      %v604 = vadd.f32 %v602, %v603
      %606 = vrot.lane.b32.xlu0 %v604, 96
      %v607 = vpop.permute.xlu0 %606
      %s609 = scalar_lea.vmem %s326, 2
      %610 = vst.msk [vmem:[%s609] sm:$0x3] %vm484, %v607
      %s611 = scalar_lea.vmem %s305, 4
      %v612 = vld [vmem:[%s611] sm:$0x3]
      %v613 = vpack.c.bf16 %v612, %v612
      %v615 = vsel %vm360, %v613, 0
      %617 = vmatprep.subr.bf16.mxu0 0
      %618 = vmatpush1.bf16.msra.mxu0 %v340
      %619 = vmatprep.subr.bf16.mxu0 0
      %620 = vmatpush1.bf16.msra.mxu0 %v341
      %621 = vmatprep.subr.bf16.mxu0 0
      %622 = vmatpush1.bf16.msra.mxu0 %v342
      %623 = vmatprep.subr.bf16.mxu0 0
      %624 = vmatpush1.bf16.msra.mxu0 %v343
      %625 = vmatprep.subr.bf16.mxu0 0
      %626 = vmatpush1.bf16.msra.mxu0 0
      %627 = vmatprep.subr.bf16.mxu0 0
      %628 = vmatpush1.bf16.msra.mxu0 0
      %629 = vmatprep.subr.bf16.mxu0 0
      %630 = vmatpush1.bf16.msra.mxu0 0
      %631 = vmatprep.subr.bf16.mxu0 0
      %632 = vmatpush1.bf16.msra.mxu0 0
      %633 = vmatprep.subr.bf16.mxu0 0
      %634 = vmatpush1.bf16.msra.mxu0 0
      %635 = vmatprep.subr.bf16.mxu0 0
      %636 = vmatpush1.bf16.msra.mxu0 0
      %637 = vmatprep.subr.bf16.mxu0 0
      %638 = vmatpush1.bf16.msra.mxu0 0
      %639 = vmatprep.subr.bf16.mxu0 0
      %640 = vmatpush1.bf16.msra.mxu0 0
      %641 = vmatprep.subr.bf16.mxu0 0
      %642 = vmatpush1.bf16.msra.mxu0 0
      %643 = vmatprep.subr.bf16.mxu0 0
      %644 = vmatpush1.bf16.msra.mxu0 0
      %645 = vmatprep.subr.bf16.mxu0 0
      %646 = vmatpush1.bf16.msra.mxu0 0
      %647 = vmatprep.subr.bf16.mxu0 0
      %648 = vmatpush1.bf16.msra.mxu0 0
      %649 = vmatprep.mubr.bf16.mxu0 0
      %650 = vmatmul.mubr.bf16.gmra.mrb[0].mxu0 %v615
      %v651 = vpop.f32.mrb[0].mxu0
      %v652 = vadd.f32 %v358, %v651
      %v653 = vpop.f32.mrb[0].mxu0
      %v654 = vpop.f32.mrb[0].mxu0
      %v655 = vpop.f32.mrb[0].mxu0
      %656 = vdwg.mxu0
      %v657 = vpack.c.bf16 %v604, %v604
      %659 = vrot.lane.b32.xlu0 %v657, 96
      %v660 = vpop.permute.xlu0 %659
      %v662 = vsel %vm410, %v660, 0
      %664 = vmatprep.subr.bf16.mxu0 0
      %665 = vmatpush1.bf16.msra.mxu0 %v348
      %666 = vmatprep.subr.bf16.mxu0 0
      %667 = vmatpush1.bf16.msra.mxu0 %v349
      %668 = vmatprep.subr.bf16.mxu0 0
      %669 = vmatpush1.bf16.msra.mxu0 0
      %670 = vmatprep.subr.bf16.mxu0 0
      %671 = vmatpush1.bf16.msra.mxu0 0
      %672 = vmatprep.subr.bf16.mxu0 0
      %673 = vmatpush1.bf16.msra.mxu0 0
      %674 = vmatprep.subr.bf16.mxu0 0
      %675 = vmatpush1.bf16.msra.mxu0 0
      %676 = vmatprep.subr.bf16.mxu0 0
      %677 = vmatpush1.bf16.msra.mxu0 0
      %678 = vmatprep.subr.bf16.mxu0 0
      %679 = vmatpush1.bf16.msra.mxu0 0
      %680 = vmatprep.subr.bf16.mxu0 0
      %681 = vmatpush1.bf16.msra.mxu0 0
      %682 = vmatprep.subr.bf16.mxu0 0
      %683 = vmatpush1.bf16.msra.mxu0 0
      %684 = vmatprep.subr.bf16.mxu0 0
      %685 = vmatpush1.bf16.msra.mxu0 0
      %686 = vmatprep.subr.bf16.mxu0 0
      %687 = vmatpush1.bf16.msra.mxu0 0
      %688 = vmatprep.subr.bf16.mxu0 0
      %689 = vmatpush1.bf16.msra.mxu0 0
      %690 = vmatprep.subr.bf16.mxu0 0
      %691 = vmatpush1.bf16.msra.mxu0 0
      %692 = vmatprep.subr.bf16.mxu0 0
      %693 = vmatpush1.bf16.msra.mxu0 0
      %694 = vmatprep.subr.bf16.mxu0 0
      %695 = vmatpush1.bf16.msra.mxu0 0
      %696 = vmatprep.mubr.bf16.mxu0 0
      %697 = vmatmul.mubr.bf16.gmra.mrb[0].mxu0 %v662
      %v698 = vpop.f32.mrb[0].mxu0
      %v699 = vadd.f32 %v408, %v698
      %v700 = vpop.f32.mrb[0].mxu0
      %v701 = vpop.f32.mrb[0].mxu0
      %v702 = vpop.f32.mrb[0].mxu0
      %703 = vdwg.mxu0
      %v704 = vadd.f32 %v652, %v699
      %v705 = vxor.u32 %v704, 2147483648
      %v706 = vmul.f32 %v705, 1.442695
      %v707 = vpow.pop %v706
      %v708 = vadd.f32 %v707, 1.0
      %v709 = vrcp.pop %v708
      %v710 = vmul.f32 1.0, %v709
      %712 = vrot.lane.b32.xlu0 %v699, 64
      %v713 = vpop.permute.xlu0 %712
      %v715 = vmul.f32 %v710, %v713
      %717 = vrot.lane.b32.xlu0 %v715, 64
      %v718 = vpop.permute.xlu0 %717
      %v720 = vadd.f32 %v652, %v718
      %v721 = vtanh.pop %v720
      %v722 = vsub.f32 1.0, %v710
      %724 = vrot.lane.b32.xlu0 %v721, 96
      %v725 = vpop.permute.xlu0 %724
      %v727 = vmul.f32 %v722, %v725
      %v728 = vmul.f32 %v710, %v604
      %v729 = vadd.f32 %v727, %v728
      %731 = vrot.lane.b32.xlu0 %v729, 96
      %v732 = vpop.permute.xlu0 %731
      %s734 = scalar_lea.vmem %s326, 4
      %735 = vst.msk [vmem:[%s734] sm:$0x3] %vm484, %v732
      %s736 = scalar_lea.vmem %s305, 6
      %v737 = vld [vmem:[%s736] sm:$0x3]
      %v738 = vpack.c.bf16 %v737, %v737
      %v740 = vsel %vm360, %v738, 0
      %742 = vmatprep.subr.bf16.mxu0 0
      %743 = vmatpush1.bf16.msra.mxu0 %v340
      %744 = vmatprep.subr.bf16.mxu0 0
      %745 = vmatpush1.bf16.msra.mxu0 %v341
      %746 = vmatprep.subr.bf16.mxu0 0
      %747 = vmatpush1.bf16.msra.mxu0 %v342
      %748 = vmatprep.subr.bf16.mxu0 0
      %749 = vmatpush1.bf16.msra.mxu0 %v343
      %750 = vmatprep.subr.bf16.mxu0 0
      %751 = vmatpush1.bf16.msra.mxu0 0
      %752 = vmatprep.subr.bf16.mxu0 0
      %753 = vmatpush1.bf16.msra.mxu0 0
      %754 = vmatprep.subr.bf16.mxu0 0
      %755 = vmatpush1.bf16.msra.mxu0 0
      %756 = vmatprep.subr.bf16.mxu0 0
      %757 = vmatpush1.bf16.msra.mxu0 0
      %758 = vmatprep.subr.bf16.mxu0 0
      %759 = vmatpush1.bf16.msra.mxu0 0
      %760 = vmatprep.subr.bf16.mxu0 0
      %761 = vmatpush1.bf16.msra.mxu0 0
      %762 = vmatprep.subr.bf16.mxu0 0
      %763 = vmatpush1.bf16.msra.mxu0 0
      %764 = vmatprep.subr.bf16.mxu0 0
      %765 = vmatpush1.bf16.msra.mxu0 0
      %766 = vmatprep.subr.bf16.mxu0 0
      %767 = vmatpush1.bf16.msra.mxu0 0
      %768 = vmatprep.subr.bf16.mxu0 0
      %769 = vmatpush1.bf16.msra.mxu0 0
      %770 = vmatprep.subr.bf16.mxu0 0
      %771 = vmatpush1.bf16.msra.mxu0 0
      %772 = vmatprep.subr.bf16.mxu0 0
      %773 = vmatpush1.bf16.msra.mxu0 0
      %774 = vmatprep.mubr.bf16.mxu0 0
      %775 = vmatmul.mubr.bf16.gmra.mrb[0].mxu0 %v740
      %v776 = vpop.f32.mrb[0].mxu0
      %v777 = vadd.f32 %v358, %v776
      %v778 = vpop.f32.mrb[0].mxu0
      %v779 = vpop.f32.mrb[0].mxu0
      %v780 = vpop.f32.mrb[0].mxu0
      %781 = vdwg.mxu0
      %v782 = vpack.c.bf16 %v729, %v729
      %784 = vrot.lane.b32.xlu0 %v782, 96
      %v785 = vpop.permute.xlu0 %784
      %v787 = vsel %vm410, %v785, 0
      %789 = vmatprep.subr.bf16.mxu0 0
      %790 = vmatpush1.bf16.msra.mxu0 %v348
      %791 = vmatprep.subr.bf16.mxu0 0
      %792 = vmatpush1.bf16.msra.mxu0 %v349
      %793 = vmatprep.subr.bf16.mxu0 0
      %794 = vmatpush1.bf16.msra.mxu0 0
      %795 = vmatprep.subr.bf16.mxu0 0
      %796 = vmatpush1.bf16.msra.mxu0 0
      %797 = vmatprep.subr.bf16.mxu0 0
      %798 = vmatpush1.bf16.msra.mxu0 0
      %799 = vmatprep.subr.bf16.mxu0 0
      %800 = vmatpush1.bf16.msra.mxu0 0
      %801 = vmatprep.subr.bf16.mxu0 0
      %802 = vmatpush1.bf16.msra.mxu0 0
      %803 = vmatprep.subr.bf16.mxu0 0
      %804 = vmatpush1.bf16.msra.mxu0 0
      %805 = vmatprep.subr.bf16.mxu0 0
      %806 = vmatpush1.bf16.msra.mxu0 0
      %807 = vmatprep.subr.bf16.mxu0 0
      %808 = vmatpush1.bf16.msra.mxu0 0
      %809 = vmatprep.subr.bf16.mxu0 0
      %810 = vmatpush1.bf16.msra.mxu0 0
      %811 = vmatprep.subr.bf16.mxu0 0
      %812 = vmatpush1.bf16.msra.mxu0 0
      %813 = vmatprep.subr.bf16.mxu0 0
      %814 = vmatpush1.bf16.msra.mxu0 0
      %815 = vmatprep.subr.bf16.mxu0 0
      %816 = vmatpush1.bf16.msra.mxu0 0
      %817 = vmatprep.subr.bf16.mxu0 0
      %818 = vmatpush1.bf16.msra.mxu0 0
      %819 = vmatprep.subr.bf16.mxu0 0
      %820 = vmatpush1.bf16.msra.mxu0 0
      %821 = vmatprep.mubr.bf16.mxu0 0
      %822 = vmatmul.mubr.bf16.gmra.mrb[0].mxu0 %v787
      %v823 = vpop.f32.mrb[0].mxu0
      %v824 = vadd.f32 %v408, %v823
      %v825 = vpop.f32.mrb[0].mxu0
      %v826 = vpop.f32.mrb[0].mxu0
      %v827 = vpop.f32.mrb[0].mxu0
      %828 = vdwg.mxu0
      %v829 = vadd.f32 %v777, %v824
      %v830 = vxor.u32 %v829, 2147483648
      %v831 = vmul.f32 %v830, 1.442695
      %v832 = vpow.pop %v831
      %v833 = vadd.f32 %v832, 1.0
      %v834 = vrcp.pop %v833
      %v835 = vmul.f32 1.0, %v834
      %837 = vrot.lane.b32.xlu0 %v824, 64
      %v838 = vpop.permute.xlu0 %837
      %v840 = vmul.f32 %v835, %v838
      %842 = vrot.lane.b32.xlu0 %v840, 64
      %v843 = vpop.permute.xlu0 %842
      %v845 = vadd.f32 %v777, %v843
      %v846 = vtanh.pop %v845
      %v847 = vsub.f32 1.0, %v835
      %849 = vrot.lane.b32.xlu0 %v846, 96
      %v850 = vpop.permute.xlu0 %849
      %v852 = vmul.f32 %v847, %v850
      %v853 = vmul.f32 %v835, %v729
      %v854 = vadd.f32 %v852, %v853
      %856 = vrot.lane.b32.xlu0 %v854, 96
      %v857 = vpop.permute.xlu0 %856
      %s859 = scalar_lea.vmem %s326, 6
      %860 = vst.msk [vmem:[%s859] sm:$0x3] %vm484, %v857
      %s861 = scalar_lea.vmem %s305, 8
      %v862 = vld [vmem:[%s861] sm:$0x3]
      %v863 = vpack.c.bf16 %v862, %v862
      %v865 = vsel %vm360, %v863, 0
      %867 = vmatprep.subr.bf16.mxu0 0
      %868 = vmatpush1.bf16.msra.mxu0 %v340
      %869 = vmatprep.subr.bf16.mxu0 0
      %870 = vmatpush1.bf16.msra.mxu0 %v341
      %871 = vmatprep.subr.bf16.mxu0 0
      %872 = vmatpush1.bf16.msra.mxu0 %v342
      %873 = vmatprep.subr.bf16.mxu0 0
      %874 = vmatpush1.bf16.msra.mxu0 %v343
      %875 = vmatprep.subr.bf16.mxu0 0
      %876 = vmatpush1.bf16.msra.mxu0 0
      %877 = vmatprep.subr.bf16.mxu0 0
      %878 = vmatpush1.bf16.msra.mxu0 0
      %879 = vmatprep.subr.bf16.mxu0 0
      %880 = vmatpush1.bf16.msra.mxu0 0
      %881 = vmatprep.subr.bf16.mxu0 0
      %882 = vmatpush1.bf16.msra.mxu0 0
      %883 = vmatprep.subr.bf16.mxu0 0
      %884 = vmatpush1.bf16.msra.mxu0 0
      %885 = vmatprep.subr.bf16.mxu0 0
      %886 = vmatpush1.bf16.msra.mxu0 0
      %887 = vmatprep.subr.bf16.mxu0 0
      %888 = vmatpush1.bf16.msra.mxu0 0
      %889 = vmatprep.subr.bf16.mxu0 0
      %890 = vmatpush1.bf16.msra.mxu0 0
      %891 = vmatprep.subr.bf16.mxu0 0
      %892 = vmatpush1.bf16.msra.mxu0 0
      %893 = vmatprep.subr.bf16.mxu0 0
      %894 = vmatpush1.bf16.msra.mxu0 0
      %895 = vmatprep.subr.bf16.mxu0 0
      %896 = vmatpush1.bf16.msra.mxu0 0
      %897 = vmatprep.subr.bf16.mxu0 0
      %898 = vmatpush1.bf16.msra.mxu0 0
      %899 = vmatprep.mubr.bf16.mxu0 0
      %900 = vmatmul.mubr.bf16.gmra.mrb[0].mxu0 %v865
      %v901 = vpop.f32.mrb[0].mxu0
      %v902 = vadd.f32 %v358, %v901
      %v903 = vpop.f32.mrb[0].mxu0
      %v904 = vpop.f32.mrb[0].mxu0
      %v905 = vpop.f32.mrb[0].mxu0
      %906 = vdwg.mxu0
      %v907 = vpack.c.bf16 %v854, %v854
      %909 = vrot.lane.b32.xlu0 %v907, 96
      %v910 = vpop.permute.xlu0 %909
      %v912 = vsel %vm410, %v910, 0
      %914 = vmatprep.subr.bf16.mxu0 0
      %915 = vmatpush1.bf16.msra.mxu0 %v348
      %916 = vmatprep.subr.bf16.mxu0 0
      %917 = vmatpush1.bf16.msra.mxu0 %v349
      %918 = vmatprep.subr.bf16.mxu0 0
      %919 = vmatpush1.bf16.msra.mxu0 0
      %920 = vmatprep.subr.bf16.mxu0 0
      %921 = vmatpush1.bf16.msra.mxu0 0
      %922 = vmatprep.subr.bf16.mxu0 0
      %923 = vmatpush1.bf16.msra.mxu0 0
      %924 = vmatprep.subr.bf16.mxu0 0
      %925 = vmatpush1.bf16.msra.mxu0 0
      %926 = vmatprep.subr.bf16.mxu0 0
      %927 = vmatpush1.bf16.msra.mxu0 0
      %928 = vmatprep.subr.bf16.mxu0 0
      %929 = vmatpush1.bf16.msra.mxu0 0
      %930 = vmatprep.subr.bf16.mxu0 0
      %931 = vmatpush1.bf16.msra.mxu0 0
      %932 = vmatprep.subr.bf16.mxu0 0
      %933 = vmatpush1.bf16.msra.mxu0 0
      %934 = vmatprep.subr.bf16.mxu0 0
      %935 = vmatpush1.bf16.msra.mxu0 0
      %936 = vmatprep.subr.bf16.mxu0 0
      %937 = vmatpush1.bf16.msra.mxu0 0
      %938 = vmatprep.subr.bf16.mxu0 0
      %939 = vmatpush1.bf16.msra.mxu0 0
      %940 = vmatprep.subr.bf16.mxu0 0
      %941 = vmatpush1.bf16.msra.mxu0 0
      %942 = vmatprep.subr.bf16.mxu0 0
      %943 = vmatpush1.bf16.msra.mxu0 0
      %944 = vmatprep.subr.bf16.mxu0 0
      %945 = vmatpush1.bf16.msra.mxu0 0
      %946 = vmatprep.mubr.bf16.mxu0 0
      %947 = vmatmul.mubr.bf16.gmra.mrb[0].mxu0 %v912
      %v948 = vpop.f32.mrb[0].mxu0
      %v949 = vadd.f32 %v408, %v948
      %v950 = vpop.f32.mrb[0].mxu0
      %v951 = vpop.f32.mrb[0].mxu0
      %v952 = vpop.f32.mrb[0].mxu0
      %953 = vdwg.mxu0
      %v954 = vadd.f32 %v902, %v949
      %v955 = vxor.u32 %v954, 2147483648
      %v956 = vmul.f32 %v955, 1.442695
      %v957 = vpow.pop %v956
      %v958 = vadd.f32 %v957, 1.0
      %v959 = vrcp.pop %v958
      %v960 = vmul.f32 1.0, %v959
      %962 = vrot.lane.b32.xlu0 %v949, 64
      %v963 = vpop.permute.xlu0 %962
      %v965 = vmul.f32 %v960, %v963
      %967 = vrot.lane.b32.xlu0 %v965, 64
      %v968 = vpop.permute.xlu0 %967
      %v970 = vadd.f32 %v902, %v968
      %v971 = vtanh.pop %v970
      %v972 = vsub.f32 1.0, %v960
      %974 = vrot.lane.b32.xlu0 %v971, 96
      %v975 = vpop.permute.xlu0 %974
      %v977 = vmul.f32 %v972, %v975
      %v978 = vmul.f32 %v960, %v854
      %v979 = vadd.f32 %v977, %v978
      %981 = vrot.lane.b32.xlu0 %v979, 96
      %v982 = vpop.permute.xlu0 %981
      %s984 = scalar_lea.vmem %s326, 8
      %985 = vst.msk [vmem:[%s984] sm:$0x3] %vm484, %v982
      %s986 = scalar_lea.vmem %s305, 10
      %v987 = vld [vmem:[%s986] sm:$0x3]
      %v988 = vpack.c.bf16 %v987, %v987
      %v990 = vsel %vm360, %v988, 0
      %992 = vmatprep.subr.bf16.mxu0 0
      %993 = vmatpush1.bf16.msra.mxu0 %v340
      %994 = vmatprep.subr.bf16.mxu0 0
      %995 = vmatpush1.bf16.msra.mxu0 %v341
      %996 = vmatprep.subr.bf16.mxu0 0
      %997 = vmatpush1.bf16.msra.mxu0 %v342
      %998 = vmatprep.subr.bf16.mxu0 0
      %999 = vmatpush1.bf16.msra.mxu0 %v343
      %1000 = vmatprep.subr.bf16.mxu0 0
      %1001 = vmatpush1.bf16.msra.mxu0 0
      %1002 = vmatprep.subr.bf16.mxu0 0
      %1003 = vmatpush1.bf16.msra.mxu0 0
      %1004 = vmatprep.subr.bf16.mxu0 0
      %1005 = vmatpush1.bf16.msra.mxu0 0
      %1006 = vmatprep.subr.bf16.mxu0 0
      %1007 = vmatpush1.bf16.msra.mxu0 0
      %1008 = vmatprep.subr.bf16.mxu0 0
      %1009 = vmatpush1.bf16.msra.mxu0 0
      %1010 = vmatprep.subr.bf16.mxu0 0
      %1011 = vmatpush1.bf16.msra.mxu0 0
      %1012 = vmatprep.subr.bf16.mxu0 0
      %1013 = vmatpush1.bf16.msra.mxu0 0
      %1014 = vmatprep.subr.bf16.mxu0 0
      %1015 = vmatpush1.bf16.msra.mxu0 0
      %1016 = vmatprep.subr.bf16.mxu0 0
      %1017 = vmatpush1.bf16.msra.mxu0 0
      %1018 = vmatprep.subr.bf16.mxu0 0
      %1019 = vmatpush1.bf16.msra.mxu0 0
      %1020 = vmatprep.subr.bf16.mxu0 0
      %1021 = vmatpush1.bf16.msra.mxu0 0
      %1022 = vmatprep.subr.bf16.mxu0 0
      %1023 = vmatpush1.bf16.msra.mxu0 0
      %1024 = vmatprep.mubr.bf16.mxu0 0
      %1025 = vmatmul.mubr.bf16.gmra.mrb[0].mxu0 %v990
      %v1026 = vpop.f32.mrb[0].mxu0
      %v1027 = vadd.f32 %v358, %v1026
      %v1028 = vpop.f32.mrb[0].mxu0
      %v1029 = vpop.f32.mrb[0].mxu0
      %v1030 = vpop.f32.mrb[0].mxu0
      %1031 = vdwg.mxu0
      %v1032 = vpack.c.bf16 %v979, %v979
      %1034 = vrot.lane.b32.xlu0 %v1032, 96
      %v1035 = vpop.permute.xlu0 %1034
      %v1037 = vsel %vm410, %v1035, 0
      %1039 = vmatprep.subr.bf16.mxu0 0
      %1040 = vmatpush1.bf16.msra.mxu0 %v348
      %1041 = vmatprep.subr.bf16.mxu0 0
      %1042 = vmatpush1.bf16.msra.mxu0 %v349
      %1043 = vmatprep.subr.bf16.mxu0 0
      %1044 = vmatpush1.bf16.msra.mxu0 0
      %1045 = vmatprep.subr.bf16.mxu0 0
      %1046 = vmatpush1.bf16.msra.mxu0 0
      %1047 = vmatprep.subr.bf16.mxu0 0
      %1048 = vmatpush1.bf16.msra.mxu0 0
      %1049 = vmatprep.subr.bf16.mxu0 0
      %1050 = vmatpush1.bf16.msra.mxu0 0
      %1051 = vmatprep.subr.bf16.mxu0 0
      %1052 = vmatpush1.bf16.msra.mxu0 0
      %1053 = vmatprep.subr.bf16.mxu0 0
      %1054 = vmatpush1.bf16.msra.mxu0 0
      %1055 = vmatprep.subr.bf16.mxu0 0
      %1056 = vmatpush1.bf16.msra.mxu0 0
      %1057 = vmatprep.subr.bf16.mxu0 0
      %1058 = vmatpush1.bf16.msra.mxu0 0
      %1059 = vmatprep.subr.bf16.mxu0 0
      %1060 = vmatpush1.bf16.msra.mxu0 0
      %1061 = vmatprep.subr.bf16.mxu0 0
      %1062 = vmatpush1.bf16.msra.mxu0 0
      %1063 = vmatprep.subr.bf16.mxu0 0
      %1064 = vmatpush1.bf16.msra.mxu0 0
      %1065 = vmatprep.subr.bf16.mxu0 0
      %1066 = vmatpush1.bf16.msra.mxu0 0
      %1067 = vmatprep.subr.bf16.mxu0 0
      %1068 = vmatpush1.bf16.msra.mxu0 0
      %1069 = vmatprep.subr.bf16.mxu0 0
      %1070 = vmatpush1.bf16.msra.mxu0 0
      %1071 = vmatprep.mubr.bf16.mxu0 0
      %1072 = vmatmul.mubr.bf16.gmra.mrb[0].mxu0 %v1037
      %v1073 = vpop.f32.mrb[0].mxu0
      %v1074 = vadd.f32 %v408, %v1073
      %v1075 = vpop.f32.mrb[0].mxu0
      %v1076 = vpop.f32.mrb[0].mxu0
      %v1077 = vpop.f32.mrb[0].mxu0
      %1078 = vdwg.mxu0
      %v1079 = vadd.f32 %v1027, %v1074
      %v1080 = vxor.u32 %v1079, 2147483648
      %v1081 = vmul.f32 %v1080, 1.442695
      %v1082 = vpow.pop %v1081
      %v1083 = vadd.f32 %v1082, 1.0
      %v1084 = vrcp.pop %v1083
      %v1085 = vmul.f32 1.0, %v1084
      %1087 = vrot.lane.b32.xlu0 %v1074, 64
      %v1088 = vpop.permute.xlu0 %1087
      %v1090 = vmul.f32 %v1085, %v1088
      %1092 = vrot.lane.b32.xlu0 %v1090, 64
      %v1093 = vpop.permute.xlu0 %1092
      %v1095 = vadd.f32 %v1027, %v1093
      %v1096 = vtanh.pop %v1095
      %v1097 = vsub.f32 1.0, %v1085
      %1099 = vrot.lane.b32.xlu0 %v1096, 96
      %v1100 = vpop.permute.xlu0 %1099
      %v1102 = vmul.f32 %v1097, %v1100
      %v1103 = vmul.f32 %v1085, %v979
      %v1104 = vadd.f32 %v1102, %v1103
      %1106 = vrot.lane.b32.xlu0 %v1104, 96
      %v1107 = vpop.permute.xlu0 %1106
      %s1109 = scalar_lea.vmem %s326, 10
      %1110 = vst.msk [vmem:[%s1109] sm:$0x3] %vm484, %v1107
      %s1111 = scalar_lea.vmem %s305, 12
      %v1112 = vld [vmem:[%s1111] sm:$0x3]
      %v1113 = vpack.c.bf16 %v1112, %v1112
      %v1115 = vsel %vm360, %v1113, 0
      %1117 = vmatprep.subr.bf16.mxu0 0
      %1118 = vmatpush1.bf16.msra.mxu0 %v340
      %1119 = vmatprep.subr.bf16.mxu0 0
      %1120 = vmatpush1.bf16.msra.mxu0 %v341
      %1121 = vmatprep.subr.bf16.mxu0 0
      %1122 = vmatpush1.bf16.msra.mxu0 %v342
      %1123 = vmatprep.subr.bf16.mxu0 0
      %1124 = vmatpush1.bf16.msra.mxu0 %v343
      %1125 = vmatprep.subr.bf16.mxu0 0
      %1126 = vmatpush1.bf16.msra.mxu0 0
      %1127 = vmatprep.subr.bf16.mxu0 0
      %1128 = vmatpush1.bf16.msra.mxu0 0
      %1129 = vmatprep.subr.bf16.mxu0 0
      %1130 = vmatpush1.bf16.msra.mxu0 0
      %1131 = vmatprep.subr.bf16.mxu0 0
      %1132 = vmatpush1.bf16.msra.mxu0 0
      %1133 = vmatprep.subr.bf16.mxu0 0
      %1134 = vmatpush1.bf16.msra.mxu0 0
      %1135 = vmatprep.subr.bf16.mxu0 0
      %1136 = vmatpush1.bf16.msra.mxu0 0
      %1137 = vmatprep.subr.bf16.mxu0 0
      %1138 = vmatpush1.bf16.msra.mxu0 0
      %1139 = vmatprep.subr.bf16.mxu0 0
      %1140 = vmatpush1.bf16.msra.mxu0 0
      %1141 = vmatprep.subr.bf16.mxu0 0
      %1142 = vmatpush1.bf16.msra.mxu0 0
      %1143 = vmatprep.subr.bf16.mxu0 0
      %1144 = vmatpush1.bf16.msra.mxu0 0
      %1145 = vmatprep.subr.bf16.mxu0 0
      %1146 = vmatpush1.bf16.msra.mxu0 0
      %1147 = vmatprep.subr.bf16.mxu0 0
      %1148 = vmatpush1.bf16.msra.mxu0 0
      %1149 = vmatprep.mubr.bf16.mxu0 0
      %1150 = vmatmul.mubr.bf16.gmra.mrb[0].mxu0 %v1115
      %v1151 = vpop.f32.mrb[0].mxu0
      %v1152 = vadd.f32 %v358, %v1151
      %v1153 = vpop.f32.mrb[0].mxu0
      %v1154 = vpop.f32.mrb[0].mxu0
      %v1155 = vpop.f32.mrb[0].mxu0
      %1156 = vdwg.mxu0
      %v1157 = vpack.c.bf16 %v1104, %v1104
      %1159 = vrot.lane.b32.xlu0 %v1157, 96
      %v1160 = vpop.permute.xlu0 %1159
      %v1162 = vsel %vm410, %v1160, 0
      %1164 = vmatprep.subr.bf16.mxu0 0
      %1165 = vmatpush1.bf16.msra.mxu0 %v348
      %1166 = vmatprep.subr.bf16.mxu0 0
      %1167 = vmatpush1.bf16.msra.mxu0 %v349
      %1168 = vmatprep.subr.bf16.mxu0 0
      %1169 = vmatpush1.bf16.msra.mxu0 0
      %1170 = vmatprep.subr.bf16.mxu0 0
      %1171 = vmatpush1.bf16.msra.mxu0 0
      %1172 = vmatprep.subr.bf16.mxu0 0
      %1173 = vmatpush1.bf16.msra.mxu0 0
      %1174 = vmatprep.subr.bf16.mxu0 0
      %1175 = vmatpush1.bf16.msra.mxu0 0
      %1176 = vmatprep.subr.bf16.mxu0 0
      %1177 = vmatpush1.bf16.msra.mxu0 0
      %1178 = vmatprep.subr.bf16.mxu0 0
      %1179 = vmatpush1.bf16.msra.mxu0 0
      %1180 = vmatprep.subr.bf16.mxu0 0
      %1181 = vmatpush1.bf16.msra.mxu0 0
      %1182 = vmatprep.subr.bf16.mxu0 0
      %1183 = vmatpush1.bf16.msra.mxu0 0
      %1184 = vmatprep.subr.bf16.mxu0 0
      %1185 = vmatpush1.bf16.msra.mxu0 0
      %1186 = vmatprep.subr.bf16.mxu0 0
      %1187 = vmatpush1.bf16.msra.mxu0 0
      %1188 = vmatprep.subr.bf16.mxu0 0
      %1189 = vmatpush1.bf16.msra.mxu0 0
      %1190 = vmatprep.subr.bf16.mxu0 0
      %1191 = vmatpush1.bf16.msra.mxu0 0
      %1192 = vmatprep.subr.bf16.mxu0 0
      %1193 = vmatpush1.bf16.msra.mxu0 0
      %1194 = vmatprep.subr.bf16.mxu0 0
      %1195 = vmatpush1.bf16.msra.mxu0 0
      %1196 = vmatprep.mubr.bf16.mxu0 0
      %1197 = vmatmul.mubr.bf16.gmra.mrb[0].mxu0 %v1162
      %v1198 = vpop.f32.mrb[0].mxu0
      %v1199 = vadd.f32 %v408, %v1198
      %v1200 = vpop.f32.mrb[0].mxu0
      %v1201 = vpop.f32.mrb[0].mxu0
      %v1202 = vpop.f32.mrb[0].mxu0
      %1203 = vdwg.mxu0
      %v1204 = vadd.f32 %v1152, %v1199
      %v1205 = vxor.u32 %v1204, 2147483648
      %v1206 = vmul.f32 %v1205, 1.442695
      %v1207 = vpow.pop %v1206
      %v1208 = vadd.f32 %v1207, 1.0
      %v1209 = vrcp.pop %v1208
      %v1210 = vmul.f32 1.0, %v1209
      %1212 = vrot.lane.b32.xlu0 %v1199, 64
      %v1213 = vpop.permute.xlu0 %1212
      %v1215 = vmul.f32 %v1210, %v1213
      %1217 = vrot.lane.b32.xlu0 %v1215, 64
      %v1218 = vpop.permute.xlu0 %1217
      %v1220 = vadd.f32 %v1152, %v1218
      %v1221 = vtanh.pop %v1220
      %v1222 = vsub.f32 1.0, %v1210
      %1224 = vrot.lane.b32.xlu0 %v1221, 96
      %v1225 = vpop.permute.xlu0 %1224
      %v1227 = vmul.f32 %v1222, %v1225
      %v1228 = vmul.f32 %v1210, %v1104
      %v1229 = vadd.f32 %v1227, %v1228
      %1231 = vrot.lane.b32.xlu0 %v1229, 96
      %v1232 = vpop.permute.xlu0 %1231
      %s1234 = scalar_lea.vmem %s326, 12
      %1235 = vst.msk [vmem:[%s1234] sm:$0x3] %vm484, %v1232
      %s1236 = scalar_lea.vmem %s305, 14
      %v1237 = vld [vmem:[%s1236] sm:$0x3]
      %v1238 = vpack.c.bf16 %v1237, %v1237
      %v1240 = vsel %vm360, %v1238, 0
      %1242 = vmatprep.subr.bf16.mxu0 0
      %1243 = vmatpush1.bf16.msra.mxu0 %v340
      %1244 = vmatprep.subr.bf16.mxu0 0
      %1245 = vmatpush1.bf16.msra.mxu0 %v341
      %1246 = vmatprep.subr.bf16.mxu0 0
      %1247 = vmatpush1.bf16.msra.mxu0 %v342
      %1248 = vmatprep.subr.bf16.mxu0 0
      %1249 = vmatpush1.bf16.msra.mxu0 %v343
      %1250 = vmatprep.subr.bf16.mxu0 0
      %1251 = vmatpush1.bf16.msra.mxu0 0
      %1252 = vmatprep.subr.bf16.mxu0 0
      %1253 = vmatpush1.bf16.msra.mxu0 0
      %1254 = vmatprep.subr.bf16.mxu0 0
      %1255 = vmatpush1.bf16.msra.mxu0 0
      %1256 = vmatprep.subr.bf16.mxu0 0
      %1257 = vmatpush1.bf16.msra.mxu0 0
      %1258 = vmatprep.subr.bf16.mxu0 0
      %1259 = vmatpush1.bf16.msra.mxu0 0
      %1260 = vmatprep.subr.bf16.mxu0 0
      %1261 = vmatpush1.bf16.msra.mxu0 0
      %1262 = vmatprep.subr.bf16.mxu0 0
      %1263 = vmatpush1.bf16.msra.mxu0 0
      %1264 = vmatprep.subr.bf16.mxu0 0
      %1265 = vmatpush1.bf16.msra.mxu0 0
      %1266 = vmatprep.subr.bf16.mxu0 0
      %1267 = vmatpush1.bf16.msra.mxu0 0
      %1268 = vmatprep.subr.bf16.mxu0 0
      %1269 = vmatpush1.bf16.msra.mxu0 0
      %1270 = vmatprep.subr.bf16.mxu0 0
      %1271 = vmatpush1.bf16.msra.mxu0 0
      %1272 = vmatprep.subr.bf16.mxu0 0
      %1273 = vmatpush1.bf16.msra.mxu0 0
      %1274 = vmatprep.mubr.bf16.mxu0 0
      %1275 = vmatmul.mubr.bf16.gmra.mrb[0].mxu0 %v1240
      %v1276 = vpop.f32.mrb[0].mxu0
      %v1277 = vadd.f32 %v358, %v1276
      %v1278 = vpop.f32.mrb[0].mxu0
      %v1279 = vpop.f32.mrb[0].mxu0
      %v1280 = vpop.f32.mrb[0].mxu0
      %1281 = vdwg.mxu0
      %v1282 = vpack.c.bf16 %v1229, %v1229
      %1284 = vrot.lane.b32.xlu0 %v1282, 96
      %v1285 = vpop.permute.xlu0 %1284
      %v1287 = vsel %vm410, %v1285, 0
      %1289 = vmatprep.subr.bf16.mxu0 0
      %1290 = vmatpush1.bf16.msra.mxu0 %v348
      %1291 = vmatprep.subr.bf16.mxu0 0
      %1292 = vmatpush1.bf16.msra.mxu0 %v349
      %1293 = vmatprep.subr.bf16.mxu0 0
      %1294 = vmatpush1.bf16.msra.mxu0 0
      %1295 = vmatprep.subr.bf16.mxu0 0
      %1296 = vmatpush1.bf16.msra.mxu0 0
      %1297 = vmatprep.subr.bf16.mxu0 0
      %1298 = vmatpush1.bf16.msra.mxu0 0
      %1299 = vmatprep.subr.bf16.mxu0 0
      %1300 = vmatpush1.bf16.msra.mxu0 0
      %1301 = vmatprep.subr.bf16.mxu0 0
      %1302 = vmatpush1.bf16.msra.mxu0 0
      %1303 = vmatprep.subr.bf16.mxu0 0
      %1304 = vmatpush1.bf16.msra.mxu0 0
      %1305 = vmatprep.subr.bf16.mxu0 0
      %1306 = vmatpush1.bf16.msra.mxu0 0
      %1307 = vmatprep.subr.bf16.mxu0 0
      %1308 = vmatpush1.bf16.msra.mxu0 0
      %1309 = vmatprep.subr.bf16.mxu0 0
      %1310 = vmatpush1.bf16.msra.mxu0 0
      %1311 = vmatprep.subr.bf16.mxu0 0
      %1312 = vmatpush1.bf16.msra.mxu0 0
      %1313 = vmatprep.subr.bf16.mxu0 0
      %1314 = vmatpush1.bf16.msra.mxu0 0
      %1315 = vmatprep.subr.bf16.mxu0 0
      %1316 = vmatpush1.bf16.msra.mxu0 0
      %1317 = vmatprep.subr.bf16.mxu0 0
      %1318 = vmatpush1.bf16.msra.mxu0 0
      %1319 = vmatprep.subr.bf16.mxu0 0
      %1320 = vmatpush1.bf16.msra.mxu0 0
      %1321 = vmatprep.mubr.bf16.mxu0 0
      %1322 = vmatmul.mubr.bf16.gmra.mrb[0].mxu0 %v1287
      %v1323 = vpop.f32.mrb[0].mxu0
      %v1324 = vadd.f32 %v408, %v1323
      %v1325 = vpop.f32.mrb[0].mxu0
      %v1326 = vpop.f32.mrb[0].mxu0
      %v1327 = vpop.f32.mrb[0].mxu0
      %1328 = vdwg.mxu0
      %v1329 = vadd.f32 %v1277, %v1324
      %v1330 = vxor.u32 %v1329, 2147483648
      %v1331 = vmul.f32 %v1330, 1.442695
      %v1332 = vpow.pop %v1331
      %v1333 = vadd.f32 %v1332, 1.0
      %v1334 = vrcp.pop %v1333
      %v1335 = vmul.f32 1.0, %v1334
      %1337 = vrot.lane.b32.xlu0 %v1324, 64
      %v1338 = vpop.permute.xlu0 %1337
      %v1340 = vmul.f32 %v1335, %v1338
      %1342 = vrot.lane.b32.xlu0 %v1340, 64
      %v1343 = vpop.permute.xlu0 %1342
      %v1345 = vadd.f32 %v1277, %v1343
      %v1346 = vtanh.pop %v1345
      %v1347 = vsub.f32 1.0, %v1335
      %1349 = vrot.lane.b32.xlu0 %v1346, 96
      %v1350 = vpop.permute.xlu0 %1349
      %v1352 = vmul.f32 %v1347, %v1350
      %v1353 = vmul.f32 %v1335, %v1229
      %v1354 = vadd.f32 %v1352, %v1353
      %1356 = vrot.lane.b32.xlu0 %v1354, 96
      %v1357 = vpop.permute.xlu0 %1356
      %s1359 = scalar_lea.vmem %s326, 14
      %1360 = vst.msk [vmem:[%s1359] sm:$0x3] %vm484, %v1357
      %1361 = vst.msk [vmem:[%s330] sm:$0x3] %vm484, %v1357
      %p1362 = scmp.lt.s32.totalorder %s18, 1
      %s1363 = scalar_select %p1362, %s18, 1
      %s1364 = smul.addr %s1363, 8
      %s1365 = smul.addr %s1364, 2
      %s1366 = scalar_lea.vmem %s5, %s1365
      %p1367 = scmp.lt.s32.totalorder %s18, 1
      %s1368 = scalar_select %p1367, %s18, 1
      %s1369 = smul.addr %s1368, 2
      %s1370 = scalar_lea.vmem %s6, %s1369
      // Predicated region
      $region41: #{seq2seq_forward.8} parent=39 // pred_check
        %p1371 = pneg %p166
      $region42: #{seq2seq_forward.8} parent=39 // pred_check_branch
        %1373 = sbr.rel (%p1371) target = $region44
      $region43: #{seq2seq_forward.8} parent=39 // pred_region
        _
      $region44: #{seq2seq_forward.8} parent=39 // pred_fallthru
        _
      // Predicated region
      $region45: #{seq2seq_forward.8} parent=39 // pred_check
        %p1374 = pneg %p192
      $region46: #{seq2seq_forward.8} parent=39 // pred_check_branch
        %1376 = sbr.rel (%p1374) target = $region48
      $region47: #{seq2seq_forward.8} parent=39 // pred_region
        _
      $region48: #{seq2seq_forward.8} parent=39 // pred_fallthru
        _
    $region40: #{seq2seq_forward.8} parent=5 // pred_fallthru
      _
    %p1377 = scmp.le.s32.totalorder 2, %s13
    // Predicated region
    $region49: #{seq2seq_forward.8} parent=5 // pred_check
      %p1378 = pneg %p1377
    $region50: #{seq2seq_forward.8} parent=5 // pred_check_branch
      %1380 = sbr.rel (%p1378) target = $region52
    $region51: #{seq2seq_forward.8} parent=5 // pred_region
      %s1381 = ssub.s32 %s13, 2
      // Predicated region
      $region53: #{seq2seq_forward.8} parent=51 // pred_check
        %p1382 = pneg %p172
      $region54: #{seq2seq_forward.8} parent=51 // pred_check_branch
        %1384 = sbr.rel (%p1382) target = $region56
      $region55: #{seq2seq_forward.8} parent=51 // pred_region
        %p1385 = scmp.lt.s32.totalorder %s19, 1
        %s1386 = scalar_select %p1385, %s19, 1
        %s1387 = smul.addr %s1386, 8
        %s1388 = smul.addr %s1387, 2
        %s1389 = scalar_lea.vmem %s5, %s1388
      $region56: #{seq2seq_forward.8} parent=51 // pred_fallthru
        _
      // Predicated region
      $region57: #{seq2seq_forward.8} parent=51 // pred_check
        %p1390 = pneg %p198
      $region58: #{seq2seq_forward.8} parent=51 // pred_check_branch
        %1392 = sbr.rel (%p1390) target = $region60
      $region59: #{seq2seq_forward.8} parent=51 // pred_region
        %p1393 = scmp.lt.s32.totalorder %s19, 1
        %s1394 = scalar_select %p1393, %s19, 1
        %s1395 = smul.addr %s1394, 2
        %s1396 = scalar_lea.vmem %s6, %s1395
      $region60: #{seq2seq_forward.8} parent=51 // pred_fallthru
        _
    $region52: #{seq2seq_forward.8} parent=5 // pred_fallthru
      _
  $region6: #{seq2seq_forward.8} parent=0 // loop_footer
    %s17 = sadd.s32 1, %s13
  $region7: #{seq2seq_forward.8} parent=0 // loop_footer_branch
    %12 = sbr.rel target = $region3
  $region8: #{seq2seq_forward.8} parent=0 // loop_exit
    _

// kernel: seq2seq_forward.7
$region0: #{seq2seq_forward.7}
  #allocation0 [shape = 'u32[]', space=smem, size = 0x4, offset = 0x4, fixed_abs, tag = 'smem constant byte address 0x4 - core index']
  #allocation1 [shape = 'u32[144,128]{1,0:T(1,128)}', space=vmem, size = 0x12000, scoped, tag = 'internal scratch']
  %s0 = inlined_call_operand.vmem [shape: f32[2,8,2,32], index: 0, kind: input, shape index: {}]
  %s1 = inlined_call_operand.vmem [shape: f32[2,32,96], index: 1, kind: input, shape index: {}]
  %s2 = inlined_call_operand.vmem [shape: f32[2,32,96], index: 2, kind: input, shape index: {}]
  %s3 = inlined_call_operand.vmem [shape: f32[2,1,96], index: 3, kind: input, shape index: {}]
  %s4 = inlined_call_operand.vmem [shape: f32[2,1,96], index: 4, kind: input, shape index: {}]
  %s5 = inlined_call_operand.vmem [shape: f32[2,8,2,32], index: 5, kind: output, shape index: {0}]
  %s6 = inlined_call_operand.hbm [shape: f32[2,2,32], index: 6, kind: output, shape index: {1}]
  %7 = xla_tuple %s5, %s6
  %s8 = sld [smem:[#allocation0]]
  $region61: #{seq2seq_forward.7} parent=0
    _
  %s10 = ssub.s32 1, %s8
  %s11 = scalar_select 0, %s10, %s8
  $region1: #{seq2seq_forward.7} parent=0
    #allocation2 [shape = 'u8[2048]{0}', space=vmem, size = 0x800, scoped, tag = 'output window, operand 1']
    #allocation3 [shape = 's32[2]{0}', space=sflag, size = 0x8, scoped, tag = 'scoped memory for seq2seq_forward.7']
    %12 = vsyncpa [#allocation3], 0
    %s13 = scalar_lea.sflag [#allocation3], 1
    %14 = vsyncpa %s13, 0
    loop: start=0, step=1, limit=4
    $region2: #{seq2seq_forward.7} parent=1 // loop_pre_header
      _
    $region3: #{seq2seq_forward.7} parent=1 // loop_header
      %s16 = sphi 0, %s20
      %p17 = scmp.ge.s32.totalorder %s16, 4
      %s26 = sphi 0, %s28
      %s29 = sphi 0, %s26
      %s30 = sphi 0, %s29
      %s46 = sphi 0, %s30
      %s52 = sphi 0, %s54
      %s55 = sphi 0, %s52
      %s56 = sphi 0, %s55
      %s72 = sphi 0, %s56
      %s78 = sphi 0, %s80
      %s81 = sphi 0, %s78
      %s82 = sphi 0, %s81
      %s98 = sphi 0, %s82
      %s104 = sphi 0, %s106
      %s107 = sphi 0, %s104
      %s108 = sphi 0, %s107
      %s124 = sphi 0, %s108
      %s130 = sphi 0, %s132
      %s133 = sphi 0, %s130
      %s134 = sphi 0, %s133
      %s150 = sphi 0, %s134
      %s156 = sphi 0, %s158
      %s159 = sphi 0, %s156
      %s160 = sphi 0, %s159
      %s176 = sphi 0, %s160
      %s182 = sphi 0, %s184
      %s185 = sphi 0, %s182
      %s186 = sphi 0, %s185
      %s202 = sphi 0, %s186
    $region4: #{seq2seq_forward.7} parent=1 // loop_header_branch
      %19 = sbr.rel (%p17) target = $region8
    $region5: #{seq2seq_forward.7} parent=1 // loop_body
      %s21 = ssub.s32 %s16, 1
      %s22 = ssub.s32 %s16, 2
      %s23 = sadd.s32 %s16, 1
      %s24 = ssub.s32 %s16, %s23
      %p25 = scmp.eq.s32.totalorder %s24, 0
      %s27 = sadd.s32 %s26, 1
      %s28 = scalar_select %p25, %s26, %s27
      %p31 = pneg %p25
      %p32 = scmp.eq.s32.totalorder %s16, 1
      %p33 = por %p31, %p32
      %p34 = scmp.ne.s32.totalorder %s26, %s29
      %p35 = scmp.eq.s32.totalorder %s16, 0
      %p36 = por %p34, %p35
      %p37 = scmp.ne.s32.totalorder %s26, %s29
      %p38 = scmp.eq.s32.totalorder %s21, 1
      %p39 = por %p37, %p38
      %p40 = scmp.ne.s32.totalorder %s29, %s30
      %p41 = scmp.eq.s32.totalorder %s21, 0
      %p42 = por %p40, %p41
      %p43 = scmp.ne.s32.totalorder %s29, %s30
      %p44 = scmp.eq.s32.totalorder %s22, 1
      %p45 = por %p43, %p44
      %p47 = scmp.ne.s32.totalorder %s30, %s46
      %p48 = scmp.eq.s32.totalorder %s22, 0
      %p49 = por %p47, %p48
      %s50 = ssub.s32 %s16, %s23
      %p51 = scmp.eq.s32.totalorder %s50, 0
      %s53 = sadd.s32 %s52, 1
      %s54 = scalar_select %p51, %s52, %s53
      %p57 = pneg %p51
      %p58 = scmp.eq.s32.totalorder %s16, 1
      %p59 = por %p57, %p58
      %p60 = scmp.ne.s32.totalorder %s52, %s55
      %p61 = scmp.eq.s32.totalorder %s16, 0
      %p62 = por %p60, %p61
      %p63 = scmp.ne.s32.totalorder %s52, %s55
      %p64 = scmp.eq.s32.totalorder %s21, 1
      %p65 = por %p63, %p64
      %p66 = scmp.ne.s32.totalorder %s55, %s56
      %p67 = scmp.eq.s32.totalorder %s21, 0
      %p68 = por %p66, %p67
      %p69 = scmp.ne.s32.totalorder %s55, %s56
      %p70 = scmp.eq.s32.totalorder %s22, 1
      %p71 = por %p69, %p70
      %p73 = scmp.ne.s32.totalorder %s56, %s72
      %p74 = scmp.eq.s32.totalorder %s22, 0
      %p75 = por %p73, %p74
      %s76 = ssub.s32 %s16, %s23
      %p77 = scmp.eq.s32.totalorder %s76, 0
      %s79 = sadd.s32 %s78, 1
      %s80 = scalar_select %p77, %s78, %s79
      %p83 = pneg %p77
      %p84 = scmp.eq.s32.totalorder %s16, 1
      %p85 = por %p83, %p84
      %p86 = scmp.ne.s32.totalorder %s78, %s81
      %p87 = scmp.eq.s32.totalorder %s16, 0
      %p88 = por %p86, %p87
      %p89 = scmp.ne.s32.totalorder %s78, %s81
      %p90 = scmp.eq.s32.totalorder %s21, 1
      %p91 = por %p89, %p90
      %p92 = scmp.ne.s32.totalorder %s81, %s82
      %p93 = scmp.eq.s32.totalorder %s21, 0
      %p94 = por %p92, %p93
      %p95 = scmp.ne.s32.totalorder %s81, %s82
      %p96 = scmp.eq.s32.totalorder %s22, 1
      %p97 = por %p95, %p96
      %p99 = scmp.ne.s32.totalorder %s82, %s98
      %p100 = scmp.eq.s32.totalorder %s22, 0
      %p101 = por %p99, %p100
      %s102 = ssub.s32 %s16, %s23
      %p103 = scmp.eq.s32.totalorder %s102, 0
      %s105 = sadd.s32 %s104, 1
      %s106 = scalar_select %p103, %s104, %s105
      %p109 = pneg %p103
      %p110 = scmp.eq.s32.totalorder %s16, 1
      %p111 = por %p109, %p110
      %p112 = scmp.ne.s32.totalorder %s104, %s107
      %p113 = scmp.eq.s32.totalorder %s16, 0
      %p114 = por %p112, %p113
      %p115 = scmp.ne.s32.totalorder %s104, %s107
      %p116 = scmp.eq.s32.totalorder %s21, 1
      %p117 = por %p115, %p116
      %p118 = scmp.ne.s32.totalorder %s107, %s108
      %p119 = scmp.eq.s32.totalorder %s21, 0
      %p120 = por %p118, %p119
      %p121 = scmp.ne.s32.totalorder %s107, %s108
      %p122 = scmp.eq.s32.totalorder %s22, 1
      %p123 = por %p121, %p122
      %p125 = scmp.ne.s32.totalorder %s108, %s124
      %p126 = scmp.eq.s32.totalorder %s22, 0
      %p127 = por %p125, %p126
      %s128 = ssub.s32 %s16, %s23
      %p129 = scmp.eq.s32.totalorder %s128, 0
      %s131 = sadd.s32 %s130, 1
      %s132 = scalar_select %p129, %s130, %s131
      %p135 = pneg %p129
      %p136 = scmp.eq.s32.totalorder %s16, 1
      %p137 = por %p135, %p136
      %p138 = scmp.ne.s32.totalorder %s130, %s133
      %p139 = scmp.eq.s32.totalorder %s16, 0
      %p140 = por %p138, %p139
      %p141 = scmp.ne.s32.totalorder %s130, %s133
      %p142 = scmp.eq.s32.totalorder %s21, 1
      %p143 = por %p141, %p142
      %p144 = scmp.ne.s32.totalorder %s133, %s134
      %p145 = scmp.eq.s32.totalorder %s21, 0
      %p146 = por %p144, %p145
      %p147 = scmp.ne.s32.totalorder %s133, %s134
      %p148 = scmp.eq.s32.totalorder %s22, 1
      %p149 = por %p147, %p148
      %p151 = scmp.ne.s32.totalorder %s134, %s150
      %p152 = scmp.eq.s32.totalorder %s22, 0
      %p153 = por %p151, %p152
      %s154 = ssub.s32 %s16, %s23
      %p155 = scmp.eq.s32.totalorder %s154, 0
      %s157 = sadd.s32 %s156, 1
      %s158 = scalar_select %p155, %s156, %s157
      %p161 = pneg %p155
      %p162 = scmp.eq.s32.totalorder %s16, 1
      %p163 = por %p161, %p162
      %p164 = scmp.ne.s32.totalorder %s156, %s159
      %p165 = scmp.eq.s32.totalorder %s16, 0
      %p166 = por %p164, %p165
      %p167 = scmp.ne.s32.totalorder %s156, %s159
      %p168 = scmp.eq.s32.totalorder %s21, 1
      %p169 = por %p167, %p168
      %p170 = scmp.ne.s32.totalorder %s159, %s160
      %p171 = scmp.eq.s32.totalorder %s21, 0
      %p172 = por %p170, %p171
      %p173 = scmp.ne.s32.totalorder %s159, %s160
      %p174 = scmp.eq.s32.totalorder %s22, 1
      %p175 = por %p173, %p174
      %p177 = scmp.ne.s32.totalorder %s160, %s176
      %p178 = scmp.eq.s32.totalorder %s22, 0
      %p179 = por %p177, %p178
      %s180 = ssub.s32 %s16, %s23
      %p181 = scmp.eq.s32.totalorder %s180, 0
      %s183 = sadd.s32 %s182, 1
      %s184 = scalar_select %p181, %s182, %s183
      %p187 = pneg %p181
      %p188 = scmp.eq.s32.totalorder %s16, 1
      %p189 = por %p187, %p188
      %p190 = scmp.ne.s32.totalorder %s182, %s185
      %p191 = scmp.eq.s32.totalorder %s16, 0
      %p192 = por %p190, %p191
      %p193 = scmp.ne.s32.totalorder %s182, %s185
      %p194 = scmp.eq.s32.totalorder %s21, 1
      %p195 = por %p193, %p194
      %p196 = scmp.ne.s32.totalorder %s185, %s186
      %p197 = scmp.eq.s32.totalorder %s21, 0
      %p198 = por %p196, %p197
      %p199 = scmp.ne.s32.totalorder %s185, %s186
      %p200 = scmp.eq.s32.totalorder %s22, 1
      %p201 = por %p199, %p200
      %p203 = scmp.ne.s32.totalorder %s186, %s202
      %p204 = scmp.eq.s32.totalorder %s22, 0
      %p205 = por %p203, %p204
      %p206 = scmp.le.s32.totalorder 1, %s16
      %p207 = scmp.lt.s32.totalorder %s16, 3
      %p208 = pnand %p206, %p207
      %p209 = pneg %p208
      // Predicated region
      $region9: #{seq2seq_forward.7} parent=5 // pred_check
        _
      $region10: #{seq2seq_forward.7} parent=5 // pred_check_branch
        %211 = sbr.rel (%p208) target = $region12
      $region11: #{seq2seq_forward.7} parent=5 // pred_region
        %s212 = ssub.s32 %s16, 1
      $region12: #{seq2seq_forward.7} parent=5 // pred_fallthru
        _
      %p213 = scmp.lt.s32.totalorder %s16, 2
      // Predicated region
      $region13: #{seq2seq_forward.7} parent=5 // pred_check
        %p214 = pneg %p213
      $region14: #{seq2seq_forward.7} parent=5 // pred_check_branch
        %216 = sbr.rel (%p214) target = $region16
      $region15: #{seq2seq_forward.7} parent=5 // pred_region
        // Predicated region
        $region17: #{seq2seq_forward.7} parent=15 // pred_check
          %p217 = pneg %p36
        $region18: #{seq2seq_forward.7} parent=15 // pred_check_branch
          %219 = sbr.rel (%p217) target = $region20
        $region19: #{seq2seq_forward.7} parent=15 // pred_region
          %p220 = scmp.lt.s32.totalorder %s16, 1
          %s221 = scalar_select %p220, %s16, 1
          %s222 = smul.addr %s221, 8
          %s223 = smul.addr %s222, 2
          %s224 = scalar_lea.vmem %s0, %s223
        $region20: #{seq2seq_forward.7} parent=15 // pred_fallthru
          _
        // Predicated region
        $region21: #{seq2seq_forward.7} parent=15 // pred_check
          %p225 = pneg %p62
        $region22: #{seq2seq_forward.7} parent=15 // pred_check_branch
          %227 = sbr.rel (%p225) target = $region24
        $region23: #{seq2seq_forward.7} parent=15 // pred_region
          %p228 = scmp.lt.s32.totalorder %s16, 1
          %s229 = scalar_select %p228, %s16, 1
          %s230 = smul.addr %s229, 4
          %s231 = smul.addr %s230, 8
          %s232 = scalar_lea.vmem %s1, %s231
        $region24: #{seq2seq_forward.7} parent=15 // pred_fallthru
          _
        // Predicated region
        $region25: #{seq2seq_forward.7} parent=15 // pred_check
          %p233 = pneg %p88
        $region26: #{seq2seq_forward.7} parent=15 // pred_check_branch
          %235 = sbr.rel (%p233) target = $region28
        $region27: #{seq2seq_forward.7} parent=15 // pred_region
          %p236 = scmp.lt.s32.totalorder %s16, 1
          %s237 = scalar_select %p236, %s16, 1
          %s238 = smul.addr %s237, 4
          %s239 = smul.addr %s238, 8
          %s240 = scalar_lea.vmem %s2, %s239
        $region28: #{seq2seq_forward.7} parent=15 // pred_fallthru
          _
        // Predicated region
        $region29: #{seq2seq_forward.7} parent=15 // pred_check
          %p241 = pneg %p114
        $region30: #{seq2seq_forward.7} parent=15 // pred_check_branch
          %243 = sbr.rel (%p241) target = $region32
        $region31: #{seq2seq_forward.7} parent=15 // pred_region
          %p244 = scmp.lt.s32.totalorder %s16, 1
          %s245 = scalar_select %p244, %s16, 1
          %s246 = scalar_lea.vmem %s3, %s245
        $region32: #{seq2seq_forward.7} parent=15 // pred_fallthru
          _
        // Predicated region
        $region33: #{seq2seq_forward.7} parent=15 // pred_check
          %p247 = pneg %p140
        $region34: #{seq2seq_forward.7} parent=15 // pred_check_branch
          %249 = sbr.rel (%p247) target = $region36
        $region35: #{seq2seq_forward.7} parent=15 // pred_region
          %p250 = scmp.lt.s32.totalorder %s16, 1
          %s251 = scalar_select %p250, %s16, 1
          %s252 = scalar_lea.vmem %s4, %s251
        $region36: #{seq2seq_forward.7} parent=15 // pred_fallthru
          _
      $region16: #{seq2seq_forward.7} parent=5 // pred_fallthru
        _
      %p253 = scmp.le.s32.totalorder 1, %s16
      %p254 = scmp.lt.s32.totalorder %s16, 3
      %p255 = pnand %p253, %p254
      %p256 = pneg %p255
      // Predicated region
      $region37: #{seq2seq_forward.7} parent=5 // pred_check
        _
      $region38: #{seq2seq_forward.7} parent=5 // pred_check_branch
        %258 = sbr.rel (%p255) target = $region40
      $region39: #{seq2seq_forward.7} parent=5 // pred_region
        %s259 = ssub.s32 %s16, 1
        %p260 = scmp.lt.s32.totalorder %s21, 1
        %s261 = scalar_select %p260, %s21, 1
        %s262 = smul.addr %s261, 8
        %s263 = smul.addr %s262, 2
        %s264 = scalar_lea.vmem %s0, %s263
        %p265 = pneg %p42
        %p266 = pneg %p39
        %p267 = scmp.lt.s32.totalorder %s21, 1
        %s268 = scalar_select %p267, %s21, 1
        %s269 = smul.addr %s268, 4
        %s270 = smul.addr %s269, 8
        %s271 = scalar_lea.vmem %s1, %s270
        %p272 = pneg %p68
        %p273 = pneg %p65
        %p274 = scmp.lt.s32.totalorder %s21, 1
        %s275 = scalar_select %p274, %s21, 1
        %s276 = smul.addr %s275, 4
        %s277 = smul.addr %s276, 8
        %s278 = scalar_lea.vmem %s2, %s277
        %p279 = pneg %p94
        %p280 = pneg %p91
        %p281 = scmp.lt.s32.totalorder %s21, 1
        %s282 = scalar_select %p281, %s21, 1
        %s283 = scalar_lea.vmem %s3, %s282
        %p284 = pneg %p120
        %p285 = pneg %p117
        %p286 = scmp.lt.s32.totalorder %s21, 1
        %s287 = scalar_select %p286, %s21, 1
        %s288 = scalar_lea.vmem %s4, %s287
        %p289 = pneg %p146
        %p290 = pneg %p143
        %p291 = pneg %p172
        %p292 = pneg %p169
        %p293 = scmp.lt.s32.totalorder %s21, 1
        %s294 = scalar_select %p293, %s21, 1
        %s295 = smul.addr %s294, 8
        %s296 = smul.addr %s295, 2
        %s297 = scalar_lea.vmem %s5, %s296
        %p298 = pneg %p198
        %p299 = pneg %p195
        %s300 = sand.u32 %s185, 1
        %s301 = scalar_lea.sflag [#allocation3], %s300
        %s302 = sand.u32 %s185, 1
        %s303 = smul.addr %s302, 2
        %s304 = scalar_lea.vmem [#allocation2], %s303
        %p305 = scmp.lt.s32.totalorder %s21, 1
        %s306 = scalar_select %p305, %s21, 1
        %s307 = smul.addr %s306, 8
        %s308 = smul.addr %s307, 2
        %s309 = scalar_lea.vmem %s0, %s308
        %p310 = scmp.lt.s32.totalorder %s21, 1
        %s311 = scalar_select %p310, %s21, 1
        %s312 = smul.addr %s311, 4
        %s313 = smul.addr %s312, 8
        %s314 = scalar_lea.vmem %s1, %s313
        %p315 = scmp.lt.s32.totalorder %s21, 1
        %s316 = scalar_select %p315, %s21, 1
        %s317 = smul.addr %s316, 4
        %s318 = smul.addr %s317, 8
        %s319 = scalar_lea.vmem %s2, %s318
        %p320 = scmp.lt.s32.totalorder %s21, 1
        %s321 = scalar_select %p320, %s21, 1
        %s322 = scalar_lea.vmem %s3, %s321
        %p323 = scmp.lt.s32.totalorder %s21, 1
        %s324 = scalar_select %p323, %s21, 1
        %s325 = scalar_lea.vmem %s4, %s324
        %p326 = scmp.lt.s32.totalorder %s21, 1
        %s327 = scalar_select %p326, %s21, 1
        %s328 = smul.addr %s327, 8
        %s329 = smul.addr %s328, 2
        %s330 = scalar_lea.vmem %s5, %s329
        %v332 = vld [vmem:[%s314] sm:$0xff]
        %v333 = vld [vmem:[%s314 + $0x8] sm:$0xff]
        %v334 = vld [vmem:[%s314 + $0x10] sm:$0xff]
        %v335 = vld [vmem:[%s314 + $0x18] sm:$0xff]
        %v336 = vpack.c.bf16 %v333, %v332
        %v337 = vpack.c.bf16 %v335, %v334
        %v338 = vld [vmem:[%s319] sm:$0xff]
        %v339 = vld [vmem:[%s319 + $0x8] sm:$0xff]
        %v340 = vld [vmem:[%s319 + $0x10] sm:$0xff]
        %v341 = vld [vmem:[%s319 + $0x18] sm:$0xff]
        %v342 = vpack.c.bf16 %v339, %v338
        %v343 = vpack.c.bf16 %v341, %v340
        %v344 = vld [vmem:[%s322] sm:$0x1]
        %v345 = vld [vmem:[%s325] sm:$0x1]
        %v346 = vld [vmem:[%s309] sm:$0x3]
        %v347 = vpack.c.bf16 %v346, %v346
        %v349 = vlaneseq
        %v350 = vshrl.u32 %v349, 7
        %v351 = vsub.s32 0, %v350
        %v352 = vrot.slane %v344, %v351
        %vm354 = vcmask 261120
        %v356 = vsel %vm354, %v347, 0
        %358 = vmatprep.subr.bf16.mxu0 0
        %359 = vmatpush1.bf16.msra.mxu0 %v336
        %360 = vmatprep.subr.bf16.mxu0 0
        %361 = vmatpush1.bf16.msra.mxu0 %v337
        %362 = vmatprep.subr.bf16.mxu0 0
        %363 = vmatpush1.bf16.msra.mxu0 0
        %364 = vmatprep.subr.bf16.mxu0 0
        %365 = vmatpush1.bf16.msra.mxu0 0
        %366 = vmatprep.subr.bf16.mxu0 0
        %367 = vmatpush1.bf16.msra.mxu0 0
        %368 = vmatprep.subr.bf16.mxu0 0
        %369 = vmatpush1.bf16.msra.mxu0 0
        %370 = vmatprep.subr.bf16.mxu0 0
        %371 = vmatpush1.bf16.msra.mxu0 0
        %372 = vmatprep.subr.bf16.mxu0 0
        %373 = vmatpush1.bf16.msra.mxu0 0
        %374 = vmatprep.subr.bf16.mxu0 0
        %375 = vmatpush1.bf16.msra.mxu0 0
        %376 = vmatprep.subr.bf16.mxu0 0
        %377 = vmatpush1.bf16.msra.mxu0 0
        %378 = vmatprep.subr.bf16.mxu0 0
        %379 = vmatpush1.bf16.msra.mxu0 0
        %380 = vmatprep.subr.bf16.mxu0 0
        %381 = vmatpush1.bf16.msra.mxu0 0
        %382 = vmatprep.subr.bf16.mxu0 0
        %383 = vmatpush1.bf16.msra.mxu0 0
        %384 = vmatprep.subr.bf16.mxu0 0
        %385 = vmatpush1.bf16.msra.mxu0 0
        %386 = vmatprep.subr.bf16.mxu0 0
        %387 = vmatpush1.bf16.msra.mxu0 0
        %388 = vmatprep.subr.bf16.mxu0 0
        %389 = vmatpush1.bf16.msra.mxu0 0
        %390 = vmatprep.mubr.bf16.mxu0 0
        %391 = vmatmul.mubr.bf16.gmra.mrb[0].mxu0 %v356
        %v392 = vpop.f32.mrb[0].mxu0
        %v393 = vadd.f32 %v352, %v392
        %v394 = vpop.f32.mrb[0].mxu0
        %v395 = vpop.f32.mrb[0].mxu0
        %v396 = vpop.f32.mrb[0].mxu0
        %397 = vdwg.mxu0
        %v399 = vlaneseq
        %v400 = vshrl.u32 %v399, 7
        %v401 = vsub.s32 0, %v400
        %v402 = vrot.slane %v345, %v401
        %v405 = vsel %vm354, 0, 0
        %407 = vmatprep.subr.bf16.mxu0 0
        %408 = vmatpush1.bf16.msra.mxu0 %v342
        %409 = vmatprep.subr.bf16.mxu0 0
        %410 = vmatpush1.bf16.msra.mxu0 %v343
        %411 = vmatprep.subr.bf16.mxu0 0
        %412 = vmatpush1.bf16.msra.mxu0 0
        %413 = vmatprep.subr.bf16.mxu0 0
        %414 = vmatpush1.bf16.msra.mxu0 0
        %415 = vmatprep.subr.bf16.mxu0 0
        %416 = vmatpush1.bf16.msra.mxu0 0
        %417 = vmatprep.subr.bf16.mxu0 0
        %418 = vmatpush1.bf16.msra.mxu0 0
        %419 = vmatprep.subr.bf16.mxu0 0
        %420 = vmatpush1.bf16.msra.mxu0 0
        %421 = vmatprep.subr.bf16.mxu0 0
        %422 = vmatpush1.bf16.msra.mxu0 0
        %423 = vmatprep.subr.bf16.mxu0 0
        %424 = vmatpush1.bf16.msra.mxu0 0
        %425 = vmatprep.subr.bf16.mxu0 0
        %426 = vmatpush1.bf16.msra.mxu0 0
        %427 = vmatprep.subr.bf16.mxu0 0
        %428 = vmatpush1.bf16.msra.mxu0 0
        %429 = vmatprep.subr.bf16.mxu0 0
        %430 = vmatpush1.bf16.msra.mxu0 0
        %431 = vmatprep.subr.bf16.mxu0 0
        %432 = vmatpush1.bf16.msra.mxu0 0
        %433 = vmatprep.subr.bf16.mxu0 0
        %434 = vmatpush1.bf16.msra.mxu0 0
        %435 = vmatprep.subr.bf16.mxu0 0
        %436 = vmatpush1.bf16.msra.mxu0 0
        %437 = vmatprep.subr.bf16.mxu0 0
        %438 = vmatpush1.bf16.msra.mxu0 0
        %439 = vmatprep.mubr.bf16.mxu0 0
        %440 = vmatmul.mubr.bf16.gmra.mrb[0].mxu0 %v405
        %v441 = vpop.f32.mrb[0].mxu0
        %v442 = vadd.f32 %v402, %v441
        %v443 = vpop.f32.mrb[0].mxu0
        %v444 = vpop.f32.mrb[0].mxu0
        %v445 = vpop.f32.mrb[0].mxu0
        %446 = vdwg.mxu0
        %v447 = vadd.f32 %v393, %v442
        %v448 = vxor.u32 %v447, 2147483648
        %v449 = vmul.f32 %v448, 1.442695
        %v450 = vpow.pop %v449
        %v451 = vadd.f32 %v450, 1.0
        %v452 = vrcp.pop %v451
        %v453 = vmul.f32 1.0, %v452
        %455 = vrot.lane.b32.xlu0 %v442, 64
        %v456 = vpop.permute.xlu0 %455
        %v458 = vmul.f32 %v453, %v456
        %460 = vrot.lane.b32.xlu0 %v458, 64
        %v461 = vpop.permute.xlu0 %460
        %v463 = vadd.f32 %v393, %v461
        %v464 = vtanh.pop %v463
        %v465 = vsub.f32 1.0, %v453
        %467 = vrot.lane.b32.xlu0 %v464, 96
        %v468 = vpop.permute.xlu0 %467
        %v470 = vmul.f32 %v465, %v468
        %v471 = vmul.f32 %v453, 0.0
        %v472 = vadd.f32 %v470, %v471
        %474 = vrot.lane.b32.xlu0 %v472, 96
        %v475 = vpop.permute.xlu0 %474
        %vm477 = vcmask 254976
        %478 = vst.msk [vmem:[%s330] sm:$0x3] %vm477, %v475
        %s479 = scalar_lea.vmem %s309, 2
        %v480 = vld [vmem:[%s479] sm:$0x3]
        %v481 = vpack.c.bf16 %v480, %v480
        %v483 = vsel %vm354, %v481, 0
        %485 = vmatprep.subr.bf16.mxu0 0
        %486 = vmatpush1.bf16.msra.mxu0 %v336
        %487 = vmatprep.subr.bf16.mxu0 0
        %488 = vmatpush1.bf16.msra.mxu0 %v337
        %489 = vmatprep.subr.bf16.mxu0 0
        %490 = vmatpush1.bf16.msra.mxu0 0
        %491 = vmatprep.subr.bf16.mxu0 0
        %492 = vmatpush1.bf16.msra.mxu0 0
        %493 = vmatprep.subr.bf16.mxu0 0
        %494 = vmatpush1.bf16.msra.mxu0 0
        %495 = vmatprep.subr.bf16.mxu0 0
        %496 = vmatpush1.bf16.msra.mxu0 0
        %497 = vmatprep.subr.bf16.mxu0 0
        %498 = vmatpush1.bf16.msra.mxu0 0
        %499 = vmatprep.subr.bf16.mxu0 0
        %500 = vmatpush1.bf16.msra.mxu0 0
        %501 = vmatprep.subr.bf16.mxu0 0
        %502 = vmatpush1.bf16.msra.mxu0 0
        %503 = vmatprep.subr.bf16.mxu0 0
        %504 = vmatpush1.bf16.msra.mxu0 0
        %505 = vmatprep.subr.bf16.mxu0 0
        %506 = vmatpush1.bf16.msra.mxu0 0
        %507 = vmatprep.subr.bf16.mxu0 0
        %508 = vmatpush1.bf16.msra.mxu0 0
        %509 = vmatprep.subr.bf16.mxu0 0
        %510 = vmatpush1.bf16.msra.mxu0 0
        %511 = vmatprep.subr.bf16.mxu0 0
        %512 = vmatpush1.bf16.msra.mxu0 0
        %513 = vmatprep.subr.bf16.mxu0 0
        %514 = vmatpush1.bf16.msra.mxu0 0
        %515 = vmatprep.subr.bf16.mxu0 0
        %516 = vmatpush1.bf16.msra.mxu0 0
        %517 = vmatprep.mubr.bf16.mxu0 0
        %518 = vmatmul.mubr.bf16.gmra.mrb[0].mxu0 %v483
        %v519 = vpop.f32.mrb[0].mxu0
        %v520 = vadd.f32 %v352, %v519
        %v521 = vpop.f32.mrb[0].mxu0
        %v522 = vpop.f32.mrb[0].mxu0
        %v523 = vpop.f32.mrb[0].mxu0
        %524 = vdwg.mxu0
        %v525 = vpack.c.bf16 %v472, %v472
        %527 = vrot.lane.b32.xlu0 %v525, 96
        %v528 = vpop.permute.xlu0 %527
        %v530 = vsel %vm354, %v528, 0
        %532 = vmatprep.subr.bf16.mxu0 0
        %533 = vmatpush1.bf16.msra.mxu0 %v342
        %534 = vmatprep.subr.bf16.mxu0 0
        %535 = vmatpush1.bf16.msra.mxu0 %v343
        %536 = vmatprep.subr.bf16.mxu0 0
        %537 = vmatpush1.bf16.msra.mxu0 0
        %538 = vmatprep.subr.bf16.mxu0 0
        %539 = vmatpush1.bf16.msra.mxu0 0
        %540 = vmatprep.subr.bf16.mxu0 0
        %541 = vmatpush1.bf16.msra.mxu0 0
        %542 = vmatprep.subr.bf16.mxu0 0
        %543 = vmatpush1.bf16.msra.mxu0 0
        %544 = vmatprep.subr.bf16.mxu0 0
        %545 = vmatpush1.bf16.msra.mxu0 0
        %546 = vmatprep.subr.bf16.mxu0 0
        %547 = vmatpush1.bf16.msra.mxu0 0
        %548 = vmatprep.subr.bf16.mxu0 0
        %549 = vmatpush1.bf16.msra.mxu0 0
        %550 = vmatprep.subr.bf16.mxu0 0
        %551 = vmatpush1.bf16.msra.mxu0 0
        %552 = vmatprep.subr.bf16.mxu0 0
        %553 = vmatpush1.bf16.msra.mxu0 0
        %554 = vmatprep.subr.bf16.mxu0 0
        %555 = vmatpush1.bf16.msra.mxu0 0
        %556 = vmatprep.subr.bf16.mxu0 0
        %557 = vmatpush1.bf16.msra.mxu0 0
        %558 = vmatprep.subr.bf16.mxu0 0
        %559 = vmatpush1.bf16.msra.mxu0 0
        %560 = vmatprep.subr.bf16.mxu0 0
        %561 = vmatpush1.bf16.msra.mxu0 0
        %562 = vmatprep.subr.bf16.mxu0 0
        %563 = vmatpush1.bf16.msra.mxu0 0
        %564 = vmatprep.mubr.bf16.mxu0 0
        %565 = vmatmul.mubr.bf16.gmra.mrb[0].mxu0 %v530
        %v566 = vpop.f32.mrb[0].mxu0
        %v567 = vadd.f32 %v402, %v566
        %v568 = vpop.f32.mrb[0].mxu0
        %v569 = vpop.f32.mrb[0].mxu0
        %v570 = vpop.f32.mrb[0].mxu0
        %571 = vdwg.mxu0
        %v572 = vadd.f32 %v520, %v567
        %v573 = vxor.u32 %v572, 2147483648
        %v574 = vmul.f32 %v573, 1.442695
        %v575 = vpow.pop %v574
        %v576 = vadd.f32 %v575, 1.0
        %v577 = vrcp.pop %v576
        %v578 = vmul.f32 1.0, %v577
        %580 = vrot.lane.b32.xlu0 %v567, 64
        %v581 = vpop.permute.xlu0 %580
        %v583 = vmul.f32 %v578, %v581
        %585 = vrot.lane.b32.xlu0 %v583, 64
        %v586 = vpop.permute.xlu0 %585
        %v588 = vadd.f32 %v520, %v586
        %v589 = vtanh.pop %v588
        %v590 = vsub.f32 1.0, %v578
        %592 = vrot.lane.b32.xlu0 %v589, 96
        %v593 = vpop.permute.xlu0 %592
        %v595 = vmul.f32 %v590, %v593
        %v596 = vmul.f32 %v578, %v472
        %v597 = vadd.f32 %v595, %v596
        %599 = vrot.lane.b32.xlu0 %v597, 96
        %v600 = vpop.permute.xlu0 %599
        %s602 = scalar_lea.vmem %s330, 2
        %603 = vst.msk [vmem:[%s602] sm:$0x3] %vm477, %v600
        %s604 = scalar_lea.vmem %s309, 4
        %v605 = vld [vmem:[%s604] sm:$0x3]
        %v606 = vpack.c.bf16 %v605, %v605
        %v608 = vsel %vm354, %v606, 0
        %610 = vmatprep.subr.bf16.mxu0 0
        %611 = vmatpush1.bf16.msra.mxu0 %v336
        %612 = vmatprep.subr.bf16.mxu0 0
        %613 = vmatpush1.bf16.msra.mxu0 %v337
        %614 = vmatprep.subr.bf16.mxu0 0
        %615 = vmatpush1.bf16.msra.mxu0 0
        %616 = vmatprep.subr.bf16.mxu0 0
        %617 = vmatpush1.bf16.msra.mxu0 0
        %618 = vmatprep.subr.bf16.mxu0 0
        %619 = vmatpush1.bf16.msra.mxu0 0
        %620 = vmatprep.subr.bf16.mxu0 0
        %621 = vmatpush1.bf16.msra.mxu0 0
        %622 = vmatprep.subr.bf16.mxu0 0
        %623 = vmatpush1.bf16.msra.mxu0 0
        %624 = vmatprep.subr.bf16.mxu0 0
        %625 = vmatpush1.bf16.msra.mxu0 0
        %626 = vmatprep.subr.bf16.mxu0 0
        %627 = vmatpush1.bf16.msra.mxu0 0
        %628 = vmatprep.subr.bf16.mxu0 0
        %629 = vmatpush1.bf16.msra.mxu0 0
        %630 = vmatprep.subr.bf16.mxu0 0
        %631 = vmatpush1.bf16.msra.mxu0 0
        %632 = vmatprep.subr.bf16.mxu0 0
        %633 = vmatpush1.bf16.msra.mxu0 0
        %634 = vmatprep.subr.bf16.mxu0 0
        %635 = vmatpush1.bf16.msra.mxu0 0
        %636 = vmatprep.subr.bf16.mxu0 0
        %637 = vmatpush1.bf16.msra.mxu0 0
        %638 = vmatprep.subr.bf16.mxu0 0
        %639 = vmatpush1.bf16.msra.mxu0 0
        %640 = vmatprep.subr.bf16.mxu0 0
        %641 = vmatpush1.bf16.msra.mxu0 0
        %642 = vmatprep.mubr.bf16.mxu0 0
        %643 = vmatmul.mubr.bf16.gmra.mrb[0].mxu0 %v608
        %v644 = vpop.f32.mrb[0].mxu0
        %v645 = vadd.f32 %v352, %v644
        %v646 = vpop.f32.mrb[0].mxu0
        %v647 = vpop.f32.mrb[0].mxu0
        %v648 = vpop.f32.mrb[0].mxu0
        %649 = vdwg.mxu0
        %v650 = vpack.c.bf16 %v597, %v597
        %652 = vrot.lane.b32.xlu0 %v650, 96
        %v653 = vpop.permute.xlu0 %652
        %v655 = vsel %vm354, %v653, 0
        %657 = vmatprep.subr.bf16.mxu0 0
        %658 = vmatpush1.bf16.msra.mxu0 %v342
        %659 = vmatprep.subr.bf16.mxu0 0
        %660 = vmatpush1.bf16.msra.mxu0 %v343
        %661 = vmatprep.subr.bf16.mxu0 0
        %662 = vmatpush1.bf16.msra.mxu0 0
        %663 = vmatprep.subr.bf16.mxu0 0
        %664 = vmatpush1.bf16.msra.mxu0 0
        %665 = vmatprep.subr.bf16.mxu0 0
        %666 = vmatpush1.bf16.msra.mxu0 0
        %667 = vmatprep.subr.bf16.mxu0 0
        %668 = vmatpush1.bf16.msra.mxu0 0
        %669 = vmatprep.subr.bf16.mxu0 0
        %670 = vmatpush1.bf16.msra.mxu0 0
        %671 = vmatprep.subr.bf16.mxu0 0
        %672 = vmatpush1.bf16.msra.mxu0 0
        %673 = vmatprep.subr.bf16.mxu0 0
        %674 = vmatpush1.bf16.msra.mxu0 0
        %675 = vmatprep.subr.bf16.mxu0 0
        %676 = vmatpush1.bf16.msra.mxu0 0
        %677 = vmatprep.subr.bf16.mxu0 0
        %678 = vmatpush1.bf16.msra.mxu0 0
        %679 = vmatprep.subr.bf16.mxu0 0
        %680 = vmatpush1.bf16.msra.mxu0 0
        %681 = vmatprep.subr.bf16.mxu0 0
        %682 = vmatpush1.bf16.msra.mxu0 0
        %683 = vmatprep.subr.bf16.mxu0 0
        %684 = vmatpush1.bf16.msra.mxu0 0
        %685 = vmatprep.subr.bf16.mxu0 0
        %686 = vmatpush1.bf16.msra.mxu0 0
        %687 = vmatprep.subr.bf16.mxu0 0
        %688 = vmatpush1.bf16.msra.mxu0 0
        %689 = vmatprep.mubr.bf16.mxu0 0
        %690 = vmatmul.mubr.bf16.gmra.mrb[0].mxu0 %v655
        %v691 = vpop.f32.mrb[0].mxu0
        %v692 = vadd.f32 %v402, %v691
        %v693 = vpop.f32.mrb[0].mxu0
        %v694 = vpop.f32.mrb[0].mxu0
        %v695 = vpop.f32.mrb[0].mxu0
        %696 = vdwg.mxu0
        %v697 = vadd.f32 %v645, %v692
        %v698 = vxor.u32 %v697, 2147483648
        %v699 = vmul.f32 %v698, 1.442695
        %v700 = vpow.pop %v699
        %v701 = vadd.f32 %v700, 1.0
        %v702 = vrcp.pop %v701
        %v703 = vmul.f32 1.0, %v702
        %705 = vrot.lane.b32.xlu0 %v692, 64
        %v706 = vpop.permute.xlu0 %705
        %v708 = vmul.f32 %v703, %v706
        %710 = vrot.lane.b32.xlu0 %v708, 64
        %v711 = vpop.permute.xlu0 %710
        %v713 = vadd.f32 %v645, %v711
        %v714 = vtanh.pop %v713
        %v715 = vsub.f32 1.0, %v703
        %717 = vrot.lane.b32.xlu0 %v714, 96
        %v718 = vpop.permute.xlu0 %717
        %v720 = vmul.f32 %v715, %v718
        %v721 = vmul.f32 %v703, %v597
        %v722 = vadd.f32 %v720, %v721
        %724 = vrot.lane.b32.xlu0 %v722, 96
        %v725 = vpop.permute.xlu0 %724
        %s727 = scalar_lea.vmem %s330, 4
        %728 = vst.msk [vmem:[%s727] sm:$0x3] %vm477, %v725
        %s729 = scalar_lea.vmem %s309, 6
        %v730 = vld [vmem:[%s729] sm:$0x3]
        %v731 = vpack.c.bf16 %v730, %v730
        %v733 = vsel %vm354, %v731, 0
        %735 = vmatprep.subr.bf16.mxu0 0
        %736 = vmatpush1.bf16.msra.mxu0 %v336
        %737 = vmatprep.subr.bf16.mxu0 0
        %738 = vmatpush1.bf16.msra.mxu0 %v337
        %739 = vmatprep.subr.bf16.mxu0 0
        %740 = vmatpush1.bf16.msra.mxu0 0
        %741 = vmatprep.subr.bf16.mxu0 0
        %742 = vmatpush1.bf16.msra.mxu0 0
        %743 = vmatprep.subr.bf16.mxu0 0
        %744 = vmatpush1.bf16.msra.mxu0 0
        %745 = vmatprep.subr.bf16.mxu0 0
        %746 = vmatpush1.bf16.msra.mxu0 0
        %747 = vmatprep.subr.bf16.mxu0 0
        %748 = vmatpush1.bf16.msra.mxu0 0
        %749 = vmatprep.subr.bf16.mxu0 0
        %750 = vmatpush1.bf16.msra.mxu0 0
        %751 = vmatprep.subr.bf16.mxu0 0
        %752 = vmatpush1.bf16.msra.mxu0 0
        %753 = vmatprep.subr.bf16.mxu0 0
        %754 = vmatpush1.bf16.msra.mxu0 0
        %755 = vmatprep.subr.bf16.mxu0 0
        %756 = vmatpush1.bf16.msra.mxu0 0
        %757 = vmatprep.subr.bf16.mxu0 0
        %758 = vmatpush1.bf16.msra.mxu0 0
        %759 = vmatprep.subr.bf16.mxu0 0
        %760 = vmatpush1.bf16.msra.mxu0 0
        %761 = vmatprep.subr.bf16.mxu0 0
        %762 = vmatpush1.bf16.msra.mxu0 0
        %763 = vmatprep.subr.bf16.mxu0 0
        %764 = vmatpush1.bf16.msra.mxu0 0
        %765 = vmatprep.subr.bf16.mxu0 0
        %766 = vmatpush1.bf16.msra.mxu0 0
        %767 = vmatprep.mubr.bf16.mxu0 0
        %768 = vmatmul.mubr.bf16.gmra.mrb[0].mxu0 %v733
        %v769 = vpop.f32.mrb[0].mxu0
        %v770 = vadd.f32 %v352, %v769
        %v771 = vpop.f32.mrb[0].mxu0
        %v772 = vpop.f32.mrb[0].mxu0
        %v773 = vpop.f32.mrb[0].mxu0
        %774 = vdwg.mxu0
        %v775 = vpack.c.bf16 %v722, %v722
        %777 = vrot.lane.b32.xlu0 %v775, 96
        %v778 = vpop.permute.xlu0 %777
        %v780 = vsel %vm354, %v778, 0
        %782 = vmatprep.subr.bf16.mxu0 0
        %783 = vmatpush1.bf16.msra.mxu0 %v342
        %784 = vmatprep.subr.bf16.mxu0 0
        %785 = vmatpush1.bf16.msra.mxu0 %v343
        %786 = vmatprep.subr.bf16.mxu0 0
        %787 = vmatpush1.bf16.msra.mxu0 0
        %788 = vmatprep.subr.bf16.mxu0 0
        %789 = vmatpush1.bf16.msra.mxu0 0
        %790 = vmatprep.subr.bf16.mxu0 0
        %791 = vmatpush1.bf16.msra.mxu0 0
        %792 = vmatprep.subr.bf16.mxu0 0
        %793 = vmatpush1.bf16.msra.mxu0 0
        %794 = vmatprep.subr.bf16.mxu0 0
        %795 = vmatpush1.bf16.msra.mxu0 0
        %796 = vmatprep.subr.bf16.mxu0 0
        %797 = vmatpush1.bf16.msra.mxu0 0
        %798 = vmatprep.subr.bf16.mxu0 0
        %799 = vmatpush1.bf16.msra.mxu0 0
        %800 = vmatprep.subr.bf16.mxu0 0
        %801 = vmatpush1.bf16.msra.mxu0 0
        %802 = vmatprep.subr.bf16.mxu0 0
        %803 = vmatpush1.bf16.msra.mxu0 0
        %804 = vmatprep.subr.bf16.mxu0 0
        %805 = vmatpush1.bf16.msra.mxu0 0
        %806 = vmatprep.subr.bf16.mxu0 0
        %807 = vmatpush1.bf16.msra.mxu0 0
        %808 = vmatprep.subr.bf16.mxu0 0
        %809 = vmatpush1.bf16.msra.mxu0 0
        %810 = vmatprep.subr.bf16.mxu0 0
        %811 = vmatpush1.bf16.msra.mxu0 0
        %812 = vmatprep.subr.bf16.mxu0 0
        %813 = vmatpush1.bf16.msra.mxu0 0
        %814 = vmatprep.mubr.bf16.mxu0 0
        %815 = vmatmul.mubr.bf16.gmra.mrb[0].mxu0 %v780
        %v816 = vpop.f32.mrb[0].mxu0
        %v817 = vadd.f32 %v402, %v816
        %v818 = vpop.f32.mrb[0].mxu0
        %v819 = vpop.f32.mrb[0].mxu0
        %v820 = vpop.f32.mrb[0].mxu0
        %821 = vdwg.mxu0
        %v822 = vadd.f32 %v770, %v817
        %v823 = vxor.u32 %v822, 2147483648
        %v824 = vmul.f32 %v823, 1.442695
        %v825 = vpow.pop %v824
        %v826 = vadd.f32 %v825, 1.0
        %v827 = vrcp.pop %v826
        %v828 = vmul.f32 1.0, %v827
        %830 = vrot.lane.b32.xlu0 %v817, 64
        %v831 = vpop.permute.xlu0 %830
        %v833 = vmul.f32 %v828, %v831
        %835 = vrot.lane.b32.xlu0 %v833, 64
        %v836 = vpop.permute.xlu0 %835
        %v838 = vadd.f32 %v770, %v836
        %v839 = vtanh.pop %v838
        %v840 = vsub.f32 1.0, %v828
        %842 = vrot.lane.b32.xlu0 %v839, 96
        %v843 = vpop.permute.xlu0 %842
        %v845 = vmul.f32 %v840, %v843
        %v846 = vmul.f32 %v828, %v722
        %v847 = vadd.f32 %v845, %v846
        %849 = vrot.lane.b32.xlu0 %v847, 96
        %v850 = vpop.permute.xlu0 %849
        %s852 = scalar_lea.vmem %s330, 6
        %853 = vst.msk [vmem:[%s852] sm:$0x3] %vm477, %v850
        %s854 = scalar_lea.vmem %s309, 8
        %v855 = vld [vmem:[%s854] sm:$0x3]
        %v856 = vpack.c.bf16 %v855, %v855
        %v858 = vsel %vm354, %v856, 0
        %860 = vmatprep.subr.bf16.mxu0 0
        %861 = vmatpush1.bf16.msra.mxu0 %v336
        %862 = vmatprep.subr.bf16.mxu0 0
        %863 = vmatpush1.bf16.msra.mxu0 %v337
        %864 = vmatprep.subr.bf16.mxu0 0
        %865 = vmatpush1.bf16.msra.mxu0 0
        %866 = vmatprep.subr.bf16.mxu0 0
        %867 = vmatpush1.bf16.msra.mxu0 0
        %868 = vmatprep.subr.bf16.mxu0 0
        %869 = vmatpush1.bf16.msra.mxu0 0
        %870 = vmatprep.subr.bf16.mxu0 0
        %871 = vmatpush1.bf16.msra.mxu0 0
        %872 = vmatprep.subr.bf16.mxu0 0
        %873 = vmatpush1.bf16.msra.mxu0 0
        %874 = vmatprep.subr.bf16.mxu0 0
        %875 = vmatpush1.bf16.msra.mxu0 0
        %876 = vmatprep.subr.bf16.mxu0 0
        %877 = vmatpush1.bf16.msra.mxu0 0
        %878 = vmatprep.subr.bf16.mxu0 0
        %879 = vmatpush1.bf16.msra.mxu0 0
        %880 = vmatprep.subr.bf16.mxu0 0
        %881 = vmatpush1.bf16.msra.mxu0 0
        %882 = vmatprep.subr.bf16.mxu0 0
        %883 = vmatpush1.bf16.msra.mxu0 0
        %884 = vmatprep.subr.bf16.mxu0 0
        %885 = vmatpush1.bf16.msra.mxu0 0
        %886 = vmatprep.subr.bf16.mxu0 0
        %887 = vmatpush1.bf16.msra.mxu0 0
        %888 = vmatprep.subr.bf16.mxu0 0
        %889 = vmatpush1.bf16.msra.mxu0 0
        %890 = vmatprep.subr.bf16.mxu0 0
        %891 = vmatpush1.bf16.msra.mxu0 0
        %892 = vmatprep.mubr.bf16.mxu0 0
        %893 = vmatmul.mubr.bf16.gmra.mrb[0].mxu0 %v858
        %v894 = vpop.f32.mrb[0].mxu0
        %v895 = vadd.f32 %v352, %v894
        %v896 = vpop.f32.mrb[0].mxu0
        %v897 = vpop.f32.mrb[0].mxu0
        %v898 = vpop.f32.mrb[0].mxu0
        %899 = vdwg.mxu0
        %v900 = vpack.c.bf16 %v847, %v847
        %902 = vrot.lane.b32.xlu0 %v900, 96
        %v903 = vpop.permute.xlu0 %902
        %v905 = vsel %vm354, %v903, 0
        %907 = vmatprep.subr.bf16.mxu0 0
        %908 = vmatpush1.bf16.msra.mxu0 %v342
        %909 = vmatprep.subr.bf16.mxu0 0
        %910 = vmatpush1.bf16.msra.mxu0 %v343
        %911 = vmatprep.subr.bf16.mxu0 0
        %912 = vmatpush1.bf16.msra.mxu0 0
        %913 = vmatprep.subr.bf16.mxu0 0
        %914 = vmatpush1.bf16.msra.mxu0 0
        %915 = vmatprep.subr.bf16.mxu0 0
        %916 = vmatpush1.bf16.msra.mxu0 0
        %917 = vmatprep.subr.bf16.mxu0 0
        %918 = vmatpush1.bf16.msra.mxu0 0
        %919 = vmatprep.subr.bf16.mxu0 0
        %920 = vmatpush1.bf16.msra.mxu0 0
        %921 = vmatprep.subr.bf16.mxu0 0
        %922 = vmatpush1.bf16.msra.mxu0 0
        %923 = vmatprep.subr.bf16.mxu0 0
        %924 = vmatpush1.bf16.msra.mxu0 0
        %925 = vmatprep.subr.bf16.mxu0 0
        %926 = vmatpush1.bf16.msra.mxu0 0
        %927 = vmatprep.subr.bf16.mxu0 0
        %928 = vmatpush1.bf16.msra.mxu0 0
        %929 = vmatprep.subr.bf16.mxu0 0
        %930 = vmatpush1.bf16.msra.mxu0 0
        %931 = vmatprep.subr.bf16.mxu0 0
        %932 = vmatpush1.bf16.msra.mxu0 0
        %933 = vmatprep.subr.bf16.mxu0 0
        %934 = vmatpush1.bf16.msra.mxu0 0
        %935 = vmatprep.subr.bf16.mxu0 0
        %936 = vmatpush1.bf16.msra.mxu0 0
        %937 = vmatprep.subr.bf16.mxu0 0
        %938 = vmatpush1.bf16.msra.mxu0 0
        %939 = vmatprep.mubr.bf16.mxu0 0
        %940 = vmatmul.mubr.bf16.gmra.mrb[0].mxu0 %v905
        %v941 = vpop.f32.mrb[0].mxu0
        %v942 = vadd.f32 %v402, %v941
        %v943 = vpop.f32.mrb[0].mxu0
        %v944 = vpop.f32.mrb[0].mxu0
        %v945 = vpop.f32.mrb[0].mxu0
        %946 = vdwg.mxu0
        %v947 = vadd.f32 %v895, %v942
        %v948 = vxor.u32 %v947, 2147483648
        %v949 = vmul.f32 %v948, 1.442695
        %v950 = vpow.pop %v949
        %v951 = vadd.f32 %v950, 1.0
        %v952 = vrcp.pop %v951
        %v953 = vmul.f32 1.0, %v952
        %955 = vrot.lane.b32.xlu0 %v942, 64
        %v956 = vpop.permute.xlu0 %955
        %v958 = vmul.f32 %v953, %v956
        %960 = vrot.lane.b32.xlu0 %v958, 64
        %v961 = vpop.permute.xlu0 %960
        %v963 = vadd.f32 %v895, %v961
        %v964 = vtanh.pop %v963
        %v965 = vsub.f32 1.0, %v953
        %967 = vrot.lane.b32.xlu0 %v964, 96
        %v968 = vpop.permute.xlu0 %967
        %v970 = vmul.f32 %v965, %v968
        %v971 = vmul.f32 %v953, %v847
        %v972 = vadd.f32 %v970, %v971
        %974 = vrot.lane.b32.xlu0 %v972, 96
        %v975 = vpop.permute.xlu0 %974
        %s977 = scalar_lea.vmem %s330, 8
        %978 = vst.msk [vmem:[%s977] sm:$0x3] %vm477, %v975
        %s979 = scalar_lea.vmem %s309, 10
        %v980 = vld [vmem:[%s979] sm:$0x3]
        %v981 = vpack.c.bf16 %v980, %v980
        %v983 = vsel %vm354, %v981, 0
        %985 = vmatprep.subr.bf16.mxu0 0
        %986 = vmatpush1.bf16.msra.mxu0 %v336
        %987 = vmatprep.subr.bf16.mxu0 0
        %988 = vmatpush1.bf16.msra.mxu0 %v337
        %989 = vmatprep.subr.bf16.mxu0 0
        %990 = vmatpush1.bf16.msra.mxu0 0
        %991 = vmatprep.subr.bf16.mxu0 0
        %992 = vmatpush1.bf16.msra.mxu0 0
        %993 = vmatprep.subr.bf16.mxu0 0
        %994 = vmatpush1.bf16.msra.mxu0 0
        %995 = vmatprep.subr.bf16.mxu0 0
        %996 = vmatpush1.bf16.msra.mxu0 0
        %997 = vmatprep.subr.bf16.mxu0 0
        %998 = vmatpush1.bf16.msra.mxu0 0
        %999 = vmatprep.subr.bf16.mxu0 0
        %1000 = vmatpush1.bf16.msra.mxu0 0
        %1001 = vmatprep.subr.bf16.mxu0 0
        %1002 = vmatpush1.bf16.msra.mxu0 0
        %1003 = vmatprep.subr.bf16.mxu0 0
        %1004 = vmatpush1.bf16.msra.mxu0 0
        %1005 = vmatprep.subr.bf16.mxu0 0
        %1006 = vmatpush1.bf16.msra.mxu0 0
        %1007 = vmatprep.subr.bf16.mxu0 0
        %1008 = vmatpush1.bf16.msra.mxu0 0
        %1009 = vmatprep.subr.bf16.mxu0 0
        %1010 = vmatpush1.bf16.msra.mxu0 0
        %1011 = vmatprep.subr.bf16.mxu0 0
        %1012 = vmatpush1.bf16.msra.mxu0 0
        %1013 = vmatprep.subr.bf16.mxu0 0
        %1014 = vmatpush1.bf16.msra.mxu0 0
        %1015 = vmatprep.subr.bf16.mxu0 0
        %1016 = vmatpush1.bf16.msra.mxu0 0
        %1017 = vmatprep.mubr.bf16.mxu0 0
        %1018 = vmatmul.mubr.bf16.gmra.mrb[0].mxu0 %v983
        %v1019 = vpop.f32.mrb[0].mxu0
        %v1020 = vadd.f32 %v352, %v1019
        %v1021 = vpop.f32.mrb[0].mxu0
        %v1022 = vpop.f32.mrb[0].mxu0
        %v1023 = vpop.f32.mrb[0].mxu0
        %1024 = vdwg.mxu0
        %v1025 = vpack.c.bf16 %v972, %v972
        %1027 = vrot.lane.b32.xlu0 %v1025, 96
        %v1028 = vpop.permute.xlu0 %1027
        %v1030 = vsel %vm354, %v1028, 0
        %1032 = vmatprep.subr.bf16.mxu0 0
        %1033 = vmatpush1.bf16.msra.mxu0 %v342
        %1034 = vmatprep.subr.bf16.mxu0 0
        %1035 = vmatpush1.bf16.msra.mxu0 %v343
        %1036 = vmatprep.subr.bf16.mxu0 0
        %1037 = vmatpush1.bf16.msra.mxu0 0
        %1038 = vmatprep.subr.bf16.mxu0 0
        %1039 = vmatpush1.bf16.msra.mxu0 0
        %1040 = vmatprep.subr.bf16.mxu0 0
        %1041 = vmatpush1.bf16.msra.mxu0 0
        %1042 = vmatprep.subr.bf16.mxu0 0
        %1043 = vmatpush1.bf16.msra.mxu0 0
        %1044 = vmatprep.subr.bf16.mxu0 0
        %1045 = vmatpush1.bf16.msra.mxu0 0
        %1046 = vmatprep.subr.bf16.mxu0 0
        %1047 = vmatpush1.bf16.msra.mxu0 0
        %1048 = vmatprep.subr.bf16.mxu0 0
        %1049 = vmatpush1.bf16.msra.mxu0 0
        %1050 = vmatprep.subr.bf16.mxu0 0
        %1051 = vmatpush1.bf16.msra.mxu0 0
        %1052 = vmatprep.subr.bf16.mxu0 0
        %1053 = vmatpush1.bf16.msra.mxu0 0
        %1054 = vmatprep.subr.bf16.mxu0 0
        %1055 = vmatpush1.bf16.msra.mxu0 0
        %1056 = vmatprep.subr.bf16.mxu0 0
        %1057 = vmatpush1.bf16.msra.mxu0 0
        %1058 = vmatprep.subr.bf16.mxu0 0
        %1059 = vmatpush1.bf16.msra.mxu0 0
        %1060 = vmatprep.subr.bf16.mxu0 0
        %1061 = vmatpush1.bf16.msra.mxu0 0
        %1062 = vmatprep.subr.bf16.mxu0 0
        %1063 = vmatpush1.bf16.msra.mxu0 0
        %1064 = vmatprep.mubr.bf16.mxu0 0
        %1065 = vmatmul.mubr.bf16.gmra.mrb[0].mxu0 %v1030
        %v1066 = vpop.f32.mrb[0].mxu0
        %v1067 = vadd.f32 %v402, %v1066
        %v1068 = vpop.f32.mrb[0].mxu0
        %v1069 = vpop.f32.mrb[0].mxu0
        %v1070 = vpop.f32.mrb[0].mxu0
        %1071 = vdwg.mxu0
        %v1072 = vadd.f32 %v1020, %v1067
        %v1073 = vxor.u32 %v1072, 2147483648
        %v1074 = vmul.f32 %v1073, 1.442695
        %v1075 = vpow.pop %v1074
        %v1076 = vadd.f32 %v1075, 1.0
        %v1077 = vrcp.pop %v1076
        %v1078 = vmul.f32 1.0, %v1077
        %1080 = vrot.lane.b32.xlu0 %v1067, 64
        %v1081 = vpop.permute.xlu0 %1080
        %v1083 = vmul.f32 %v1078, %v1081
        %1085 = vrot.lane.b32.xlu0 %v1083, 64
        %v1086 = vpop.permute.xlu0 %1085
        %v1088 = vadd.f32 %v1020, %v1086
        %v1089 = vtanh.pop %v1088
        %v1090 = vsub.f32 1.0, %v1078
        %1092 = vrot.lane.b32.xlu0 %v1089, 96
        %v1093 = vpop.permute.xlu0 %1092
        %v1095 = vmul.f32 %v1090, %v1093
        %v1096 = vmul.f32 %v1078, %v972
        %v1097 = vadd.f32 %v1095, %v1096
        %1099 = vrot.lane.b32.xlu0 %v1097, 96
        %v1100 = vpop.permute.xlu0 %1099
        %s1102 = scalar_lea.vmem %s330, 10
        %1103 = vst.msk [vmem:[%s1102] sm:$0x3] %vm477, %v1100
        %s1104 = scalar_lea.vmem %s309, 12
        %v1105 = vld [vmem:[%s1104] sm:$0x3]
        %v1106 = vpack.c.bf16 %v1105, %v1105
        %v1108 = vsel %vm354, %v1106, 0
        %1110 = vmatprep.subr.bf16.mxu0 0
        %1111 = vmatpush1.bf16.msra.mxu0 %v336
        %1112 = vmatprep.subr.bf16.mxu0 0
        %1113 = vmatpush1.bf16.msra.mxu0 %v337
        %1114 = vmatprep.subr.bf16.mxu0 0
        %1115 = vmatpush1.bf16.msra.mxu0 0
        %1116 = vmatprep.subr.bf16.mxu0 0
        %1117 = vmatpush1.bf16.msra.mxu0 0
        %1118 = vmatprep.subr.bf16.mxu0 0
        %1119 = vmatpush1.bf16.msra.mxu0 0
        %1120 = vmatprep.subr.bf16.mxu0 0
        %1121 = vmatpush1.bf16.msra.mxu0 0
        %1122 = vmatprep.subr.bf16.mxu0 0
        %1123 = vmatpush1.bf16.msra.mxu0 0
        %1124 = vmatprep.subr.bf16.mxu0 0
        %1125 = vmatpush1.bf16.msra.mxu0 0
        %1126 = vmatprep.subr.bf16.mxu0 0
        %1127 = vmatpush1.bf16.msra.mxu0 0
        %1128 = vmatprep.subr.bf16.mxu0 0
        %1129 = vmatpush1.bf16.msra.mxu0 0
        %1130 = vmatprep.subr.bf16.mxu0 0
        %1131 = vmatpush1.bf16.msra.mxu0 0
        %1132 = vmatprep.subr.bf16.mxu0 0
        %1133 = vmatpush1.bf16.msra.mxu0 0
        %1134 = vmatprep.subr.bf16.mxu0 0
        %1135 = vmatpush1.bf16.msra.mxu0 0
        %1136 = vmatprep.subr.bf16.mxu0 0
        %1137 = vmatpush1.bf16.msra.mxu0 0
        %1138 = vmatprep.subr.bf16.mxu0 0
        %1139 = vmatpush1.bf16.msra.mxu0 0
        %1140 = vmatprep.subr.bf16.mxu0 0
        %1141 = vmatpush1.bf16.msra.mxu0 0
        %1142 = vmatprep.mubr.bf16.mxu0 0
        %1143 = vmatmul.mubr.bf16.gmra.mrb[0].mxu0 %v1108
        %v1144 = vpop.f32.mrb[0].mxu0
        %v1145 = vadd.f32 %v352, %v1144
        %v1146 = vpop.f32.mrb[0].mxu0
        %v1147 = vpop.f32.mrb[0].mxu0
        %v1148 = vpop.f32.mrb[0].mxu0
        %1149 = vdwg.mxu0
        %v1150 = vpack.c.bf16 %v1097, %v1097
        %1152 = vrot.lane.b32.xlu0 %v1150, 96
        %v1153 = vpop.permute.xlu0 %1152
        %v1155 = vsel %vm354, %v1153, 0
        %1157 = vmatprep.subr.bf16.mxu0 0
        %1158 = vmatpush1.bf16.msra.mxu0 %v342
        %1159 = vmatprep.subr.bf16.mxu0 0
        %1160 = vmatpush1.bf16.msra.mxu0 %v343
        %1161 = vmatprep.subr.bf16.mxu0 0
        %1162 = vmatpush1.bf16.msra.mxu0 0
        %1163 = vmatprep.subr.bf16.mxu0 0
        %1164 = vmatpush1.bf16.msra.mxu0 0
        %1165 = vmatprep.subr.bf16.mxu0 0
        %1166 = vmatpush1.bf16.msra.mxu0 0
        %1167 = vmatprep.subr.bf16.mxu0 0
        %1168 = vmatpush1.bf16.msra.mxu0 0
        %1169 = vmatprep.subr.bf16.mxu0 0
        %1170 = vmatpush1.bf16.msra.mxu0 0
        %1171 = vmatprep.subr.bf16.mxu0 0
        %1172 = vmatpush1.bf16.msra.mxu0 0
        %1173 = vmatprep.subr.bf16.mxu0 0
        %1174 = vmatpush1.bf16.msra.mxu0 0
        %1175 = vmatprep.subr.bf16.mxu0 0
        %1176 = vmatpush1.bf16.msra.mxu0 0
        %1177 = vmatprep.subr.bf16.mxu0 0
        %1178 = vmatpush1.bf16.msra.mxu0 0
        %1179 = vmatprep.subr.bf16.mxu0 0
        %1180 = vmatpush1.bf16.msra.mxu0 0
        %1181 = vmatprep.subr.bf16.mxu0 0
        %1182 = vmatpush1.bf16.msra.mxu0 0
        %1183 = vmatprep.subr.bf16.mxu0 0
        %1184 = vmatpush1.bf16.msra.mxu0 0
        %1185 = vmatprep.subr.bf16.mxu0 0
        %1186 = vmatpush1.bf16.msra.mxu0 0
        %1187 = vmatprep.subr.bf16.mxu0 0
        %1188 = vmatpush1.bf16.msra.mxu0 0
        %1189 = vmatprep.mubr.bf16.mxu0 0
        %1190 = vmatmul.mubr.bf16.gmra.mrb[0].mxu0 %v1155
        %v1191 = vpop.f32.mrb[0].mxu0
        %v1192 = vadd.f32 %v402, %v1191
        %v1193 = vpop.f32.mrb[0].mxu0
        %v1194 = vpop.f32.mrb[0].mxu0
        %v1195 = vpop.f32.mrb[0].mxu0
        %1196 = vdwg.mxu0
        %v1197 = vadd.f32 %v1145, %v1192
        %v1198 = vxor.u32 %v1197, 2147483648
        %v1199 = vmul.f32 %v1198, 1.442695
        %v1200 = vpow.pop %v1199
        %v1201 = vadd.f32 %v1200, 1.0
        %v1202 = vrcp.pop %v1201
        %v1203 = vmul.f32 1.0, %v1202
        %1205 = vrot.lane.b32.xlu0 %v1192, 64
        %v1206 = vpop.permute.xlu0 %1205
        %v1208 = vmul.f32 %v1203, %v1206
        %1210 = vrot.lane.b32.xlu0 %v1208, 64
        %v1211 = vpop.permute.xlu0 %1210
        %v1213 = vadd.f32 %v1145, %v1211
        %v1214 = vtanh.pop %v1213
        %v1215 = vsub.f32 1.0, %v1203
        %1217 = vrot.lane.b32.xlu0 %v1214, 96
        %v1218 = vpop.permute.xlu0 %1217
        %v1220 = vmul.f32 %v1215, %v1218
        %v1221 = vmul.f32 %v1203, %v1097
        %v1222 = vadd.f32 %v1220, %v1221
        %1224 = vrot.lane.b32.xlu0 %v1222, 96
        %v1225 = vpop.permute.xlu0 %1224
        %s1227 = scalar_lea.vmem %s330, 12
        %1228 = vst.msk [vmem:[%s1227] sm:$0x3] %vm477, %v1225
        %s1229 = scalar_lea.vmem %s309, 14
        %v1230 = vld [vmem:[%s1229] sm:$0x3]
        %v1231 = vpack.c.bf16 %v1230, %v1230
        %v1233 = vsel %vm354, %v1231, 0
        %1235 = vmatprep.subr.bf16.mxu0 0
        %1236 = vmatpush1.bf16.msra.mxu0 %v336
        %1237 = vmatprep.subr.bf16.mxu0 0
        %1238 = vmatpush1.bf16.msra.mxu0 %v337
        %1239 = vmatprep.subr.bf16.mxu0 0
        %1240 = vmatpush1.bf16.msra.mxu0 0
        %1241 = vmatprep.subr.bf16.mxu0 0
        %1242 = vmatpush1.bf16.msra.mxu0 0
        %1243 = vmatprep.subr.bf16.mxu0 0
        %1244 = vmatpush1.bf16.msra.mxu0 0
        %1245 = vmatprep.subr.bf16.mxu0 0
        %1246 = vmatpush1.bf16.msra.mxu0 0
        %1247 = vmatprep.subr.bf16.mxu0 0
        %1248 = vmatpush1.bf16.msra.mxu0 0
        %1249 = vmatprep.subr.bf16.mxu0 0
        %1250 = vmatpush1.bf16.msra.mxu0 0
        %1251 = vmatprep.subr.bf16.mxu0 0
        %1252 = vmatpush1.bf16.msra.mxu0 0
        %1253 = vmatprep.subr.bf16.mxu0 0
        %1254 = vmatpush1.bf16.msra.mxu0 0
        %1255 = vmatprep.subr.bf16.mxu0 0
        %1256 = vmatpush1.bf16.msra.mxu0 0
        %1257 = vmatprep.subr.bf16.mxu0 0
        %1258 = vmatpush1.bf16.msra.mxu0 0
        %1259 = vmatprep.subr.bf16.mxu0 0
        %1260 = vmatpush1.bf16.msra.mxu0 0
        %1261 = vmatprep.subr.bf16.mxu0 0
        %1262 = vmatpush1.bf16.msra.mxu0 0
        %1263 = vmatprep.subr.bf16.mxu0 0
        %1264 = vmatpush1.bf16.msra.mxu0 0
        %1265 = vmatprep.subr.bf16.mxu0 0
        %1266 = vmatpush1.bf16.msra.mxu0 0
        %1267 = vmatprep.mubr.bf16.mxu0 0
        %1268 = vmatmul.mubr.bf16.gmra.mrb[0].mxu0 %v1233
        %v1269 = vpop.f32.mrb[0].mxu0
        %v1270 = vadd.f32 %v352, %v1269
        %v1271 = vpop.f32.mrb[0].mxu0
        %v1272 = vpop.f32.mrb[0].mxu0
        %v1273 = vpop.f32.mrb[0].mxu0
        %1274 = vdwg.mxu0
        %v1275 = vpack.c.bf16 %v1222, %v1222
        %1277 = vrot.lane.b32.xlu0 %v1275, 96
        %v1278 = vpop.permute.xlu0 %1277
        %v1280 = vsel %vm354, %v1278, 0
        %1282 = vmatprep.subr.bf16.mxu0 0
        %1283 = vmatpush1.bf16.msra.mxu0 %v342
        %1284 = vmatprep.subr.bf16.mxu0 0
        %1285 = vmatpush1.bf16.msra.mxu0 %v343
        %1286 = vmatprep.subr.bf16.mxu0 0
        %1287 = vmatpush1.bf16.msra.mxu0 0
        %1288 = vmatprep.subr.bf16.mxu0 0
        %1289 = vmatpush1.bf16.msra.mxu0 0
        %1290 = vmatprep.subr.bf16.mxu0 0
        %1291 = vmatpush1.bf16.msra.mxu0 0
        %1292 = vmatprep.subr.bf16.mxu0 0
        %1293 = vmatpush1.bf16.msra.mxu0 0
        %1294 = vmatprep.subr.bf16.mxu0 0
        %1295 = vmatpush1.bf16.msra.mxu0 0
        %1296 = vmatprep.subr.bf16.mxu0 0
        %1297 = vmatpush1.bf16.msra.mxu0 0
        %1298 = vmatprep.subr.bf16.mxu0 0
        %1299 = vmatpush1.bf16.msra.mxu0 0
        %1300 = vmatprep.subr.bf16.mxu0 0
        %1301 = vmatpush1.bf16.msra.mxu0 0
        %1302 = vmatprep.subr.bf16.mxu0 0
        %1303 = vmatpush1.bf16.msra.mxu0 0
        %1304 = vmatprep.subr.bf16.mxu0 0
        %1305 = vmatpush1.bf16.msra.mxu0 0
        %1306 = vmatprep.subr.bf16.mxu0 0
        %1307 = vmatpush1.bf16.msra.mxu0 0
        %1308 = vmatprep.subr.bf16.mxu0 0
        %1309 = vmatpush1.bf16.msra.mxu0 0
        %1310 = vmatprep.subr.bf16.mxu0 0
        %1311 = vmatpush1.bf16.msra.mxu0 0
        %1312 = vmatprep.subr.bf16.mxu0 0
        %1313 = vmatpush1.bf16.msra.mxu0 0
        %1314 = vmatprep.mubr.bf16.mxu0 0
        %1315 = vmatmul.mubr.bf16.gmra.mrb[0].mxu0 %v1280
        %v1316 = vpop.f32.mrb[0].mxu0
        %v1317 = vadd.f32 %v402, %v1316
        %v1318 = vpop.f32.mrb[0].mxu0
        %v1319 = vpop.f32.mrb[0].mxu0
        %v1320 = vpop.f32.mrb[0].mxu0
        %1321 = vdwg.mxu0
        %v1322 = vadd.f32 %v1270, %v1317
        %v1323 = vxor.u32 %v1322, 2147483648
        %v1324 = vmul.f32 %v1323, 1.442695
        %v1325 = vpow.pop %v1324
        %v1326 = vadd.f32 %v1325, 1.0
        %v1327 = vrcp.pop %v1326
        %v1328 = vmul.f32 1.0, %v1327
        %1330 = vrot.lane.b32.xlu0 %v1317, 64
        %v1331 = vpop.permute.xlu0 %1330
        %v1333 = vmul.f32 %v1328, %v1331
        %1335 = vrot.lane.b32.xlu0 %v1333, 64
        %v1336 = vpop.permute.xlu0 %1335
        %v1338 = vadd.f32 %v1270, %v1336
        %v1339 = vtanh.pop %v1338
        %v1340 = vsub.f32 1.0, %v1328
        %1342 = vrot.lane.b32.xlu0 %v1339, 96
        %v1343 = vpop.permute.xlu0 %1342
        %v1345 = vmul.f32 %v1340, %v1343
        %v1346 = vmul.f32 %v1328, %v1222
        %v1347 = vadd.f32 %v1345, %v1346
        %1349 = vrot.lane.b32.xlu0 %v1347, 96
        %v1350 = vpop.permute.xlu0 %1349
        %s1352 = scalar_lea.vmem %s330, 14
        %1353 = vst.msk [vmem:[%s1352] sm:$0x3] %vm477, %v1350
        %1354 = vst.msk [vmem:[%s304] sm:$0x3] %vm477, %v1350
        %p1355 = scmp.lt.s32.totalorder %s21, 1
        %s1356 = scalar_select %p1355, %s21, 1
        %s1357 = smul.addr %s1356, 8
        %s1358 = smul.addr %s1357, 2
        %s1359 = scalar_lea.vmem %s5, %s1358
        %s1360 = sand.u32 %s185, 1
        %s1361 = scalar_lea.sflag [#allocation3], %s1360
        %s1362 = sand.u32 %s185, 1
        %s1363 = smul.addr %s1362, 2
        %s1364 = scalar_lea.vmem [#allocation2], %s1363
        // Predicated region
        $region41: #{seq2seq_forward.7} parent=39 // pred_check
          %p1365 = pneg %p169
        $region42: #{seq2seq_forward.7} parent=39 // pred_check_branch
          %1367 = sbr.rel (%p1365) target = $region44
        $region43: #{seq2seq_forward.7} parent=39 // pred_region
          _
        $region44: #{seq2seq_forward.7} parent=39 // pred_fallthru
          _
        // Predicated region
        $region45: #{seq2seq_forward.7} parent=39 // pred_check
          %p1368 = pneg %p195
        $region46: #{seq2seq_forward.7} parent=39 // pred_check_branch
          %1370 = sbr.rel (%p1368) target = $region48
        $region47: #{seq2seq_forward.7} parent=39 // pred_region
          %s1372 = ssub.s32 32, 32
          %1373 = vsyncadd %s1361, %s1372
          %s1374 = smul.addr %s21, 32
          %s1375 = scalar_lea.hbm %s6, %s1374
          %s1377 = sshll.u32 %s1364, 4
          %s1378 = int_to_ptr.vmem [resolvable:$true] %s1377
          %1380 = dma.vmem_to_hbm [thread:$0]  %s1378, 32, %s1375, %s1361
        $region48: #{seq2seq_forward.7} parent=39 // pred_fallthru
          _
      $region40: #{seq2seq_forward.7} parent=5 // pred_fallthru
        _
      %p1381 = scmp.le.s32.totalorder 2, %s16
      // Predicated region
      $region49: #{seq2seq_forward.7} parent=5 // pred_check
        %p1382 = pneg %p1381
      $region50: #{seq2seq_forward.7} parent=5 // pred_check_branch
        %1384 = sbr.rel (%p1382) target = $region52
      $region51: #{seq2seq_forward.7} parent=5 // pred_region
        %s1385 = ssub.s32 %s16, 2
        // Predicated region
        $region53: #{seq2seq_forward.7} parent=51 // pred_check
          %p1386 = pneg %p175
        $region54: #{seq2seq_forward.7} parent=51 // pred_check_branch
          %1388 = sbr.rel (%p1386) target = $region56
        $region55: #{seq2seq_forward.7} parent=51 // pred_region
          %p1389 = scmp.lt.s32.totalorder %s22, 1
          %s1390 = scalar_select %p1389, %s22, 1
          %s1391 = smul.addr %s1390, 8
          %s1392 = smul.addr %s1391, 2
          %s1393 = scalar_lea.vmem %s5, %s1392
        $region56: #{seq2seq_forward.7} parent=51 // pred_fallthru
          _
        // Predicated region
        $region57: #{seq2seq_forward.7} parent=51 // pred_check
          %p1394 = pneg %p201
        $region58: #{seq2seq_forward.7} parent=51 // pred_check_branch
          %1396 = sbr.rel (%p1394) target = $region60
        $region59: #{seq2seq_forward.7} parent=51 // pred_region
          %s1397 = sand.u32 %s186, 1
          %s1398 = scalar_lea.sflag [#allocation3], %s1397
          %s1399 = sand.u32 %s186, 1
          %s1400 = smul.addr %s1399, 2
          %s1401 = scalar_lea.vmem [#allocation2], %s1400
          %1402 = dma.done %s1398, 32
        $region60: #{seq2seq_forward.7} parent=51 // pred_fallthru
          _
      $region52: #{seq2seq_forward.7} parent=5 // pred_fallthru
        _
    $region6: #{seq2seq_forward.7} parent=1 // loop_footer
      %s20 = sadd.s32 1, %s16
    $region7: #{seq2seq_forward.7} parent=1 // loop_footer_branch
      %15 = sbr.rel target = $region3
    $region8: #{seq2seq_forward.7} parent=1 // loop_exit
      _
    %1403 = vsyncpa [#allocation3], 1
    %s1404 = scalar_lea.sflag [#allocation3], 1
    %1405 = vsyncpa %s1404, 1

// kernel: seq2seq_forward.12
$region0: #{seq2seq_forward.12}
  #allocation0 [shape = 'u32[]', space=smem, size = 0x4, offset = 0x4, fixed_abs, tag = 'smem constant byte address 0x4 - core index']
  #allocation1 [shape = 'u32[144,128]{1,0:T(1,128)}', space=vmem, size = 0x12000, scoped, tag = 'internal scratch']
  %s0 = inlined_call_operand.vmem [shape: f32[12,32], index: 0, kind: input, shape index: {}]
  %s1 = inlined_call_operand.vmem [shape: f32[32,64], index: 1, kind: input, shape index: {}]
  %s2 = inlined_call_operand.vmem [shape: f32[1,64], index: 2, kind: input, shape index: {}]
  %s3 = inlined_call_operand.vmem [shape: f32[12,64], index: 3, kind: output, shape index: {}]
  %s4 = sld [smem:[#allocation0]]
  $region22: #{seq2seq_forward.12} parent=0
    _
  %s6 = ssub.s32 1, %s4
  %s7 = scalar_select 0, %s6, %s4
  // Predicated region
  $region2: #{seq2seq_forward.12} parent=0 // pred_check
    _
  $region3: #{seq2seq_forward.12} parent=0 // pred_check_branch
    %9 = sbr.rel (0) target = $region5
  $region4: #{seq2seq_forward.12} parent=0 // pred_region
    _
  $region5: #{seq2seq_forward.12} parent=0 // pred_fallthru
    _
  // Predicated region
  $region6: #{seq2seq_forward.12} parent=0 // pred_check
    _
  $region7: #{seq2seq_forward.12} parent=0 // pred_check_branch
    %11 = sbr.rel (0) target = $region9
  $region8: #{seq2seq_forward.12} parent=0 // pred_region
    _
  $region9: #{seq2seq_forward.12} parent=0 // pred_fallthru
    _
  // Predicated region
  $region10: #{seq2seq_forward.12} parent=0 // pred_check
    _
  $region11: #{seq2seq_forward.12} parent=0 // pred_check_branch
    %13 = sbr.rel (0) target = $region13
  $region12: #{seq2seq_forward.12} parent=0 // pred_region
    _
  $region13: #{seq2seq_forward.12} parent=0 // pred_fallthru
    _
  %v15 = vld [vmem:[%s0] sm:$0xff]
  %v16 = vld [vmem:[%s0 + $0x8] sm:$0xf]
  %v17 = vld [vmem:[%s1] sm:$0xff]
  %v18 = vld [vmem:[%s1 + $0x8] sm:$0xff]
  %v19 = vld [vmem:[%s1 + $0x10] sm:$0xff]
  %v20 = vld [vmem:[%s1 + $0x18] sm:$0xff]
  %v21 = vpack.c.bf16 %v16, %v15
  %v22 = vpack.c.bf16 %v18, %v17
  %v23 = vpack.c.bf16 %v20, %v19
  %v24 = vld [vmem:[%s2] sm:$0x1]
  %v26 = vlaneseq
  %v27 = vshrl.u32 %v26, 7
  %v28 = vsub.s32 0, %v27
  %v29 = vrot.slane %v24, %v28
  %vm31 = vcmask 261120
  %v33 = vsel %vm31, %v21, 0
  %35 = vmatprep.subr.bf16.mxu0 0
  %36 = vmatpush1.bf16.msra.mxu0 %v22
  %37 = vmatprep.subr.bf16.mxu0 0
  %38 = vmatpush1.bf16.msra.mxu0 %v23
  %39 = vmatprep.subr.bf16.mxu0 0
  %40 = vmatpush1.bf16.msra.mxu0 0
  %41 = vmatprep.subr.bf16.mxu0 0
  %42 = vmatpush1.bf16.msra.mxu0 0
  %43 = vmatprep.subr.bf16.mxu0 0
  %44 = vmatpush1.bf16.msra.mxu0 0
  %45 = vmatprep.subr.bf16.mxu0 0
  %46 = vmatpush1.bf16.msra.mxu0 0
  %47 = vmatprep.subr.bf16.mxu0 0
  %48 = vmatpush1.bf16.msra.mxu0 0
  %49 = vmatprep.subr.bf16.mxu0 0
  %50 = vmatpush1.bf16.msra.mxu0 0
  %51 = vmatprep.subr.bf16.mxu0 0
  %52 = vmatpush1.bf16.msra.mxu0 0
  %53 = vmatprep.subr.bf16.mxu0 0
  %54 = vmatpush1.bf16.msra.mxu0 0
  %55 = vmatprep.subr.bf16.mxu0 0
  %56 = vmatpush1.bf16.msra.mxu0 0
  %57 = vmatprep.subr.bf16.mxu0 0
  %58 = vmatpush1.bf16.msra.mxu0 0
  %59 = vmatprep.subr.bf16.mxu0 0
  %60 = vmatpush1.bf16.msra.mxu0 0
  %61 = vmatprep.subr.bf16.mxu0 0
  %62 = vmatpush1.bf16.msra.mxu0 0
  %63 = vmatprep.subr.bf16.mxu0 0
  %64 = vmatpush1.bf16.msra.mxu0 0
  %65 = vmatprep.subr.bf16.mxu0 0
  %66 = vmatpush1.bf16.msra.mxu0 0
  %67 = vmatprep.mubr.bf16.mxu0 0
  %68 = vmatmul.mubr.bf16.gmra.mrb[0].mxu0 %v33
  %v69 = vpop.f32.mrb[0].mxu0
  %v70 = vadd.f32 %v29, %v69
  %v71 = vpop.f32.mrb[0].mxu0
  %v72 = vpop.f32.mrb[0].mxu0
  %v73 = vadd.f32 %v29, %v72
  %v74 = vpop.f32.mrb[0].mxu0
  %75 = vdwg.mxu0
  %vm76 = vcmask 523264
  %77 = vst.msk [vmem:[%s3] sm:$0xff] %vm76, %v70
  %vm78 = vcmask 519168
  %79 = vst.msk [vmem:[%s3 + $0x8] sm:$0xf] %vm78, %v73
  // Predicated region
  $region14: #{seq2seq_forward.12} parent=0 // pred_check
    _
  $region15: #{seq2seq_forward.12} parent=0 // pred_check_branch
    %81 = sbr.rel (0) target = $region17
  $region16: #{seq2seq_forward.12} parent=0 // pred_region
    _
  $region17: #{seq2seq_forward.12} parent=0 // pred_fallthru
    _
  // Predicated region
  $region18: #{seq2seq_forward.12} parent=0 // pred_check
    _
  $region19: #{seq2seq_forward.12} parent=0 // pred_check_branch
    %83 = sbr.rel (0) target = $region21
  $region20: #{seq2seq_forward.12} parent=0 // pred_region
    _
  $region21: #{seq2seq_forward.12} parent=0 // pred_fallthru
    _

// kernel: seq2seq_forward.13
$region0: #{seq2seq_forward.13}
  #allocation0 [shape = 'u32[]', space=smem, size = 0x4, offset = 0x4, fixed_abs, tag = 'smem constant byte address 0x4 - core index']
  #allocation1 [shape = 'u32[144,128]{1,0:T(1,128)}', space=vmem, size = 0x12000, scoped, tag = 'internal scratch']
  %s0 = inlined_call_operand.vmem [shape: f32[10,64], index: 0, kind: input, shape index: {}]
  %s1 = inlined_call_operand.vmem [shape: s32[10,1], index: 1, kind: input, shape index: {}]
  %s2 = inlined_call_operand.hbm [shape: f32[1,1], index: 2, kind: output, shape index: {}]
  %s3 = sld [smem:[#allocation0]]
  $region18: #{seq2seq_forward.13} parent=0
    _
  %s5 = ssub.s32 1, %s3
  %s6 = scalar_select 0, %s5, %s3
  $region1: #{seq2seq_forward.13} parent=0
    #allocation2 [shape = 'u8[512]{0}', space=vmem, size = 0x400, scoped, tag = 'output window, operand 0, single buffered']
    #allocation3 [shape = 's32[1]{0}', space=sflag, size = 0x4, scoped, tag = 'scoped memory for seq2seq_forward.13']
    %7 = vsyncpa [#allocation3], 0
    // Predicated region
    $region2: #{seq2seq_forward.13} parent=1 // pred_check
      _
    $region3: #{seq2seq_forward.13} parent=1 // pred_check_branch
      %9 = sbr.rel (0) target = $region5
    $region4: #{seq2seq_forward.13} parent=1 // pred_region
      _
    $region5: #{seq2seq_forward.13} parent=1 // pred_fallthru
      _
    // Predicated region
    $region6: #{seq2seq_forward.13} parent=1 // pred_check
      _
    $region7: #{seq2seq_forward.13} parent=1 // pred_check_branch
      %11 = sbr.rel (0) target = $region9
    $region8: #{seq2seq_forward.13} parent=1 // pred_region
      _
    $region9: #{seq2seq_forward.13} parent=1 // pred_fallthru
      _
    %v12 = vld [vmem:[%s0] sm:$0xff]
    %v13 = vld [vmem:[%s0 + $0x8] sm:$0x3]
    %v14 = vld [vmem:[%s1] sm:$0xff]
    %v15 = vld [vmem:[%s1 + $0x8] sm:$0x3]
    %vm16 = vcmask 523264
    %v17 = vsel %vm16, %v12, -inf
    %18 = vmax.xlane.f32.xlu0 %v17
    %v19 = vpop.xlane.xlu0 %18
    %vm20 = vcmask 517120
    %v21 = vsel %vm20, %v13, -inf
    %22 = vmax.xlane.f32.xlu0 %v21
    %v23 = vpop.xlane.xlu0 %22
    %v24 = vsub.f32 %v12, %v19
    %v25 = vsub.f32 %v13, %v23
    %v26 = vmul.f32 %v24, 1.442695
    %v27 = vpow.pop %v26
    %v28 = vmul.f32 %v25, 1.442695
    %v29 = vpow.pop %v28
    %v30 = vsel %vm16, %v27, 0.0
    %31 = vadd.xlane.f32.xlu0 %v30
    %v32 = vpop.xlane.xlu0 %31
    %v33 = vsel %vm20, %v29, 0.0
    %34 = vadd.xlane.f32.xlu0 %v33
    %v35 = vpop.xlane.xlu0 %34
    %v36 = vlog2.pop %v32
    %v37 = vmul.f32 %v36, 0.6931472
    %v38 = vlog2.pop %v35
    %v39 = vmul.f32 %v38, 0.6931472
    %v40 = vadd.f32 %v37, %v19
    %v41 = vadd.f32 %v39, %v23
    %v42 = vlaneseq
    %v43 = vand.u32 %v42, 127
    %44 = vset.pattern.permute.xlu0 0
    %45 = vperm.xlu0 %44, %v14
    %v46 = vpop.permute.xlu0 %45
    %47 = vset.pattern.permute.xlu0 0
    %48 = vperm.xlu0 %47, %v15
    %v49 = vpop.permute.xlu0 %48
    %vm50 = vcmp.eq.s32.totalorder %v43, %v46
    %vm51 = vcmp.eq.s32.totalorder %v43, %v49
    %v52 = vsel %vm50, %v12, 0.0
    %v53 = vsel %vm51, %v13, 0.0
    %v54 = vsel %vm16, %v52, 0.0
    %55 = vadd.xlane.f32.xlu0 %v54
    %v56 = vpop.xlane.xlu0 %55
    %v57 = vsel %vm20, %v53, 0.0
    %58 = vadd.xlane.f32.xlu0 %v57
    %v59 = vpop.xlane.xlu0 %58
    %vm60 = vcmp.ne.s32.totalorder %v14, 0
    %vm61 = vcmp.ne.s32.totalorder %v15, 0
    %v62 = vsel %vm60, 1, 0
    %v63 = vsel %vm61, 1, 0
    %v64 = vcvt.s32.f32 %v62
    %v65 = vcvt.s32.f32 %v63
    %v66 = vsub.f32 %v40, %v56
    %v67 = vsub.f32 %v41, %v59
    %v68 = vmul.f32 %v64, %v66
    %v69 = vmul.f32 %v65, %v67
    %vm70 = vcmask 7168
    %v71 = vsel %vm70, %v68, 0.0
    %vm72 = vcmask 1024
    %v73 = vsel %vm72, %v69, 0.0
    %v74 = vadd.f32 %v71, %v73
    %75 = vadd.xlane.f32.xlu0 %v74
    %v76 = vpop.xlane.xlu0 %75
    %v77 = vrot.slane %v76, 4
    %v78 = vadd.f32 %v76, %v77
    %v79 = vrot.slane %v78, 2
    %v80 = vadd.f32 %v78, %v79
    %v81 = vrot.slane %v80, 1
    %v82 = vadd.f32 %v80, %v81
    %s83 = vtos %v82
    %v84 = vsel %vm70, %v64, 0.0
    %v85 = vsel %vm72, %v65, 0.0
    %v86 = vadd.f32 %v84, %v85
    %87 = vadd.xlane.f32.xlu0 %v86
    %v88 = vpop.xlane.xlu0 %87
    %v89 = vrot.slane %v88, 4
    %v90 = vadd.f32 %v88, %v89
    %v91 = vrot.slane %v90, 2
    %v92 = vadd.f32 %v90, %v91
    %v93 = vrot.slane %v92, 1
    %v94 = vadd.f32 %v92, %v93
    %s95 = vtos %v94
    %p96 = scmp.gt.f32.partialorder %s95, 0.0
    %s97 = smax.f32 %s95, 1.0
    %v98 = vstv %s97
    %v99 = vrcp.pop %v98
    %s100 = vtos %v99
    %s101 = smul.f32 %s83, %s100
    %s102 = scalar_select %p96, %s101, 0.0
    %v103 = vstv %s102
    %vm104 = vcmask 0
    %105 = vst.msk [vmem:[#allocation2] sm:$0x1] %vm104, %v103
    // Predicated region
    $region10: #{seq2seq_forward.13} parent=1 // pred_check
      _
    $region11: #{seq2seq_forward.13} parent=1 // pred_check_branch
      %107 = sbr.rel (0) target = $region13
    $region12: #{seq2seq_forward.13} parent=1 // pred_region
      %s109 = ssub.s32 16, 16
      %110 = vsyncadd [#allocation3], %s109
      %s112 = sshll.u32 [#allocation2], 4
      %s113 = int_to_ptr.vmem [resolvable:$true] %s112
      %115 = dma.vmem_to_hbm [thread:$0]  %s113, 16, %s2, [#allocation3]
    $region13: #{seq2seq_forward.13} parent=1 // pred_fallthru
      _
    // Predicated region
    $region14: #{seq2seq_forward.13} parent=1 // pred_check
      _
    $region15: #{seq2seq_forward.13} parent=1 // pred_check_branch
      %117 = sbr.rel (0) target = $region17
    $region16: #{seq2seq_forward.13} parent=1 // pred_region
      %118 = dma.done [#allocation3], 16
    $region17: #{seq2seq_forward.13} parent=1 // pred_fallthru
      _
    %119 = vsyncpa [#allocation3], 1

// kernel: seq2seq_forward.11
$region0: #{seq2seq_forward.11}
  #allocation0 [shape = 'u32[]', space=smem, size = 0x4, offset = 0x4, fixed_abs, tag = 'smem constant byte address 0x4 - core index']
  #allocation1 [shape = 'u32[144,128]{1,0:T(1,128)}', space=vmem, size = 0x12000, scoped, tag = 'internal scratch']
  %s0 = inlined_call_operand.vmem [shape: f32[6,2,32], index: 0, kind: input, shape index: {}]
  %s1 = inlined_call_operand.vmem [shape: f32[8,2,32], index: 1, kind: input, shape index: {}]
  %s2 = inlined_call_operand.vmem [shape: f32[8,2,32], index: 2, kind: input, shape index: {}]
  %s3 = inlined_call_operand.vmem [shape: f32[2,32], index: 3, kind: input, shape index: {}]
  %s4 = inlined_call_operand.vmem [shape: f32[32,96], index: 4, kind: input, shape index: {}]
  %s5 = inlined_call_operand.vmem [shape: f32[32,96], index: 5, kind: input, shape index: {}]
  %s6 = inlined_call_operand.vmem [shape: f32[32,96], index: 6, kind: input, shape index: {}]
  %s7 = inlined_call_operand.vmem [shape: f32[1,96], index: 7, kind: input, shape index: {}]
  %s8 = inlined_call_operand.vmem [shape: f32[1,96], index: 8, kind: input, shape index: {}]
  %s9 = inlined_call_operand.vmem [shape: f32[32,96], index: 9, kind: input, shape index: {}]
  %s10 = inlined_call_operand.vmem [shape: f32[32,96], index: 10, kind: input, shape index: {}]
  %s11 = inlined_call_operand.vmem [shape: f32[1,96], index: 11, kind: input, shape index: {}]
  %s12 = inlined_call_operand.vmem [shape: f32[1,96], index: 12, kind: input, shape index: {}]
  %s13 = inlined_call_operand.vmem [shape: f32[32,32], index: 13, kind: input, shape index: {}]
  %s14 = inlined_call_operand.vmem [shape: f32[1,32], index: 14, kind: input, shape index: {}]
  %s15 = inlined_call_operand.vmem [shape: f32[1,1,32], index: 15, kind: input, shape index: {}]
  %s16 = inlined_call_operand.vmem [shape: f32[6,2,32], index: 16, kind: output, shape index: {}]
  %s17 = sld [smem:[#allocation0]]
  $region74: #{seq2seq_forward.11} parent=0
    _
  %s19 = ssub.s32 1, %s17
  %s20 = scalar_select 0, %s19, %s17
  // Predicated region
  $region2: #{seq2seq_forward.11} parent=0 // pred_check
    _
  $region3: #{seq2seq_forward.11} parent=0 // pred_check_branch
    %22 = sbr.rel (0) target = $region5
  $region4: #{seq2seq_forward.11} parent=0 // pred_region
    _
  $region5: #{seq2seq_forward.11} parent=0 // pred_fallthru
    _
  // Predicated region
  $region6: #{seq2seq_forward.11} parent=0 // pred_check
    _
  $region7: #{seq2seq_forward.11} parent=0 // pred_check_branch
    %24 = sbr.rel (0) target = $region9
  $region8: #{seq2seq_forward.11} parent=0 // pred_region
    _
  $region9: #{seq2seq_forward.11} parent=0 // pred_fallthru
    _
  // Predicated region
  $region10: #{seq2seq_forward.11} parent=0 // pred_check
    _
  $region11: #{seq2seq_forward.11} parent=0 // pred_check_branch
    %26 = sbr.rel (0) target = $region13
  $region12: #{seq2seq_forward.11} parent=0 // pred_region
    _
  $region13: #{seq2seq_forward.11} parent=0 // pred_fallthru
    _
  // Predicated region
  $region14: #{seq2seq_forward.11} parent=0 // pred_check
    _
  $region15: #{seq2seq_forward.11} parent=0 // pred_check_branch
    %28 = sbr.rel (0) target = $region17
  $region16: #{seq2seq_forward.11} parent=0 // pred_region
    _
  $region17: #{seq2seq_forward.11} parent=0 // pred_fallthru
    _
  // Predicated region
  $region18: #{seq2seq_forward.11} parent=0 // pred_check
    _
  $region19: #{seq2seq_forward.11} parent=0 // pred_check_branch
    %30 = sbr.rel (0) target = $region21
  $region20: #{seq2seq_forward.11} parent=0 // pred_region
    _
  $region21: #{seq2seq_forward.11} parent=0 // pred_fallthru
    _
  // Predicated region
  $region22: #{seq2seq_forward.11} parent=0 // pred_check
    _
  $region23: #{seq2seq_forward.11} parent=0 // pred_check_branch
    %32 = sbr.rel (0) target = $region25
  $region24: #{seq2seq_forward.11} parent=0 // pred_region
    _
  $region25: #{seq2seq_forward.11} parent=0 // pred_fallthru
    _
  // Predicated region
  $region26: #{seq2seq_forward.11} parent=0 // pred_check
    _
  $region27: #{seq2seq_forward.11} parent=0 // pred_check_branch
    %34 = sbr.rel (0) target = $region29
  $region28: #{seq2seq_forward.11} parent=0 // pred_region
    _
  $region29: #{seq2seq_forward.11} parent=0 // pred_fallthru
    _
  // Predicated region
  $region30: #{seq2seq_forward.11} parent=0 // pred_check
    _
  $region31: #{seq2seq_forward.11} parent=0 // pred_check_branch
    %36 = sbr.rel (0) target = $region33
  $region32: #{seq2seq_forward.11} parent=0 // pred_region
    _
  $region33: #{seq2seq_forward.11} parent=0 // pred_fallthru
    _
  // Predicated region
  $region34: #{seq2seq_forward.11} parent=0 // pred_check
    _
  $region35: #{seq2seq_forward.11} parent=0 // pred_check_branch
    %38 = sbr.rel (0) target = $region37
  $region36: #{seq2seq_forward.11} parent=0 // pred_region
    _
  $region37: #{seq2seq_forward.11} parent=0 // pred_fallthru
    _
  // Predicated region
  $region38: #{seq2seq_forward.11} parent=0 // pred_check
    _
  $region39: #{seq2seq_forward.11} parent=0 // pred_check_branch
    %40 = sbr.rel (0) target = $region41
  $region40: #{seq2seq_forward.11} parent=0 // pred_region
    _
  $region41: #{seq2seq_forward.11} parent=0 // pred_fallthru
    _
  // Predicated region
  $region42: #{seq2seq_forward.11} parent=0 // pred_check
    _
  $region43: #{seq2seq_forward.11} parent=0 // pred_check_branch
    %42 = sbr.rel (0) target = $region45
  $region44: #{seq2seq_forward.11} parent=0 // pred_region
    _
  $region45: #{seq2seq_forward.11} parent=0 // pred_fallthru
    _
  // Predicated region
  $region46: #{seq2seq_forward.11} parent=0 // pred_check
    _
  $region47: #{seq2seq_forward.11} parent=0 // pred_check_branch
    %44 = sbr.rel (0) target = $region49
  $region48: #{seq2seq_forward.11} parent=0 // pred_region
    _
  $region49: #{seq2seq_forward.11} parent=0 // pred_fallthru
    _
  // Predicated region
  $region50: #{seq2seq_forward.11} parent=0 // pred_check
    _
  $region51: #{seq2seq_forward.11} parent=0 // pred_check_branch
    %46 = sbr.rel (0) target = $region53
  $region52: #{seq2seq_forward.11} parent=0 // pred_region
    _
  $region53: #{seq2seq_forward.11} parent=0 // pred_fallthru
    _
  // Predicated region
  $region54: #{seq2seq_forward.11} parent=0 // pred_check
    _
  $region55: #{seq2seq_forward.11} parent=0 // pred_check_branch
    %48 = sbr.rel (0) target = $region57
  $region56: #{seq2seq_forward.11} parent=0 // pred_region
    _
  $region57: #{seq2seq_forward.11} parent=0 // pred_fallthru
    _
  // Predicated region
  $region58: #{seq2seq_forward.11} parent=0 // pred_check
    _
  $region59: #{seq2seq_forward.11} parent=0 // pred_check_branch
    %50 = sbr.rel (0) target = $region61
  $region60: #{seq2seq_forward.11} parent=0 // pred_region
    _
  $region61: #{seq2seq_forward.11} parent=0 // pred_fallthru
    _
  // Predicated region
  $region62: #{seq2seq_forward.11} parent=0 // pred_check
    _
  $region63: #{seq2seq_forward.11} parent=0 // pred_check_branch
    %52 = sbr.rel (0) target = $region65
  $region64: #{seq2seq_forward.11} parent=0 // pred_region
    _
  $region65: #{seq2seq_forward.11} parent=0 // pred_fallthru
    _
  %v54 = vld [vmem:[%s1] sm:$0x3]
  %v55 = vld [vmem:[%s1 + $0x2] sm:$0x3]
  %v56 = vld [vmem:[%s1 + $0x4] sm:$0x3]
  %v57 = vld [vmem:[%s1 + $0x6] sm:$0x3]
  %v58 = vld [vmem:[%s1 + $0x8] sm:$0x3]
  %v59 = vld [vmem:[%s1 + $0xa] sm:$0x3]
  %v60 = vld [vmem:[%s1 + $0xc] sm:$0x3]
  %v61 = vld [vmem:[%s1 + $0xe] sm:$0x3]
  %v62 = vld [vmem:[%s2] sm:$0x3]
  %v63 = vld [vmem:[%s2 + $0x2] sm:$0x3]
  %v64 = vld [vmem:[%s2 + $0x4] sm:$0x3]
  %v65 = vld [vmem:[%s2 + $0x6] sm:$0x3]
  %v66 = vld [vmem:[%s2 + $0x8] sm:$0x3]
  %v67 = vld [vmem:[%s2 + $0xa] sm:$0x3]
  %v68 = vld [vmem:[%s2 + $0xc] sm:$0x3]
  %v69 = vld [vmem:[%s2 + $0xe] sm:$0x3]
  %v70 = vld [vmem:[%s4] sm:$0xff]
  %v71 = vld [vmem:[%s4 + $0x8] sm:$0xff]
  %v72 = vld [vmem:[%s4 + $0x10] sm:$0xff]
  %v73 = vld [vmem:[%s4 + $0x18] sm:$0xff]
  %v74 = vpack.c.bf16 %v71, %v70
  %v75 = vpack.c.bf16 %v73, %v72
  %v76 = vld [vmem:[%s5] sm:$0xff]
  %v77 = vld [vmem:[%s5 + $0x8] sm:$0xff]
  %v78 = vld [vmem:[%s5 + $0x10] sm:$0xff]
  %v79 = vld [vmem:[%s5 + $0x18] sm:$0xff]
  %v80 = vpack.c.bf16 %v77, %v76
  %v81 = vpack.c.bf16 %v79, %v78
  %v82 = vld [vmem:[%s6] sm:$0xff]
  %v83 = vld [vmem:[%s6 + $0x8] sm:$0xff]
  %v84 = vld [vmem:[%s6 + $0x10] sm:$0xff]
  %v85 = vld [vmem:[%s6 + $0x18] sm:$0xff]
  %v86 = vpack.c.bf16 %v83, %v82
  %v87 = vpack.c.bf16 %v85, %v84
  %v88 = vld [vmem:[%s9] sm:$0xff]
  %v89 = vld [vmem:[%s9 + $0x8] sm:$0xff]
  %v90 = vld [vmem:[%s9 + $0x10] sm:$0xff]
  %v91 = vld [vmem:[%s9 + $0x18] sm:$0xff]
  %v92 = vpack.c.bf16 %v89, %v88
  %v93 = vpack.c.bf16 %v91, %v90
  %v94 = vld [vmem:[%s10] sm:$0xff]
  %v95 = vld [vmem:[%s10 + $0x8] sm:$0xff]
  %v96 = vld [vmem:[%s10 + $0x10] sm:$0xff]
  %v97 = vld [vmem:[%s10 + $0x18] sm:$0xff]
  %v98 = vpack.c.bf16 %v95, %v94
  %v99 = vpack.c.bf16 %v97, %v96
  %v100 = vld [vmem:[%s7] sm:$0x1]
  %v101 = vld [vmem:[%s8] sm:$0x1]
  %v102 = vld [vmem:[%s11] sm:$0x1]
  %v103 = vld [vmem:[%s12] sm:$0x1]
  %v104 = vld [vmem:[%s13] sm:$0xff]
  %v105 = vld [vmem:[%s13 + $0x8] sm:$0xff]
  %v106 = vld [vmem:[%s13 + $0x10] sm:$0xff]
  %v107 = vld [vmem:[%s13 + $0x18] sm:$0xff]
  %v108 = vpack.c.bf16 %v105, %v104
  %v109 = vpack.c.bf16 %v107, %v106
  %v110 = vld [vmem:[%s14] sm:$0x1]
  %v111 = vld [vmem:[%s15] sm:$0x1]
  %v112 = vld [vmem:[%s3] sm:$0x3]
  %v113 = vpack.c.bf16 %v112, %v112
  %v115 = vlaneseq
  %v116 = vshrl.u32 %v115, 7
  %v117 = vsub.s32 0, %v116
  %v118 = vrot.slane %v110, %v117
  %vm120 = vcmask 261120
  %v122 = vsel %vm120, %v113, 0
  %124 = vmatprep.subr.bf16.mxu0 0
  %125 = vmatpush1.bf16.msra.mxu0 %v108
  %126 = vmatprep.subr.bf16.mxu0 0
  %127 = vmatpush1.bf16.msra.mxu0 %v109
  %128 = vmatprep.subr.bf16.mxu0 0
  %129 = vmatpush1.bf16.msra.mxu0 0
  %130 = vmatprep.subr.bf16.mxu0 0
  %131 = vmatpush1.bf16.msra.mxu0 0
  %132 = vmatprep.subr.bf16.mxu0 0
  %133 = vmatpush1.bf16.msra.mxu0 0
  %134 = vmatprep.subr.bf16.mxu0 0
  %135 = vmatpush1.bf16.msra.mxu0 0
  %136 = vmatprep.subr.bf16.mxu0 0
  %137 = vmatpush1.bf16.msra.mxu0 0
  %138 = vmatprep.subr.bf16.mxu0 0
  %139 = vmatpush1.bf16.msra.mxu0 0
  %140 = vmatprep.subr.bf16.mxu0 0
  %141 = vmatpush1.bf16.msra.mxu0 0
  %142 = vmatprep.subr.bf16.mxu0 0
  %143 = vmatpush1.bf16.msra.mxu0 0
  %144 = vmatprep.subr.bf16.mxu0 0
  %145 = vmatpush1.bf16.msra.mxu0 0
  %146 = vmatprep.subr.bf16.mxu0 0
  %147 = vmatpush1.bf16.msra.mxu0 0
  %148 = vmatprep.subr.bf16.mxu0 0
  %149 = vmatpush1.bf16.msra.mxu0 0
  %150 = vmatprep.subr.bf16.mxu0 0
  %151 = vmatpush1.bf16.msra.mxu0 0
  %152 = vmatprep.subr.bf16.mxu0 0
  %153 = vmatpush1.bf16.msra.mxu0 0
  %154 = vmatprep.subr.bf16.mxu0 0
  %155 = vmatpush1.bf16.msra.mxu0 0
  %156 = vmatprep.mubr.bf16.mxu0 0
  %157 = vmatmul.mubr.bf16.gmra.mrb[0].mxu0 %v122
  %v158 = vpop.f32.mrb[0].mxu0
  %v159 = vadd.f32 %v118, %v158
  %v160 = vpop.f32.mrb[0].mxu0
  %v161 = vpop.f32.mrb[0].mxu0
  %v162 = vpop.f32.mrb[0].mxu0
  %163 = vdwg.mxu0
  %v164 = vadd.f32 %v62, %v159
  %v165 = vadd.f32 %v63, %v159
  %v166 = vadd.f32 %v64, %v159
  %v167 = vadd.f32 %v65, %v159
  %v168 = vadd.f32 %v66, %v159
  %v169 = vadd.f32 %v67, %v159
  %v170 = vadd.f32 %v68, %v159
  %v171 = vadd.f32 %v69, %v159
  %v173 = vlaneseq
  %v174 = vshrl.u32 %v173, 7
  %v175 = vsub.s32 0, %v174
  %v176 = vrot.slane %v111, %v175
  %v178 = vmul.f32 %v164, %v176
  %v179 = vmul.f32 %v165, %v176
  %v180 = vmul.f32 %v166, %v176
  %v181 = vmul.f32 %v167, %v176
  %v182 = vmul.f32 %v168, %v176
  %v183 = vmul.f32 %v169, %v176
  %v184 = vmul.f32 %v170, %v176
  %v185 = vmul.f32 %v171, %v176
  %vm186 = vcmask 254976
  %v187 = vsel %vm186, %v178, 0.0
  %188 = vadd.xlane.f32.xlu0 %v187
  %v189 = vpop.xlane.xlu0 %188
  %v190 = vsel %vm186, %v179, 0.0
  %191 = vadd.xlane.f32.xlu0 %v190
  %v192 = vpop.xlane.xlu0 %191
  %v193 = vsel %vm186, %v180, 0.0
  %194 = vadd.xlane.f32.xlu0 %v193
  %v195 = vpop.xlane.xlu0 %194
  %v196 = vsel %vm186, %v181, 0.0
  %197 = vadd.xlane.f32.xlu0 %v196
  %v198 = vpop.xlane.xlu0 %197
  %v199 = vsel %vm186, %v182, 0.0
  %200 = vadd.xlane.f32.xlu0 %v199
  %v201 = vpop.xlane.xlu0 %200
  %v202 = vsel %vm186, %v183, 0.0
  %203 = vadd.xlane.f32.xlu0 %v202
  %v204 = vpop.xlane.xlu0 %203
  %v205 = vsel %vm186, %v184, 0.0
  %206 = vadd.xlane.f32.xlu0 %v205
  %v207 = vpop.xlane.xlu0 %206
  %v208 = vsel %vm186, %v185, 0.0
  %209 = vadd.xlane.f32.xlu0 %v208
  %v210 = vpop.xlane.xlu0 %209
  %vm211 = vcmask 1041408
  %v212 = vsel %vm211, %v189, -inf
  %v213 = vsel %vm211, %v192, -inf
  %v214 = vsel %vm211, %v195, -inf
  %v215 = vsel %vm211, %v198, -inf
  %v216 = vsel %vm211, %v201, -inf
  %v217 = vmax.f32 %v212, %v216
  %v218 = vsel %vm211, %v204, -inf
  %v219 = vmax.f32 %v213, %v218
  %v220 = vsel %vm211, %v207, -inf
  %v221 = vmax.f32 %v214, %v220
  %v222 = vsel %vm211, %v210, -inf
  %v223 = vmax.f32 %v215, %v222
  %v224 = vmax.f32 %v217, %v219
  %v225 = vmax.f32 %v221, %v223
  %v226 = vmax.f32 %v224, %v225
  %v227 = vsub.f32 %v189, %v226
  %v228 = vsub.f32 %v192, %v226
  %v229 = vsub.f32 %v195, %v226
  %v230 = vsub.f32 %v198, %v226
  %v231 = vsub.f32 %v201, %v226
  %v232 = vsub.f32 %v204, %v226
  %v233 = vsub.f32 %v207, %v226
  %v234 = vsub.f32 %v210, %v226
  %v235 = vmul.f32 %v227, 1.442695
  %v236 = vpow.pop %v235
  %v237 = vmul.f32 %v228, 1.442695
  %v238 = vpow.pop %v237
  %v239 = vmul.f32 %v229, 1.442695
  %v240 = vpow.pop %v239
  %v241 = vmul.f32 %v230, 1.442695
  %v242 = vpow.pop %v241
  %v243 = vmul.f32 %v231, 1.442695
  %v244 = vpow.pop %v243
  %v245 = vmul.f32 %v232, 1.442695
  %v246 = vpow.pop %v245
  %v247 = vmul.f32 %v233, 1.442695
  %v248 = vpow.pop %v247
  %v249 = vmul.f32 %v234, 1.442695
  %v250 = vpow.pop %v249
  %v251 = vsel %vm211, %v236, 0.0
  %v252 = vsel %vm211, %v238, 0.0
  %v253 = vadd.f32 %v251, %v252
  %v254 = vsel %vm211, %v240, 0.0
  %v255 = vadd.f32 %v253, %v254
  %v256 = vsel %vm211, %v242, 0.0
  %v257 = vadd.f32 %v255, %v256
  %v258 = vsel %vm211, %v244, 0.0
  %v259 = vadd.f32 %v257, %v258
  %v260 = vsel %vm211, %v246, 0.0
  %v261 = vadd.f32 %v259, %v260
  %v262 = vsel %vm211, %v248, 0.0
  %v263 = vadd.f32 %v261, %v262
  %v264 = vsel %vm211, %v250, 0.0
  %v265 = vadd.f32 %v263, %v264
  %v266 = vrcp.pop %v265
  %v267 = vmul.f32 %v236, %v266
  %v268 = vmul.f32 %v238, %v266
  %v269 = vmul.f32 %v240, %v266
  %v270 = vmul.f32 %v242, %v266
  %v271 = vmul.f32 %v244, %v266
  %v272 = vmul.f32 %v246, %v266
  %v273 = vmul.f32 %v248, %v266
  %v274 = vmul.f32 %v250, %v266
  %v275 = vmul.f32 %v267, %v54
  %v276 = vmul.f32 %v268, %v55
  %v277 = vmul.f32 %v269, %v56
  %v278 = vmul.f32 %v270, %v57
  %v279 = vmul.f32 %v271, %v58
  %v280 = vmul.f32 %v272, %v59
  %v281 = vmul.f32 %v273, %v60
  %v282 = vmul.f32 %v274, %v61
  %v283 = vsel %vm186, %v275, 0.0
  %v284 = vsel %vm186, %v276, 0.0
  %v285 = vadd.f32 %v283, %v284
  %v286 = vsel %vm186, %v277, 0.0
  %v287 = vadd.f32 %v285, %v286
  %v288 = vsel %vm186, %v278, 0.0
  %v289 = vadd.f32 %v287, %v288
  %v290 = vsel %vm186, %v279, 0.0
  %v291 = vadd.f32 %v289, %v290
  %v292 = vsel %vm186, %v280, 0.0
  %v293 = vadd.f32 %v291, %v292
  %v294 = vsel %vm186, %v281, 0.0
  %v295 = vadd.f32 %v293, %v294
  %v296 = vsel %vm186, %v282, 0.0
  %v297 = vadd.f32 %v295, %v296
  %v298 = vld [vmem:[%s0] sm:$0x3]
  %v299 = vpack.c.bf16 %v298, %v298
  %v300 = vpack.c.bf16 %v297, %v297
  %v302 = vsel %vm120, %v300, 0
  %304 = vmatprep.subr.bf16.mxu0 0
  %305 = vmatpush1.bf16.msra.mxu0 %v80
  %306 = vmatprep.subr.bf16.mxu0 0
  %307 = vmatpush1.bf16.msra.mxu0 %v81
  %308 = vmatprep.subr.bf16.mxu0 0
  %309 = vmatpush1.bf16.msra.mxu0 0
  %310 = vmatprep.subr.bf16.mxu0 0
  %311 = vmatpush1.bf16.msra.mxu0 0
  %312 = vmatprep.subr.bf16.mxu0 0
  %313 = vmatpush1.bf16.msra.mxu0 0
  %314 = vmatprep.subr.bf16.mxu0 0
  %315 = vmatpush1.bf16.msra.mxu0 0
  %316 = vmatprep.subr.bf16.mxu0 0
  %317 = vmatpush1.bf16.msra.mxu0 0
  %318 = vmatprep.subr.bf16.mxu0 0
  %319 = vmatpush1.bf16.msra.mxu0 0
  %320 = vmatprep.subr.bf16.mxu0 0
  %321 = vmatpush1.bf16.msra.mxu0 0
  %322 = vmatprep.subr.bf16.mxu0 0
  %323 = vmatpush1.bf16.msra.mxu0 0
  %324 = vmatprep.subr.bf16.mxu0 0
  %325 = vmatpush1.bf16.msra.mxu0 0
  %326 = vmatprep.subr.bf16.mxu0 0
  %327 = vmatpush1.bf16.msra.mxu0 0
  %328 = vmatprep.subr.bf16.mxu0 0
  %329 = vmatpush1.bf16.msra.mxu0 0
  %330 = vmatprep.subr.bf16.mxu0 0
  %331 = vmatpush1.bf16.msra.mxu0 0
  %332 = vmatprep.subr.bf16.mxu0 0
  %333 = vmatpush1.bf16.msra.mxu0 0
  %334 = vmatprep.subr.bf16.mxu0 0
  %335 = vmatpush1.bf16.msra.mxu0 0
  %336 = vmatprep.mubr.bf16.mxu0 0
  %337 = vmatmul.mubr.bf16.gmra.mrb[0].mxu0 %v302
  %v338 = vpop.f32.mrb[0].mxu0
  %v339 = vadd.f32 0.0, %v338
  %v340 = vpop.f32.mrb[0].mxu0
  %v341 = vpop.f32.mrb[0].mxu0
  %v342 = vpop.f32.mrb[0].mxu0
  %343 = vdwg.mxu0
  %v345 = vsel %vm120, %v299, 0
  %347 = vmatprep.subr.bf16.mxu0 0
  %348 = vmatpush1.bf16.msra.mxu0 %v74
  %349 = vmatprep.subr.bf16.mxu0 0
  %350 = vmatpush1.bf16.msra.mxu0 %v75
  %351 = vmatprep.subr.bf16.mxu0 0
  %352 = vmatpush1.bf16.msra.mxu0 0
  %353 = vmatprep.subr.bf16.mxu0 0
  %354 = vmatpush1.bf16.msra.mxu0 0
  %355 = vmatprep.subr.bf16.mxu0 0
  %356 = vmatpush1.bf16.msra.mxu0 0
  %357 = vmatprep.subr.bf16.mxu0 0
  %358 = vmatpush1.bf16.msra.mxu0 0
  %359 = vmatprep.subr.bf16.mxu0 0
  %360 = vmatpush1.bf16.msra.mxu0 0
  %361 = vmatprep.subr.bf16.mxu0 0
  %362 = vmatpush1.bf16.msra.mxu0 0
  %363 = vmatprep.subr.bf16.mxu0 0
  %364 = vmatpush1.bf16.msra.mxu0 0
  %365 = vmatprep.subr.bf16.mxu0 0
  %366 = vmatpush1.bf16.msra.mxu0 0
  %367 = vmatprep.subr.bf16.mxu0 0
  %368 = vmatpush1.bf16.msra.mxu0 0
  %369 = vmatprep.subr.bf16.mxu0 0
  %370 = vmatpush1.bf16.msra.mxu0 0
  %371 = vmatprep.subr.bf16.mxu0 0
  %372 = vmatpush1.bf16.msra.mxu0 0
  %373 = vmatprep.subr.bf16.mxu0 0
  %374 = vmatpush1.bf16.msra.mxu0 0
  %375 = vmatprep.subr.bf16.mxu0 0
  %376 = vmatpush1.bf16.msra.mxu0 0
  %377 = vmatprep.subr.bf16.mxu0 0
  %378 = vmatpush1.bf16.msra.mxu0 0
  %379 = vmatprep.mubr.bf16.mxu0 0
  %380 = vmatmul.mubr.bf16.gmra.mrb[0].mxu0 %v345
  %v381 = vpop.f32.mrb[0].mxu0
  %v382 = vadd.f32 %v339, %v381
  %v383 = vpop.f32.mrb[0].mxu0
  %v384 = vpop.f32.mrb[0].mxu0
  %v385 = vpop.f32.mrb[0].mxu0
  %386 = vdwg.mxu0
  %v388 = vlaneseq
  %v389 = vshrl.u32 %v388, 7
  %v390 = vsub.s32 0, %v389
  %v391 = vrot.slane %v100, %v390
  %v393 = vadd.f32 %v382, %v391
  %v395 = vlaneseq
  %v396 = vshrl.u32 %v395, 7
  %v397 = vsub.s32 0, %v396
  %v398 = vrot.slane %v101, %v397
  %400 = vmatprep.subr.bf16.mxu0 0
  %401 = vmatpush1.bf16.msra.mxu0 %v86
  %402 = vmatprep.subr.bf16.mxu0 0
  %403 = vmatpush1.bf16.msra.mxu0 %v87
  %404 = vmatprep.subr.bf16.mxu0 0
  %405 = vmatpush1.bf16.msra.mxu0 0
  %406 = vmatprep.subr.bf16.mxu0 0
  %407 = vmatpush1.bf16.msra.mxu0 0
  %408 = vmatprep.subr.bf16.mxu0 0
  %409 = vmatpush1.bf16.msra.mxu0 0
  %410 = vmatprep.subr.bf16.mxu0 0
  %411 = vmatpush1.bf16.msra.mxu0 0
  %412 = vmatprep.subr.bf16.mxu0 0
  %413 = vmatpush1.bf16.msra.mxu0 0
  %414 = vmatprep.subr.bf16.mxu0 0
  %415 = vmatpush1.bf16.msra.mxu0 0
  %416 = vmatprep.subr.bf16.mxu0 0
  %417 = vmatpush1.bf16.msra.mxu0 0
  %418 = vmatprep.subr.bf16.mxu0 0
  %419 = vmatpush1.bf16.msra.mxu0 0
  %420 = vmatprep.subr.bf16.mxu0 0
  %421 = vmatpush1.bf16.msra.mxu0 0
  %422 = vmatprep.subr.bf16.mxu0 0
  %423 = vmatpush1.bf16.msra.mxu0 0
  %424 = vmatprep.subr.bf16.mxu0 0
  %425 = vmatpush1.bf16.msra.mxu0 0
  %426 = vmatprep.subr.bf16.mxu0 0
  %427 = vmatpush1.bf16.msra.mxu0 0
  %428 = vmatprep.subr.bf16.mxu0 0
  %429 = vmatpush1.bf16.msra.mxu0 0
  %430 = vmatprep.subr.bf16.mxu0 0
  %431 = vmatpush1.bf16.msra.mxu0 0
  %432 = vmatprep.mubr.bf16.mxu0 0
  %433 = vmatmul.mubr.bf16.gmra.mrb[0].mxu0 %v122
  %v434 = vpop.f32.mrb[0].mxu0
  %v435 = vadd.f32 %v398, %v434
  %v436 = vpop.f32.mrb[0].mxu0
  %v437 = vpop.f32.mrb[0].mxu0
  %v438 = vpop.f32.mrb[0].mxu0
  %439 = vdwg.mxu0
  %v440 = vadd.f32 %v393, %v435
  %v441 = vxor.u32 %v440, 2147483648
  %v442 = vmul.f32 %v441, 1.442695
  %v443 = vpow.pop %v442
  %v444 = vadd.f32 %v443, 1.0
  %v445 = vrcp.pop %v444
  %v446 = vmul.f32 1.0, %v445
  %448 = vrot.lane.b32.xlu0 %v435, 64
  %v449 = vpop.permute.xlu0 %448
  %v451 = vmul.f32 %v446, %v449
  %453 = vrot.lane.b32.xlu0 %v451, 64
  %v454 = vpop.permute.xlu0 %453
  %v456 = vadd.f32 %v393, %v454
  %v457 = vtanh.pop %v456
  %v458 = vsub.f32 1.0, %v446
  %460 = vrot.lane.b32.xlu0 %v457, 96
  %v461 = vpop.permute.xlu0 %460
  %v463 = vmul.f32 %v458, %v461
  %465 = vrot.lane.b32.xlu0 %v112, 32
  %v466 = vpop.permute.xlu0 %465
  %v468 = vmul.f32 %v446, %v466
  %v469 = vadd.f32 %v463, %v468
  %v470 = vpack.c.bf16 %v469, %v469
  %v472 = vlaneseq
  %v473 = vshrl.u32 %v472, 7
  %v474 = vsub.s32 0, %v473
  %v475 = vrot.slane %v102, %v474
  %478 = vrot.lane.b32.xlu0 %v470, 96
  %v479 = vpop.permute.xlu0 %478
  %v481 = vsel %vm120, %v479, 0
  %483 = vmatprep.subr.bf16.mxu0 0
  %484 = vmatpush1.bf16.msra.mxu0 %v92
  %485 = vmatprep.subr.bf16.mxu0 0
  %486 = vmatpush1.bf16.msra.mxu0 %v93
  %487 = vmatprep.subr.bf16.mxu0 0
  %488 = vmatpush1.bf16.msra.mxu0 0
  %489 = vmatprep.subr.bf16.mxu0 0
  %490 = vmatpush1.bf16.msra.mxu0 0
  %491 = vmatprep.subr.bf16.mxu0 0
  %492 = vmatpush1.bf16.msra.mxu0 0
  %493 = vmatprep.subr.bf16.mxu0 0
  %494 = vmatpush1.bf16.msra.mxu0 0
  %495 = vmatprep.subr.bf16.mxu0 0
  %496 = vmatpush1.bf16.msra.mxu0 0
  %497 = vmatprep.subr.bf16.mxu0 0
  %498 = vmatpush1.bf16.msra.mxu0 0
  %499 = vmatprep.subr.bf16.mxu0 0
  %500 = vmatpush1.bf16.msra.mxu0 0
  %501 = vmatprep.subr.bf16.mxu0 0
  %502 = vmatpush1.bf16.msra.mxu0 0
  %503 = vmatprep.subr.bf16.mxu0 0
  %504 = vmatpush1.bf16.msra.mxu0 0
  %505 = vmatprep.subr.bf16.mxu0 0
  %506 = vmatpush1.bf16.msra.mxu0 0
  %507 = vmatprep.subr.bf16.mxu0 0
  %508 = vmatpush1.bf16.msra.mxu0 0
  %509 = vmatprep.subr.bf16.mxu0 0
  %510 = vmatpush1.bf16.msra.mxu0 0
  %511 = vmatprep.subr.bf16.mxu0 0
  %512 = vmatpush1.bf16.msra.mxu0 0
  %513 = vmatprep.subr.bf16.mxu0 0
  %514 = vmatpush1.bf16.msra.mxu0 0
  %515 = vmatprep.mubr.bf16.mxu0 0
  %516 = vmatmul.mubr.bf16.gmra.mrb[0].mxu0 %v481
  %v517 = vpop.f32.mrb[0].mxu0
  %v518 = vadd.f32 %v475, %v517
  %v519 = vpop.f32.mrb[0].mxu0
  %v520 = vpop.f32.mrb[0].mxu0
  %v521 = vpop.f32.mrb[0].mxu0
  %522 = vdwg.mxu0
  %v524 = vlaneseq
  %v525 = vshrl.u32 %v524, 7
  %v526 = vsub.s32 0, %v525
  %v527 = vrot.slane %v103, %v526
  %529 = vmatprep.subr.bf16.mxu0 0
  %530 = vmatpush1.bf16.msra.mxu0 %v98
  %531 = vmatprep.subr.bf16.mxu0 0
  %532 = vmatpush1.bf16.msra.mxu0 %v99
  %533 = vmatprep.subr.bf16.mxu0 0
  %534 = vmatpush1.bf16.msra.mxu0 0
  %535 = vmatprep.subr.bf16.mxu0 0
  %536 = vmatpush1.bf16.msra.mxu0 0
  %537 = vmatprep.subr.bf16.mxu0 0
  %538 = vmatpush1.bf16.msra.mxu0 0
  %539 = vmatprep.subr.bf16.mxu0 0
  %540 = vmatpush1.bf16.msra.mxu0 0
  %541 = vmatprep.subr.bf16.mxu0 0
  %542 = vmatpush1.bf16.msra.mxu0 0
  %543 = vmatprep.subr.bf16.mxu0 0
  %544 = vmatpush1.bf16.msra.mxu0 0
  %545 = vmatprep.subr.bf16.mxu0 0
  %546 = vmatpush1.bf16.msra.mxu0 0
  %547 = vmatprep.subr.bf16.mxu0 0
  %548 = vmatpush1.bf16.msra.mxu0 0
  %549 = vmatprep.subr.bf16.mxu0 0
  %550 = vmatpush1.bf16.msra.mxu0 0
  %551 = vmatprep.subr.bf16.mxu0 0
  %552 = vmatpush1.bf16.msra.mxu0 0
  %553 = vmatprep.subr.bf16.mxu0 0
  %554 = vmatpush1.bf16.msra.mxu0 0
  %555 = vmatprep.subr.bf16.mxu0 0
  %556 = vmatpush1.bf16.msra.mxu0 0
  %557 = vmatprep.subr.bf16.mxu0 0
  %558 = vmatpush1.bf16.msra.mxu0 0
  %559 = vmatprep.subr.bf16.mxu0 0
  %560 = vmatpush1.bf16.msra.mxu0 0
  %561 = vmatprep.mubr.bf16.mxu0 0
  %562 = vmatmul.mubr.bf16.gmra.mrb[0].mxu0 %v122
  %v563 = vpop.f32.mrb[0].mxu0
  %v564 = vadd.f32 %v527, %v563
  %v565 = vpop.f32.mrb[0].mxu0
  %v566 = vpop.f32.mrb[0].mxu0
  %v567 = vpop.f32.mrb[0].mxu0
  %568 = vdwg.mxu0
  %v569 = vadd.f32 %v518, %v564
  %v570 = vxor.u32 %v569, 2147483648
  %v571 = vmul.f32 %v570, 1.442695
  %v572 = vpow.pop %v571
  %v573 = vadd.f32 %v572, 1.0
  %v574 = vrcp.pop %v573
  %v575 = vmul.f32 1.0, %v574
  %577 = vrot.lane.b32.xlu0 %v564, 64
  %v578 = vpop.permute.xlu0 %577
  %v580 = vmul.f32 %v575, %v578
  %582 = vrot.lane.b32.xlu0 %v580, 64
  %v583 = vpop.permute.xlu0 %582
  %v585 = vadd.f32 %v518, %v583
  %v586 = vtanh.pop %v585
  %v587 = vsub.f32 1.0, %v575
  %589 = vrot.lane.b32.xlu0 %v586, 96
  %v590 = vpop.permute.xlu0 %589
  %v592 = vmul.f32 %v587, %v590
  %v593 = vmul.f32 %v575, %v466
  %v594 = vadd.f32 %v592, %v593
  %596 = vrot.lane.b32.xlu0 %v594, 96
  %v597 = vpop.permute.xlu0 %596
  %599 = vst.msk [vmem:[%s16] sm:$0x3] %vm186, %v597
  %v600 = vpack.c.bf16 %v594, %v594
  %602 = vrot.lane.b32.xlu0 %v600, 96
  %v603 = vpop.permute.xlu0 %602
  %v605 = vsel %vm120, %v603, 0
  %607 = vmatprep.subr.bf16.mxu0 0
  %608 = vmatpush1.bf16.msra.mxu0 %v108
  %609 = vmatprep.subr.bf16.mxu0 0
  %610 = vmatpush1.bf16.msra.mxu0 %v109
  %611 = vmatprep.subr.bf16.mxu0 0
  %612 = vmatpush1.bf16.msra.mxu0 0
  %613 = vmatprep.subr.bf16.mxu0 0
  %614 = vmatpush1.bf16.msra.mxu0 0
  %615 = vmatprep.subr.bf16.mxu0 0
  %616 = vmatpush1.bf16.msra.mxu0 0
  %617 = vmatprep.subr.bf16.mxu0 0
  %618 = vmatpush1.bf16.msra.mxu0 0
  %619 = vmatprep.subr.bf16.mxu0 0
  %620 = vmatpush1.bf16.msra.mxu0 0
  %621 = vmatprep.subr.bf16.mxu0 0
  %622 = vmatpush1.bf16.msra.mxu0 0
  %623 = vmatprep.subr.bf16.mxu0 0
  %624 = vmatpush1.bf16.msra.mxu0 0
  %625 = vmatprep.subr.bf16.mxu0 0
  %626 = vmatpush1.bf16.msra.mxu0 0
  %627 = vmatprep.subr.bf16.mxu0 0
  %628 = vmatpush1.bf16.msra.mxu0 0
  %629 = vmatprep.subr.bf16.mxu0 0
  %630 = vmatpush1.bf16.msra.mxu0 0
  %631 = vmatprep.subr.bf16.mxu0 0
  %632 = vmatpush1.bf16.msra.mxu0 0
  %633 = vmatprep.subr.bf16.mxu0 0
  %634 = vmatpush1.bf16.msra.mxu0 0
  %635 = vmatprep.subr.bf16.mxu0 0
  %636 = vmatpush1.bf16.msra.mxu0 0
  %637 = vmatprep.subr.bf16.mxu0 0
  %638 = vmatpush1.bf16.msra.mxu0 0
  %639 = vmatprep.mubr.bf16.mxu0 0
  %640 = vmatmul.mubr.bf16.gmra.mrb[0].mxu0 %v605
  %v641 = vpop.f32.mrb[0].mxu0
  %v642 = vadd.f32 %v118, %v641
  %v643 = vpop.f32.mrb[0].mxu0
  %v644 = vpop.f32.mrb[0].mxu0
  %v645 = vpop.f32.mrb[0].mxu0
  %646 = vdwg.mxu0
  %v647 = vadd.f32 %v62, %v642
  %v648 = vadd.f32 %v63, %v642
  %v649 = vadd.f32 %v64, %v642
  %v650 = vadd.f32 %v65, %v642
  %v651 = vadd.f32 %v66, %v642
  %v652 = vadd.f32 %v67, %v642
  %v653 = vadd.f32 %v68, %v642
  %v654 = vadd.f32 %v69, %v642
  %v655 = vmul.f32 %v647, %v176
  %v656 = vmul.f32 %v648, %v176
  %v657 = vmul.f32 %v649, %v176
  %v658 = vmul.f32 %v650, %v176
  %v659 = vmul.f32 %v651, %v176
  %v660 = vmul.f32 %v652, %v176
  %v661 = vmul.f32 %v653, %v176
  %v662 = vmul.f32 %v654, %v176
  %v663 = vsel %vm186, %v655, 0.0
  %664 = vadd.xlane.f32.xlu0 %v663
  %v665 = vpop.xlane.xlu0 %664
  %v666 = vsel %vm186, %v656, 0.0
  %667 = vadd.xlane.f32.xlu0 %v666
  %v668 = vpop.xlane.xlu0 %667
  %v669 = vsel %vm186, %v657, 0.0
  %670 = vadd.xlane.f32.xlu0 %v669
  %v671 = vpop.xlane.xlu0 %670
  %v672 = vsel %vm186, %v658, 0.0
  %673 = vadd.xlane.f32.xlu0 %v672
  %v674 = vpop.xlane.xlu0 %673
  %v675 = vsel %vm186, %v659, 0.0
  %676 = vadd.xlane.f32.xlu0 %v675
  %v677 = vpop.xlane.xlu0 %676
  %v678 = vsel %vm186, %v660, 0.0
  %679 = vadd.xlane.f32.xlu0 %v678
  %v680 = vpop.xlane.xlu0 %679
  %v681 = vsel %vm186, %v661, 0.0
  %682 = vadd.xlane.f32.xlu0 %v681
  %v683 = vpop.xlane.xlu0 %682
  %v684 = vsel %vm186, %v662, 0.0
  %685 = vadd.xlane.f32.xlu0 %v684
  %v686 = vpop.xlane.xlu0 %685
  %v687 = vsel %vm211, %v665, -inf
  %v688 = vsel %vm211, %v668, -inf
  %v689 = vsel %vm211, %v671, -inf
  %v690 = vsel %vm211, %v674, -inf
  %v691 = vsel %vm211, %v677, -inf
  %v692 = vmax.f32 %v687, %v691
  %v693 = vsel %vm211, %v680, -inf
  %v694 = vmax.f32 %v688, %v693
  %v695 = vsel %vm211, %v683, -inf
  %v696 = vmax.f32 %v689, %v695
  %v697 = vsel %vm211, %v686, -inf
  %v698 = vmax.f32 %v690, %v697
  %v699 = vmax.f32 %v692, %v694
  %v700 = vmax.f32 %v696, %v698
  %v701 = vmax.f32 %v699, %v700
  %v702 = vsub.f32 %v665, %v701
  %v703 = vsub.f32 %v668, %v701
  %v704 = vsub.f32 %v671, %v701
  %v705 = vsub.f32 %v674, %v701
  %v706 = vsub.f32 %v677, %v701
  %v707 = vsub.f32 %v680, %v701
  %v708 = vsub.f32 %v683, %v701
  %v709 = vsub.f32 %v686, %v701
  %v710 = vmul.f32 %v702, 1.442695
  %v711 = vpow.pop %v710
  %v712 = vmul.f32 %v703, 1.442695
  %v713 = vpow.pop %v712
  %v714 = vmul.f32 %v704, 1.442695
  %v715 = vpow.pop %v714
  %v716 = vmul.f32 %v705, 1.442695
  %v717 = vpow.pop %v716
  %v718 = vmul.f32 %v706, 1.442695
  %v719 = vpow.pop %v718
  %v720 = vmul.f32 %v707, 1.442695
  %v721 = vpow.pop %v720
  %v722 = vmul.f32 %v708, 1.442695
  %v723 = vpow.pop %v722
  %v724 = vmul.f32 %v709, 1.442695
  %v725 = vpow.pop %v724
  %v726 = vsel %vm211, %v711, 0.0
  %v727 = vsel %vm211, %v713, 0.0
  %v728 = vadd.f32 %v726, %v727
  %v729 = vsel %vm211, %v715, 0.0
  %v730 = vadd.f32 %v728, %v729
  %v731 = vsel %vm211, %v717, 0.0
  %v732 = vadd.f32 %v730, %v731
  %v733 = vsel %vm211, %v719, 0.0
  %v734 = vadd.f32 %v732, %v733
  %v735 = vsel %vm211, %v721, 0.0
  %v736 = vadd.f32 %v734, %v735
  %v737 = vsel %vm211, %v723, 0.0
  %v738 = vadd.f32 %v736, %v737
  %v739 = vsel %vm211, %v725, 0.0
  %v740 = vadd.f32 %v738, %v739
  %v741 = vrcp.pop %v740
  %v742 = vmul.f32 %v711, %v741
  %v743 = vmul.f32 %v713, %v741
  %v744 = vmul.f32 %v715, %v741
  %v745 = vmul.f32 %v717, %v741
  %v746 = vmul.f32 %v719, %v741
  %v747 = vmul.f32 %v721, %v741
  %v748 = vmul.f32 %v723, %v741
  %v749 = vmul.f32 %v725, %v741
  %v750 = vmul.f32 %v742, %v54
  %v751 = vmul.f32 %v743, %v55
  %v752 = vmul.f32 %v744, %v56
  %v753 = vmul.f32 %v745, %v57
  %v754 = vmul.f32 %v746, %v58
  %v755 = vmul.f32 %v747, %v59
  %v756 = vmul.f32 %v748, %v60
  %v757 = vmul.f32 %v749, %v61
  %v758 = vsel %vm186, %v750, 0.0
  %v759 = vsel %vm186, %v751, 0.0
  %v760 = vadd.f32 %v758, %v759
  %v761 = vsel %vm186, %v752, 0.0
  %v762 = vadd.f32 %v760, %v761
  %v763 = vsel %vm186, %v753, 0.0
  %v764 = vadd.f32 %v762, %v763
  %v765 = vsel %vm186, %v754, 0.0
  %v766 = vadd.f32 %v764, %v765
  %v767 = vsel %vm186, %v755, 0.0
  %v768 = vadd.f32 %v766, %v767
  %v769 = vsel %vm186, %v756, 0.0
  %v770 = vadd.f32 %v768, %v769
  %v771 = vsel %vm186, %v757, 0.0
  %v772 = vadd.f32 %v770, %v771
  %s773 = scalar_lea.vmem %s0, 2
  %v774 = vld [vmem:[%s773] sm:$0x3]
  %v775 = vpack.c.bf16 %v774, %v774
  %v776 = vpack.c.bf16 %v772, %v772
  %v778 = vsel %vm120, %v776, 0
  %780 = vmatprep.subr.bf16.mxu0 0
  %781 = vmatpush1.bf16.msra.mxu0 %v80
  %782 = vmatprep.subr.bf16.mxu0 0
  %783 = vmatpush1.bf16.msra.mxu0 %v81
  %784 = vmatprep.subr.bf16.mxu0 0
  %785 = vmatpush1.bf16.msra.mxu0 0
  %786 = vmatprep.subr.bf16.mxu0 0
  %787 = vmatpush1.bf16.msra.mxu0 0
  %788 = vmatprep.subr.bf16.mxu0 0
  %789 = vmatpush1.bf16.msra.mxu0 0
  %790 = vmatprep.subr.bf16.mxu0 0
  %791 = vmatpush1.bf16.msra.mxu0 0
  %792 = vmatprep.subr.bf16.mxu0 0
  %793 = vmatpush1.bf16.msra.mxu0 0
  %794 = vmatprep.subr.bf16.mxu0 0
  %795 = vmatpush1.bf16.msra.mxu0 0
  %796 = vmatprep.subr.bf16.mxu0 0
  %797 = vmatpush1.bf16.msra.mxu0 0
  %798 = vmatprep.subr.bf16.mxu0 0
  %799 = vmatpush1.bf16.msra.mxu0 0
  %800 = vmatprep.subr.bf16.mxu0 0
  %801 = vmatpush1.bf16.msra.mxu0 0
  %802 = vmatprep.subr.bf16.mxu0 0
  %803 = vmatpush1.bf16.msra.mxu0 0
  %804 = vmatprep.subr.bf16.mxu0 0
  %805 = vmatpush1.bf16.msra.mxu0 0
  %806 = vmatprep.subr.bf16.mxu0 0
  %807 = vmatpush1.bf16.msra.mxu0 0
  %808 = vmatprep.subr.bf16.mxu0 0
  %809 = vmatpush1.bf16.msra.mxu0 0
  %810 = vmatprep.subr.bf16.mxu0 0
  %811 = vmatpush1.bf16.msra.mxu0 0
  %812 = vmatprep.mubr.bf16.mxu0 0
  %813 = vmatmul.mubr.bf16.gmra.mrb[0].mxu0 %v778
  %v814 = vpop.f32.mrb[0].mxu0
  %v815 = vadd.f32 0.0, %v814
  %v816 = vpop.f32.mrb[0].mxu0
  %v817 = vpop.f32.mrb[0].mxu0
  %v818 = vpop.f32.mrb[0].mxu0
  %819 = vdwg.mxu0
  %v821 = vsel %vm120, %v775, 0
  %823 = vmatprep.subr.bf16.mxu0 0
  %824 = vmatpush1.bf16.msra.mxu0 %v74
  %825 = vmatprep.subr.bf16.mxu0 0
  %826 = vmatpush1.bf16.msra.mxu0 %v75
  %827 = vmatprep.subr.bf16.mxu0 0
  %828 = vmatpush1.bf16.msra.mxu0 0
  %829 = vmatprep.subr.bf16.mxu0 0
  %830 = vmatpush1.bf16.msra.mxu0 0
  %831 = vmatprep.subr.bf16.mxu0 0
  %832 = vmatpush1.bf16.msra.mxu0 0
  %833 = vmatprep.subr.bf16.mxu0 0
  %834 = vmatpush1.bf16.msra.mxu0 0
  %835 = vmatprep.subr.bf16.mxu0 0
  %836 = vmatpush1.bf16.msra.mxu0 0
  %837 = vmatprep.subr.bf16.mxu0 0
  %838 = vmatpush1.bf16.msra.mxu0 0
  %839 = vmatprep.subr.bf16.mxu0 0
  %840 = vmatpush1.bf16.msra.mxu0 0
  %841 = vmatprep.subr.bf16.mxu0 0
  %842 = vmatpush1.bf16.msra.mxu0 0
  %843 = vmatprep.subr.bf16.mxu0 0
  %844 = vmatpush1.bf16.msra.mxu0 0
  %845 = vmatprep.subr.bf16.mxu0 0
  %846 = vmatpush1.bf16.msra.mxu0 0
  %847 = vmatprep.subr.bf16.mxu0 0
  %848 = vmatpush1.bf16.msra.mxu0 0
  %849 = vmatprep.subr.bf16.mxu0 0
  %850 = vmatpush1.bf16.msra.mxu0 0
  %851 = vmatprep.subr.bf16.mxu0 0
  %852 = vmatpush1.bf16.msra.mxu0 0
  %853 = vmatprep.subr.bf16.mxu0 0
  %854 = vmatpush1.bf16.msra.mxu0 0
  %855 = vmatprep.mubr.bf16.mxu0 0
  %856 = vmatmul.mubr.bf16.gmra.mrb[0].mxu0 %v821
  %v857 = vpop.f32.mrb[0].mxu0
  %v858 = vadd.f32 %v815, %v857
  %v859 = vpop.f32.mrb[0].mxu0
  %v860 = vpop.f32.mrb[0].mxu0
  %v861 = vpop.f32.mrb[0].mxu0
  %862 = vdwg.mxu0
  %v863 = vadd.f32 %v858, %v391
  %864 = vmatprep.subr.bf16.mxu0 0
  %865 = vmatpush1.bf16.msra.mxu0 %v86
  %866 = vmatprep.subr.bf16.mxu0 0
  %867 = vmatpush1.bf16.msra.mxu0 %v87
  %868 = vmatprep.subr.bf16.mxu0 0
  %869 = vmatpush1.bf16.msra.mxu0 0
  %870 = vmatprep.subr.bf16.mxu0 0
  %871 = vmatpush1.bf16.msra.mxu0 0
  %872 = vmatprep.subr.bf16.mxu0 0
  %873 = vmatpush1.bf16.msra.mxu0 0
  %874 = vmatprep.subr.bf16.mxu0 0
  %875 = vmatpush1.bf16.msra.mxu0 0
  %876 = vmatprep.subr.bf16.mxu0 0
  %877 = vmatpush1.bf16.msra.mxu0 0
  %878 = vmatprep.subr.bf16.mxu0 0
  %879 = vmatpush1.bf16.msra.mxu0 0
  %880 = vmatprep.subr.bf16.mxu0 0
  %881 = vmatpush1.bf16.msra.mxu0 0
  %882 = vmatprep.subr.bf16.mxu0 0
  %883 = vmatpush1.bf16.msra.mxu0 0
  %884 = vmatprep.subr.bf16.mxu0 0
  %885 = vmatpush1.bf16.msra.mxu0 0
  %886 = vmatprep.subr.bf16.mxu0 0
  %887 = vmatpush1.bf16.msra.mxu0 0
  %888 = vmatprep.subr.bf16.mxu0 0
  %889 = vmatpush1.bf16.msra.mxu0 0
  %890 = vmatprep.subr.bf16.mxu0 0
  %891 = vmatpush1.bf16.msra.mxu0 0
  %892 = vmatprep.subr.bf16.mxu0 0
  %893 = vmatpush1.bf16.msra.mxu0 0
  %894 = vmatprep.subr.bf16.mxu0 0
  %895 = vmatpush1.bf16.msra.mxu0 0
  %896 = vmatprep.mubr.bf16.mxu0 0
  %897 = vmatmul.mubr.bf16.gmra.mrb[0].mxu0 %v481
  %v898 = vpop.f32.mrb[0].mxu0
  %v899 = vadd.f32 %v398, %v898
  %v900 = vpop.f32.mrb[0].mxu0
  %v901 = vpop.f32.mrb[0].mxu0
  %v902 = vpop.f32.mrb[0].mxu0
  %903 = vdwg.mxu0
  %v904 = vadd.f32 %v863, %v899
  %v905 = vxor.u32 %v904, 2147483648
  %v906 = vmul.f32 %v905, 1.442695
  %v907 = vpow.pop %v906
  %v908 = vadd.f32 %v907, 1.0
  %v909 = vrcp.pop %v908
  %v910 = vmul.f32 1.0, %v909
  %912 = vrot.lane.b32.xlu0 %v899, 64
  %v913 = vpop.permute.xlu0 %912
  %v915 = vmul.f32 %v910, %v913
  %917 = vrot.lane.b32.xlu0 %v915, 64
  %v918 = vpop.permute.xlu0 %917
  %v920 = vadd.f32 %v863, %v918
  %v921 = vtanh.pop %v920
  %v922 = vsub.f32 1.0, %v910
  %924 = vrot.lane.b32.xlu0 %v921, 96
  %v925 = vpop.permute.xlu0 %924
  %v927 = vmul.f32 %v922, %v925
  %v928 = vmul.f32 %v910, %v469
  %v929 = vadd.f32 %v927, %v928
  %v930 = vpack.c.bf16 %v929, %v929
  %932 = vrot.lane.b32.xlu0 %v930, 96
  %v933 = vpop.permute.xlu0 %932
  %v935 = vsel %vm120, %v933, 0
  %937 = vmatprep.subr.bf16.mxu0 0
  %938 = vmatpush1.bf16.msra.mxu0 %v92
  %939 = vmatprep.subr.bf16.mxu0 0
  %940 = vmatpush1.bf16.msra.mxu0 %v93
  %941 = vmatprep.subr.bf16.mxu0 0
  %942 = vmatpush1.bf16.msra.mxu0 0
  %943 = vmatprep.subr.bf16.mxu0 0
  %944 = vmatpush1.bf16.msra.mxu0 0
  %945 = vmatprep.subr.bf16.mxu0 0
  %946 = vmatpush1.bf16.msra.mxu0 0
  %947 = vmatprep.subr.bf16.mxu0 0
  %948 = vmatpush1.bf16.msra.mxu0 0
  %949 = vmatprep.subr.bf16.mxu0 0
  %950 = vmatpush1.bf16.msra.mxu0 0
  %951 = vmatprep.subr.bf16.mxu0 0
  %952 = vmatpush1.bf16.msra.mxu0 0
  %953 = vmatprep.subr.bf16.mxu0 0
  %954 = vmatpush1.bf16.msra.mxu0 0
  %955 = vmatprep.subr.bf16.mxu0 0
  %956 = vmatpush1.bf16.msra.mxu0 0
  %957 = vmatprep.subr.bf16.mxu0 0
  %958 = vmatpush1.bf16.msra.mxu0 0
  %959 = vmatprep.subr.bf16.mxu0 0
  %960 = vmatpush1.bf16.msra.mxu0 0
  %961 = vmatprep.subr.bf16.mxu0 0
  %962 = vmatpush1.bf16.msra.mxu0 0
  %963 = vmatprep.subr.bf16.mxu0 0
  %964 = vmatpush1.bf16.msra.mxu0 0
  %965 = vmatprep.subr.bf16.mxu0 0
  %966 = vmatpush1.bf16.msra.mxu0 0
  %967 = vmatprep.subr.bf16.mxu0 0
  %968 = vmatpush1.bf16.msra.mxu0 0
  %969 = vmatprep.mubr.bf16.mxu0 0
  %970 = vmatmul.mubr.bf16.gmra.mrb[0].mxu0 %v935
  %v971 = vpop.f32.mrb[0].mxu0
  %v972 = vadd.f32 %v475, %v971
  %v973 = vpop.f32.mrb[0].mxu0
  %v974 = vpop.f32.mrb[0].mxu0
  %v975 = vpop.f32.mrb[0].mxu0
  %976 = vdwg.mxu0
  %977 = vmatprep.subr.bf16.mxu0 0
  %978 = vmatpush1.bf16.msra.mxu0 %v98
  %979 = vmatprep.subr.bf16.mxu0 0
  %980 = vmatpush1.bf16.msra.mxu0 %v99
  %981 = vmatprep.subr.bf16.mxu0 0
  %982 = vmatpush1.bf16.msra.mxu0 0
  %983 = vmatprep.subr.bf16.mxu0 0
  %984 = vmatpush1.bf16.msra.mxu0 0
  %985 = vmatprep.subr.bf16.mxu0 0
  %986 = vmatpush1.bf16.msra.mxu0 0
  %987 = vmatprep.subr.bf16.mxu0 0
  %988 = vmatpush1.bf16.msra.mxu0 0
  %989 = vmatprep.subr.bf16.mxu0 0
  %990 = vmatpush1.bf16.msra.mxu0 0
  %991 = vmatprep.subr.bf16.mxu0 0
  %992 = vmatpush1.bf16.msra.mxu0 0
  %993 = vmatprep.subr.bf16.mxu0 0
  %994 = vmatpush1.bf16.msra.mxu0 0
  %995 = vmatprep.subr.bf16.mxu0 0
  %996 = vmatpush1.bf16.msra.mxu0 0
  %997 = vmatprep.subr.bf16.mxu0 0
  %998 = vmatpush1.bf16.msra.mxu0 0
  %999 = vmatprep.subr.bf16.mxu0 0
  %1000 = vmatpush1.bf16.msra.mxu0 0
  %1001 = vmatprep.subr.bf16.mxu0 0
  %1002 = vmatpush1.bf16.msra.mxu0 0
  %1003 = vmatprep.subr.bf16.mxu0 0
  %1004 = vmatpush1.bf16.msra.mxu0 0
  %1005 = vmatprep.subr.bf16.mxu0 0
  %1006 = vmatpush1.bf16.msra.mxu0 0
  %1007 = vmatprep.subr.bf16.mxu0 0
  %1008 = vmatpush1.bf16.msra.mxu0 0
  %1009 = vmatprep.mubr.bf16.mxu0 0
  %1010 = vmatmul.mubr.bf16.gmra.mrb[0].mxu0 %v605
  %v1011 = vpop.f32.mrb[0].mxu0
  %v1012 = vadd.f32 %v527, %v1011
  %v1013 = vpop.f32.mrb[0].mxu0
  %v1014 = vpop.f32.mrb[0].mxu0
  %v1015 = vpop.f32.mrb[0].mxu0
  %1016 = vdwg.mxu0
  %v1017 = vadd.f32 %v972, %v1012
  %v1018 = vxor.u32 %v1017, 2147483648
  %v1019 = vmul.f32 %v1018, 1.442695
  %v1020 = vpow.pop %v1019
  %v1021 = vadd.f32 %v1020, 1.0
  %v1022 = vrcp.pop %v1021
  %v1023 = vmul.f32 1.0, %v1022
  %1025 = vrot.lane.b32.xlu0 %v1012, 64
  %v1026 = vpop.permute.xlu0 %1025
  %v1028 = vmul.f32 %v1023, %v1026
  %1030 = vrot.lane.b32.xlu0 %v1028, 64
  %v1031 = vpop.permute.xlu0 %1030
  %v1033 = vadd.f32 %v972, %v1031
  %v1034 = vtanh.pop %v1033
  %v1035 = vsub.f32 1.0, %v1023
  %1037 = vrot.lane.b32.xlu0 %v1034, 96
  %v1038 = vpop.permute.xlu0 %1037
  %v1040 = vmul.f32 %v1035, %v1038
  %v1041 = vmul.f32 %v1023, %v594
  %v1042 = vadd.f32 %v1040, %v1041
  %1044 = vrot.lane.b32.xlu0 %v1042, 96
  %v1045 = vpop.permute.xlu0 %1044
  %s1047 = scalar_lea.vmem %s16, 2
  %1048 = vst.msk [vmem:[%s1047] sm:$0x3] %vm186, %v1045
  %v1049 = vpack.c.bf16 %v1042, %v1042
  %1051 = vrot.lane.b32.xlu0 %v1049, 96
  %v1052 = vpop.permute.xlu0 %1051
  %v1054 = vsel %vm120, %v1052, 0
  %1056 = vmatprep.subr.bf16.mxu0 0
  %1057 = vmatpush1.bf16.msra.mxu0 %v108
  %1058 = vmatprep.subr.bf16.mxu0 0
  %1059 = vmatpush1.bf16.msra.mxu0 %v109
  %1060 = vmatprep.subr.bf16.mxu0 0
  %1061 = vmatpush1.bf16.msra.mxu0 0
  %1062 = vmatprep.subr.bf16.mxu0 0
  %1063 = vmatpush1.bf16.msra.mxu0 0
  %1064 = vmatprep.subr.bf16.mxu0 0
  %1065 = vmatpush1.bf16.msra.mxu0 0
  %1066 = vmatprep.subr.bf16.mxu0 0
  %1067 = vmatpush1.bf16.msra.mxu0 0
  %1068 = vmatprep.subr.bf16.mxu0 0
  %1069 = vmatpush1.bf16.msra.mxu0 0
  %1070 = vmatprep.subr.bf16.mxu0 0
  %1071 = vmatpush1.bf16.msra.mxu0 0
  %1072 = vmatprep.subr.bf16.mxu0 0
  %1073 = vmatpush1.bf16.msra.mxu0 0
  %1074 = vmatprep.subr.bf16.mxu0 0
  %1075 = vmatpush1.bf16.msra.mxu0 0
  %1076 = vmatprep.subr.bf16.mxu0 0
  %1077 = vmatpush1.bf16.msra.mxu0 0
  %1078 = vmatprep.subr.bf16.mxu0 0
  %1079 = vmatpush1.bf16.msra.mxu0 0
  %1080 = vmatprep.subr.bf16.mxu0 0
  %1081 = vmatpush1.bf16.msra.mxu0 0
  %1082 = vmatprep.subr.bf16.mxu0 0
  %1083 = vmatpush1.bf16.msra.mxu0 0
  %1084 = vmatprep.subr.bf16.mxu0 0
  %1085 = vmatpush1.bf16.msra.mxu0 0
  %1086 = vmatprep.subr.bf16.mxu0 0
  %1087 = vmatpush1.bf16.msra.mxu0 0
  %1088 = vmatprep.mubr.bf16.mxu0 0
  %1089 = vmatmul.mubr.bf16.gmra.mrb[0].mxu0 %v1054
  %v1090 = vpop.f32.mrb[0].mxu0
  %v1091 = vadd.f32 %v118, %v1090
  %v1092 = vpop.f32.mrb[0].mxu0
  %v1093 = vpop.f32.mrb[0].mxu0
  %v1094 = vpop.f32.mrb[0].mxu0
  %1095 = vdwg.mxu0
  %v1096 = vadd.f32 %v62, %v1091
  %v1097 = vadd.f32 %v63, %v1091
  %v1098 = vadd.f32 %v64, %v1091
  %v1099 = vadd.f32 %v65, %v1091
  %v1100 = vadd.f32 %v66, %v1091
  %v1101 = vadd.f32 %v67, %v1091
  %v1102 = vadd.f32 %v68, %v1091
  %v1103 = vadd.f32 %v69, %v1091
  %v1104 = vmul.f32 %v1096, %v176
  %v1105 = vmul.f32 %v1097, %v176
  %v1106 = vmul.f32 %v1098, %v176
  %v1107 = vmul.f32 %v1099, %v176
  %v1108 = vmul.f32 %v1100, %v176
  %v1109 = vmul.f32 %v1101, %v176
  %v1110 = vmul.f32 %v1102, %v176
  %v1111 = vmul.f32 %v1103, %v176
  %v1112 = vsel %vm186, %v1104, 0.0
  %1113 = vadd.xlane.f32.xlu0 %v1112
  %v1114 = vpop.xlane.xlu0 %1113
  %v1115 = vsel %vm186, %v1105, 0.0
  %1116 = vadd.xlane.f32.xlu0 %v1115
  %v1117 = vpop.xlane.xlu0 %1116
  %v1118 = vsel %vm186, %v1106, 0.0
  %1119 = vadd.xlane.f32.xlu0 %v1118
  %v1120 = vpop.xlane.xlu0 %1119
  %v1121 = vsel %vm186, %v1107, 0.0
  %1122 = vadd.xlane.f32.xlu0 %v1121
  %v1123 = vpop.xlane.xlu0 %1122
  %v1124 = vsel %vm186, %v1108, 0.0
  %1125 = vadd.xlane.f32.xlu0 %v1124
  %v1126 = vpop.xlane.xlu0 %1125
  %v1127 = vsel %vm186, %v1109, 0.0
  %1128 = vadd.xlane.f32.xlu0 %v1127
  %v1129 = vpop.xlane.xlu0 %1128
  %v1130 = vsel %vm186, %v1110, 0.0
  %1131 = vadd.xlane.f32.xlu0 %v1130
  %v1132 = vpop.xlane.xlu0 %1131
  %v1133 = vsel %vm186, %v1111, 0.0
  %1134 = vadd.xlane.f32.xlu0 %v1133
  %v1135 = vpop.xlane.xlu0 %1134
  %v1136 = vsel %vm211, %v1114, -inf
  %v1137 = vsel %vm211, %v1117, -inf
  %v1138 = vsel %vm211, %v1120, -inf
  %v1139 = vsel %vm211, %v1123, -inf
  %v1140 = vsel %vm211, %v1126, -inf
  %v1141 = vmax.f32 %v1136, %v1140
  %v1142 = vsel %vm211, %v1129, -inf
  %v1143 = vmax.f32 %v1137, %v1142
  %v1144 = vsel %vm211, %v1132, -inf
  %v1145 = vmax.f32 %v1138, %v1144
  %v1146 = vsel %vm211, %v1135, -inf
  %v1147 = vmax.f32 %v1139, %v1146
  %v1148 = vmax.f32 %v1141, %v1143
  %v1149 = vmax.f32 %v1145, %v1147
  %v1150 = vmax.f32 %v1148, %v1149
  %v1151 = vsub.f32 %v1114, %v1150
  %v1152 = vsub.f32 %v1117, %v1150
  %v1153 = vsub.f32 %v1120, %v1150
  %v1154 = vsub.f32 %v1123, %v1150
  %v1155 = vsub.f32 %v1126, %v1150
  %v1156 = vsub.f32 %v1129, %v1150
  %v1157 = vsub.f32 %v1132, %v1150
  %v1158 = vsub.f32 %v1135, %v1150
  %v1159 = vmul.f32 %v1151, 1.442695
  %v1160 = vpow.pop %v1159
  %v1161 = vmul.f32 %v1152, 1.442695
  %v1162 = vpow.pop %v1161
  %v1163 = vmul.f32 %v1153, 1.442695
  %v1164 = vpow.pop %v1163
  %v1165 = vmul.f32 %v1154, 1.442695
  %v1166 = vpow.pop %v1165
  %v1167 = vmul.f32 %v1155, 1.442695
  %v1168 = vpow.pop %v1167
  %v1169 = vmul.f32 %v1156, 1.442695
  %v1170 = vpow.pop %v1169
  %v1171 = vmul.f32 %v1157, 1.442695
  %v1172 = vpow.pop %v1171
  %v1173 = vmul.f32 %v1158, 1.442695
  %v1174 = vpow.pop %v1173
  %v1175 = vsel %vm211, %v1160, 0.0
  %v1176 = vsel %vm211, %v1162, 0.0
  %v1177 = vadd.f32 %v1175, %v1176
  %v1178 = vsel %vm211, %v1164, 0.0
  %v1179 = vadd.f32 %v1177, %v1178
  %v1180 = vsel %vm211, %v1166, 0.0
  %v1181 = vadd.f32 %v1179, %v1180
  %v1182 = vsel %vm211, %v1168, 0.0
  %v1183 = vadd.f32 %v1181, %v1182
  %v1184 = vsel %vm211, %v1170, 0.0
  %v1185 = vadd.f32 %v1183, %v1184
  %v1186 = vsel %vm211, %v1172, 0.0
  %v1187 = vadd.f32 %v1185, %v1186
  %v1188 = vsel %vm211, %v1174, 0.0
  %v1189 = vadd.f32 %v1187, %v1188
  %v1190 = vrcp.pop %v1189
  %v1191 = vmul.f32 %v1160, %v1190
  %v1192 = vmul.f32 %v1162, %v1190
  %v1193 = vmul.f32 %v1164, %v1190
  %v1194 = vmul.f32 %v1166, %v1190
  %v1195 = vmul.f32 %v1168, %v1190
  %v1196 = vmul.f32 %v1170, %v1190
  %v1197 = vmul.f32 %v1172, %v1190
  %v1198 = vmul.f32 %v1174, %v1190
  %v1199 = vmul.f32 %v1191, %v54
  %v1200 = vmul.f32 %v1192, %v55
  %v1201 = vmul.f32 %v1193, %v56
  %v1202 = vmul.f32 %v1194, %v57
  %v1203 = vmul.f32 %v1195, %v58
  %v1204 = vmul.f32 %v1196, %v59
  %v1205 = vmul.f32 %v1197, %v60
  %v1206 = vmul.f32 %v1198, %v61
  %v1207 = vsel %vm186, %v1199, 0.0
  %v1208 = vsel %vm186, %v1200, 0.0
  %v1209 = vadd.f32 %v1207, %v1208
  %v1210 = vsel %vm186, %v1201, 0.0
  %v1211 = vadd.f32 %v1209, %v1210
  %v1212 = vsel %vm186, %v1202, 0.0
  %v1213 = vadd.f32 %v1211, %v1212
  %v1214 = vsel %vm186, %v1203, 0.0
  %v1215 = vadd.f32 %v1213, %v1214
  %v1216 = vsel %vm186, %v1204, 0.0
  %v1217 = vadd.f32 %v1215, %v1216
  %v1218 = vsel %vm186, %v1205, 0.0
  %v1219 = vadd.f32 %v1217, %v1218
  %v1220 = vsel %vm186, %v1206, 0.0
  %v1221 = vadd.f32 %v1219, %v1220
  %s1222 = scalar_lea.vmem %s0, 4
  %v1223 = vld [vmem:[%s1222] sm:$0x3]
  %v1224 = vpack.c.bf16 %v1223, %v1223
  %v1225 = vpack.c.bf16 %v1221, %v1221
  %v1227 = vsel %vm120, %v1225, 0
  %1229 = vmatprep.subr.bf16.mxu0 0
  %1230 = vmatpush1.bf16.msra.mxu0 %v80
  %1231 = vmatprep.subr.bf16.mxu0 0
  %1232 = vmatpush1.bf16.msra.mxu0 %v81
  %1233 = vmatprep.subr.bf16.mxu0 0
  %1234 = vmatpush1.bf16.msra.mxu0 0
  %1235 = vmatprep.subr.bf16.mxu0 0
  %1236 = vmatpush1.bf16.msra.mxu0 0
  %1237 = vmatprep.subr.bf16.mxu0 0
  %1238 = vmatpush1.bf16.msra.mxu0 0
  %1239 = vmatprep.subr.bf16.mxu0 0
  %1240 = vmatpush1.bf16.msra.mxu0 0
  %1241 = vmatprep.subr.bf16.mxu0 0
  %1242 = vmatpush1.bf16.msra.mxu0 0
  %1243 = vmatprep.subr.bf16.mxu0 0
  %1244 = vmatpush1.bf16.msra.mxu0 0
  %1245 = vmatprep.subr.bf16.mxu0 0
  %1246 = vmatpush1.bf16.msra.mxu0 0
  %1247 = vmatprep.subr.bf16.mxu0 0
  %1248 = vmatpush1.bf16.msra.mxu0 0
  %1249 = vmatprep.subr.bf16.mxu0 0
  %1250 = vmatpush1.bf16.msra.mxu0 0
  %1251 = vmatprep.subr.bf16.mxu0 0
  %1252 = vmatpush1.bf16.msra.mxu0 0
  %1253 = vmatprep.subr.bf16.mxu0 0
  %1254 = vmatpush1.bf16.msra.mxu0 0
  %1255 = vmatprep.subr.bf16.mxu0 0
  %1256 = vmatpush1.bf16.msra.mxu0 0
  %1257 = vmatprep.subr.bf16.mxu0 0
  %1258 = vmatpush1.bf16.msra.mxu0 0
  %1259 = vmatprep.subr.bf16.mxu0 0
  %1260 = vmatpush1.bf16.msra.mxu0 0
  %1261 = vmatprep.mubr.bf16.mxu0 0
  %1262 = vmatmul.mubr.bf16.gmra.mrb[0].mxu0 %v1227
  %v1263 = vpop.f32.mrb[0].mxu0
  %v1264 = vadd.f32 0.0, %v1263
  %v1265 = vpop.f32.mrb[0].mxu0
  %v1266 = vpop.f32.mrb[0].mxu0
  %v1267 = vpop.f32.mrb[0].mxu0
  %1268 = vdwg.mxu0
  %v1270 = vsel %vm120, %v1224, 0
  %1272 = vmatprep.subr.bf16.mxu0 0
  %1273 = vmatpush1.bf16.msra.mxu0 %v74
  %1274 = vmatprep.subr.bf16.mxu0 0
  %1275 = vmatpush1.bf16.msra.mxu0 %v75
  %1276 = vmatprep.subr.bf16.mxu0 0
  %1277 = vmatpush1.bf16.msra.mxu0 0
  %1278 = vmatprep.subr.bf16.mxu0 0
  %1279 = vmatpush1.bf16.msra.mxu0 0
  %1280 = vmatprep.subr.bf16.mxu0 0
  %1281 = vmatpush1.bf16.msra.mxu0 0
  %1282 = vmatprep.subr.bf16.mxu0 0
  %1283 = vmatpush1.bf16.msra.mxu0 0
  %1284 = vmatprep.subr.bf16.mxu0 0
  %1285 = vmatpush1.bf16.msra.mxu0 0
  %1286 = vmatprep.subr.bf16.mxu0 0
  %1287 = vmatpush1.bf16.msra.mxu0 0
  %1288 = vmatprep.subr.bf16.mxu0 0
  %1289 = vmatpush1.bf16.msra.mxu0 0
  %1290 = vmatprep.subr.bf16.mxu0 0
  %1291 = vmatpush1.bf16.msra.mxu0 0
  %1292 = vmatprep.subr.bf16.mxu0 0
  %1293 = vmatpush1.bf16.msra.mxu0 0
  %1294 = vmatprep.subr.bf16.mxu0 0
  %1295 = vmatpush1.bf16.msra.mxu0 0
  %1296 = vmatprep.subr.bf16.mxu0 0
  %1297 = vmatpush1.bf16.msra.mxu0 0
  %1298 = vmatprep.subr.bf16.mxu0 0
  %1299 = vmatpush1.bf16.msra.mxu0 0
  %1300 = vmatprep.subr.bf16.mxu0 0
  %1301 = vmatpush1.bf16.msra.mxu0 0
  %1302 = vmatprep.subr.bf16.mxu0 0
  %1303 = vmatpush1.bf16.msra.mxu0 0
  %1304 = vmatprep.mubr.bf16.mxu0 0
  %1305 = vmatmul.mubr.bf16.gmra.mrb[0].mxu0 %v1270
  %v1306 = vpop.f32.mrb[0].mxu0
  %v1307 = vadd.f32 %v1264, %v1306
  %v1308 = vpop.f32.mrb[0].mxu0
  %v1309 = vpop.f32.mrb[0].mxu0
  %v1310 = vpop.f32.mrb[0].mxu0
  %1311 = vdwg.mxu0
  %v1312 = vadd.f32 %v1307, %v391
  %1313 = vmatprep.subr.bf16.mxu0 0
  %1314 = vmatpush1.bf16.msra.mxu0 %v86
  %1315 = vmatprep.subr.bf16.mxu0 0
  %1316 = vmatpush1.bf16.msra.mxu0 %v87
  %1317 = vmatprep.subr.bf16.mxu0 0
  %1318 = vmatpush1.bf16.msra.mxu0 0
  %1319 = vmatprep.subr.bf16.mxu0 0
  %1320 = vmatpush1.bf16.msra.mxu0 0
  %1321 = vmatprep.subr.bf16.mxu0 0
  %1322 = vmatpush1.bf16.msra.mxu0 0
  %1323 = vmatprep.subr.bf16.mxu0 0
  %1324 = vmatpush1.bf16.msra.mxu0 0
  %1325 = vmatprep.subr.bf16.mxu0 0
  %1326 = vmatpush1.bf16.msra.mxu0 0
  %1327 = vmatprep.subr.bf16.mxu0 0
  %1328 = vmatpush1.bf16.msra.mxu0 0
  %1329 = vmatprep.subr.bf16.mxu0 0
  %1330 = vmatpush1.bf16.msra.mxu0 0
  %1331 = vmatprep.subr.bf16.mxu0 0
  %1332 = vmatpush1.bf16.msra.mxu0 0
  %1333 = vmatprep.subr.bf16.mxu0 0
  %1334 = vmatpush1.bf16.msra.mxu0 0
  %1335 = vmatprep.subr.bf16.mxu0 0
  %1336 = vmatpush1.bf16.msra.mxu0 0
  %1337 = vmatprep.subr.bf16.mxu0 0
  %1338 = vmatpush1.bf16.msra.mxu0 0
  %1339 = vmatprep.subr.bf16.mxu0 0
  %1340 = vmatpush1.bf16.msra.mxu0 0
  %1341 = vmatprep.subr.bf16.mxu0 0
  %1342 = vmatpush1.bf16.msra.mxu0 0
  %1343 = vmatprep.subr.bf16.mxu0 0
  %1344 = vmatpush1.bf16.msra.mxu0 0
  %1345 = vmatprep.mubr.bf16.mxu0 0
  %1346 = vmatmul.mubr.bf16.gmra.mrb[0].mxu0 %v935
  %v1347 = vpop.f32.mrb[0].mxu0
  %v1348 = vadd.f32 %v398, %v1347
  %v1349 = vpop.f32.mrb[0].mxu0
  %v1350 = vpop.f32.mrb[0].mxu0
  %v1351 = vpop.f32.mrb[0].mxu0
  %1352 = vdwg.mxu0
  %v1353 = vadd.f32 %v1312, %v1348
  %v1354 = vxor.u32 %v1353, 2147483648
  %v1355 = vmul.f32 %v1354, 1.442695
  %v1356 = vpow.pop %v1355
  %v1357 = vadd.f32 %v1356, 1.0
  %v1358 = vrcp.pop %v1357
  %v1359 = vmul.f32 1.0, %v1358
  %1361 = vrot.lane.b32.xlu0 %v1348, 64
  %v1362 = vpop.permute.xlu0 %1361
  %v1364 = vmul.f32 %v1359, %v1362
  %1366 = vrot.lane.b32.xlu0 %v1364, 64
  %v1367 = vpop.permute.xlu0 %1366
  %v1369 = vadd.f32 %v1312, %v1367
  %v1370 = vtanh.pop %v1369
  %v1371 = vsub.f32 1.0, %v1359
  %1373 = vrot.lane.b32.xlu0 %v1370, 96
  %v1374 = vpop.permute.xlu0 %1373
  %v1376 = vmul.f32 %v1371, %v1374
  %v1377 = vmul.f32 %v1359, %v929
  %v1378 = vadd.f32 %v1376, %v1377
  %v1379 = vpack.c.bf16 %v1378, %v1378
  %1381 = vrot.lane.b32.xlu0 %v1379, 96
  %v1382 = vpop.permute.xlu0 %1381
  %v1384 = vsel %vm120, %v1382, 0
  %1386 = vmatprep.subr.bf16.mxu0 0
  %1387 = vmatpush1.bf16.msra.mxu0 %v92
  %1388 = vmatprep.subr.bf16.mxu0 0
  %1389 = vmatpush1.bf16.msra.mxu0 %v93
  %1390 = vmatprep.subr.bf16.mxu0 0
  %1391 = vmatpush1.bf16.msra.mxu0 0
  %1392 = vmatprep.subr.bf16.mxu0 0
  %1393 = vmatpush1.bf16.msra.mxu0 0
  %1394 = vmatprep.subr.bf16.mxu0 0
  %1395 = vmatpush1.bf16.msra.mxu0 0
  %1396 = vmatprep.subr.bf16.mxu0 0
  %1397 = vmatpush1.bf16.msra.mxu0 0
  %1398 = vmatprep.subr.bf16.mxu0 0
  %1399 = vmatpush1.bf16.msra.mxu0 0
  %1400 = vmatprep.subr.bf16.mxu0 0
  %1401 = vmatpush1.bf16.msra.mxu0 0
  %1402 = vmatprep.subr.bf16.mxu0 0
  %1403 = vmatpush1.bf16.msra.mxu0 0
  %1404 = vmatprep.subr.bf16.mxu0 0
  %1405 = vmatpush1.bf16.msra.mxu0 0
  %1406 = vmatprep.subr.bf16.mxu0 0
  %1407 = vmatpush1.bf16.msra.mxu0 0
  %1408 = vmatprep.subr.bf16.mxu0 0
  %1409 = vmatpush1.bf16.msra.mxu0 0
  %1410 = vmatprep.subr.bf16.mxu0 0
  %1411 = vmatpush1.bf16.msra.mxu0 0
  %1412 = vmatprep.subr.bf16.mxu0 0
  %1413 = vmatpush1.bf16.msra.mxu0 0
  %1414 = vmatprep.subr.bf16.mxu0 0
  %1415 = vmatpush1.bf16.msra.mxu0 0
  %1416 = vmatprep.subr.bf16.mxu0 0
  %1417 = vmatpush1.bf16.msra.mxu0 0
  %1418 = vmatprep.mubr.bf16.mxu0 0
  %1419 = vmatmul.mubr.bf16.gmra.mrb[0].mxu0 %v1384
  %v1420 = vpop.f32.mrb[0].mxu0
  %v1421 = vadd.f32 %v475, %v1420
  %v1422 = vpop.f32.mrb[0].mxu0
  %v1423 = vpop.f32.mrb[0].mxu0
  %v1424 = vpop.f32.mrb[0].mxu0
  %1425 = vdwg.mxu0
  %1426 = vmatprep.subr.bf16.mxu0 0
  %1427 = vmatpush1.bf16.msra.mxu0 %v98
  %1428 = vmatprep.subr.bf16.mxu0 0
  %1429 = vmatpush1.bf16.msra.mxu0 %v99
  %1430 = vmatprep.subr.bf16.mxu0 0
  %1431 = vmatpush1.bf16.msra.mxu0 0
  %1432 = vmatprep.subr.bf16.mxu0 0
  %1433 = vmatpush1.bf16.msra.mxu0 0
  %1434 = vmatprep.subr.bf16.mxu0 0
  %1435 = vmatpush1.bf16.msra.mxu0 0
  %1436 = vmatprep.subr.bf16.mxu0 0
  %1437 = vmatpush1.bf16.msra.mxu0 0
  %1438 = vmatprep.subr.bf16.mxu0 0
  %1439 = vmatpush1.bf16.msra.mxu0 0
  %1440 = vmatprep.subr.bf16.mxu0 0
  %1441 = vmatpush1.bf16.msra.mxu0 0
  %1442 = vmatprep.subr.bf16.mxu0 0
  %1443 = vmatpush1.bf16.msra.mxu0 0
  %1444 = vmatprep.subr.bf16.mxu0 0
  %1445 = vmatpush1.bf16.msra.mxu0 0
  %1446 = vmatprep.subr.bf16.mxu0 0
  %1447 = vmatpush1.bf16.msra.mxu0 0
  %1448 = vmatprep.subr.bf16.mxu0 0
  %1449 = vmatpush1.bf16.msra.mxu0 0
  %1450 = vmatprep.subr.bf16.mxu0 0
  %1451 = vmatpush1.bf16.msra.mxu0 0
  %1452 = vmatprep.subr.bf16.mxu0 0
  %1453 = vmatpush1.bf16.msra.mxu0 0
  %1454 = vmatprep.subr.bf16.mxu0 0
  %1455 = vmatpush1.bf16.msra.mxu0 0
  %1456 = vmatprep.subr.bf16.mxu0 0
  %1457 = vmatpush1.bf16.msra.mxu0 0
  %1458 = vmatprep.mubr.bf16.mxu0 0
  %1459 = vmatmul.mubr.bf16.gmra.mrb[0].mxu0 %v1054
  %v1460 = vpop.f32.mrb[0].mxu0
  %v1461 = vadd.f32 %v527, %v1460
  %v1462 = vpop.f32.mrb[0].mxu0
  %v1463 = vpop.f32.mrb[0].mxu0
  %v1464 = vpop.f32.mrb[0].mxu0
  %1465 = vdwg.mxu0
  %v1466 = vadd.f32 %v1421, %v1461
  %v1467 = vxor.u32 %v1466, 2147483648
  %v1468 = vmul.f32 %v1467, 1.442695
  %v1469 = vpow.pop %v1468
  %v1470 = vadd.f32 %v1469, 1.0
  %v1471 = vrcp.pop %v1470
  %v1472 = vmul.f32 1.0, %v1471
  %1474 = vrot.lane.b32.xlu0 %v1461, 64
  %v1475 = vpop.permute.xlu0 %1474
  %v1477 = vmul.f32 %v1472, %v1475
  %1479 = vrot.lane.b32.xlu0 %v1477, 64
  %v1480 = vpop.permute.xlu0 %1479
  %v1482 = vadd.f32 %v1421, %v1480
  %v1483 = vtanh.pop %v1482
  %v1484 = vsub.f32 1.0, %v1472
  %1486 = vrot.lane.b32.xlu0 %v1483, 96
  %v1487 = vpop.permute.xlu0 %1486
  %v1489 = vmul.f32 %v1484, %v1487
  %v1490 = vmul.f32 %v1472, %v1042
  %v1491 = vadd.f32 %v1489, %v1490
  %1493 = vrot.lane.b32.xlu0 %v1491, 96
  %v1494 = vpop.permute.xlu0 %1493
  %s1496 = scalar_lea.vmem %s16, 4
  %1497 = vst.msk [vmem:[%s1496] sm:$0x3] %vm186, %v1494
  %v1498 = vpack.c.bf16 %v1491, %v1491
  %1500 = vrot.lane.b32.xlu0 %v1498, 96
  %v1501 = vpop.permute.xlu0 %1500
  %v1503 = vsel %vm120, %v1501, 0
  %1505 = vmatprep.subr.bf16.mxu0 0
  %1506 = vmatpush1.bf16.msra.mxu0 %v108
  %1507 = vmatprep.subr.bf16.mxu0 0
  %1508 = vmatpush1.bf16.msra.mxu0 %v109
  %1509 = vmatprep.subr.bf16.mxu0 0
  %1510 = vmatpush1.bf16.msra.mxu0 0
  %1511 = vmatprep.subr.bf16.mxu0 0
  %1512 = vmatpush1.bf16.msra.mxu0 0
  %1513 = vmatprep.subr.bf16.mxu0 0
  %1514 = vmatpush1.bf16.msra.mxu0 0
  %1515 = vmatprep.subr.bf16.mxu0 0
  %1516 = vmatpush1.bf16.msra.mxu0 0
  %1517 = vmatprep.subr.bf16.mxu0 0
  %1518 = vmatpush1.bf16.msra.mxu0 0
  %1519 = vmatprep.subr.bf16.mxu0 0
  %1520 = vmatpush1.bf16.msra.mxu0 0
  %1521 = vmatprep.subr.bf16.mxu0 0
  %1522 = vmatpush1.bf16.msra.mxu0 0
  %1523 = vmatprep.subr.bf16.mxu0 0
  %1524 = vmatpush1.bf16.msra.mxu0 0
  %1525 = vmatprep.subr.bf16.mxu0 0
  %1526 = vmatpush1.bf16.msra.mxu0 0
  %1527 = vmatprep.subr.bf16.mxu0 0
  %1528 = vmatpush1.bf16.msra.mxu0 0
  %1529 = vmatprep.subr.bf16.mxu0 0
  %1530 = vmatpush1.bf16.msra.mxu0 0
  %1531 = vmatprep.subr.bf16.mxu0 0
  %1532 = vmatpush1.bf16.msra.mxu0 0
  %1533 = vmatprep.subr.bf16.mxu0 0
  %1534 = vmatpush1.bf16.msra.mxu0 0
  %1535 = vmatprep.subr.bf16.mxu0 0
  %1536 = vmatpush1.bf16.msra.mxu0 0
  %1537 = vmatprep.mubr.bf16.mxu0 0
  %1538 = vmatmul.mubr.bf16.gmra.mrb[0].mxu0 %v1503
  %v1539 = vpop.f32.mrb[0].mxu0
  %v1540 = vadd.f32 %v118, %v1539
  %v1541 = vpop.f32.mrb[0].mxu0
  %v1542 = vpop.f32.mrb[0].mxu0
  %v1543 = vpop.f32.mrb[0].mxu0
  %1544 = vdwg.mxu0
  %v1545 = vadd.f32 %v62, %v1540
  %v1546 = vadd.f32 %v63, %v1540
  %v1547 = vadd.f32 %v64, %v1540
  %v1548 = vadd.f32 %v65, %v1540
  %v1549 = vadd.f32 %v66, %v1540
  %v1550 = vadd.f32 %v67, %v1540
  %v1551 = vadd.f32 %v68, %v1540
  %v1552 = vadd.f32 %v69, %v1540
  %v1553 = vmul.f32 %v1545, %v176
  %v1554 = vmul.f32 %v1546, %v176
  %v1555 = vmul.f32 %v1547, %v176
  %v1556 = vmul.f32 %v1548, %v176
  %v1557 = vmul.f32 %v1549, %v176
  %v1558 = vmul.f32 %v1550, %v176
  %v1559 = vmul.f32 %v1551, %v176
  %v1560 = vmul.f32 %v1552, %v176
  %v1561 = vsel %vm186, %v1553, 0.0
  %1562 = vadd.xlane.f32.xlu0 %v1561
  %v1563 = vpop.xlane.xlu0 %1562
  %v1564 = vsel %vm186, %v1554, 0.0
  %1565 = vadd.xlane.f32.xlu0 %v1564
  %v1566 = vpop.xlane.xlu0 %1565
  %v1567 = vsel %vm186, %v1555, 0.0
  %1568 = vadd.xlane.f32.xlu0 %v1567
  %v1569 = vpop.xlane.xlu0 %1568
  %v1570 = vsel %vm186, %v1556, 0.0
  %1571 = vadd.xlane.f32.xlu0 %v1570
  %v1572 = vpop.xlane.xlu0 %1571
  %v1573 = vsel %vm186, %v1557, 0.0
  %1574 = vadd.xlane.f32.xlu0 %v1573
  %v1575 = vpop.xlane.xlu0 %1574
  %v1576 = vsel %vm186, %v1558, 0.0
  %1577 = vadd.xlane.f32.xlu0 %v1576
  %v1578 = vpop.xlane.xlu0 %1577
  %v1579 = vsel %vm186, %v1559, 0.0
  %1580 = vadd.xlane.f32.xlu0 %v1579
  %v1581 = vpop.xlane.xlu0 %1580
  %v1582 = vsel %vm186, %v1560, 0.0
  %1583 = vadd.xlane.f32.xlu0 %v1582
  %v1584 = vpop.xlane.xlu0 %1583
  %v1585 = vsel %vm211, %v1563, -inf
  %v1586 = vsel %vm211, %v1566, -inf
  %v1587 = vsel %vm211, %v1569, -inf
  %v1588 = vsel %vm211, %v1572, -inf
  %v1589 = vsel %vm211, %v1575, -inf
  %v1590 = vmax.f32 %v1585, %v1589
  %v1591 = vsel %vm211, %v1578, -inf
  %v1592 = vmax.f32 %v1586, %v1591
  %v1593 = vsel %vm211, %v1581, -inf
  %v1594 = vmax.f32 %v1587, %v1593
  %v1595 = vsel %vm211, %v1584, -inf
  %v1596 = vmax.f32 %v1588, %v1595
  %v1597 = vmax.f32 %v1590, %v1592
  %v1598 = vmax.f32 %v1594, %v1596
  %v1599 = vmax.f32 %v1597, %v1598
  %v1600 = vsub.f32 %v1563, %v1599
  %v1601 = vsub.f32 %v1566, %v1599
  %v1602 = vsub.f32 %v1569, %v1599
  %v1603 = vsub.f32 %v1572, %v1599
  %v1604 = vsub.f32 %v1575, %v1599
  %v1605 = vsub.f32 %v1578, %v1599
  %v1606 = vsub.f32 %v1581, %v1599
  %v1607 = vsub.f32 %v1584, %v1599
  %v1608 = vmul.f32 %v1600, 1.442695
  %v1609 = vpow.pop %v1608
  %v1610 = vmul.f32 %v1601, 1.442695
  %v1611 = vpow.pop %v1610
  %v1612 = vmul.f32 %v1602, 1.442695
  %v1613 = vpow.pop %v1612
  %v1614 = vmul.f32 %v1603, 1.442695
  %v1615 = vpow.pop %v1614
  %v1616 = vmul.f32 %v1604, 1.442695
  %v1617 = vpow.pop %v1616
  %v1618 = vmul.f32 %v1605, 1.442695
  %v1619 = vpow.pop %v1618
  %v1620 = vmul.f32 %v1606, 1.442695
  %v1621 = vpow.pop %v1620
  %v1622 = vmul.f32 %v1607, 1.442695
  %v1623 = vpow.pop %v1622
  %v1624 = vsel %vm211, %v1609, 0.0
  %v1625 = vsel %vm211, %v1611, 0.0
  %v1626 = vadd.f32 %v1624, %v1625
  %v1627 = vsel %vm211, %v1613, 0.0
  %v1628 = vadd.f32 %v1626, %v1627
  %v1629 = vsel %vm211, %v1615, 0.0
  %v1630 = vadd.f32 %v1628, %v1629
  %v1631 = vsel %vm211, %v1617, 0.0
  %v1632 = vadd.f32 %v1630, %v1631
  %v1633 = vsel %vm211, %v1619, 0.0
  %v1634 = vadd.f32 %v1632, %v1633
  %v1635 = vsel %vm211, %v1621, 0.0
  %v1636 = vadd.f32 %v1634, %v1635
  %v1637 = vsel %vm211, %v1623, 0.0
  %v1638 = vadd.f32 %v1636, %v1637
  %v1639 = vrcp.pop %v1638
  %v1640 = vmul.f32 %v1609, %v1639
  %v1641 = vmul.f32 %v1611, %v1639
  %v1642 = vmul.f32 %v1613, %v1639
  %v1643 = vmul.f32 %v1615, %v1639
  %v1644 = vmul.f32 %v1617, %v1639
  %v1645 = vmul.f32 %v1619, %v1639
  %v1646 = vmul.f32 %v1621, %v1639
  %v1647 = vmul.f32 %v1623, %v1639
  %v1648 = vmul.f32 %v1640, %v54
  %v1649 = vmul.f32 %v1641, %v55
  %v1650 = vmul.f32 %v1642, %v56
  %v1651 = vmul.f32 %v1643, %v57
  %v1652 = vmul.f32 %v1644, %v58
  %v1653 = vmul.f32 %v1645, %v59
  %v1654 = vmul.f32 %v1646, %v60
  %v1655 = vmul.f32 %v1647, %v61
  %v1656 = vsel %vm186, %v1648, 0.0
  %v1657 = vsel %vm186, %v1649, 0.0
  %v1658 = vadd.f32 %v1656, %v1657
  %v1659 = vsel %vm186, %v1650, 0.0
  %v1660 = vadd.f32 %v1658, %v1659
  %v1661 = vsel %vm186, %v1651, 0.0
  %v1662 = vadd.f32 %v1660, %v1661
  %v1663 = vsel %vm186, %v1652, 0.0
  %v1664 = vadd.f32 %v1662, %v1663
  %v1665 = vsel %vm186, %v1653, 0.0
  %v1666 = vadd.f32 %v1664, %v1665
  %v1667 = vsel %vm186, %v1654, 0.0
  %v1668 = vadd.f32 %v1666, %v1667
  %v1669 = vsel %vm186, %v1655, 0.0
  %v1670 = vadd.f32 %v1668, %v1669
  %s1671 = scalar_lea.vmem %s0, 6
  %v1672 = vld [vmem:[%s1671] sm:$0x3]
  %v1673 = vpack.c.bf16 %v1672, %v1672
  %v1674 = vpack.c.bf16 %v1670, %v1670
  %v1676 = vsel %vm120, %v1674, 0
  %1678 = vmatprep.subr.bf16.mxu0 0
  %1679 = vmatpush1.bf16.msra.mxu0 %v80
  %1680 = vmatprep.subr.bf16.mxu0 0
  %1681 = vmatpush1.bf16.msra.mxu0 %v81
  %1682 = vmatprep.subr.bf16.mxu0 0
  %1683 = vmatpush1.bf16.msra.mxu0 0
  %1684 = vmatprep.subr.bf16.mxu0 0
  %1685 = vmatpush1.bf16.msra.mxu0 0
  %1686 = vmatprep.subr.bf16.mxu0 0
  %1687 = vmatpush1.bf16.msra.mxu0 0
  %1688 = vmatprep.subr.bf16.mxu0 0
  %1689 = vmatpush1.bf16.msra.mxu0 0
  %1690 = vmatprep.subr.bf16.mxu0 0
  %1691 = vmatpush1.bf16.msra.mxu0 0
  %1692 = vmatprep.subr.bf16.mxu0 0
  %1693 = vmatpush1.bf16.msra.mxu0 0
  %1694 = vmatprep.subr.bf16.mxu0 0
  %1695 = vmatpush1.bf16.msra.mxu0 0
  %1696 = vmatprep.subr.bf16.mxu0 0
  %1697 = vmatpush1.bf16.msra.mxu0 0
  %1698 = vmatprep.subr.bf16.mxu0 0
  %1699 = vmatpush1.bf16.msra.mxu0 0
  %1700 = vmatprep.subr.bf16.mxu0 0
  %1701 = vmatpush1.bf16.msra.mxu0 0
  %1702 = vmatprep.subr.bf16.mxu0 0
  %1703 = vmatpush1.bf16.msra.mxu0 0
  %1704 = vmatprep.subr.bf16.mxu0 0
  %1705 = vmatpush1.bf16.msra.mxu0 0
  %1706 = vmatprep.subr.bf16.mxu0 0
  %1707 = vmatpush1.bf16.msra.mxu0 0
  %1708 = vmatprep.subr.bf16.mxu0 0
  %1709 = vmatpush1.bf16.msra.mxu0 0
  %1710 = vmatprep.mubr.bf16.mxu0 0
  %1711 = vmatmul.mubr.bf16.gmra.mrb[0].mxu0 %v1676
  %v1712 = vpop.f32.mrb[0].mxu0
  %v1713 = vadd.f32 0.0, %v1712
  %v1714 = vpop.f32.mrb[0].mxu0
  %v1715 = vpop.f32.mrb[0].mxu0
  %v1716 = vpop.f32.mrb[0].mxu0
  %1717 = vdwg.mxu0
  %v1719 = vsel %vm120, %v1673, 0
  %1721 = vmatprep.subr.bf16.mxu0 0
  %1722 = vmatpush1.bf16.msra.mxu0 %v74
  %1723 = vmatprep.subr.bf16.mxu0 0
  %1724 = vmatpush1.bf16.msra.mxu0 %v75
  %1725 = vmatprep.subr.bf16.mxu0 0
  %1726 = vmatpush1.bf16.msra.mxu0 0
  %1727 = vmatprep.subr.bf16.mxu0 0
  %1728 = vmatpush1.bf16.msra.mxu0 0
  %1729 = vmatprep.subr.bf16.mxu0 0
  %1730 = vmatpush1.bf16.msra.mxu0 0
  %1731 = vmatprep.subr.bf16.mxu0 0
  %1732 = vmatpush1.bf16.msra.mxu0 0
  %1733 = vmatprep.subr.bf16.mxu0 0
  %1734 = vmatpush1.bf16.msra.mxu0 0
  %1735 = vmatprep.subr.bf16.mxu0 0
  %1736 = vmatpush1.bf16.msra.mxu0 0
  %1737 = vmatprep.subr.bf16.mxu0 0
  %1738 = vmatpush1.bf16.msra.mxu0 0
  %1739 = vmatprep.subr.bf16.mxu0 0
  %1740 = vmatpush1.bf16.msra.mxu0 0
  %1741 = vmatprep.subr.bf16.mxu0 0
  %1742 = vmatpush1.bf16.msra.mxu0 0
  %1743 = vmatprep.subr.bf16.mxu0 0
  %1744 = vmatpush1.bf16.msra.mxu0 0
  %1745 = vmatprep.subr.bf16.mxu0 0
  %1746 = vmatpush1.bf16.msra.mxu0 0
  %1747 = vmatprep.subr.bf16.mxu0 0
  %1748 = vmatpush1.bf16.msra.mxu0 0
  %1749 = vmatprep.subr.bf16.mxu0 0
  %1750 = vmatpush1.bf16.msra.mxu0 0
  %1751 = vmatprep.subr.bf16.mxu0 0
  %1752 = vmatpush1.bf16.msra.mxu0 0
  %1753 = vmatprep.mubr.bf16.mxu0 0
  %1754 = vmatmul.mubr.bf16.gmra.mrb[0].mxu0 %v1719
  %v1755 = vpop.f32.mrb[0].mxu0
  %v1756 = vadd.f32 %v1713, %v1755
  %v1757 = vpop.f32.mrb[0].mxu0
  %v1758 = vpop.f32.mrb[0].mxu0
  %v1759 = vpop.f32.mrb[0].mxu0
  %1760 = vdwg.mxu0
  %v1761 = vadd.f32 %v1756, %v391
  %1762 = vmatprep.subr.bf16.mxu0 0
  %1763 = vmatpush1.bf16.msra.mxu0 %v86
  %1764 = vmatprep.subr.bf16.mxu0 0
  %1765 = vmatpush1.bf16.msra.mxu0 %v87
  %1766 = vmatprep.subr.bf16.mxu0 0
  %1767 = vmatpush1.bf16.msra.mxu0 0
  %1768 = vmatprep.subr.bf16.mxu0 0
  %1769 = vmatpush1.bf16.msra.mxu0 0
  %1770 = vmatprep.subr.bf16.mxu0 0
  %1771 = vmatpush1.bf16.msra.mxu0 0
  %1772 = vmatprep.subr.bf16.mxu0 0
  %1773 = vmatpush1.bf16.msra.mxu0 0
  %1774 = vmatprep.subr.bf16.mxu0 0
  %1775 = vmatpush1.bf16.msra.mxu0 0
  %1776 = vmatprep.subr.bf16.mxu0 0
  %1777 = vmatpush1.bf16.msra.mxu0 0
  %1778 = vmatprep.subr.bf16.mxu0 0
  %1779 = vmatpush1.bf16.msra.mxu0 0
  %1780 = vmatprep.subr.bf16.mxu0 0
  %1781 = vmatpush1.bf16.msra.mxu0 0
  %1782 = vmatprep.subr.bf16.mxu0 0
  %1783 = vmatpush1.bf16.msra.mxu0 0
  %1784 = vmatprep.subr.bf16.mxu0 0
  %1785 = vmatpush1.bf16.msra.mxu0 0
  %1786 = vmatprep.subr.bf16.mxu0 0
  %1787 = vmatpush1.bf16.msra.mxu0 0
  %1788 = vmatprep.subr.bf16.mxu0 0
  %1789 = vmatpush1.bf16.msra.mxu0 0
  %1790 = vmatprep.subr.bf16.mxu0 0
  %1791 = vmatpush1.bf16.msra.mxu0 0
  %1792 = vmatprep.subr.bf16.mxu0 0
  %1793 = vmatpush1.bf16.msra.mxu0 0
  %1794 = vmatprep.mubr.bf16.mxu0 0
  %1795 = vmatmul.mubr.bf16.gmra.mrb[0].mxu0 %v1384
  %v1796 = vpop.f32.mrb[0].mxu0
  %v1797 = vadd.f32 %v398, %v1796
  %v1798 = vpop.f32.mrb[0].mxu0
  %v1799 = vpop.f32.mrb[0].mxu0
  %v1800 = vpop.f32.mrb[0].mxu0
  %1801 = vdwg.mxu0
  %v1802 = vadd.f32 %v1761, %v1797
  %v1803 = vxor.u32 %v1802, 2147483648
  %v1804 = vmul.f32 %v1803, 1.442695
  %v1805 = vpow.pop %v1804
  %v1806 = vadd.f32 %v1805, 1.0
  %v1807 = vrcp.pop %v1806
  %v1808 = vmul.f32 1.0, %v1807
  %1810 = vrot.lane.b32.xlu0 %v1797, 64
  %v1811 = vpop.permute.xlu0 %1810
  %v1813 = vmul.f32 %v1808, %v1811
  %1815 = vrot.lane.b32.xlu0 %v1813, 64
  %v1816 = vpop.permute.xlu0 %1815
  %v1818 = vadd.f32 %v1761, %v1816
  %v1819 = vtanh.pop %v1818
  %v1820 = vsub.f32 1.0, %v1808
  %1822 = vrot.lane.b32.xlu0 %v1819, 96
  %v1823 = vpop.permute.xlu0 %1822
  %v1825 = vmul.f32 %v1820, %v1823
  %v1826 = vmul.f32 %v1808, %v1378
  %v1827 = vadd.f32 %v1825, %v1826
  %v1828 = vpack.c.bf16 %v1827, %v1827
  %1830 = vrot.lane.b32.xlu0 %v1828, 96
  %v1831 = vpop.permute.xlu0 %1830
  %v1833 = vsel %vm120, %v1831, 0
  %1835 = vmatprep.subr.bf16.mxu0 0
  %1836 = vmatpush1.bf16.msra.mxu0 %v92
  %1837 = vmatprep.subr.bf16.mxu0 0
  %1838 = vmatpush1.bf16.msra.mxu0 %v93
  %1839 = vmatprep.subr.bf16.mxu0 0
  %1840 = vmatpush1.bf16.msra.mxu0 0
  %1841 = vmatprep.subr.bf16.mxu0 0
  %1842 = vmatpush1.bf16.msra.mxu0 0
  %1843 = vmatprep.subr.bf16.mxu0 0
  %1844 = vmatpush1.bf16.msra.mxu0 0
  %1845 = vmatprep.subr.bf16.mxu0 0
  %1846 = vmatpush1.bf16.msra.mxu0 0
  %1847 = vmatprep.subr.bf16.mxu0 0
  %1848 = vmatpush1.bf16.msra.mxu0 0
  %1849 = vmatprep.subr.bf16.mxu0 0
  %1850 = vmatpush1.bf16.msra.mxu0 0
  %1851 = vmatprep.subr.bf16.mxu0 0
  %1852 = vmatpush1.bf16.msra.mxu0 0
  %1853 = vmatprep.subr.bf16.mxu0 0
  %1854 = vmatpush1.bf16.msra.mxu0 0
  %1855 = vmatprep.subr.bf16.mxu0 0
  %1856 = vmatpush1.bf16.msra.mxu0 0
  %1857 = vmatprep.subr.bf16.mxu0 0
  %1858 = vmatpush1.bf16.msra.mxu0 0
  %1859 = vmatprep.subr.bf16.mxu0 0
  %1860 = vmatpush1.bf16.msra.mxu0 0
  %1861 = vmatprep.subr.bf16.mxu0 0
  %1862 = vmatpush1.bf16.msra.mxu0 0
  %1863 = vmatprep.subr.bf16.mxu0 0
  %1864 = vmatpush1.bf16.msra.mxu0 0
  %1865 = vmatprep.subr.bf16.mxu0 0
  %1866 = vmatpush1.bf16.msra.mxu0 0
  %1867 = vmatprep.mubr.bf16.mxu0 0
  %1868 = vmatmul.mubr.bf16.gmra.mrb[0].mxu0 %v1833
  %v1869 = vpop.f32.mrb[0].mxu0
  %v1870 = vadd.f32 %v475, %v1869
  %v1871 = vpop.f32.mrb[0].mxu0
  %v1872 = vpop.f32.mrb[0].mxu0
  %v1873 = vpop.f32.mrb[0].mxu0
  %1874 = vdwg.mxu0
  %1875 = vmatprep.subr.bf16.mxu0 0
  %1876 = vmatpush1.bf16.msra.mxu0 %v98
  %1877 = vmatprep.subr.bf16.mxu0 0
  %1878 = vmatpush1.bf16.msra.mxu0 %v99
  %1879 = vmatprep.subr.bf16.mxu0 0
  %1880 = vmatpush1.bf16.msra.mxu0 0
  %1881 = vmatprep.subr.bf16.mxu0 0
  %1882 = vmatpush1.bf16.msra.mxu0 0
  %1883 = vmatprep.subr.bf16.mxu0 0
  %1884 = vmatpush1.bf16.msra.mxu0 0
  %1885 = vmatprep.subr.bf16.mxu0 0
  %1886 = vmatpush1.bf16.msra.mxu0 0
  %1887 = vmatprep.subr.bf16.mxu0 0
  %1888 = vmatpush1.bf16.msra.mxu0 0
  %1889 = vmatprep.subr.bf16.mxu0 0
  %1890 = vmatpush1.bf16.msra.mxu0 0
  %1891 = vmatprep.subr.bf16.mxu0 0
  %1892 = vmatpush1.bf16.msra.mxu0 0
  %1893 = vmatprep.subr.bf16.mxu0 0
  %1894 = vmatpush1.bf16.msra.mxu0 0
  %1895 = vmatprep.subr.bf16.mxu0 0
  %1896 = vmatpush1.bf16.msra.mxu0 0
  %1897 = vmatprep.subr.bf16.mxu0 0
  %1898 = vmatpush1.bf16.msra.mxu0 0
  %1899 = vmatprep.subr.bf16.mxu0 0
  %1900 = vmatpush1.bf16.msra.mxu0 0
  %1901 = vmatprep.subr.bf16.mxu0 0
  %1902 = vmatpush1.bf16.msra.mxu0 0
  %1903 = vmatprep.subr.bf16.mxu0 0
  %1904 = vmatpush1.bf16.msra.mxu0 0
  %1905 = vmatprep.subr.bf16.mxu0 0
  %1906 = vmatpush1.bf16.msra.mxu0 0
  %1907 = vmatprep.mubr.bf16.mxu0 0
  %1908 = vmatmul.mubr.bf16.gmra.mrb[0].mxu0 %v1503
  %v1909 = vpop.f32.mrb[0].mxu0
  %v1910 = vadd.f32 %v527, %v1909
  %v1911 = vpop.f32.mrb[0].mxu0
  %v1912 = vpop.f32.mrb[0].mxu0
  %v1913 = vpop.f32.mrb[0].mxu0
  %1914 = vdwg.mxu0
  %v1915 = vadd.f32 %v1870, %v1910
  %v1916 = vxor.u32 %v1915, 2147483648
  %v1917 = vmul.f32 %v1916, 1.442695
  %v1918 = vpow.pop %v1917
  %v1919 = vadd.f32 %v1918, 1.0
  %v1920 = vrcp.pop %v1919
  %v1921 = vmul.f32 1.0, %v1920
  %1923 = vrot.lane.b32.xlu0 %v1910, 64
  %v1924 = vpop.permute.xlu0 %1923
  %v1926 = vmul.f32 %v1921, %v1924
  %1928 = vrot.lane.b32.xlu0 %v1926, 64
  %v1929 = vpop.permute.xlu0 %1928
  %v1931 = vadd.f32 %v1870, %v1929
  %v1932 = vtanh.pop %v1931
  %v1933 = vsub.f32 1.0, %v1921
  %1935 = vrot.lane.b32.xlu0 %v1932, 96
  %v1936 = vpop.permute.xlu0 %1935
  %v1938 = vmul.f32 %v1933, %v1936
  %v1939 = vmul.f32 %v1921, %v1491
  %v1940 = vadd.f32 %v1938, %v1939
  %1942 = vrot.lane.b32.xlu0 %v1940, 96
  %v1943 = vpop.permute.xlu0 %1942
  %s1945 = scalar_lea.vmem %s16, 6
  %1946 = vst.msk [vmem:[%s1945] sm:$0x3] %vm186, %v1943
  %v1947 = vpack.c.bf16 %v1940, %v1940
  %1949 = vrot.lane.b32.xlu0 %v1947, 96
  %v1950 = vpop.permute.xlu0 %1949
  %v1952 = vsel %vm120, %v1950, 0
  %1954 = vmatprep.subr.bf16.mxu0 0
  %1955 = vmatpush1.bf16.msra.mxu0 %v108
  %1956 = vmatprep.subr.bf16.mxu0 0
  %1957 = vmatpush1.bf16.msra.mxu0 %v109
  %1958 = vmatprep.subr.bf16.mxu0 0
  %1959 = vmatpush1.bf16.msra.mxu0 0
  %1960 = vmatprep.subr.bf16.mxu0 0
  %1961 = vmatpush1.bf16.msra.mxu0 0
  %1962 = vmatprep.subr.bf16.mxu0 0
  %1963 = vmatpush1.bf16.msra.mxu0 0
  %1964 = vmatprep.subr.bf16.mxu0 0
  %1965 = vmatpush1.bf16.msra.mxu0 0
  %1966 = vmatprep.subr.bf16.mxu0 0
  %1967 = vmatpush1.bf16.msra.mxu0 0
  %1968 = vmatprep.subr.bf16.mxu0 0
  %1969 = vmatpush1.bf16.msra.mxu0 0
  %1970 = vmatprep.subr.bf16.mxu0 0
  %1971 = vmatpush1.bf16.msra.mxu0 0
  %1972 = vmatprep.subr.bf16.mxu0 0
  %1973 = vmatpush1.bf16.msra.mxu0 0
  %1974 = vmatprep.subr.bf16.mxu0 0
  %1975 = vmatpush1.bf16.msra.mxu0 0
  %1976 = vmatprep.subr.bf16.mxu0 0
  %1977 = vmatpush1.bf16.msra.mxu0 0
  %1978 = vmatprep.subr.bf16.mxu0 0
  %1979 = vmatpush1.bf16.msra.mxu0 0
  %1980 = vmatprep.subr.bf16.mxu0 0
  %1981 = vmatpush1.bf16.msra.mxu0 0
  %1982 = vmatprep.subr.bf16.mxu0 0
  %1983 = vmatpush1.bf16.msra.mxu0 0
  %1984 = vmatprep.subr.bf16.mxu0 0
  %1985 = vmatpush1.bf16.msra.mxu0 0
  %1986 = vmatprep.mubr.bf16.mxu0 0
  %1987 = vmatmul.mubr.bf16.gmra.mrb[0].mxu0 %v1952
  %v1988 = vpop.f32.mrb[0].mxu0
  %v1989 = vadd.f32 %v118, %v1988
  %v1990 = vpop.f32.mrb[0].mxu0
  %v1991 = vpop.f32.mrb[0].mxu0
  %v1992 = vpop.f32.mrb[0].mxu0
  %1993 = vdwg.mxu0
  %v1994 = vadd.f32 %v62, %v1989
  %v1995 = vadd.f32 %v63, %v1989
  %v1996 = vadd.f32 %v64, %v1989
  %v1997 = vadd.f32 %v65, %v1989
  %v1998 = vadd.f32 %v66, %v1989
  %v1999 = vadd.f32 %v67, %v1989
  %v2000 = vadd.f32 %v68, %v1989
  %v2001 = vadd.f32 %v69, %v1989
  %v2002 = vmul.f32 %v1994, %v176
  %v2003 = vmul.f32 %v1995, %v176
  %v2004 = vmul.f32 %v1996, %v176
  %v2005 = vmul.f32 %v1997, %v176
  %v2006 = vmul.f32 %v1998, %v176
  %v2007 = vmul.f32 %v1999, %v176
  %v2008 = vmul.f32 %v2000, %v176
  %v2009 = vmul.f32 %v2001, %v176
  %v2010 = vsel %vm186, %v2002, 0.0
  %2011 = vadd.xlane.f32.xlu0 %v2010
  %v2012 = vpop.xlane.xlu0 %2011
  %v2013 = vsel %vm186, %v2003, 0.0
  %2014 = vadd.xlane.f32.xlu0 %v2013
  %v2015 = vpop.xlane.xlu0 %2014
  %v2016 = vsel %vm186, %v2004, 0.0
  %2017 = vadd.xlane.f32.xlu0 %v2016
  %v2018 = vpop.xlane.xlu0 %2017
  %v2019 = vsel %vm186, %v2005, 0.0
  %2020 = vadd.xlane.f32.xlu0 %v2019
  %v2021 = vpop.xlane.xlu0 %2020
  %v2022 = vsel %vm186, %v2006, 0.0
  %2023 = vadd.xlane.f32.xlu0 %v2022
  %v2024 = vpop.xlane.xlu0 %2023
  %v2025 = vsel %vm186, %v2007, 0.0
  %2026 = vadd.xlane.f32.xlu0 %v2025
  %v2027 = vpop.xlane.xlu0 %2026
  %v2028 = vsel %vm186, %v2008, 0.0
  %2029 = vadd.xlane.f32.xlu0 %v2028
  %v2030 = vpop.xlane.xlu0 %2029
  %v2031 = vsel %vm186, %v2009, 0.0
  %2032 = vadd.xlane.f32.xlu0 %v2031
  %v2033 = vpop.xlane.xlu0 %2032
  %v2034 = vsel %vm211, %v2012, -inf
  %v2035 = vsel %vm211, %v2015, -inf
  %v2036 = vsel %vm211, %v2018, -inf
  %v2037 = vsel %vm211, %v2021, -inf
  %v2038 = vsel %vm211, %v2024, -inf
  %v2039 = vmax.f32 %v2034, %v2038
  %v2040 = vsel %vm211, %v2027, -inf
  %v2041 = vmax.f32 %v2035, %v2040
  %v2042 = vsel %vm211, %v2030, -inf
  %v2043 = vmax.f32 %v2036, %v2042
  %v2044 = vsel %vm211, %v2033, -inf
  %v2045 = vmax.f32 %v2037, %v2044
  %v2046 = vmax.f32 %v2039, %v2041
  %v2047 = vmax.f32 %v2043, %v2045
  %v2048 = vmax.f32 %v2046, %v2047
  %v2049 = vsub.f32 %v2012, %v2048
  %v2050 = vsub.f32 %v2015, %v2048
  %v2051 = vsub.f32 %v2018, %v2048
  %v2052 = vsub.f32 %v2021, %v2048
  %v2053 = vsub.f32 %v2024, %v2048
  %v2054 = vsub.f32 %v2027, %v2048
  %v2055 = vsub.f32 %v2030, %v2048
  %v2056 = vsub.f32 %v2033, %v2048
  %v2057 = vmul.f32 %v2049, 1.442695
  %v2058 = vpow.pop %v2057
  %v2059 = vmul.f32 %v2050, 1.442695
  %v2060 = vpow.pop %v2059
  %v2061 = vmul.f32 %v2051, 1.442695
  %v2062 = vpow.pop %v2061
  %v2063 = vmul.f32 %v2052, 1.442695
  %v2064 = vpow.pop %v2063
  %v2065 = vmul.f32 %v2053, 1.442695
  %v2066 = vpow.pop %v2065
  %v2067 = vmul.f32 %v2054, 1.442695
  %v2068 = vpow.pop %v2067
  %v2069 = vmul.f32 %v2055, 1.442695
  %v2070 = vpow.pop %v2069
  %v2071 = vmul.f32 %v2056, 1.442695
  %v2072 = vpow.pop %v2071
  %v2073 = vsel %vm211, %v2058, 0.0
  %v2074 = vsel %vm211, %v2060, 0.0
  %v2075 = vadd.f32 %v2073, %v2074
  %v2076 = vsel %vm211, %v2062, 0.0
  %v2077 = vadd.f32 %v2075, %v2076
  %v2078 = vsel %vm211, %v2064, 0.0
  %v2079 = vadd.f32 %v2077, %v2078
  %v2080 = vsel %vm211, %v2066, 0.0
  %v2081 = vadd.f32 %v2079, %v2080
  %v2082 = vsel %vm211, %v2068, 0.0
  %v2083 = vadd.f32 %v2081, %v2082
  %v2084 = vsel %vm211, %v2070, 0.0
  %v2085 = vadd.f32 %v2083, %v2084
  %v2086 = vsel %vm211, %v2072, 0.0
  %v2087 = vadd.f32 %v2085, %v2086
  %v2088 = vrcp.pop %v2087
  %v2089 = vmul.f32 %v2058, %v2088
  %v2090 = vmul.f32 %v2060, %v2088
  %v2091 = vmul.f32 %v2062, %v2088
  %v2092 = vmul.f32 %v2064, %v2088
  %v2093 = vmul.f32 %v2066, %v2088
  %v2094 = vmul.f32 %v2068, %v2088
  %v2095 = vmul.f32 %v2070, %v2088
  %v2096 = vmul.f32 %v2072, %v2088
  %v2097 = vmul.f32 %v2089, %v54
  %v2098 = vmul.f32 %v2090, %v55
  %v2099 = vmul.f32 %v2091, %v56
  %v2100 = vmul.f32 %v2092, %v57
  %v2101 = vmul.f32 %v2093, %v58
  %v2102 = vmul.f32 %v2094, %v59
  %v2103 = vmul.f32 %v2095, %v60
  %v2104 = vmul.f32 %v2096, %v61
  %v2105 = vsel %vm186, %v2097, 0.0
  %v2106 = vsel %vm186, %v2098, 0.0
  %v2107 = vadd.f32 %v2105, %v2106
  %v2108 = vsel %vm186, %v2099, 0.0
  %v2109 = vadd.f32 %v2107, %v2108
  %v2110 = vsel %vm186, %v2100, 0.0
  %v2111 = vadd.f32 %v2109, %v2110
  %v2112 = vsel %vm186, %v2101, 0.0
  %v2113 = vadd.f32 %v2111, %v2112
  %v2114 = vsel %vm186, %v2102, 0.0
  %v2115 = vadd.f32 %v2113, %v2114
  %v2116 = vsel %vm186, %v2103, 0.0
  %v2117 = vadd.f32 %v2115, %v2116
  %v2118 = vsel %vm186, %v2104, 0.0
  %v2119 = vadd.f32 %v2117, %v2118
  %s2120 = scalar_lea.vmem %s0, 8
  %v2121 = vld [vmem:[%s2120] sm:$0x3]
  %v2122 = vpack.c.bf16 %v2121, %v2121
  %v2123 = vpack.c.bf16 %v2119, %v2119
  %v2125 = vsel %vm120, %v2123, 0
  %2127 = vmatprep.subr.bf16.mxu0 0
  %2128 = vmatpush1.bf16.msra.mxu0 %v80
  %2129 = vmatprep.subr.bf16.mxu0 0
  %2130 = vmatpush1.bf16.msra.mxu0 %v81
  %2131 = vmatprep.subr.bf16.mxu0 0
  %2132 = vmatpush1.bf16.msra.mxu0 0
  %2133 = vmatprep.subr.bf16.mxu0 0
  %2134 = vmatpush1.bf16.msra.mxu0 0
  %2135 = vmatprep.subr.bf16.mxu0 0
  %2136 = vmatpush1.bf16.msra.mxu0 0
  %2137 = vmatprep.subr.bf16.mxu0 0
  %2138 = vmatpush1.bf16.msra.mxu0 0
  %2139 = vmatprep.subr.bf16.mxu0 0
  %2140 = vmatpush1.bf16.msra.mxu0 0
  %2141 = vmatprep.subr.bf16.mxu0 0
  %2142 = vmatpush1.bf16.msra.mxu0 0
  %2143 = vmatprep.subr.bf16.mxu0 0
  %2144 = vmatpush1.bf16.msra.mxu0 0
  %2145 = vmatprep.subr.bf16.mxu0 0
  %2146 = vmatpush1.bf16.msra.mxu0 0
  %2147 = vmatprep.subr.bf16.mxu0 0
  %2148 = vmatpush1.bf16.msra.mxu0 0
  %2149 = vmatprep.subr.bf16.mxu0 0
  %2150 = vmatpush1.bf16.msra.mxu0 0
  %2151 = vmatprep.subr.bf16.mxu0 0
  %2152 = vmatpush1.bf16.msra.mxu0 0
  %2153 = vmatprep.subr.bf16.mxu0 0
  %2154 = vmatpush1.bf16.msra.mxu0 0
  %2155 = vmatprep.subr.bf16.mxu0 0
  %2156 = vmatpush1.bf16.msra.mxu0 0
  %2157 = vmatprep.subr.bf16.mxu0 0
  %2158 = vmatpush1.bf16.msra.mxu0 0
  %2159 = vmatprep.mubr.bf16.mxu0 0
  %2160 = vmatmul.mubr.bf16.gmra.mrb[0].mxu0 %v2125
  %v2161 = vpop.f32.mrb[0].mxu0
  %v2162 = vadd.f32 0.0, %v2161
  %v2163 = vpop.f32.mrb[0].mxu0
  %v2164 = vpop.f32.mrb[0].mxu0
  %v2165 = vpop.f32.mrb[0].mxu0
  %2166 = vdwg.mxu0
  %v2168 = vsel %vm120, %v2122, 0
  %2170 = vmatprep.subr.bf16.mxu0 0
  %2171 = vmatpush1.bf16.msra.mxu0 %v74
  %2172 = vmatprep.subr.bf16.mxu0 0
  %2173 = vmatpush1.bf16.msra.mxu0 %v75
  %2174 = vmatprep.subr.bf16.mxu0 0
  %2175 = vmatpush1.bf16.msra.mxu0 0
  %2176 = vmatprep.subr.bf16.mxu0 0
  %2177 = vmatpush1.bf16.msra.mxu0 0
  %2178 = vmatprep.subr.bf16.mxu0 0
  %2179 = vmatpush1.bf16.msra.mxu0 0
  %2180 = vmatprep.subr.bf16.mxu0 0
  %2181 = vmatpush1.bf16.msra.mxu0 0
  %2182 = vmatprep.subr.bf16.mxu0 0
  %2183 = vmatpush1.bf16.msra.mxu0 0
  %2184 = vmatprep.subr.bf16.mxu0 0
  %2185 = vmatpush1.bf16.msra.mxu0 0
  %2186 = vmatprep.subr.bf16.mxu0 0
  %2187 = vmatpush1.bf16.msra.mxu0 0
  %2188 = vmatprep.subr.bf16.mxu0 0
  %2189 = vmatpush1.bf16.msra.mxu0 0
  %2190 = vmatprep.subr.bf16.mxu0 0
  %2191 = vmatpush1.bf16.msra.mxu0 0
  %2192 = vmatprep.subr.bf16.mxu0 0
  %2193 = vmatpush1.bf16.msra.mxu0 0
  %2194 = vmatprep.subr.bf16.mxu0 0
  %2195 = vmatpush1.bf16.msra.mxu0 0
  %2196 = vmatprep.subr.bf16.mxu0 0
  %2197 = vmatpush1.bf16.msra.mxu0 0
  %2198 = vmatprep.subr.bf16.mxu0 0
  %2199 = vmatpush1.bf16.msra.mxu0 0
  %2200 = vmatprep.subr.bf16.mxu0 0
  %2201 = vmatpush1.bf16.msra.mxu0 0
  %2202 = vmatprep.mubr.bf16.mxu0 0
  %2203 = vmatmul.mubr.bf16.gmra.mrb[0].mxu0 %v2168
  %v2204 = vpop.f32.mrb[0].mxu0
  %v2205 = vadd.f32 %v2162, %v2204
  %v2206 = vpop.f32.mrb[0].mxu0
  %v2207 = vpop.f32.mrb[0].mxu0
  %v2208 = vpop.f32.mrb[0].mxu0
  %2209 = vdwg.mxu0
  %v2210 = vadd.f32 %v2205, %v391
  %2211 = vmatprep.subr.bf16.mxu0 0
  %2212 = vmatpush1.bf16.msra.mxu0 %v86
  %2213 = vmatprep.subr.bf16.mxu0 0
  %2214 = vmatpush1.bf16.msra.mxu0 %v87
  %2215 = vmatprep.subr.bf16.mxu0 0
  %2216 = vmatpush1.bf16.msra.mxu0 0
  %2217 = vmatprep.subr.bf16.mxu0 0
  %2218 = vmatpush1.bf16.msra.mxu0 0
  %2219 = vmatprep.subr.bf16.mxu0 0
  %2220 = vmatpush1.bf16.msra.mxu0 0
  %2221 = vmatprep.subr.bf16.mxu0 0
  %2222 = vmatpush1.bf16.msra.mxu0 0
  %2223 = vmatprep.subr.bf16.mxu0 0
  %2224 = vmatpush1.bf16.msra.mxu0 0
  %2225 = vmatprep.subr.bf16.mxu0 0
  %2226 = vmatpush1.bf16.msra.mxu0 0
  %2227 = vmatprep.subr.bf16.mxu0 0
  %2228 = vmatpush1.bf16.msra.mxu0 0
  %2229 = vmatprep.subr.bf16.mxu0 0
  %2230 = vmatpush1.bf16.msra.mxu0 0
  %2231 = vmatprep.subr.bf16.mxu0 0
  %2232 = vmatpush1.bf16.msra.mxu0 0
  %2233 = vmatprep.subr.bf16.mxu0 0
  %2234 = vmatpush1.bf16.msra.mxu0 0
  %2235 = vmatprep.subr.bf16.mxu0 0
  %2236 = vmatpush1.bf16.msra.mxu0 0
  %2237 = vmatprep.subr.bf16.mxu0 0
  %2238 = vmatpush1.bf16.msra.mxu0 0
  %2239 = vmatprep.subr.bf16.mxu0 0
  %2240 = vmatpush1.bf16.msra.mxu0 0
  %2241 = vmatprep.subr.bf16.mxu0 0
  %2242 = vmatpush1.bf16.msra.mxu0 0
  %2243 = vmatprep.mubr.bf16.mxu0 0
  %2244 = vmatmul.mubr.bf16.gmra.mrb[0].mxu0 %v1833
  %v2245 = vpop.f32.mrb[0].mxu0
  %v2246 = vadd.f32 %v398, %v2245
  %v2247 = vpop.f32.mrb[0].mxu0
  %v2248 = vpop.f32.mrb[0].mxu0
  %v2249 = vpop.f32.mrb[0].mxu0
  %2250 = vdwg.mxu0
  %v2251 = vadd.f32 %v2210, %v2246
  %v2252 = vxor.u32 %v2251, 2147483648
  %v2253 = vmul.f32 %v2252, 1.442695
  %v2254 = vpow.pop %v2253
  %v2255 = vadd.f32 %v2254, 1.0
  %v2256 = vrcp.pop %v2255
  %v2257 = vmul.f32 1.0, %v2256
  %2259 = vrot.lane.b32.xlu0 %v2246, 64
  %v2260 = vpop.permute.xlu0 %2259
  %v2262 = vmul.f32 %v2257, %v2260
  %2264 = vrot.lane.b32.xlu0 %v2262, 64
  %v2265 = vpop.permute.xlu0 %2264
  %v2267 = vadd.f32 %v2210, %v2265
  %v2268 = vtanh.pop %v2267
  %v2269 = vsub.f32 1.0, %v2257
  %2271 = vrot.lane.b32.xlu0 %v2268, 96
  %v2272 = vpop.permute.xlu0 %2271
  %v2274 = vmul.f32 %v2269, %v2272
  %v2275 = vmul.f32 %v2257, %v1827
  %v2276 = vadd.f32 %v2274, %v2275
  %v2277 = vpack.c.bf16 %v2276, %v2276
  %2279 = vrot.lane.b32.xlu0 %v2277, 96
  %v2280 = vpop.permute.xlu0 %2279
  %v2282 = vsel %vm120, %v2280, 0
  %2284 = vmatprep.subr.bf16.mxu0 0
  %2285 = vmatpush1.bf16.msra.mxu0 %v92
  %2286 = vmatprep.subr.bf16.mxu0 0
  %2287 = vmatpush1.bf16.msra.mxu0 %v93
  %2288 = vmatprep.subr.bf16.mxu0 0
  %2289 = vmatpush1.bf16.msra.mxu0 0
  %2290 = vmatprep.subr.bf16.mxu0 0
  %2291 = vmatpush1.bf16.msra.mxu0 0
  %2292 = vmatprep.subr.bf16.mxu0 0
  %2293 = vmatpush1.bf16.msra.mxu0 0
  %2294 = vmatprep.subr.bf16.mxu0 0
  %2295 = vmatpush1.bf16.msra.mxu0 0
  %2296 = vmatprep.subr.bf16.mxu0 0
  %2297 = vmatpush1.bf16.msra.mxu0 0
  %2298 = vmatprep.subr.bf16.mxu0 0
  %2299 = vmatpush1.bf16.msra.mxu0 0
  %2300 = vmatprep.subr.bf16.mxu0 0
  %2301 = vmatpush1.bf16.msra.mxu0 0
  %2302 = vmatprep.subr.bf16.mxu0 0
  %2303 = vmatpush1.bf16.msra.mxu0 0
  %2304 = vmatprep.subr.bf16.mxu0 0
  %2305 = vmatpush1.bf16.msra.mxu0 0
  %2306 = vmatprep.subr.bf16.mxu0 0
  %2307 = vmatpush1.bf16.msra.mxu0 0
  %2308 = vmatprep.subr.bf16.mxu0 0
  %2309 = vmatpush1.bf16.msra.mxu0 0
  %2310 = vmatprep.subr.bf16.mxu0 0
  %2311 = vmatpush1.bf16.msra.mxu0 0
  %2312 = vmatprep.subr.bf16.mxu0 0
  %2313 = vmatpush1.bf16.msra.mxu0 0
  %2314 = vmatprep.subr.bf16.mxu0 0
  %2315 = vmatpush1.bf16.msra.mxu0 0
  %2316 = vmatprep.mubr.bf16.mxu0 0
  %2317 = vmatmul.mubr.bf16.gmra.mrb[0].mxu0 %v2282
  %v2318 = vpop.f32.mrb[0].mxu0
  %v2319 = vadd.f32 %v475, %v2318
  %v2320 = vpop.f32.mrb[0].mxu0
  %v2321 = vpop.f32.mrb[0].mxu0
  %v2322 = vpop.f32.mrb[0].mxu0
  %2323 = vdwg.mxu0
  %2324 = vmatprep.subr.bf16.mxu0 0
  %2325 = vmatpush1.bf16.msra.mxu0 %v98
  %2326 = vmatprep.subr.bf16.mxu0 0
  %2327 = vmatpush1.bf16.msra.mxu0 %v99
  %2328 = vmatprep.subr.bf16.mxu0 0
  %2329 = vmatpush1.bf16.msra.mxu0 0
  %2330 = vmatprep.subr.bf16.mxu0 0
  %2331 = vmatpush1.bf16.msra.mxu0 0
  %2332 = vmatprep.subr.bf16.mxu0 0
  %2333 = vmatpush1.bf16.msra.mxu0 0
  %2334 = vmatprep.subr.bf16.mxu0 0
  %2335 = vmatpush1.bf16.msra.mxu0 0
  %2336 = vmatprep.subr.bf16.mxu0 0
  %2337 = vmatpush1.bf16.msra.mxu0 0
  %2338 = vmatprep.subr.bf16.mxu0 0
  %2339 = vmatpush1.bf16.msra.mxu0 0
  %2340 = vmatprep.subr.bf16.mxu0 0
  %2341 = vmatpush1.bf16.msra.mxu0 0
  %2342 = vmatprep.subr.bf16.mxu0 0
  %2343 = vmatpush1.bf16.msra.mxu0 0
  %2344 = vmatprep.subr.bf16.mxu0 0
  %2345 = vmatpush1.bf16.msra.mxu0 0
  %2346 = vmatprep.subr.bf16.mxu0 0
  %2347 = vmatpush1.bf16.msra.mxu0 0
  %2348 = vmatprep.subr.bf16.mxu0 0
  %2349 = vmatpush1.bf16.msra.mxu0 0
  %2350 = vmatprep.subr.bf16.mxu0 0
  %2351 = vmatpush1.bf16.msra.mxu0 0
  %2352 = vmatprep.subr.bf16.mxu0 0
  %2353 = vmatpush1.bf16.msra.mxu0 0
  %2354 = vmatprep.subr.bf16.mxu0 0
  %2355 = vmatpush1.bf16.msra.mxu0 0
  %2356 = vmatprep.mubr.bf16.mxu0 0
  %2357 = vmatmul.mubr.bf16.gmra.mrb[0].mxu0 %v1952
  %v2358 = vpop.f32.mrb[0].mxu0
  %v2359 = vadd.f32 %v527, %v2358
  %v2360 = vpop.f32.mrb[0].mxu0
  %v2361 = vpop.f32.mrb[0].mxu0
  %v2362 = vpop.f32.mrb[0].mxu0
  %2363 = vdwg.mxu0
  %v2364 = vadd.f32 %v2319, %v2359
  %v2365 = vxor.u32 %v2364, 2147483648
  %v2366 = vmul.f32 %v2365, 1.442695
  %v2367 = vpow.pop %v2366
  %v2368 = vadd.f32 %v2367, 1.0
  %v2369 = vrcp.pop %v2368
  %v2370 = vmul.f32 1.0, %v2369
  %2372 = vrot.lane.b32.xlu0 %v2359, 64
  %v2373 = vpop.permute.xlu0 %2372
  %v2375 = vmul.f32 %v2370, %v2373
  %2377 = vrot.lane.b32.xlu0 %v2375, 64
  %v2378 = vpop.permute.xlu0 %2377
  %v2380 = vadd.f32 %v2319, %v2378
  %v2381 = vtanh.pop %v2380
  %v2382 = vsub.f32 1.0, %v2370
  %2384 = vrot.lane.b32.xlu0 %v2381, 96
  %v2385 = vpop.permute.xlu0 %2384
  %v2387 = vmul.f32 %v2382, %v2385
  %v2388 = vmul.f32 %v2370, %v1940
  %v2389 = vadd.f32 %v2387, %v2388
  %2391 = vrot.lane.b32.xlu0 %v2389, 96
  %v2392 = vpop.permute.xlu0 %2391
  %s2394 = scalar_lea.vmem %s16, 8
  %2395 = vst.msk [vmem:[%s2394] sm:$0x3] %vm186, %v2392
  %v2396 = vpack.c.bf16 %v2389, %v2389
  %2398 = vrot.lane.b32.xlu0 %v2396, 96
  %v2399 = vpop.permute.xlu0 %2398
  %v2401 = vsel %vm120, %v2399, 0
  %2403 = vmatprep.subr.bf16.mxu0 0
  %2404 = vmatpush1.bf16.msra.mxu0 %v108
  %2405 = vmatprep.subr.bf16.mxu0 0
  %2406 = vmatpush1.bf16.msra.mxu0 %v109
  %2407 = vmatprep.subr.bf16.mxu0 0
  %2408 = vmatpush1.bf16.msra.mxu0 0
  %2409 = vmatprep.subr.bf16.mxu0 0
  %2410 = vmatpush1.bf16.msra.mxu0 0
  %2411 = vmatprep.subr.bf16.mxu0 0
  %2412 = vmatpush1.bf16.msra.mxu0 0
  %2413 = vmatprep.subr.bf16.mxu0 0
  %2414 = vmatpush1.bf16.msra.mxu0 0
  %2415 = vmatprep.subr.bf16.mxu0 0
  %2416 = vmatpush1.bf16.msra.mxu0 0
  %2417 = vmatprep.subr.bf16.mxu0 0
  %2418 = vmatpush1.bf16.msra.mxu0 0
  %2419 = vmatprep.subr.bf16.mxu0 0
  %2420 = vmatpush1.bf16.msra.mxu0 0
  %2421 = vmatprep.subr.bf16.mxu0 0
  %2422 = vmatpush1.bf16.msra.mxu0 0
  %2423 = vmatprep.subr.bf16.mxu0 0
  %2424 = vmatpush1.bf16.msra.mxu0 0
  %2425 = vmatprep.subr.bf16.mxu0 0
  %2426 = vmatpush1.bf16.msra.mxu0 0
  %2427 = vmatprep.subr.bf16.mxu0 0
  %2428 = vmatpush1.bf16.msra.mxu0 0
  %2429 = vmatprep.subr.bf16.mxu0 0
  %2430 = vmatpush1.bf16.msra.mxu0 0
  %2431 = vmatprep.subr.bf16.mxu0 0
  %2432 = vmatpush1.bf16.msra.mxu0 0
  %2433 = vmatprep.subr.bf16.mxu0 0
  %2434 = vmatpush1.bf16.msra.mxu0 0
  %2435 = vmatprep.mubr.bf16.mxu0 0
  %2436 = vmatmul.mubr.bf16.gmra.mrb[0].mxu0 %v2401
  %v2437 = vpop.f32.mrb[0].mxu0
  %v2438 = vadd.f32 %v118, %v2437
  %v2439 = vpop.f32.mrb[0].mxu0
  %v2440 = vpop.f32.mrb[0].mxu0
  %v2441 = vpop.f32.mrb[0].mxu0
  %2442 = vdwg.mxu0
  %v2443 = vadd.f32 %v62, %v2438
  %v2444 = vadd.f32 %v63, %v2438
  %v2445 = vadd.f32 %v64, %v2438
  %v2446 = vadd.f32 %v65, %v2438
  %v2447 = vadd.f32 %v66, %v2438
  %v2448 = vadd.f32 %v67, %v2438
  %v2449 = vadd.f32 %v68, %v2438
  %v2450 = vadd.f32 %v69, %v2438
  %v2451 = vmul.f32 %v2443, %v176
  %v2452 = vmul.f32 %v2444, %v176
  %v2453 = vmul.f32 %v2445, %v176
  %v2454 = vmul.f32 %v2446, %v176
  %v2455 = vmul.f32 %v2447, %v176
  %v2456 = vmul.f32 %v2448, %v176
  %v2457 = vmul.f32 %v2449, %v176
  %v2458 = vmul.f32 %v2450, %v176
  %v2459 = vsel %vm186, %v2451, 0.0
  %2460 = vadd.xlane.f32.xlu0 %v2459
  %v2461 = vpop.xlane.xlu0 %2460
  %v2462 = vsel %vm186, %v2452, 0.0
  %2463 = vadd.xlane.f32.xlu0 %v2462
  %v2464 = vpop.xlane.xlu0 %2463
  %v2465 = vsel %vm186, %v2453, 0.0
  %2466 = vadd.xlane.f32.xlu0 %v2465
  %v2467 = vpop.xlane.xlu0 %2466
  %v2468 = vsel %vm186, %v2454, 0.0
  %2469 = vadd.xlane.f32.xlu0 %v2468
  %v2470 = vpop.xlane.xlu0 %2469
  %v2471 = vsel %vm186, %v2455, 0.0
  %2472 = vadd.xlane.f32.xlu0 %v2471
  %v2473 = vpop.xlane.xlu0 %2472
  %v2474 = vsel %vm186, %v2456, 0.0
  %2475 = vadd.xlane.f32.xlu0 %v2474
  %v2476 = vpop.xlane.xlu0 %2475
  %v2477 = vsel %vm186, %v2457, 0.0
  %2478 = vadd.xlane.f32.xlu0 %v2477
  %v2479 = vpop.xlane.xlu0 %2478
  %v2480 = vsel %vm186, %v2458, 0.0
  %2481 = vadd.xlane.f32.xlu0 %v2480
  %v2482 = vpop.xlane.xlu0 %2481
  %v2483 = vsel %vm211, %v2461, -inf
  %v2484 = vsel %vm211, %v2464, -inf
  %v2485 = vsel %vm211, %v2467, -inf
  %v2486 = vsel %vm211, %v2470, -inf
  %v2487 = vsel %vm211, %v2473, -inf
  %v2488 = vmax.f32 %v2483, %v2487
  %v2489 = vsel %vm211, %v2476, -inf
  %v2490 = vmax.f32 %v2484, %v2489
  %v2491 = vsel %vm211, %v2479, -inf
  %v2492 = vmax.f32 %v2485, %v2491
  %v2493 = vsel %vm211, %v2482, -inf
  %v2494 = vmax.f32 %v2486, %v2493
  %v2495 = vmax.f32 %v2488, %v2490
  %v2496 = vmax.f32 %v2492, %v2494
  %v2497 = vmax.f32 %v2495, %v2496
  %v2498 = vsub.f32 %v2461, %v2497
  %v2499 = vsub.f32 %v2464, %v2497
  %v2500 = vsub.f32 %v2467, %v2497
  %v2501 = vsub.f32 %v2470, %v2497
  %v2502 = vsub.f32 %v2473, %v2497
  %v2503 = vsub.f32 %v2476, %v2497
  %v2504 = vsub.f32 %v2479, %v2497
  %v2505 = vsub.f32 %v2482, %v2497
  %v2506 = vmul.f32 %v2498, 1.442695
  %v2507 = vpow.pop %v2506
  %v2508 = vmul.f32 %v2499, 1.442695
  %v2509 = vpow.pop %v2508
  %v2510 = vmul.f32 %v2500, 1.442695
  %v2511 = vpow.pop %v2510
  %v2512 = vmul.f32 %v2501, 1.442695
  %v2513 = vpow.pop %v2512
  %v2514 = vmul.f32 %v2502, 1.442695
  %v2515 = vpow.pop %v2514
  %v2516 = vmul.f32 %v2503, 1.442695
  %v2517 = vpow.pop %v2516
  %v2518 = vmul.f32 %v2504, 1.442695
  %v2519 = vpow.pop %v2518
  %v2520 = vmul.f32 %v2505, 1.442695
  %v2521 = vpow.pop %v2520
  %v2522 = vsel %vm211, %v2507, 0.0
  %v2523 = vsel %vm211, %v2509, 0.0
  %v2524 = vadd.f32 %v2522, %v2523
  %v2525 = vsel %vm211, %v2511, 0.0
  %v2526 = vadd.f32 %v2524, %v2525
  %v2527 = vsel %vm211, %v2513, 0.0
  %v2528 = vadd.f32 %v2526, %v2527
  %v2529 = vsel %vm211, %v2515, 0.0
  %v2530 = vadd.f32 %v2528, %v2529
  %v2531 = vsel %vm211, %v2517, 0.0
  %v2532 = vadd.f32 %v2530, %v2531
  %v2533 = vsel %vm211, %v2519, 0.0
  %v2534 = vadd.f32 %v2532, %v2533
  %v2535 = vsel %vm211, %v2521, 0.0
  %v2536 = vadd.f32 %v2534, %v2535
  %v2537 = vrcp.pop %v2536
  %v2538 = vmul.f32 %v2507, %v2537
  %v2539 = vmul.f32 %v2509, %v2537
  %v2540 = vmul.f32 %v2511, %v2537
  %v2541 = vmul.f32 %v2513, %v2537
  %v2542 = vmul.f32 %v2515, %v2537
  %v2543 = vmul.f32 %v2517, %v2537
  %v2544 = vmul.f32 %v2519, %v2537
  %v2545 = vmul.f32 %v2521, %v2537
  %v2546 = vmul.f32 %v2538, %v54
  %v2547 = vmul.f32 %v2539, %v55
  %v2548 = vmul.f32 %v2540, %v56
  %v2549 = vmul.f32 %v2541, %v57
  %v2550 = vmul.f32 %v2542, %v58
  %v2551 = vmul.f32 %v2543, %v59
  %v2552 = vmul.f32 %v2544, %v60
  %v2553 = vmul.f32 %v2545, %v61
  %v2554 = vsel %vm186, %v2546, 0.0
  %v2555 = vsel %vm186, %v2547, 0.0
  %v2556 = vadd.f32 %v2554, %v2555
  %v2557 = vsel %vm186, %v2548, 0.0
  %v2558 = vadd.f32 %v2556, %v2557
  %v2559 = vsel %vm186, %v2549, 0.0
  %v2560 = vadd.f32 %v2558, %v2559
  %v2561 = vsel %vm186, %v2550, 0.0
  %v2562 = vadd.f32 %v2560, %v2561
  %v2563 = vsel %vm186, %v2551, 0.0
  %v2564 = vadd.f32 %v2562, %v2563
  %v2565 = vsel %vm186, %v2552, 0.0
  %v2566 = vadd.f32 %v2564, %v2565
  %v2567 = vsel %vm186, %v2553, 0.0
  %v2568 = vadd.f32 %v2566, %v2567
  %s2569 = scalar_lea.vmem %s0, 10
  %v2570 = vld [vmem:[%s2569] sm:$0x3]
  %v2571 = vpack.c.bf16 %v2570, %v2570
  %v2572 = vpack.c.bf16 %v2568, %v2568
  %v2574 = vsel %vm120, %v2572, 0
  %2576 = vmatprep.subr.bf16.mxu0 0
  %2577 = vmatpush1.bf16.msra.mxu0 %v80
  %2578 = vmatprep.subr.bf16.mxu0 0
  %2579 = vmatpush1.bf16.msra.mxu0 %v81
  %2580 = vmatprep.subr.bf16.mxu0 0
  %2581 = vmatpush1.bf16.msra.mxu0 0
  %2582 = vmatprep.subr.bf16.mxu0 0
  %2583 = vmatpush1.bf16.msra.mxu0 0
  %2584 = vmatprep.subr.bf16.mxu0 0
  %2585 = vmatpush1.bf16.msra.mxu0 0
  %2586 = vmatprep.subr.bf16.mxu0 0
  %2587 = vmatpush1.bf16.msra.mxu0 0
  %2588 = vmatprep.subr.bf16.mxu0 0
  %2589 = vmatpush1.bf16.msra.mxu0 0
  %2590 = vmatprep.subr.bf16.mxu0 0
  %2591 = vmatpush1.bf16.msra.mxu0 0
  %2592 = vmatprep.subr.bf16.mxu0 0
  %2593 = vmatpush1.bf16.msra.mxu0 0
  %2594 = vmatprep.subr.bf16.mxu0 0
  %2595 = vmatpush1.bf16.msra.mxu0 0
  %2596 = vmatprep.subr.bf16.mxu0 0
  %2597 = vmatpush1.bf16.msra.mxu0 0
  %2598 = vmatprep.subr.bf16.mxu0 0
  %2599 = vmatpush1.bf16.msra.mxu0 0
  %2600 = vmatprep.subr.bf16.mxu0 0
  %2601 = vmatpush1.bf16.msra.mxu0 0
  %2602 = vmatprep.subr.bf16.mxu0 0
  %2603 = vmatpush1.bf16.msra.mxu0 0
  %2604 = vmatprep.subr.bf16.mxu0 0
  %2605 = vmatpush1.bf16.msra.mxu0 0
  %2606 = vmatprep.subr.bf16.mxu0 0
  %2607 = vmatpush1.bf16.msra.mxu0 0
  %2608 = vmatprep.mubr.bf16.mxu0 0
  %2609 = vmatmul.mubr.bf16.gmra.mrb[0].mxu0 %v2574
  %v2610 = vpop.f32.mrb[0].mxu0
  %v2611 = vadd.f32 0.0, %v2610
  %v2612 = vpop.f32.mrb[0].mxu0
  %v2613 = vpop.f32.mrb[0].mxu0
  %v2614 = vpop.f32.mrb[0].mxu0
  %2615 = vdwg.mxu0
  %v2617 = vsel %vm120, %v2571, 0
  %2619 = vmatprep.subr.bf16.mxu0 0
  %2620 = vmatpush1.bf16.msra.mxu0 %v74
  %2621 = vmatprep.subr.bf16.mxu0 0
  %2622 = vmatpush1.bf16.msra.mxu0 %v75
  %2623 = vmatprep.subr.bf16.mxu0 0
  %2624 = vmatpush1.bf16.msra.mxu0 0
  %2625 = vmatprep.subr.bf16.mxu0 0
  %2626 = vmatpush1.bf16.msra.mxu0 0
  %2627 = vmatprep.subr.bf16.mxu0 0
  %2628 = vmatpush1.bf16.msra.mxu0 0
  %2629 = vmatprep.subr.bf16.mxu0 0
  %2630 = vmatpush1.bf16.msra.mxu0 0
  %2631 = vmatprep.subr.bf16.mxu0 0
  %2632 = vmatpush1.bf16.msra.mxu0 0
  %2633 = vmatprep.subr.bf16.mxu0 0
  %2634 = vmatpush1.bf16.msra.mxu0 0
  %2635 = vmatprep.subr.bf16.mxu0 0
  %2636 = vmatpush1.bf16.msra.mxu0 0
  %2637 = vmatprep.subr.bf16.mxu0 0
  %2638 = vmatpush1.bf16.msra.mxu0 0
  %2639 = vmatprep.subr.bf16.mxu0 0
  %2640 = vmatpush1.bf16.msra.mxu0 0
  %2641 = vmatprep.subr.bf16.mxu0 0
  %2642 = vmatpush1.bf16.msra.mxu0 0
  %2643 = vmatprep.subr.bf16.mxu0 0
  %2644 = vmatpush1.bf16.msra.mxu0 0
  %2645 = vmatprep.subr.bf16.mxu0 0
  %2646 = vmatpush1.bf16.msra.mxu0 0
  %2647 = vmatprep.subr.bf16.mxu0 0
  %2648 = vmatpush1.bf16.msra.mxu0 0
  %2649 = vmatprep.subr.bf16.mxu0 0
  %2650 = vmatpush1.bf16.msra.mxu0 0
  %2651 = vmatprep.mubr.bf16.mxu0 0
  %2652 = vmatmul.mubr.bf16.gmra.mrb[0].mxu0 %v2617
  %v2653 = vpop.f32.mrb[0].mxu0
  %v2654 = vadd.f32 %v2611, %v2653
  %v2655 = vpop.f32.mrb[0].mxu0
  %v2656 = vpop.f32.mrb[0].mxu0
  %v2657 = vpop.f32.mrb[0].mxu0
  %2658 = vdwg.mxu0
  %v2659 = vadd.f32 %v2654, %v391
  %2660 = vmatprep.subr.bf16.mxu0 0
  %2661 = vmatpush1.bf16.msra.mxu0 %v86
  %2662 = vmatprep.subr.bf16.mxu0 0
  %2663 = vmatpush1.bf16.msra.mxu0 %v87
  %2664 = vmatprep.subr.bf16.mxu0 0
  %2665 = vmatpush1.bf16.msra.mxu0 0
  %2666 = vmatprep.subr.bf16.mxu0 0
  %2667 = vmatpush1.bf16.msra.mxu0 0
  %2668 = vmatprep.subr.bf16.mxu0 0
  %2669 = vmatpush1.bf16.msra.mxu0 0
  %2670 = vmatprep.subr.bf16.mxu0 0
  %2671 = vmatpush1.bf16.msra.mxu0 0
  %2672 = vmatprep.subr.bf16.mxu0 0
  %2673 = vmatpush1.bf16.msra.mxu0 0
  %2674 = vmatprep.subr.bf16.mxu0 0
  %2675 = vmatpush1.bf16.msra.mxu0 0
  %2676 = vmatprep.subr.bf16.mxu0 0
  %2677 = vmatpush1.bf16.msra.mxu0 0
  %2678 = vmatprep.subr.bf16.mxu0 0
  %2679 = vmatpush1.bf16.msra.mxu0 0
  %2680 = vmatprep.subr.bf16.mxu0 0
  %2681 = vmatpush1.bf16.msra.mxu0 0
  %2682 = vmatprep.subr.bf16.mxu0 0
  %2683 = vmatpush1.bf16.msra.mxu0 0
  %2684 = vmatprep.subr.bf16.mxu0 0
  %2685 = vmatpush1.bf16.msra.mxu0 0
  %2686 = vmatprep.subr.bf16.mxu0 0
  %2687 = vmatpush1.bf16.msra.mxu0 0
  %2688 = vmatprep.subr.bf16.mxu0 0
  %2689 = vmatpush1.bf16.msra.mxu0 0
  %2690 = vmatprep.subr.bf16.mxu0 0
  %2691 = vmatpush1.bf16.msra.mxu0 0
  %2692 = vmatprep.mubr.bf16.mxu0 0
  %2693 = vmatmul.mubr.bf16.gmra.mrb[0].mxu0 %v2282
  %v2694 = vpop.f32.mrb[0].mxu0
  %v2695 = vadd.f32 %v398, %v2694
  %v2696 = vpop.f32.mrb[0].mxu0
  %v2697 = vpop.f32.mrb[0].mxu0
  %v2698 = vpop.f32.mrb[0].mxu0
  %2699 = vdwg.mxu0
  %v2700 = vadd.f32 %v2659, %v2695
  %v2701 = vxor.u32 %v2700, 2147483648
  %v2702 = vmul.f32 %v2701, 1.442695
  %v2703 = vpow.pop %v2702
  %v2704 = vadd.f32 %v2703, 1.0
  %v2705 = vrcp.pop %v2704
  %v2706 = vmul.f32 1.0, %v2705
  %2708 = vrot.lane.b32.xlu0 %v2695, 64
  %v2709 = vpop.permute.xlu0 %2708
  %v2711 = vmul.f32 %v2706, %v2709
  %2713 = vrot.lane.b32.xlu0 %v2711, 64
  %v2714 = vpop.permute.xlu0 %2713
  %v2716 = vadd.f32 %v2659, %v2714
  %v2717 = vtanh.pop %v2716
  %v2718 = vsub.f32 1.0, %v2706
  %2720 = vrot.lane.b32.xlu0 %v2717, 96
  %v2721 = vpop.permute.xlu0 %2720
  %v2723 = vmul.f32 %v2718, %v2721
  %v2724 = vmul.f32 %v2706, %v2276
  %v2725 = vadd.f32 %v2723, %v2724
  %v2726 = vpack.c.bf16 %v2725, %v2725
  %2728 = vrot.lane.b32.xlu0 %v2726, 96
  %v2729 = vpop.permute.xlu0 %2728
  %v2731 = vsel %vm120, %v2729, 0
  %2733 = vmatprep.subr.bf16.mxu0 0
  %2734 = vmatpush1.bf16.msra.mxu0 %v92
  %2735 = vmatprep.subr.bf16.mxu0 0
  %2736 = vmatpush1.bf16.msra.mxu0 %v93
  %2737 = vmatprep.subr.bf16.mxu0 0
  %2738 = vmatpush1.bf16.msra.mxu0 0
  %2739 = vmatprep.subr.bf16.mxu0 0
  %2740 = vmatpush1.bf16.msra.mxu0 0
  %2741 = vmatprep.subr.bf16.mxu0 0
  %2742 = vmatpush1.bf16.msra.mxu0 0
  %2743 = vmatprep.subr.bf16.mxu0 0
  %2744 = vmatpush1.bf16.msra.mxu0 0
  %2745 = vmatprep.subr.bf16.mxu0 0
  %2746 = vmatpush1.bf16.msra.mxu0 0
  %2747 = vmatprep.subr.bf16.mxu0 0
  %2748 = vmatpush1.bf16.msra.mxu0 0
  %2749 = vmatprep.subr.bf16.mxu0 0
  %2750 = vmatpush1.bf16.msra.mxu0 0
  %2751 = vmatprep.subr.bf16.mxu0 0
  %2752 = vmatpush1.bf16.msra.mxu0 0
  %2753 = vmatprep.subr.bf16.mxu0 0
  %2754 = vmatpush1.bf16.msra.mxu0 0
  %2755 = vmatprep.subr.bf16.mxu0 0
  %2756 = vmatpush1.bf16.msra.mxu0 0
  %2757 = vmatprep.subr.bf16.mxu0 0
  %2758 = vmatpush1.bf16.msra.mxu0 0
  %2759 = vmatprep.subr.bf16.mxu0 0
  %2760 = vmatpush1.bf16.msra.mxu0 0
  %2761 = vmatprep.subr.bf16.mxu0 0
  %2762 = vmatpush1.bf16.msra.mxu0 0
  %2763 = vmatprep.subr.bf16.mxu0 0
  %2764 = vmatpush1.bf16.msra.mxu0 0
  %2765 = vmatprep.mubr.bf16.mxu0 0
  %2766 = vmatmul.mubr.bf16.gmra.mrb[0].mxu0 %v2731
  %v2767 = vpop.f32.mrb[0].mxu0
  %v2768 = vadd.f32 %v475, %v2767
  %v2769 = vpop.f32.mrb[0].mxu0
  %v2770 = vpop.f32.mrb[0].mxu0
  %v2771 = vpop.f32.mrb[0].mxu0
  %2772 = vdwg.mxu0
  %2773 = vmatprep.subr.bf16.mxu0 0
  %2774 = vmatpush1.bf16.msra.mxu0 %v98
  %2775 = vmatprep.subr.bf16.mxu0 0
  %2776 = vmatpush1.bf16.msra.mxu0 %v99
  %2777 = vmatprep.subr.bf16.mxu0 0
  %2778 = vmatpush1.bf16.msra.mxu0 0
  %2779 = vmatprep.subr.bf16.mxu0 0
  %2780 = vmatpush1.bf16.msra.mxu0 0
  %2781 = vmatprep.subr.bf16.mxu0 0
  %2782 = vmatpush1.bf16.msra.mxu0 0
  %2783 = vmatprep.subr.bf16.mxu0 0
  %2784 = vmatpush1.bf16.msra.mxu0 0
  %2785 = vmatprep.subr.bf16.mxu0 0
  %2786 = vmatpush1.bf16.msra.mxu0 0
  %2787 = vmatprep.subr.bf16.mxu0 0
  %2788 = vmatpush1.bf16.msra.mxu0 0
  %2789 = vmatprep.subr.bf16.mxu0 0
  %2790 = vmatpush1.bf16.msra.mxu0 0
  %2791 = vmatprep.subr.bf16.mxu0 0
  %2792 = vmatpush1.bf16.msra.mxu0 0
  %2793 = vmatprep.subr.bf16.mxu0 0
  %2794 = vmatpush1.bf16.msra.mxu0 0
  %2795 = vmatprep.subr.bf16.mxu0 0
  %2796 = vmatpush1.bf16.msra.mxu0 0
  %2797 = vmatprep.subr.bf16.mxu0 0
  %2798 = vmatpush1.bf16.msra.mxu0 0
  %2799 = vmatprep.subr.bf16.mxu0 0
  %2800 = vmatpush1.bf16.msra.mxu0 0
  %2801 = vmatprep.subr.bf16.mxu0 0
  %2802 = vmatpush1.bf16.msra.mxu0 0
  %2803 = vmatprep.subr.bf16.mxu0 0
  %2804 = vmatpush1.bf16.msra.mxu0 0
  %2805 = vmatprep.mubr.bf16.mxu0 0
  %2806 = vmatmul.mubr.bf16.gmra.mrb[0].mxu0 %v2401
  %v2807 = vpop.f32.mrb[0].mxu0
  %v2808 = vadd.f32 %v527, %v2807
  %v2809 = vpop.f32.mrb[0].mxu0
  %v2810 = vpop.f32.mrb[0].mxu0
  %v2811 = vpop.f32.mrb[0].mxu0
  %2812 = vdwg.mxu0
  %v2813 = vadd.f32 %v2768, %v2808
  %v2814 = vxor.u32 %v2813, 2147483648
  %v2815 = vmul.f32 %v2814, 1.442695
  %v2816 = vpow.pop %v2815
  %v2817 = vadd.f32 %v2816, 1.0
  %v2818 = vrcp.pop %v2817
  %v2819 = vmul.f32 1.0, %v2818
  %2821 = vrot.lane.b32.xlu0 %v2808, 64
  %v2822 = vpop.permute.xlu0 %2821
  %v2824 = vmul.f32 %v2819, %v2822
  %2826 = vrot.lane.b32.xlu0 %v2824, 64
  %v2827 = vpop.permute.xlu0 %2826
  %v2829 = vadd.f32 %v2768, %v2827
  %v2830 = vtanh.pop %v2829
  %v2831 = vsub.f32 1.0, %v2819
  %2833 = vrot.lane.b32.xlu0 %v2830, 96
  %v2834 = vpop.permute.xlu0 %2833
  %v2836 = vmul.f32 %v2831, %v2834
  %v2837 = vmul.f32 %v2819, %v2389
  %v2838 = vadd.f32 %v2836, %v2837
  %2840 = vrot.lane.b32.xlu0 %v2838, 96
  %v2841 = vpop.permute.xlu0 %2840
  %s2843 = scalar_lea.vmem %s16, 10
  %2844 = vst.msk [vmem:[%s2843] sm:$0x3] %vm186, %v2841
  // Predicated region
  $region66: #{seq2seq_forward.11} parent=0 // pred_check
    _
  $region67: #{seq2seq_forward.11} parent=0 // pred_check_branch
    %2846 = sbr.rel (0) target = $region69
  $region68: #{seq2seq_forward.11} parent=0 // pred_region
    _
  $region69: #{seq2seq_forward.11} parent=0 // pred_fallthru
    _
  // Predicated region
  $region70: #{seq2seq_forward.11} parent=0 // pred_check
    _
  $region71: #{seq2seq_forward.11} parent=0 // pred_check_branch
    %2848 = sbr.rel (0) target = $region73
  $region72: #{seq2seq_forward.11} parent=0 // pred_region
    _
  $region73: #{seq2seq_forward.11} parent=0 // pred_fallthru
    _

</llo_original>
